<compile_context>
chip_gen: v7x
topology: tpu7x:2x2x1
jax: 0.10.0
libtpu: 0.0.40
codegen_flags: <defaults>
</compile_context>

<pallas_src>
import math

import jax
import jax.numpy as jnp
from jax import lax
from jax.experimental import pallas as pl
from jax.experimental.pallas import tpu as pltpu

LEAKY_SLOPE = 0.01  # F.leaky_relu default


def _leaky_relu(x):
    return jnp.where(x >= 0, x, LEAKY_SLOPE * x)


def _gate_update(gates, c, H):
    # PyTorch gate order: i, f, g, o
    i = jax.nn.sigmoid(gates[:, 0 * H:1 * H])
    f = jax.nn.sigmoid(gates[:, 1 * H:2 * H])
    g = jnp.tanh(gates[:, 2 * H:3 * H])
    o = jax.nn.sigmoid(gates[:, 3 * H:4 * H])
    c_new = f * c + i * g
    h_new = o * jnp.tanh(c_new)
    return h_new, c_new


# ----------------------------------------------------------------------------
# Fused Seq2Seq kernel (single invocation, no grid; everything VMEM-resident)
# ----------------------------------------------------------------------------
def seq2seq_fused_kernel(
    x_ref,                                            # (T*Bp, D) encoder input, batch padded to Bp
    ew1_ref, eu1_ref, eb1_ref, eh1_ref, ec1_ref,      # enc layer 1: (D,4H1)(H1,4H1)(1,4H1)(Bp,H1)(Bp,H1)
    ew2_ref, eu2_ref, eb2_ref, eh2_ref, ec2_ref,      # enc layer 2
    ew3_ref, eu3_ref, eb3_ref, eh3_ref, ec3_ref,      # enc layer 3
    efw_ref, efb_ref,                                 # Seq2Seq.fc as a row: (1,H3),(1,1)
    dw1_ref, du1_ref, db1_ref,                        # dec layer 1: (1,4H1)(H1,4H1)(1,4H1)
    dw2_ref, du2_ref, db2_ref,                        # dec layer 2
    dw3_ref, du3_ref, db3_ref,                        # dec layer 3
    dfw_ref, dfb_ref,                                 # decoder fc as a row: (1,H3),(1,1)
    out_ref,                                          # (horizon, Bp, 1)
    xg_sc,                                            # VMEM scratch (T*Bp, 4H1)
):
    f32 = jnp.float32
    Bp = eh1_ref.shape[0]
    H1 = eu1_ref.shape[0]
    H2 = eu2_ref.shape[0]
    H3 = eu3_ref.shape[0]
    T = x_ref.shape[0] // Bp
    horizon = out_ref.shape[0]

    # ---------------- encoder ----------------
    # One big GEMM for the layer-1 input projection across the whole sequence
    # instead of T tiny (Bp, D) x (D, 4H1) matmuls.
    xg_sc[...] = jnp.dot(x_ref[...], ew1_ref[...], preferred_element_type=f32)

    # Hoist weight loads out of the recurrence loops (VMEM-resident values).
    eu1 = eu1_ref[...]; eb1 = eb1_ref[...]
    ew2 = ew2_ref[...]; eu2 = eu2_ref[...]; eb2 = eb2_ref[...]
    ew3 = ew3_ref[...]; eu3 = eu3_ref[...]; eb3 = eb3_ref[...]

    def enc_step(t, carry):
        h1, c1, h2, c2, h3, c3 = carry
        row = pl.multiple_of(t * Bp, Bp)          # 8-aligned sublane slice
        g1 = (xg_sc[pl.ds(row, Bp), :]
              + jnp.dot(h1, eu1, preferred_element_type=f32) + eb1)
        h1, c1 = _gate_update(g1, c1, H1)
        # dropout p=0 -> identity between stacked layers
        g2 = (jnp.dot(h1, ew2, preferred_element_type=f32)
              + jnp.dot(h2, eu2, preferred_element_type=f32) + eb2)
        h2, c2 = _gate_update(g2, c2, H2)
        g3 = (jnp.dot(h2, ew3, preferred_element_type=f32)
              + jnp.dot(h3, eu3, preferred_element_type=f32) + eb3)
        h3, c3 = _gate_update(g3, c3, H3)
        return (h1, c1, h2, c2, h3, c3)

    carry0 = (eh1_ref[...], ec1_ref[...], eh2_ref[...], ec2_ref[...],
              eh3_ref[...], ec3_ref[...])
    h1, c1, h2, c2, h3, c3 = lax.fori_loop(0, T, enc_step, carry0, unroll=True)

    # output = leaky_relu(fc(enc_output[-1])), enc_output[-1] == last h3.
    # N=1 projection as VPU multiply + lane reduction (no MXU rank-1 matmul).
    out = _leaky_relu(jnp.sum(h3 * efw_ref[...], axis=-1, keepdims=True)
                      + efb_ref[...])

    # ---------------- decoder (autoregressive horizon loop) ----------------
    dw1 = dw1_ref[...]; du1 = du1_ref[...]; db1 = db1_ref[...]
    dw2 = dw2_ref[...]; du2 = du2_ref[...]; db2 = db2_ref[...]
    dw3 = dw3_ref[...]; du3 = du3_ref[...]; db3 = db3_ref[...]
    dfw = dfw_ref[...]; dfb = dfb_ref[...]

    def dec_step(t, carry):
        y, h1, c1, h2, c2, h3, c3 = carry
        if dw1.shape[0] == 1:
            gx = y * dw1          # K=1 input projection: VPU broadcast multiply
        else:
            gx = jnp.dot(y, dw1, preferred_element_type=f32)
        g1 = gx + jnp.dot(h1, du1, preferred_element_type=f32) + db1
        h1, c1 = _gate_update(g1, c1, H1)
        g2 = (jnp.dot(h1, dw2, preferred_element_type=f32)
              + jnp.dot(h2, du2, preferred_element_type=f32) + db2)
        h2, c2 = _gate_update(g2, c2, H2)
        g3 = (jnp.dot(h2, dw3, preferred_element_type=f32)
              + jnp.dot(h3, du3, preferred_element_type=f32) + db3)
        h3, c3 = _gate_update(g3, c3, H3)
        y = _leaky_relu(jnp.sum(h3 * dfw, axis=-1, keepdims=True) + dfb)
        out_ref[t] = y            # (Bp, 1) block at dynamic leading index
        return (y, h1, c1, h2, c2, h3, c3)

    lax.fori_loop(0, horizon, dec_step, (out, h1, c1, h2, c2, h3, c3),
                  unroll=True)


# ----------------------------------------------------------------------------
# Wrapper: batch padding, argument packing, single pallas_call
# ----------------------------------------------------------------------------
def _round_up(x, m):
    return ((x + m - 1) // m) * m


def seq2seq_forward(params, X, horizon):
    T, B, D = X.shape
    Bp = max(8, _round_up(B, 8))      # pad batch to full sublane groups
    pad = Bp - B
    if pad:
        X = jnp.pad(X, ((0, 0), (0, pad), (0, 0)))

    def pad_rows(a):
        return jnp.pad(a, ((0, pad), (0, 0))) if pad else a

    Xf = X.reshape(T * Bp, D)         # free metadata reshape in XLA

    enc = params["enc_layers"]
    dec = params["dec_layers"]
    H1 = enc[0]["whh_t"].shape[0]

    args = [Xf]
    for lp in enc:
        args += [lp["wih_t"], lp["whh_t"], lp["b"],
                 pad_rows(lp["h0"]), pad_rows(lp["c0"])]
    args += [params["fc_w_row"], params["fc_b"]]
    for lp in dec:
        args += [lp["wih_t"], lp["whh_t"], lp["b"]]
    args += [params["dec_fc_w_row"], params["dec_fc_b"]]

    out = pl.pallas_call(
        seq2seq_fused_kernel,
        out_shape=jax.ShapeDtypeStruct((horizon, Bp, 1), jnp.float32),
        scratch_shapes=[pltpu.VMEM((T * Bp, 4 * H1), jnp.float32)],
    )(*args)
    return out[:, :B, 0]              # (horizon, B), drop padded batch rows


# ----------------------------------------------------------------------------
# Pure-JAX reference (same math, scan/loops)
# ----------------------------------------------------------------------------
def _lstm_cell_ref(x, h, c, wih_t, whh_t, b):
    gates = jnp.dot(x, wih_t) + jnp.dot(h, whh_t) + b
    return _gate_update(gates, c, h.shape[-1])


def seq2seq_forward_ref(params, X, horizon):
    def lstm_layer(x_seq, lp):
        def step(carry, xt):
            h, c = _lstm_cell_ref(xt, carry[0], carry[1],
                                  lp["wih_t"], lp["whh_t"], lp["b"])
            return (h, c), h
        (hT, cT), ys = lax.scan(step, (lp["h0"], lp["c0"]), x_seq)
        return ys, hT, cT

    y = X
    hn = []
    for lp in params["enc_layers"]:
        y, hT, cT = lstm_layer(y, lp)
        hn.append((hT, cT))
    out = _leaky_relu(jnp.sum(y[-1] * params["fc_w_row"], axis=-1, keepdims=True)
                      + params["fc_b"])
    outputs = []
    for _ in range(horizon):
        h_in = out
        new_hn = []
        for lp, (h, c) in zip(params["dec_layers"], hn):
            h, c = _lstm_cell_ref(h_in, h, c, lp["wih_t"], lp["whh_t"], lp["b"])
            new_hn.append((h, c))
            h_in = h
        out = _leaky_relu(jnp.sum(h_in * params["dec_fc_w_row"], axis=-1,
                                  keepdims=True) + params["dec_fc_b"])
        hn = new_hn
        outputs.append(out[:, 0])
    return jnp.stack(outputs, axis=0)


# ----------------------------------------------------------------------------
# Deterministic parameter init (PyTorch-style uniform(-1/sqrt(H), 1/sqrt(H)))
# ----------------------------------------------------------------------------
def _lstm_params(key, in_dim, hidden):
    k = 1.0 / math.sqrt(hidden)
    k1, k2, k3, k4 = jax.random.split(key, 4)
    wih = jax.random.uniform(k1, (4 * hidden, in_dim), jnp.float32, -k, k)
    whh = jax.random.uniform(k2, (4 * hidden, hidden), jnp.float32, -k, k)
    bih = jax.random.uniform(k3, (4 * hidden,), jnp.float32, -k, k)
    bhh = jax.random.uniform(k4, (4 * hidden,), jnp.float32, -k, k)
    return {
        "wih_t": jnp.transpose(wih),                 # (in_dim, 4H)
        "whh_t": jnp.transpose(whh),                 # (H, 4H)
        "b": (bih + bhh).reshape(1, 4 * hidden),     # (1, 4H)
    }


def init_params(key, enc_input_dim, hidden_dim, dec_input_dim, batch_size):
    H1, H2, H3 = hidden_dim[1], hidden_dim[2], hidden_dim[3]
    keys = jax.random.split(key, 16)

    enc_dims = [(enc_input_dim, H1), (H1, H2), (H2, H3)]
    enc_layers = []
    for li, (din, h) in enumerate(enc_dims):
        lp = _lstm_params(keys[li], din, h)
        kh, kc = jax.random.split(keys[3 + li])
        std = math.sqrt(2.0 / h)   # kaiming-normal-style deterministic init states
        lp["h0"] = std * jax.random.normal(kh, (batch_size, h), jnp.float32)
        lp["c0"] = std * jax.random.normal(kc, (batch_size, h), jnp.float32)
        enc_layers.append(lp)

    dec_dims = [(dec_input_dim, H1), (H1, H2), (H2, H3)]
    dec_layers = [_lstm_params(keys[6 + li], din, h)
                  for li, (din, h) in enumerate(dec_dims)]

    kf = 1.0 / math.sqrt(H3)
    fc_w_row = jax.random.uniform(keys[9], (1, H3), jnp.float32, -kf, kf)
    fc_b = jax.random.uniform(keys[10], (1, 1), jnp.float32, -kf, kf)
    dec_fc_w_row = jax.random.uniform(keys[11], (1, H3), jnp.float32, -kf, kf)
    dec_fc_b = jax.random.uniform(keys[12], (1, 1), jnp.float32, -kf, kf)

    return {
        "enc_layers": enc_layers,
        "dec_layers": dec_layers,
        "fc_w_row": fc_w_row, "fc_b": fc_b,
        "dec_fc_w_row": dec_fc_w_row, "dec_fc_b": dec_fc_b,
    }


if __name__ == "__main__":
    B = 2                 # batch_size
    T_ENC = 8             # encoder sequence length
    HORIZON = 5           # y.shape[0]
    ENC_INPUT_DIM = 16    # encoder feature dim
    HIDDEN_DIM = [3, 16, 24, 32]
    DEC_INPUT_DIM = 1     # decoder feeds back its scalar prediction

    key = jax.random.PRNGKey(0)
    kx, ky, kp = jax.random.split(key, 3)
    X = jax.random.normal(kx, (T_ENC, B, ENC_INPUT_DIM), jnp.float32)
    y = jax.random.normal(ky, (HORIZON, B), jnp.float32)  # only shapes matter

    params = init_params(kp, ENC_INPUT_DIM, HIDDEN_DIM, DEC_INPUT_DIM, B)

    fwd = jax.jit(seq2seq_forward, static_argnums=(2,))
    out = jax.block_until_ready(fwd(params, X, HORIZON))
    assert out.shape == (HORIZON, B)

    ref = seq2seq_forward_ref(params, X, HORIZON)
    assert jnp.allclose(out, ref, rtol=1e-3, atol=1e-3), \
        "Pallas output mismatch vs JAX reference"

    # TODO(synk): teacher-forcing branch and traffic_sig concat path not exercised
    # (teacher_forcing_ratio=0, traffic_sig=None in this synthetic setup).
    print("KERNEL_OK")
</pallas_src>

<mosaic_0001>
module attributes {stable_mosaic.version = 11 : i64} {
  func.func @seq2seq_fused_kernel(%arg0: memref<64x16xf32, #tpu.memory_space<vmem>>, %arg1: memref<16x64xf32, #tpu.memory_space<vmem>>, %arg2: memref<16x64xf32, #tpu.memory_space<vmem>>, %arg3: memref<1x64xf32, #tpu.memory_space<vmem>>, %arg4: memref<8x16xf32, #tpu.memory_space<vmem>>, %arg5: memref<8x16xf32, #tpu.memory_space<vmem>>, %arg6: memref<16x96xf32, #tpu.memory_space<vmem>>, %arg7: memref<24x96xf32, #tpu.memory_space<vmem>>, %arg8: memref<1x96xf32, #tpu.memory_space<vmem>>, %arg9: memref<8x24xf32, #tpu.memory_space<vmem>>, %arg10: memref<8x24xf32, #tpu.memory_space<vmem>>, %arg11: memref<24x128xf32, #tpu.memory_space<vmem>>, %arg12: memref<32x128xf32, #tpu.memory_space<vmem>>, %arg13: memref<1x128xf32, #tpu.memory_space<vmem>>, %arg14: memref<8x32xf32, #tpu.memory_space<vmem>>, %arg15: memref<8x32xf32, #tpu.memory_space<vmem>>, %arg16: memref<1x32xf32, #tpu.memory_space<vmem>>, %arg17: memref<1x1xf32, #tpu.memory_space<vmem>>, %arg18: memref<1x64xf32, #tpu.memory_space<vmem>>, %arg19: memref<16x64xf32, #tpu.memory_space<vmem>>, %arg20: memref<1x64xf32, #tpu.memory_space<vmem>>, %arg21: memref<16x96xf32, #tpu.memory_space<vmem>>, %arg22: memref<24x96xf32, #tpu.memory_space<vmem>>, %arg23: memref<1x96xf32, #tpu.memory_space<vmem>>, %arg24: memref<24x128xf32, #tpu.memory_space<vmem>>, %arg25: memref<32x128xf32, #tpu.memory_space<vmem>>, %arg26: memref<1x128xf32, #tpu.memory_space<vmem>>, %arg27: memref<1x32xf32, #tpu.memory_space<vmem>>, %arg28: memref<1x1xf32, #tpu.memory_space<vmem>>, %arg29: memref<5x8x1xf32, #tpu.memory_space<vmem>>, %arg30: memref<64x64xf32, #tpu.memory_space<vmem>>) attributes {dimension_semantics = [], scalar_prefetch = 0 : i64, scratch_operands = 1 : i64, tpu.core_type = #tpu.core_type<tc>} {
    %c0 = arith.constant 0 : index
    %c0_0 = arith.constant 0 : index
    %0 = vector.load %arg0[%c0, %c0_0] : memref<64x16xf32, #tpu.memory_space<vmem>>, vector<64x16xf32>
    %c0_1 = arith.constant 0 : index
    %c0_2 = arith.constant 0 : index
    %1 = vector.load %arg1[%c0_1, %c0_2] : memref<16x64xf32, #tpu.memory_space<vmem>>, vector<16x64xf32>
    %cst = arith.constant dense<0.000000e+00> : vector<64x64xf32>
    %2 = tpu.matmul %0, %1, %cst {dimension_numbers = #tpu.dot_dimension_numbers<[1], [0], [0], [1], [0, 0, 1, 1], [], []>} : vector<64x16xf32>, vector<16x64xf32>, vector<64x64xf32> -> vector<64x64xf32>
    %c0_3 = arith.constant 0 : index
    %c0_4 = arith.constant 0 : index
    %3 = vector.load %arg30[%c0_3, %c0_4] : memref<64x64xf32, #tpu.memory_space<vmem>>, vector<64x64xf32>
    tpu.vector_store %arg30[%c0_3, %c0_4], %2 {strides = array<i32>} : memref<64x64xf32, #tpu.memory_space<vmem>>, vector<64x64xf32>,
    %c0_5 = arith.constant 0 : index
    %c0_6 = arith.constant 0 : index
    %4 = vector.load %arg2[%c0_5, %c0_6] : memref<16x64xf32, #tpu.memory_space<vmem>>, vector<16x64xf32>
    %c0_7 = arith.constant 0 : index
    %c0_8 = arith.constant 0 : index
    %5 = vector.load %arg3[%c0_7, %c0_8] : memref<1x64xf32, #tpu.memory_space<vmem>>, vector<1x64xf32>
    %c0_9 = arith.constant 0 : index
    %c0_10 = arith.constant 0 : index
    %6 = vector.load %arg6[%c0_9, %c0_10] : memref<16x96xf32, #tpu.memory_space<vmem>>, vector<16x96xf32>
    %c0_11 = arith.constant 0 : index
    %c0_12 = arith.constant 0 : index
    %7 = vector.load %arg7[%c0_11, %c0_12] : memref<24x96xf32, #tpu.memory_space<vmem>>, vector<24x96xf32>
    %c0_13 = arith.constant 0 : index
    %c0_14 = arith.constant 0 : index
    %8 = vector.load %arg8[%c0_13, %c0_14] : memref<1x96xf32, #tpu.memory_space<vmem>>, vector<1x96xf32>
    %c0_15 = arith.constant 0 : index
    %c0_16 = arith.constant 0 : index
    %9 = vector.load %arg11[%c0_15, %c0_16] : memref<24x128xf32, #tpu.memory_space<vmem>>, vector<24x128xf32>
    %c0_17 = arith.constant 0 : index
    %c0_18 = arith.constant 0 : index
    %10 = vector.load %arg12[%c0_17, %c0_18] : memref<32x128xf32, #tpu.memory_space<vmem>>, vector<32x128xf32>
    %c0_19 = arith.constant 0 : index
    %c0_20 = arith.constant 0 : index
    %11 = vector.load %arg13[%c0_19, %c0_20] : memref<1x128xf32, #tpu.memory_space<vmem>>, vector<1x128xf32>
    %c0_21 = arith.constant 0 : index
    %c0_22 = arith.constant 0 : index
    %12 = vector.load %arg4[%c0_21, %c0_22] : memref<8x16xf32, #tpu.memory_space<vmem>>, vector<8x16xf32>
    %c0_23 = arith.constant 0 : index
    %c0_24 = arith.constant 0 : index
    %13 = vector.load %arg5[%c0_23, %c0_24] : memref<8x16xf32, #tpu.memory_space<vmem>>, vector<8x16xf32>
    %c0_25 = arith.constant 0 : index
    %c0_26 = arith.constant 0 : index
    %14 = vector.load %arg9[%c0_25, %c0_26] : memref<8x24xf32, #tpu.memory_space<vmem>>, vector<8x24xf32>
    %c0_27 = arith.constant 0 : index
    %c0_28 = arith.constant 0 : index
    %15 = vector.load %arg10[%c0_27, %c0_28] : memref<8x24xf32, #tpu.memory_space<vmem>>, vector<8x24xf32>
    %c0_29 = arith.constant 0 : index
    %c0_30 = arith.constant 0 : index
    %16 = vector.load %arg14[%c0_29, %c0_30] : memref<8x32xf32, #tpu.memory_space<vmem>>, vector<8x32xf32>
    %c0_31 = arith.constant 0 : index
    %c0_32 = arith.constant 0 : index
    %17 = vector.load %arg15[%c0_31, %c0_32] : memref<8x32xf32, #tpu.memory_space<vmem>>, vector<8x32xf32>
    %c0_i32 = arith.constant 0 : i32
    %c8_i32 = arith.constant 8 : i32
    %18 = arith.muli %c0_i32, %c8_i32 : i32
    %19 = tpu.assume_multiple %18, 8 : i32
    %20 = arith.index_cast %19 : i32 to index
    %c0_33 = arith.constant 0 : index
    %21 = vector.load %arg30[%20, %c0_33] : memref<64x64xf32, #tpu.memory_space<vmem>>, vector<8x64xf32>
    %cst_34 = arith.constant dense<0.000000e+00> : vector<8x64xf32>
    %22 = tpu.matmul %12, %4, %cst_34 {dimension_numbers = #tpu.dot_dimension_numbers<[1], [0], [0], [1], [0, 0, 1, 1], [], []>} : vector<8x16xf32>, vector<16x64xf32>, vector<8x64xf32> -> vector<8x64xf32>
    %23 = arith.addf %21, %22 : vector<8x64xf32>
    %24 = vector.broadcast %5 : vector<1x64xf32> to vector<8x64xf32>
    %25 = arith.addf %23, %24 : vector<8x64xf32>
    %26 = vector.extract_strided_slice %25 {offsets = [0, 0], sizes = [8, 16], strides = [1, 1]} : vector<8x64xf32> to vector<8x16xf32>
    %27 = arith.negf %26 : vector<8x16xf32>
    %28 = math.exp %27 : vector<8x16xf32>
    %cst_35 = arith.constant 1.000000e+00 : f32
    %29 = vector.broadcast %cst_35 : f32 to vector<8x16xf32>
    %30 = arith.addf %29, %28 : vector<8x16xf32>
    %31 = arith.divf %29, %30 : vector<8x16xf32>
    %32 = vector.extract_strided_slice %25 {offsets = [0, 16], sizes = [8, 16], strides = [1, 1]} : vector<8x64xf32> to vector<8x16xf32>
    %33 = arith.negf %32 : vector<8x16xf32>
    %34 = math.exp %33 : vector<8x16xf32>
    %cst_36 = arith.constant 1.000000e+00 : f32
    %35 = vector.broadcast %cst_36 : f32 to vector<8x16xf32>
    %36 = arith.addf %35, %34 : vector<8x16xf32>
    %37 = arith.divf %35, %36 : vector<8x16xf32>
    %38 = vector.extract_strided_slice %25 {offsets = [0, 32], sizes = [8, 16], strides = [1, 1]} : vector<8x64xf32> to vector<8x16xf32>
    %39 = math.tanh %38 : vector<8x16xf32>
    %40 = vector.extract_strided_slice %25 {offsets = [0, 48], sizes = [8, 16], strides = [1, 1]} : vector<8x64xf32> to vector<8x16xf32>
    %41 = arith.negf %40 : vector<8x16xf32>
    %42 = math.exp %41 : vector<8x16xf32>
    %cst_37 = arith.constant 1.000000e+00 : f32
    %43 = vector.broadcast %cst_37 : f32 to vector<8x16xf32>
    %44 = arith.addf %43, %42 : vector<8x16xf32>
    %45 = arith.divf %43, %44 : vector<8x16xf32>
    %46 = arith.mulf %37, %13 : vector<8x16xf32>
    %47 = arith.mulf %31, %39 : vector<8x16xf32>
    %48 = arith.addf %46, %47 : vector<8x16xf32>
    %49 = math.tanh %48 : vector<8x16xf32>
    %50 = arith.mulf %45, %49 : vector<8x16xf32>
    %cst_38 = arith.constant dense<0.000000e+00> : vector<8x96xf32>
    %51 = tpu.matmul %50, %6, %cst_38 {dimension_numbers = #tpu.dot_dimension_numbers<[1], [0], [0], [1], [0, 0, 1, 1], [], []>} : vector<8x16xf32>, vector<16x96xf32>, vector<8x96xf32> -> vector<8x96xf32>
    %cst_39 = arith.constant dense<0.000000e+00> : vector<8x96xf32>
    %52 = tpu.matmul %14, %7, %cst_39 {dimension_numbers = #tpu.dot_dimension_numbers<[1], [0], [0], [1], [0, 0, 1, 1], [], []>} : vector<8x24xf32>, vector<24x96xf32>, vector<8x96xf32> -> vector<8x96xf32>
    %53 = arith.addf %51, %52 : vector<8x96xf32>
    %54 = vector.broadcast %8 : vector<1x96xf32> to vector<8x96xf32>
    %55 = arith.addf %53, %54 : vector<8x96xf32>
    %56 = vector.extract_strided_slice %55 {offsets = [0, 0], sizes = [8, 24], strides = [1, 1]} : vector<8x96xf32> to vector<8x24xf32>
    %57 = arith.negf %56 : vector<8x24xf32>
    %58 = math.exp %57 : vector<8x24xf32>
    %cst_40 = arith.constant 1.000000e+00 : f32
    %59 = vector.broadcast %cst_40 : f32 to vector<8x24xf32>
    %60 = arith.addf %59, %58 : vector<8x24xf32>
    %61 = arith.divf %59, %60 : vector<8x24xf32>
    %62 = vector.extract_strided_slice %55 {offsets = [0, 24], sizes = [8, 24], strides = [1, 1]} : vector<8x96xf32> to vector<8x24xf32>
    %63 = arith.negf %62 : vector<8x24xf32>
    %64 = math.exp %63 : vector<8x24xf32>
    %cst_41 = arith.constant 1.000000e+00 : f32
    %65 = vector.broadcast %cst_41 : f32 to vector<8x24xf32>
    %66 = arith.addf %65, %64 : vector<8x24xf32>
    %67 = arith.divf %65, %66 : vector<8x24xf32>
    %68 = vector.extract_strided_slice %55 {offsets = [0, 48], sizes = [8, 24], strides = [1, 1]} : vector<8x96xf32> to vector<8x24xf32>
    %69 = math.tanh %68 : vector<8x24xf32>
    %70 = vector.extract_strided_slice %55 {offsets = [0, 72], sizes = [8, 24], strides = [1, 1]} : vector<8x96xf32> to vector<8x24xf32>
    %71 = arith.negf %70 : vector<8x24xf32>
    %72 = math.exp %71 : vector<8x24xf32>
    %cst_42 = arith.constant 1.000000e+00 : f32
    %73 = vector.broadcast %cst_42 : f32 to vector<8x24xf32>
    %74 = arith.addf %73, %72 : vector<8x24xf32>
    %75 = arith.divf %73, %74 : vector<8x24xf32>
    %76 = arith.mulf %67, %15 : vector<8x24xf32>
    %77 = arith.mulf %61, %69 : vector<8x24xf32>
    %78 = arith.addf %76, %77 : vector<8x24xf32>
    %79 = math.tanh %78 : vector<8x24xf32>
    %80 = arith.mulf %75, %79 : vector<8x24xf32>
    %cst_43 = arith.constant dense<0.000000e+00> : vector<8x128xf32>
    %81 = tpu.matmul %80, %9, %cst_43 {dimension_numbers = #tpu.dot_dimension_numbers<[1], [0], [0], [1], [0, 0, 1, 1], [], []>} : vector<8x24xf32>, vector<24x128xf32>, vector<8x128xf32> -> vector<8x128xf32>
    %cst_44 = arith.constant dense<0.000000e+00> : vector<8x128xf32>
    %82 = tpu.matmul %16, %10, %cst_44 {dimension_numbers = #tpu.dot_dimension_numbers<[1], [0], [0], [1], [0, 0, 1, 1], [], []>} : vector<8x32xf32>, vector<32x128xf32>, vector<8x128xf32> -> vector<8x128xf32>
    %83 = arith.addf %81, %82 : vector<8x128xf32>
    %84 = vector.broadcast %11 : vector<1x128xf32> to vector<8x128xf32>
    %85 = arith.addf %83, %84 : vector<8x128xf32>
    %86 = vector.extract_strided_slice %85 {offsets = [0, 0], sizes = [8, 32], strides = [1, 1]} : vector<8x128xf32> to vector<8x32xf32>
    %87 = arith.negf %86 : vector<8x32xf32>
    %88 = math.exp %87 : vector<8x32xf32>
    %cst_45 = arith.constant 1.000000e+00 : f32
    %89 = vector.broadcast %cst_45 : f32 to vector<8x32xf32>
    %90 = arith.addf %89, %88 : vector<8x32xf32>
    %91 = arith.divf %89, %90 : vector<8x32xf32>
    %92 = vector.extract_strided_slice %85 {offsets = [0, 32], sizes = [8, 32], strides = [1, 1]} : vector<8x128xf32> to vector<8x32xf32>
    %93 = arith.negf %92 : vector<8x32xf32>
    %94 = math.exp %93 : vector<8x32xf32>
    %cst_46 = arith.constant 1.000000e+00 : f32
    %95 = vector.broadcast %cst_46 : f32 to vector<8x32xf32>
    %96 = arith.addf %95, %94 : vector<8x32xf32>
    %97 = arith.divf %95, %96 : vector<8x32xf32>
    %98 = vector.extract_strided_slice %85 {offsets = [0, 64], sizes = [8, 32], strides = [1, 1]} : vector<8x128xf32> to vector<8x32xf32>
    %99 = math.tanh %98 : vector<8x32xf32>
    %100 = vector.extract_strided_slice %85 {offsets = [0, 96], sizes = [8, 32], strides = [1, 1]} : vector<8x128xf32> to vector<8x32xf32>
    %101 = arith.negf %100 : vector<8x32xf32>
    %102 = math.exp %101 : vector<8x32xf32>
    %cst_47 = arith.constant 1.000000e+00 : f32
    %103 = vector.broadcast %cst_47 : f32 to vector<8x32xf32>
    %104 = arith.addf %103, %102 : vector<8x32xf32>
    %105 = arith.divf %103, %104 : vector<8x32xf32>
    %106 = arith.mulf %97, %17 : vector<8x32xf32>
    %107 = arith.mulf %91, %99 : vector<8x32xf32>
    %108 = arith.addf %106, %107 : vector<8x32xf32>
    %109 = math.tanh %108 : vector<8x32xf32>
    %110 = arith.mulf %105, %109 : vector<8x32xf32>
    %c1_i32 = arith.constant 1 : i32
    %c8_i32_48 = arith.constant 8 : i32
    %111 = arith.muli %c1_i32, %c8_i32_48 : i32
    %112 = tpu.assume_multiple %111, 8 : i32
    %113 = arith.index_cast %112 : i32 to index
    %c0_49 = arith.constant 0 : index
    %114 = vector.load %arg30[%113, %c0_49] : memref<64x64xf32, #tpu.memory_space<vmem>>, vector<8x64xf32>
    %cst_50 = arith.constant dense<0.000000e+00> : vector<8x64xf32>
    %115 = tpu.matmul %50, %4, %cst_50 {dimension_numbers = #tpu.dot_dimension_numbers<[1], [0], [0], [1], [0, 0, 1, 1], [], []>} : vector<8x16xf32>, vector<16x64xf32>, vector<8x64xf32> -> vector<8x64xf32>
    %116 = arith.addf %114, %115 : vector<8x64xf32>
    %117 = vector.broadcast %5 : vector<1x64xf32> to vector<8x64xf32>
    %118 = arith.addf %116, %117 : vector<8x64xf32>
    %119 = vector.extract_strided_slice %118 {offsets = [0, 0], sizes = [8, 16], strides = [1, 1]} : vector<8x64xf32> to vector<8x16xf32>
    %120 = arith.negf %119 : vector<8x16xf32>
    %121 = math.exp %120 : vector<8x16xf32>
    %cst_51 = arith.constant 1.000000e+00 : f32
    %122 = vector.broadcast %cst_51 : f32 to vector<8x16xf32>
    %123 = arith.addf %122, %121 : vector<8x16xf32>
    %124 = arith.divf %122, %123 : vector<8x16xf32>
    %125 = vector.extract_strided_slice %118 {offsets = [0, 16], sizes = [8, 16], strides = [1, 1]} : vector<8x64xf32> to vector<8x16xf32>
    %126 = arith.negf %125 : vector<8x16xf32>
    %127 = math.exp %126 : vector<8x16xf32>
    %cst_52 = arith.constant 1.000000e+00 : f32
    %128 = vector.broadcast %cst_52 : f32 to vector<8x16xf32>
    %129 = arith.addf %128, %127 : vector<8x16xf32>
    %130 = arith.divf %128, %129 : vector<8x16xf32>
    %131 = vector.extract_strided_slice %118 {offsets = [0, 32], sizes = [8, 16], strides = [1, 1]} : vector<8x64xf32> to vector<8x16xf32>
    %132 = math.tanh %131 : vector<8x16xf32>
    %133 = vector.extract_strided_slice %118 {offsets = [0, 48], sizes = [8, 16], strides = [1, 1]} : vector<8x64xf32> to vector<8x16xf32>
    %134 = arith.negf %133 : vector<8x16xf32>
    %135 = math.exp %134 : vector<8x16xf32>
    %cst_53 = arith.constant 1.000000e+00 : f32
    %136 = vector.broadcast %cst_53 : f32 to vector<8x16xf32>
    %137 = arith.addf %136, %135 : vector<8x16xf32>
    %138 = arith.divf %136, %137 : vector<8x16xf32>
    %139 = arith.mulf %130, %48 : vector<8x16xf32>
    %140 = arith.mulf %124, %132 : vector<8x16xf32>
    %141 = arith.addf %139, %140 : vector<8x16xf32>
    %142 = math.tanh %141 : vector<8x16xf32>
    %143 = arith.mulf %138, %142 : vector<8x16xf32>
    %cst_54 = arith.constant dense<0.000000e+00> : vector<8x96xf32>
    %144 = tpu.matmul %143, %6, %cst_54 {dimension_numbers = #tpu.dot_dimension_numbers<[1], [0], [0], [1], [0, 0, 1, 1], [], []>} : vector<8x16xf32>, vector<16x96xf32>, vector<8x96xf32> -> vector<8x96xf32>
    %cst_55 = arith.constant dense<0.000000e+00> : vector<8x96xf32>
    %145 = tpu.matmul %80, %7, %cst_55 {dimension_numbers = #tpu.dot_dimension_numbers<[1], [0], [0], [1], [0, 0, 1, 1], [], []>} : vector<8x24xf32>, vector<24x96xf32>, vector<8x96xf32> -> vector<8x96xf32>
    %146 = arith.addf %144, %145 : vector<8x96xf32>
    %147 = vector.broadcast %8 : vector<1x96xf32> to vector<8x96xf32>
    %148 = arith.addf %146, %147 : vector<8x96xf32>
    %149 = vector.extract_strided_slice %148 {offsets = [0, 0], sizes = [8, 24], strides = [1, 1]} : vector<8x96xf32> to vector<8x24xf32>
    %150 = arith.negf %149 : vector<8x24xf32>
    %151 = math.exp %150 : vector<8x24xf32>
    %cst_56 = arith.constant 1.000000e+00 : f32
    %152 = vector.broadcast %cst_56 : f32 to vector<8x24xf32>
    %153 = arith.addf %152, %151 : vector<8x24xf32>
    %154 = arith.divf %152, %153 : vector<8x24xf32>
    %155 = vector.extract_strided_slice %148 {offsets = [0, 24], sizes = [8, 24], strides = [1, 1]} : vector<8x96xf32> to vector<8x24xf32>
    %156 = arith.negf %155 : vector<8x24xf32>
    %157 = math.exp %156 : vector<8x24xf32>
    %cst_57 = arith.constant 1.000000e+00 : f32
    %158 = vector.broadcast %cst_57 : f32 to vector<8x24xf32>
    %159 = arith.addf %158, %157 : vector<8x24xf32>
    %160 = arith.divf %158, %159 : vector<8x24xf32>
    %161 = vector.extract_strided_slice %148 {offsets = [0, 48], sizes = [8, 24], strides = [1, 1]} : vector<8x96xf32> to vector<8x24xf32>
    %162 = math.tanh %161 : vector<8x24xf32>
    %163 = vector.extract_strided_slice %148 {offsets = [0, 72], sizes = [8, 24], strides = [1, 1]} : vector<8x96xf32> to vector<8x24xf32>
    %164 = arith.negf %163 : vector<8x24xf32>
    %165 = math.exp %164 : vector<8x24xf32>
    %cst_58 = arith.constant 1.000000e+00 : f32
    %166 = vector.broadcast %cst_58 : f32 to vector<8x24xf32>
    %167 = arith.addf %166, %165 : vector<8x24xf32>
    %168 = arith.divf %166, %167 : vector<8x24xf32>
    %169 = arith.mulf %160, %78 : vector<8x24xf32>
    %170 = arith.mulf %154, %162 : vector<8x24xf32>
    %171 = arith.addf %169, %170 : vector<8x24xf32>
    %172 = math.tanh %171 : vector<8x24xf32>
    %173 = arith.mulf %168, %172 : vector<8x24xf32>
    %cst_59 = arith.constant dense<0.000000e+00> : vector<8x128xf32>
    %174 = tpu.matmul %173, %9, %cst_59 {dimension_numbers = #tpu.dot_dimension_numbers<[1], [0], [0], [1], [0, 0, 1, 1], [], []>} : vector<8x24xf32>, vector<24x128xf32>, vector<8x128xf32> -> vector<8x128xf32>
    %cst_60 = arith.constant dense<0.000000e+00> : vector<8x128xf32>
    %175 = tpu.matmul %110, %10, %cst_60 {dimension_numbers = #tpu.dot_dimension_numbers<[1], [0], [0], [1], [0, 0, 1, 1], [], []>} : vector<8x32xf32>, vector<32x128xf32>, vector<8x128xf32> -> vector<8x128xf32>
    %176 = arith.addf %174, %175 : vector<8x128xf32>
    %177 = vector.broadcast %11 : vector<1x128xf32> to vector<8x128xf32>
    %178 = arith.addf %176, %177 : vector<8x128xf32>
    %179 = vector.extract_strided_slice %178 {offsets = [0, 0], sizes = [8, 32], strides = [1, 1]} : vector<8x128xf32> to vector<8x32xf32>
    %180 = arith.negf %179 : vector<8x32xf32>
    %181 = math.exp %180 : vector<8x32xf32>
    %cst_61 = arith.constant 1.000000e+00 : f32
    %182 = vector.broadcast %cst_61 : f32 to vector<8x32xf32>
    %183 = arith.addf %182, %181 : vector<8x32xf32>
    %184 = arith.divf %182, %183 : vector<8x32xf32>
    %185 = vector.extract_strided_slice %178 {offsets = [0, 32], sizes = [8, 32], strides = [1, 1]} : vector<8x128xf32> to vector<8x32xf32>
    %186 = arith.negf %185 : vector<8x32xf32>
    %187 = math.exp %186 : vector<8x32xf32>
    %cst_62 = arith.constant 1.000000e+00 : f32
    %188 = vector.broadcast %cst_62 : f32 to vector<8x32xf32>
    %189 = arith.addf %188, %187 : vector<8x32xf32>
    %190 = arith.divf %188, %189 : vector<8x32xf32>
    %191 = vector.extract_strided_slice %178 {offsets = [0, 64], sizes = [8, 32], strides = [1, 1]} : vector<8x128xf32> to vector<8x32xf32>
    %192 = math.tanh %191 : vector<8x32xf32>
    %193 = vector.extract_strided_slice %178 {offsets = [0, 96], sizes = [8, 32], strides = [1, 1]} : vector<8x128xf32> to vector<8x32xf32>
    %194 = arith.negf %193 : vector<8x32xf32>
    %195 = math.exp %194 : vector<8x32xf32>
    %cst_63 = arith.constant 1.000000e+00 : f32
    %196 = vector.broadcast %cst_63 : f32 to vector<8x32xf32>
    %197 = arith.addf %196, %195 : vector<8x32xf32>
    %198 = arith.divf %196, %197 : vector<8x32xf32>
    %199 = arith.mulf %190, %108 : vector<8x32xf32>
    %200 = arith.mulf %184, %192 : vector<8x32xf32>
    %201 = arith.addf %199, %200 : vector<8x32xf32>
    %202 = math.tanh %201 : vector<8x32xf32>
    %203 = arith.mulf %198, %202 : vector<8x32xf32>
    %c2_i32 = arith.constant 2 : i32
    %c8_i32_64 = arith.constant 8 : i32
    %204 = arith.muli %c2_i32, %c8_i32_64 : i32
    %205 = tpu.assume_multiple %204, 8 : i32
    %206 = arith.index_cast %205 : i32 to index
    %c0_65 = arith.constant 0 : index
    %207 = vector.load %arg30[%206, %c0_65] : memref<64x64xf32, #tpu.memory_space<vmem>>, vector<8x64xf32>
    %cst_66 = arith.constant dense<0.000000e+00> : vector<8x64xf32>
    %208 = tpu.matmul %143, %4, %cst_66 {dimension_numbers = #tpu.dot_dimension_numbers<[1], [0], [0], [1], [0, 0, 1, 1], [], []>} : vector<8x16xf32>, vector<16x64xf32>, vector<8x64xf32> -> vector<8x64xf32>
    %209 = arith.addf %207, %208 : vector<8x64xf32>
    %210 = vector.broadcast %5 : vector<1x64xf32> to vector<8x64xf32>
    %211 = arith.addf %209, %210 : vector<8x64xf32>
    %212 = vector.extract_strided_slice %211 {offsets = [0, 0], sizes = [8, 16], strides = [1, 1]} : vector<8x64xf32> to vector<8x16xf32>
    %213 = arith.negf %212 : vector<8x16xf32>
    %214 = math.exp %213 : vector<8x16xf32>
    %cst_67 = arith.constant 1.000000e+00 : f32
    %215 = vector.broadcast %cst_67 : f32 to vector<8x16xf32>
    %216 = arith.addf %215, %214 : vector<8x16xf32>
    %217 = arith.divf %215, %216 : vector<8x16xf32>
    %218 = vector.extract_strided_slice %211 {offsets = [0, 16], sizes = [8, 16], strides = [1, 1]} : vector<8x64xf32> to vector<8x16xf32>
    %219 = arith.negf %218 : vector<8x16xf32>
    %220 = math.exp %219 : vector<8x16xf32>
    %cst_68 = arith.constant 1.000000e+00 : f32
    %221 = vector.broadcast %cst_68 : f32 to vector<8x16xf32>
    %222 = arith.addf %221, %220 : vector<8x16xf32>
    %223 = arith.divf %221, %222 : vector<8x16xf32>
    %224 = vector.extract_strided_slice %211 {offsets = [0, 32], sizes = [8, 16], strides = [1, 1]} : vector<8x64xf32> to vector<8x16xf32>
    %225 = math.tanh %224 : vector<8x16xf32>
    %226 = vector.extract_strided_slice %211 {offsets = [0, 48], sizes = [8, 16], strides = [1, 1]} : vector<8x64xf32> to vector<8x16xf32>
    %227 = arith.negf %226 : vector<8x16xf32>
    %228 = math.exp %227 : vector<8x16xf32>
    %cst_69 = arith.constant 1.000000e+00 : f32
    %229 = vector.broadcast %cst_69 : f32 to vector<8x16xf32>
    %230 = arith.addf %229, %228 : vector<8x16xf32>
    %231 = arith.divf %229, %230 : vector<8x16xf32>
    %232 = arith.mulf %223, %141 : vector<8x16xf32>
    %233 = arith.mulf %217, %225 : vector<8x16xf32>
    %234 = arith.addf %232, %233 : vector<8x16xf32>
    %235 = math.tanh %234 : vector<8x16xf32>
    %236 = arith.mulf %231, %235 : vector<8x16xf32>
    %cst_70 = arith.constant dense<0.000000e+00> : vector<8x96xf32>
    %237 = tpu.matmul %236, %6, %cst_70 {dimension_numbers = #tpu.dot_dimension_numbers<[1], [0], [0], [1], [0, 0, 1, 1], [], []>} : vector<8x16xf32>, vector<16x96xf32>, vector<8x96xf32> -> vector<8x96xf32>
    %cst_71 = arith.constant dense<0.000000e+00> : vector<8x96xf32>
    %238 = tpu.matmul %173, %7, %cst_71 {dimension_numbers = #tpu.dot_dimension_numbers<[1], [0], [0], [1], [0, 0, 1, 1], [], []>} : vector<8x24xf32>, vector<24x96xf32>, vector<8x96xf32> -> vector<8x96xf32>
    %239 = arith.addf %237, %238 : vector<8x96xf32>
    %240 = vector.broadcast %8 : vector<1x96xf32> to vector<8x96xf32>
    %241 = arith.addf %239, %240 : vector<8x96xf32>
    %242 = vector.extract_strided_slice %241 {offsets = [0, 0], sizes = [8, 24], strides = [1, 1]} : vector<8x96xf32> to vector<8x24xf32>
    %243 = arith.negf %242 : vector<8x24xf32>
    %244 = math.exp %243 : vector<8x24xf32>
    %cst_72 = arith.constant 1.000000e+00 : f32
    %245 = vector.broadcast %cst_72 : f32 to vector<8x24xf32>
    %246 = arith.addf %245, %244 : vector<8x24xf32>
    %247 = arith.divf %245, %246 : vector<8x24xf32>
    %248 = vector.extract_strided_slice %241 {offsets = [0, 24], sizes = [8, 24], strides = [1, 1]} : vector<8x96xf32> to vector<8x24xf32>
    %249 = arith.negf %248 : vector<8x24xf32>
    %250 = math.exp %249 : vector<8x24xf32>
    %cst_73 = arith.constant 1.000000e+00 : f32
    %251 = vector.broadcast %cst_73 : f32 to vector<8x24xf32>
    %252 = arith.addf %251, %250 : vector<8x24xf32>
    %253 = arith.divf %251, %252 : vector<8x24xf32>
    %254 = vector.extract_strided_slice %241 {offsets = [0, 48], sizes = [8, 24], strides = [1, 1]} : vector<8x96xf32> to vector<8x24xf32>
    %255 = math.tanh %254 : vector<8x24xf32>
    %256 = vector.extract_strided_slice %241 {offsets = [0, 72], sizes = [8, 24], strides = [1, 1]} : vector<8x96xf32> to vector<8x24xf32>
    %257 = arith.negf %256 : vector<8x24xf32>
    %258 = math.exp %257 : vector<8x24xf32>
    %cst_74 = arith.constant 1.000000e+00 : f32
    %259 = vector.broadcast %cst_74 : f32 to vector<8x24xf32>
    %260 = arith.addf %259, %258 : vector<8x24xf32>
    %261 = arith.divf %259, %260 : vector<8x24xf32>
    %262 = arith.mulf %253, %171 : vector<8x24xf32>
    %263 = arith.mulf %247, %255 : vector<8x24xf32>
    %264 = arith.addf %262, %263 : vector<8x24xf32>
    %265 = math.tanh %264 : vector<8x24xf32>
    %266 = arith.mulf %261, %265 : vector<8x24xf32>
    %cst_75 = arith.constant dense<0.000000e+00> : vector<8x128xf32>
    %267 = tpu.matmul %266, %9, %cst_75 {dimension_numbers = #tpu.dot_dimension_numbers<[1], [0], [0], [1], [0, 0, 1, 1], [], []>} : vector<8x24xf32>, vector<24x128xf32>, vector<8x128xf32> -> vector<8x128xf32>
    %cst_76 = arith.constant dense<0.000000e+00> : vector<8x128xf32>
    %268 = tpu.matmul %203, %10, %cst_76 {dimension_numbers = #tpu.dot_dimension_numbers<[1], [0], [0], [1], [0, 0, 1, 1], [], []>} : vector<8x32xf32>, vector<32x128xf32>, vector<8x128xf32> -> vector<8x128xf32>
    %269 = arith.addf %267, %268 : vector<8x128xf32>
    %270 = vector.broadcast %11 : vector<1x128xf32> to vector<8x128xf32>
    %271 = arith.addf %269, %270 : vector<8x128xf32>
    %272 = vector.extract_strided_slice %271 {offsets = [0, 0], sizes = [8, 32], strides = [1, 1]} : vector<8x128xf32> to vector<8x32xf32>
    %273 = arith.negf %272 : vector<8x32xf32>
    %274 = math.exp %273 : vector<8x32xf32>
    %cst_77 = arith.constant 1.000000e+00 : f32
    %275 = vector.broadcast %cst_77 : f32 to vector<8x32xf32>
    %276 = arith.addf %275, %274 : vector<8x32xf32>
    %277 = arith.divf %275, %276 : vector<8x32xf32>
    %278 = vector.extract_strided_slice %271 {offsets = [0, 32], sizes = [8, 32], strides = [1, 1]} : vector<8x128xf32> to vector<8x32xf32>
    %279 = arith.negf %278 : vector<8x32xf32>
    %280 = math.exp %279 : vector<8x32xf32>
    %cst_78 = arith.constant 1.000000e+00 : f32
    %281 = vector.broadcast %cst_78 : f32 to vector<8x32xf32>
    %282 = arith.addf %281, %280 : vector<8x32xf32>
    %283 = arith.divf %281, %282 : vector<8x32xf32>
    %284 = vector.extract_strided_slice %271 {offsets = [0, 64], sizes = [8, 32], strides = [1, 1]} : vector<8x128xf32> to vector<8x32xf32>
    %285 = math.tanh %284 : vector<8x32xf32>
    %286 = vector.extract_strided_slice %271 {offsets = [0, 96], sizes = [8, 32], strides = [1, 1]} : vector<8x128xf32> to vector<8x32xf32>
    %287 = arith.negf %286 : vector<8x32xf32>
    %288 = math.exp %287 : vector<8x32xf32>
    %cst_79 = arith.constant 1.000000e+00 : f32
    %289 = vector.broadcast %cst_79 : f32 to vector<8x32xf32>
    %290 = arith.addf %289, %288 : vector<8x32xf32>
    %291 = arith.divf %289, %290 : vector<8x32xf32>
    %292 = arith.mulf %283, %201 : vector<8x32xf32>
    %293 = arith.mulf %277, %285 : vector<8x32xf32>
    %294 = arith.addf %292, %293 : vector<8x32xf32>
    %295 = math.tanh %294 : vector<8x32xf32>
    %296 = arith.mulf %291, %295 : vector<8x32xf32>
    %c3_i32 = arith.constant 3 : i32
    %c8_i32_80 = arith.constant 8 : i32
    %297 = arith.muli %c3_i32, %c8_i32_80 : i32
    %298 = tpu.assume_multiple %297, 8 : i32
    %299 = arith.index_cast %298 : i32 to index
    %c0_81 = arith.constant 0 : index
    %300 = vector.load %arg30[%299, %c0_81] : memref<64x64xf32, #tpu.memory_space<vmem>>, vector<8x64xf32>
    %cst_82 = arith.constant dense<0.000000e+00> : vector<8x64xf32>
    %301 = tpu.matmul %236, %4, %cst_82 {dimension_numbers = #tpu.dot_dimension_numbers<[1], [0], [0], [1], [0, 0, 1, 1], [], []>} : vector<8x16xf32>, vector<16x64xf32>, vector<8x64xf32> -> vector<8x64xf32>
    %302 = arith.addf %300, %301 : vector<8x64xf32>
    %303 = vector.broadcast %5 : vector<1x64xf32> to vector<8x64xf32>
    %304 = arith.addf %302, %303 : vector<8x64xf32>
    %305 = vector.extract_strided_slice %304 {offsets = [0, 0], sizes = [8, 16], strides = [1, 1]} : vector<8x64xf32> to vector<8x16xf32>
    %306 = arith.negf %305 : vector<8x16xf32>
    %307 = math.exp %306 : vector<8x16xf32>
    %cst_83 = arith.constant 1.000000e+00 : f32
    %308 = vector.broadcast %cst_83 : f32 to vector<8x16xf32>
    %309 = arith.addf %308, %307 : vector<8x16xf32>
    %310 = arith.divf %308, %309 : vector<8x16xf32>
    %311 = vector.extract_strided_slice %304 {offsets = [0, 16], sizes = [8, 16], strides = [1, 1]} : vector<8x64xf32> to vector<8x16xf32>
    %312 = arith.negf %311 : vector<8x16xf32>
    %313 = math.exp %312 : vector<8x16xf32>
    %cst_84 = arith.constant 1.000000e+00 : f32
    %314 = vector.broadcast %cst_84 : f32 to vector<8x16xf32>
    %315 = arith.addf %314, %313 : vector<8x16xf32>
    %316 = arith.divf %314, %315 : vector<8x16xf32>
    %317 = vector.extract_strided_slice %304 {offsets = [0, 32], sizes = [8, 16], strides = [1, 1]} : vector<8x64xf32> to vector<8x16xf32>
    %318 = math.tanh %317 : vector<8x16xf32>
    %319 = vector.extract_strided_slice %304 {offsets = [0, 48], sizes = [8, 16], strides = [1, 1]} : vector<8x64xf32> to vector<8x16xf32>
    %320 = arith.negf %319 : vector<8x16xf32>
    %321 = math.exp %320 : vector<8x16xf32>
    %cst_85 = arith.constant 1.000000e+00 : f32
    %322 = vector.broadcast %cst_85 : f32 to vector<8x16xf32>
    %323 = arith.addf %322, %321 : vector<8x16xf32>
    %324 = arith.divf %322, %323 : vector<8x16xf32>
    %325 = arith.mulf %316, %234 : vector<8x16xf32>
    %326 = arith.mulf %310, %318 : vector<8x16xf32>
    %327 = arith.addf %325, %326 : vector<8x16xf32>
    %328 = math.tanh %327 : vector<8x16xf32>
    %329 = arith.mulf %324, %328 : vector<8x16xf32>
    %cst_86 = arith.constant dense<0.000000e+00> : vector<8x96xf32>
    %330 = tpu.matmul %329, %6, %cst_86 {dimension_numbers = #tpu.dot_dimension_numbers<[1], [0], [0], [1], [0, 0, 1, 1], [], []>} : vector<8x16xf32>, vector<16x96xf32>, vector<8x96xf32> -> vector<8x96xf32>
    %cst_87 = arith.constant dense<0.000000e+00> : vector<8x96xf32>
    %331 = tpu.matmul %266, %7, %cst_87 {dimension_numbers = #tpu.dot_dimension_numbers<[1], [0], [0], [1], [0, 0, 1, 1], [], []>} : vector<8x24xf32>, vector<24x96xf32>, vector<8x96xf32> -> vector<8x96xf32>
    %332 = arith.addf %330, %331 : vector<8x96xf32>
    %333 = vector.broadcast %8 : vector<1x96xf32> to vector<8x96xf32>
    %334 = arith.addf %332, %333 : vector<8x96xf32>
    %335 = vector.extract_strided_slice %334 {offsets = [0, 0], sizes = [8, 24], strides = [1, 1]} : vector<8x96xf32> to vector<8x24xf32>
    %336 = arith.negf %335 : vector<8x24xf32>
    %337 = math.exp %336 : vector<8x24xf32>
    %cst_88 = arith.constant 1.000000e+00 : f32
    %338 = vector.broadcast %cst_88 : f32 to vector<8x24xf32>
    %339 = arith.addf %338, %337 : vector<8x24xf32>
    %340 = arith.divf %338, %339 : vector<8x24xf32>
    %341 = vector.extract_strided_slice %334 {offsets = [0, 24], sizes = [8, 24], strides = [1, 1]} : vector<8x96xf32> to vector<8x24xf32>
    %342 = arith.negf %341 : vector<8x24xf32>
    %343 = math.exp %342 : vector<8x24xf32>
    %cst_89 = arith.constant 1.000000e+00 : f32
    %344 = vector.broadcast %cst_89 : f32 to vector<8x24xf32>
    %345 = arith.addf %344, %343 : vector<8x24xf32>
    %346 = arith.divf %344, %345 : vector<8x24xf32>
    %347 = vector.extract_strided_slice %334 {offsets = [0, 48], sizes = [8, 24], strides = [1, 1]} : vector<8x96xf32> to vector<8x24xf32>
    %348 = math.tanh %347 : vector<8x24xf32>
    %349 = vector.extract_strided_slice %334 {offsets = [0, 72], sizes = [8, 24], strides = [1, 1]} : vector<8x96xf32> to vector<8x24xf32>
    %350 = arith.negf %349 : vector<8x24xf32>
    %351 = math.exp %350 : vector<8x24xf32>
    %cst_90 = arith.constant 1.000000e+00 : f32
    %352 = vector.broadcast %cst_90 : f32 to vector<8x24xf32>
    %353 = arith.addf %352, %351 : vector<8x24xf32>
    %354 = arith.divf %352, %353 : vector<8x24xf32>
    %355 = arith.mulf %346, %264 : vector<8x24xf32>
    %356 = arith.mulf %340, %348 : vector<8x24xf32>
    %357 = arith.addf %355, %356 : vector<8x24xf32>
    %358 = math.tanh %357 : vector<8x24xf32>
    %359 = arith.mulf %354, %358 : vector<8x24xf32>
    %cst_91 = arith.constant dense<0.000000e+00> : vector<8x128xf32>
    %360 = tpu.matmul %359, %9, %cst_91 {dimension_numbers = #tpu.dot_dimension_numbers<[1], [0], [0], [1], [0, 0, 1, 1], [], []>} : vector<8x24xf32>, vector<24x128xf32>, vector<8x128xf32> -> vector<8x128xf32>
    %cst_92 = arith.constant dense<0.000000e+00> : vector<8x128xf32>
    %361 = tpu.matmul %296, %10, %cst_92 {dimension_numbers = #tpu.dot_dimension_numbers<[1], [0], [0], [1], [0, 0, 1, 1], [], []>} : vector<8x32xf32>, vector<32x128xf32>, vector<8x128xf32> -> vector<8x128xf32>
    %362 = arith.addf %360, %361 : vector<8x128xf32>
    %363 = vector.broadcast %11 : vector<1x128xf32> to vector<8x128xf32>
    %364 = arith.addf %362, %363 : vector<8x128xf32>
    %365 = vector.extract_strided_slice %364 {offsets = [0, 0], sizes = [8, 32], strides = [1, 1]} : vector<8x128xf32> to vector<8x32xf32>
    %366 = arith.negf %365 : vector<8x32xf32>
    %367 = math.exp %366 : vector<8x32xf32>
    %cst_93 = arith.constant 1.000000e+00 : f32
    %368 = vector.broadcast %cst_93 : f32 to vector<8x32xf32>
    %369 = arith.addf %368, %367 : vector<8x32xf32>
    %370 = arith.divf %368, %369 : vector<8x32xf32>
    %371 = vector.extract_strided_slice %364 {offsets = [0, 32], sizes = [8, 32], strides = [1, 1]} : vector<8x128xf32> to vector<8x32xf32>
    %372 = arith.negf %371 : vector<8x32xf32>
    %373 = math.exp %372 : vector<8x32xf32>
    %cst_94 = arith.constant 1.000000e+00 : f32
    %374 = vector.broadcast %cst_94 : f32 to vector<8x32xf32>
    %375 = arith.addf %374, %373 : vector<8x32xf32>
    %376 = arith.divf %374, %375 : vector<8x32xf32>
    %377 = vector.extract_strided_slice %364 {offsets = [0, 64], sizes = [8, 32], strides = [1, 1]} : vector<8x128xf32> to vector<8x32xf32>
    %378 = math.tanh %377 : vector<8x32xf32>
    %379 = vector.extract_strided_slice %364 {offsets = [0, 96], sizes = [8, 32], strides = [1, 1]} : vector<8x128xf32> to vector<8x32xf32>
    %380 = arith.negf %379 : vector<8x32xf32>
    %381 = math.exp %380 : vector<8x32xf32>
    %cst_95 = arith.constant 1.000000e+00 : f32
    %382 = vector.broadcast %cst_95 : f32 to vector<8x32xf32>
    %383 = arith.addf %382, %381 : vector<8x32xf32>
    %384 = arith.divf %382, %383 : vector<8x32xf32>
    %385 = arith.mulf %376, %294 : vector<8x32xf32>
    %386 = arith.mulf %370, %378 : vector<8x32xf32>
    %387 = arith.addf %385, %386 : vector<8x32xf32>
    %388 = math.tanh %387 : vector<8x32xf32>
    %389 = arith.mulf %384, %388 : vector<8x32xf32>
    %c4_i32 = arith.constant 4 : i32
    %c8_i32_96 = arith.constant 8 : i32
    %390 = arith.muli %c4_i32, %c8_i32_96 : i32
    %391 = tpu.assume_multiple %390, 8 : i32
    %392 = arith.index_cast %391 : i32 to index
    %c0_97 = arith.constant 0 : index
    %393 = vector.load %arg30[%392, %c0_97] : memref<64x64xf32, #tpu.memory_space<vmem>>, vector<8x64xf32>
    %cst_98 = arith.constant dense<0.000000e+00> : vector<8x64xf32>
    %394 = tpu.matmul %329, %4, %cst_98 {dimension_numbers = #tpu.dot_dimension_numbers<[1], [0], [0], [1], [0, 0, 1, 1], [], []>} : vector<8x16xf32>, vector<16x64xf32>, vector<8x64xf32> -> vector<8x64xf32>
    %395 = arith.addf %393, %394 : vector<8x64xf32>
    %396 = vector.broadcast %5 : vector<1x64xf32> to vector<8x64xf32>
    %397 = arith.addf %395, %396 : vector<8x64xf32>
    %398 = vector.extract_strided_slice %397 {offsets = [0, 0], sizes = [8, 16], strides = [1, 1]} : vector<8x64xf32> to vector<8x16xf32>
    %399 = arith.negf %398 : vector<8x16xf32>
    %400 = math.exp %399 : vector<8x16xf32>
    %cst_99 = arith.constant 1.000000e+00 : f32
    %401 = vector.broadcast %cst_99 : f32 to vector<8x16xf32>
    %402 = arith.addf %401, %400 : vector<8x16xf32>
    %403 = arith.divf %401, %402 : vector<8x16xf32>
    %404 = vector.extract_strided_slice %397 {offsets = [0, 16], sizes = [8, 16], strides = [1, 1]} : vector<8x64xf32> to vector<8x16xf32>
    %405 = arith.negf %404 : vector<8x16xf32>
    %406 = math.exp %405 : vector<8x16xf32>
    %cst_100 = arith.constant 1.000000e+00 : f32
    %407 = vector.broadcast %cst_100 : f32 to vector<8x16xf32>
    %408 = arith.addf %407, %406 : vector<8x16xf32>
    %409 = arith.divf %407, %408 : vector<8x16xf32>
    %410 = vector.extract_strided_slice %397 {offsets = [0, 32], sizes = [8, 16], strides = [1, 1]} : vector<8x64xf32> to vector<8x16xf32>
    %411 = math.tanh %410 : vector<8x16xf32>
    %412 = vector.extract_strided_slice %397 {offsets = [0, 48], sizes = [8, 16], strides = [1, 1]} : vector<8x64xf32> to vector<8x16xf32>
    %413 = arith.negf %412 : vector<8x16xf32>
    %414 = math.exp %413 : vector<8x16xf32>
    %cst_101 = arith.constant 1.000000e+00 : f32
    %415 = vector.broadcast %cst_101 : f32 to vector<8x16xf32>
    %416 = arith.addf %415, %414 : vector<8x16xf32>
    %417 = arith.divf %415, %416 : vector<8x16xf32>
    %418 = arith.mulf %409, %327 : vector<8x16xf32>
    %419 = arith.mulf %403, %411 : vector<8x16xf32>
    %420 = arith.addf %418, %419 : vector<8x16xf32>
    %421 = math.tanh %420 : vector<8x16xf32>
    %422 = arith.mulf %417, %421 : vector<8x16xf32>
    %cst_102 = arith.constant dense<0.000000e+00> : vector<8x96xf32>
    %423 = tpu.matmul %422, %6, %cst_102 {dimension_numbers = #tpu.dot_dimension_numbers<[1], [0], [0], [1], [0, 0, 1, 1], [], []>} : vector<8x16xf32>, vector<16x96xf32>, vector<8x96xf32> -> vector<8x96xf32>
    %cst_103 = arith.constant dense<0.000000e+00> : vector<8x96xf32>
    %424 = tpu.matmul %359, %7, %cst_103 {dimension_numbers = #tpu.dot_dimension_numbers<[1], [0], [0], [1], [0, 0, 1, 1], [], []>} : vector<8x24xf32>, vector<24x96xf32>, vector<8x96xf32> -> vector<8x96xf32>
    %425 = arith.addf %423, %424 : vector<8x96xf32>
    %426 = vector.broadcast %8 : vector<1x96xf32> to vector<8x96xf32>
    %427 = arith.addf %425, %426 : vector<8x96xf32>
    %428 = vector.extract_strided_slice %427 {offsets = [0, 0], sizes = [8, 24], strides = [1, 1]} : vector<8x96xf32> to vector<8x24xf32>
    %429 = arith.negf %428 : vector<8x24xf32>
    %430 = math.exp %429 : vector<8x24xf32>
    %cst_104 = arith.constant 1.000000e+00 : f32
    %431 = vector.broadcast %cst_104 : f32 to vector<8x24xf32>
    %432 = arith.addf %431, %430 : vector<8x24xf32>
    %433 = arith.divf %431, %432 : vector<8x24xf32>
    %434 = vector.extract_strided_slice %427 {offsets = [0, 24], sizes = [8, 24], strides = [1, 1]} : vector<8x96xf32> to vector<8x24xf32>
    %435 = arith.negf %434 : vector<8x24xf32>
    %436 = math.exp %435 : vector<8x24xf32>
    %cst_105 = arith.constant 1.000000e+00 : f32
    %437 = vector.broadcast %cst_105 : f32 to vector<8x24xf32>
    %438 = arith.addf %437, %436 : vector<8x24xf32>
    %439 = arith.divf %437, %438 : vector<8x24xf32>
    %440 = vector.extract_strided_slice %427 {offsets = [0, 48], sizes = [8, 24], strides = [1, 1]} : vector<8x96xf32> to vector<8x24xf32>
    %441 = math.tanh %440 : vector<8x24xf32>
    %442 = vector.extract_strided_slice %427 {offsets = [0, 72], sizes = [8, 24], strides = [1, 1]} : vector<8x96xf32> to vector<8x24xf32>
    %443 = arith.negf %442 : vector<8x24xf32>
    %444 = math.exp %443 : vector<8x24xf32>
    %cst_106 = arith.constant 1.000000e+00 : f32
    %445 = vector.broadcast %cst_106 : f32 to vector<8x24xf32>
    %446 = arith.addf %445, %444 : vector<8x24xf32>
    %447 = arith.divf %445, %446 : vector<8x24xf32>
    %448 = arith.mulf %439, %357 : vector<8x24xf32>
    %449 = arith.mulf %433, %441 : vector<8x24xf32>
    %450 = arith.addf %448, %449 : vector<8x24xf32>
    %451 = math.tanh %450 : vector<8x24xf32>
    %452 = arith.mulf %447, %451 : vector<8x24xf32>
    %cst_107 = arith.constant dense<0.000000e+00> : vector<8x128xf32>
    %453 = tpu.matmul %452, %9, %cst_107 {dimension_numbers = #tpu.dot_dimension_numbers<[1], [0], [0], [1], [0, 0, 1, 1], [], []>} : vector<8x24xf32>, vector<24x128xf32>, vector<8x128xf32> -> vector<8x128xf32>
    %cst_108 = arith.constant dense<0.000000e+00> : vector<8x128xf32>
    %454 = tpu.matmul %389, %10, %cst_108 {dimension_numbers = #tpu.dot_dimension_numbers<[1], [0], [0], [1], [0, 0, 1, 1], [], []>} : vector<8x32xf32>, vector<32x128xf32>, vector<8x128xf32> -> vector<8x128xf32>
    %455 = arith.addf %453, %454 : vector<8x128xf32>
    %456 = vector.broadcast %11 : vector<1x128xf32> to vector<8x128xf32>
    %457 = arith.addf %455, %456 : vector<8x128xf32>
    %458 = vector.extract_strided_slice %457 {offsets = [0, 0], sizes = [8, 32], strides = [1, 1]} : vector<8x128xf32> to vector<8x32xf32>
    %459 = arith.negf %458 : vector<8x32xf32>
    %460 = math.exp %459 : vector<8x32xf32>
    %cst_109 = arith.constant 1.000000e+00 : f32
    %461 = vector.broadcast %cst_109 : f32 to vector<8x32xf32>
    %462 = arith.addf %461, %460 : vector<8x32xf32>
    %463 = arith.divf %461, %462 : vector<8x32xf32>
    %464 = vector.extract_strided_slice %457 {offsets = [0, 32], sizes = [8, 32], strides = [1, 1]} : vector<8x128xf32> to vector<8x32xf32>
    %465 = arith.negf %464 : vector<8x32xf32>
    %466 = math.exp %465 : vector<8x32xf32>
    %cst_110 = arith.constant 1.000000e+00 : f32
    %467 = vector.broadcast %cst_110 : f32 to vector<8x32xf32>
    %468 = arith.addf %467, %466 : vector<8x32xf32>
    %469 = arith.divf %467, %468 : vector<8x32xf32>
    %470 = vector.extract_strided_slice %457 {offsets = [0, 64], sizes = [8, 32], strides = [1, 1]} : vector<8x128xf32> to vector<8x32xf32>
    %471 = math.tanh %470 : vector<8x32xf32>
    %472 = vector.extract_strided_slice %457 {offsets = [0, 96], sizes = [8, 32], strides = [1, 1]} : vector<8x128xf32> to vector<8x32xf32>
    %473 = arith.negf %472 : vector<8x32xf32>
    %474 = math.exp %473 : vector<8x32xf32>
    %cst_111 = arith.constant 1.000000e+00 : f32
    %475 = vector.broadcast %cst_111 : f32 to vector<8x32xf32>
    %476 = arith.addf %475, %474 : vector<8x32xf32>
    %477 = arith.divf %475, %476 : vector<8x32xf32>
    %478 = arith.mulf %469, %387 : vector<8x32xf32>
    %479 = arith.mulf %463, %471 : vector<8x32xf32>
    %480 = arith.addf %478, %479 : vector<8x32xf32>
    %481 = math.tanh %480 : vector<8x32xf32>
    %482 = arith.mulf %477, %481 : vector<8x32xf32>
    %c5_i32 = arith.constant 5 : i32
    %c8_i32_112 = arith.constant 8 : i32
    %483 = arith.muli %c5_i32, %c8_i32_112 : i32
    %484 = tpu.assume_multiple %483, 8 : i32
    %485 = arith.index_cast %484 : i32 to index
    %c0_113 = arith.constant 0 : index
    %486 = vector.load %arg30[%485, %c0_113] : memref<64x64xf32, #tpu.memory_space<vmem>>, vector<8x64xf32>
    %cst_114 = arith.constant dense<0.000000e+00> : vector<8x64xf32>
    %487 = tpu.matmul %422, %4, %cst_114 {dimension_numbers = #tpu.dot_dimension_numbers<[1], [0], [0], [1], [0, 0, 1, 1], [], []>} : vector<8x16xf32>, vector<16x64xf32>, vector<8x64xf32> -> vector<8x64xf32>
    %488 = arith.addf %486, %487 : vector<8x64xf32>
    %489 = vector.broadcast %5 : vector<1x64xf32> to vector<8x64xf32>
    %490 = arith.addf %488, %489 : vector<8x64xf32>
    %491 = vector.extract_strided_slice %490 {offsets = [0, 0], sizes = [8, 16], strides = [1, 1]} : vector<8x64xf32> to vector<8x16xf32>
    %492 = arith.negf %491 : vector<8x16xf32>
    %493 = math.exp %492 : vector<8x16xf32>
    %cst_115 = arith.constant 1.000000e+00 : f32
    %494 = vector.broadcast %cst_115 : f32 to vector<8x16xf32>
    %495 = arith.addf %494, %493 : vector<8x16xf32>
    %496 = arith.divf %494, %495 : vector<8x16xf32>
    %497 = vector.extract_strided_slice %490 {offsets = [0, 16], sizes = [8, 16], strides = [1, 1]} : vector<8x64xf32> to vector<8x16xf32>
    %498 = arith.negf %497 : vector<8x16xf32>
    %499 = math.exp %498 : vector<8x16xf32>
    %cst_116 = arith.constant 1.000000e+00 : f32
    %500 = vector.broadcast %cst_116 : f32 to vector<8x16xf32>
    %501 = arith.addf %500, %499 : vector<8x16xf32>
    %502 = arith.divf %500, %501 : vector<8x16xf32>
    %503 = vector.extract_strided_slice %490 {offsets = [0, 32], sizes = [8, 16], strides = [1, 1]} : vector<8x64xf32> to vector<8x16xf32>
    %504 = math.tanh %503 : vector<8x16xf32>
    %505 = vector.extract_strided_slice %490 {offsets = [0, 48], sizes = [8, 16], strides = [1, 1]} : vector<8x64xf32> to vector<8x16xf32>
    %506 = arith.negf %505 : vector<8x16xf32>
    %507 = math.exp %506 : vector<8x16xf32>
    %cst_117 = arith.constant 1.000000e+00 : f32
    %508 = vector.broadcast %cst_117 : f32 to vector<8x16xf32>
    %509 = arith.addf %508, %507 : vector<8x16xf32>
    %510 = arith.divf %508, %509 : vector<8x16xf32>
    %511 = arith.mulf %502, %420 : vector<8x16xf32>
    %512 = arith.mulf %496, %504 : vector<8x16xf32>
    %513 = arith.addf %511, %512 : vector<8x16xf32>
    %514 = math.tanh %513 : vector<8x16xf32>
    %515 = arith.mulf %510, %514 : vector<8x16xf32>
    %cst_118 = arith.constant dense<0.000000e+00> : vector<8x96xf32>
    %516 = tpu.matmul %515, %6, %cst_118 {dimension_numbers = #tpu.dot_dimension_numbers<[1], [0], [0], [1], [0, 0, 1, 1], [], []>} : vector<8x16xf32>, vector<16x96xf32>, vector<8x96xf32> -> vector<8x96xf32>
    %cst_119 = arith.constant dense<0.000000e+00> : vector<8x96xf32>
    %517 = tpu.matmul %452, %7, %cst_119 {dimension_numbers = #tpu.dot_dimension_numbers<[1], [0], [0], [1], [0, 0, 1, 1], [], []>} : vector<8x24xf32>, vector<24x96xf32>, vector<8x96xf32> -> vector<8x96xf32>
    %518 = arith.addf %516, %517 : vector<8x96xf32>
    %519 = vector.broadcast %8 : vector<1x96xf32> to vector<8x96xf32>
    %520 = arith.addf %518, %519 : vector<8x96xf32>
    %521 = vector.extract_strided_slice %520 {offsets = [0, 0], sizes = [8, 24], strides = [1, 1]} : vector<8x96xf32> to vector<8x24xf32>
    %522 = arith.negf %521 : vector<8x24xf32>
    %523 = math.exp %522 : vector<8x24xf32>
    %cst_120 = arith.constant 1.000000e+00 : f32
    %524 = vector.broadcast %cst_120 : f32 to vector<8x24xf32>
    %525 = arith.addf %524, %523 : vector<8x24xf32>
    %526 = arith.divf %524, %525 : vector<8x24xf32>
    %527 = vector.extract_strided_slice %520 {offsets = [0, 24], sizes = [8, 24], strides = [1, 1]} : vector<8x96xf32> to vector<8x24xf32>
    %528 = arith.negf %527 : vector<8x24xf32>
    %529 = math.exp %528 : vector<8x24xf32>
    %cst_121 = arith.constant 1.000000e+00 : f32
    %530 = vector.broadcast %cst_121 : f32 to vector<8x24xf32>
    %531 = arith.addf %530, %529 : vector<8x24xf32>
    %532 = arith.divf %530, %531 : vector<8x24xf32>
    %533 = vector.extract_strided_slice %520 {offsets = [0, 48], sizes = [8, 24], strides = [1, 1]} : vector<8x96xf32> to vector<8x24xf32>
    %534 = math.tanh %533 : vector<8x24xf32>
    %535 = vector.extract_strided_slice %520 {offsets = [0, 72], sizes = [8, 24], strides = [1, 1]} : vector<8x96xf32> to vector<8x24xf32>
    %536 = arith.negf %535 : vector<8x24xf32>
    %537 = math.exp %536 : vector<8x24xf32>
    %cst_122 = arith.constant 1.000000e+00 : f32
    %538 = vector.broadcast %cst_122 : f32 to vector<8x24xf32>
    %539 = arith.addf %538, %537 : vector<8x24xf32>
    %540 = arith.divf %538, %539 : vector<8x24xf32>
    %541 = arith.mulf %532, %450 : vector<8x24xf32>
    %542 = arith.mulf %526, %534 : vector<8x24xf32>
    %543 = arith.addf %541, %542 : vector<8x24xf32>
    %544 = math.tanh %543 : vector<8x24xf32>
    %545 = arith.mulf %540, %544 : vector<8x24xf32>
    %cst_123 = arith.constant dense<0.000000e+00> : vector<8x128xf32>
    %546 = tpu.matmul %545, %9, %cst_123 {dimension_numbers = #tpu.dot_dimension_numbers<[1], [0], [0], [1], [0, 0, 1, 1], [], []>} : vector<8x24xf32>, vector<24x128xf32>, vector<8x128xf32> -> vector<8x128xf32>
    %cst_124 = arith.constant dense<0.000000e+00> : vector<8x128xf32>
    %547 = tpu.matmul %482, %10, %cst_124 {dimension_numbers = #tpu.dot_dimension_numbers<[1], [0], [0], [1], [0, 0, 1, 1], [], []>} : vector<8x32xf32>, vector<32x128xf32>, vector<8x128xf32> -> vector<8x128xf32>
    %548 = arith.addf %546, %547 : vector<8x128xf32>
    %549 = vector.broadcast %11 : vector<1x128xf32> to vector<8x128xf32>
    %550 = arith.addf %548, %549 : vector<8x128xf32>
    %551 = vector.extract_strided_slice %550 {offsets = [0, 0], sizes = [8, 32], strides = [1, 1]} : vector<8x128xf32> to vector<8x32xf32>
    %552 = arith.negf %551 : vector<8x32xf32>
    %553 = math.exp %552 : vector<8x32xf32>
    %cst_125 = arith.constant 1.000000e+00 : f32
    %554 = vector.broadcast %cst_125 : f32 to vector<8x32xf32>
    %555 = arith.addf %554, %553 : vector<8x32xf32>
    %556 = arith.divf %554, %555 : vector<8x32xf32>
    %557 = vector.extract_strided_slice %550 {offsets = [0, 32], sizes = [8, 32], strides = [1, 1]} : vector<8x128xf32> to vector<8x32xf32>
    %558 = arith.negf %557 : vector<8x32xf32>
    %559 = math.exp %558 : vector<8x32xf32>
    %cst_126 = arith.constant 1.000000e+00 : f32
    %560 = vector.broadcast %cst_126 : f32 to vector<8x32xf32>
    %561 = arith.addf %560, %559 : vector<8x32xf32>
    %562 = arith.divf %560, %561 : vector<8x32xf32>
    %563 = vector.extract_strided_slice %550 {offsets = [0, 64], sizes = [8, 32], strides = [1, 1]} : vector<8x128xf32> to vector<8x32xf32>
    %564 = math.tanh %563 : vector<8x32xf32>
    %565 = vector.extract_strided_slice %550 {offsets = [0, 96], sizes = [8, 32], strides = [1, 1]} : vector<8x128xf32> to vector<8x32xf32>
    %566 = arith.negf %565 : vector<8x32xf32>
    %567 = math.exp %566 : vector<8x32xf32>
    %cst_127 = arith.constant 1.000000e+00 : f32
    %568 = vector.broadcast %cst_127 : f32 to vector<8x32xf32>
    %569 = arith.addf %568, %567 : vector<8x32xf32>
    %570 = arith.divf %568, %569 : vector<8x32xf32>
    %571 = arith.mulf %562, %480 : vector<8x32xf32>
    %572 = arith.mulf %556, %564 : vector<8x32xf32>
    %573 = arith.addf %571, %572 : vector<8x32xf32>
    %574 = math.tanh %573 : vector<8x32xf32>
    %575 = arith.mulf %570, %574 : vector<8x32xf32>
    %c6_i32 = arith.constant 6 : i32
    %c8_i32_128 = arith.constant 8 : i32
    %576 = arith.muli %c6_i32, %c8_i32_128 : i32
    %577 = tpu.assume_multiple %576, 8 : i32
    %578 = arith.index_cast %577 : i32 to index
    %c0_129 = arith.constant 0 : index
    %579 = vector.load %arg30[%578, %c0_129] : memref<64x64xf32, #tpu.memory_space<vmem>>, vector<8x64xf32>
    %cst_130 = arith.constant dense<0.000000e+00> : vector<8x64xf32>
    %580 = tpu.matmul %515, %4, %cst_130 {dimension_numbers = #tpu.dot_dimension_numbers<[1], [0], [0], [1], [0, 0, 1, 1], [], []>} : vector<8x16xf32>, vector<16x64xf32>, vector<8x64xf32> -> vector<8x64xf32>
    %581 = arith.addf %579, %580 : vector<8x64xf32>
    %582 = vector.broadcast %5 : vector<1x64xf32> to vector<8x64xf32>
    %583 = arith.addf %581, %582 : vector<8x64xf32>
    %584 = vector.extract_strided_slice %583 {offsets = [0, 0], sizes = [8, 16], strides = [1, 1]} : vector<8x64xf32> to vector<8x16xf32>
    %585 = arith.negf %584 : vector<8x16xf32>
    %586 = math.exp %585 : vector<8x16xf32>
    %cst_131 = arith.constant 1.000000e+00 : f32
    %587 = vector.broadcast %cst_131 : f32 to vector<8x16xf32>
    %588 = arith.addf %587, %586 : vector<8x16xf32>
    %589 = arith.divf %587, %588 : vector<8x16xf32>
    %590 = vector.extract_strided_slice %583 {offsets = [0, 16], sizes = [8, 16], strides = [1, 1]} : vector<8x64xf32> to vector<8x16xf32>
    %591 = arith.negf %590 : vector<8x16xf32>
    %592 = math.exp %591 : vector<8x16xf32>
    %cst_132 = arith.constant 1.000000e+00 : f32
    %593 = vector.broadcast %cst_132 : f32 to vector<8x16xf32>
    %594 = arith.addf %593, %592 : vector<8x16xf32>
    %595 = arith.divf %593, %594 : vector<8x16xf32>
    %596 = vector.extract_strided_slice %583 {offsets = [0, 32], sizes = [8, 16], strides = [1, 1]} : vector<8x64xf32> to vector<8x16xf32>
    %597 = math.tanh %596 : vector<8x16xf32>
    %598 = vector.extract_strided_slice %583 {offsets = [0, 48], sizes = [8, 16], strides = [1, 1]} : vector<8x64xf32> to vector<8x16xf32>
    %599 = arith.negf %598 : vector<8x16xf32>
    %600 = math.exp %599 : vector<8x16xf32>
    %cst_133 = arith.constant 1.000000e+00 : f32
    %601 = vector.broadcast %cst_133 : f32 to vector<8x16xf32>
    %602 = arith.addf %601, %600 : vector<8x16xf32>
    %603 = arith.divf %601, %602 : vector<8x16xf32>
    %604 = arith.mulf %595, %513 : vector<8x16xf32>
    %605 = arith.mulf %589, %597 : vector<8x16xf32>
    %606 = arith.addf %604, %605 : vector<8x16xf32>
    %607 = math.tanh %606 : vector<8x16xf32>
    %608 = arith.mulf %603, %607 : vector<8x16xf32>
    %cst_134 = arith.constant dense<0.000000e+00> : vector<8x96xf32>
    %609 = tpu.matmul %608, %6, %cst_134 {dimension_numbers = #tpu.dot_dimension_numbers<[1], [0], [0], [1], [0, 0, 1, 1], [], []>} : vector<8x16xf32>, vector<16x96xf32>, vector<8x96xf32> -> vector<8x96xf32>
    %cst_135 = arith.constant dense<0.000000e+00> : vector<8x96xf32>
    %610 = tpu.matmul %545, %7, %cst_135 {dimension_numbers = #tpu.dot_dimension_numbers<[1], [0], [0], [1], [0, 0, 1, 1], [], []>} : vector<8x24xf32>, vector<24x96xf32>, vector<8x96xf32> -> vector<8x96xf32>
    %611 = arith.addf %609, %610 : vector<8x96xf32>
    %612 = vector.broadcast %8 : vector<1x96xf32> to vector<8x96xf32>
    %613 = arith.addf %611, %612 : vector<8x96xf32>
    %614 = vector.extract_strided_slice %613 {offsets = [0, 0], sizes = [8, 24], strides = [1, 1]} : vector<8x96xf32> to vector<8x24xf32>
    %615 = arith.negf %614 : vector<8x24xf32>
    %616 = math.exp %615 : vector<8x24xf32>
    %cst_136 = arith.constant 1.000000e+00 : f32
    %617 = vector.broadcast %cst_136 : f32 to vector<8x24xf32>
    %618 = arith.addf %617, %616 : vector<8x24xf32>
    %619 = arith.divf %617, %618 : vector<8x24xf32>
    %620 = vector.extract_strided_slice %613 {offsets = [0, 24], sizes = [8, 24], strides = [1, 1]} : vector<8x96xf32> to vector<8x24xf32>
    %621 = arith.negf %620 : vector<8x24xf32>
    %622 = math.exp %621 : vector<8x24xf32>
    %cst_137 = arith.constant 1.000000e+00 : f32
    %623 = vector.broadcast %cst_137 : f32 to vector<8x24xf32>
    %624 = arith.addf %623, %622 : vector<8x24xf32>
    %625 = arith.divf %623, %624 : vector<8x24xf32>
    %626 = vector.extract_strided_slice %613 {offsets = [0, 48], sizes = [8, 24], strides = [1, 1]} : vector<8x96xf32> to vector<8x24xf32>
    %627 = math.tanh %626 : vector<8x24xf32>
    %628 = vector.extract_strided_slice %613 {offsets = [0, 72], sizes = [8, 24], strides = [1, 1]} : vector<8x96xf32> to vector<8x24xf32>
    %629 = arith.negf %628 : vector<8x24xf32>
    %630 = math.exp %629 : vector<8x24xf32>
    %cst_138 = arith.constant 1.000000e+00 : f32
    %631 = vector.broadcast %cst_138 : f32 to vector<8x24xf32>
    %632 = arith.addf %631, %630 : vector<8x24xf32>
    %633 = arith.divf %631, %632 : vector<8x24xf32>
    %634 = arith.mulf %625, %543 : vector<8x24xf32>
    %635 = arith.mulf %619, %627 : vector<8x24xf32>
    %636 = arith.addf %634, %635 : vector<8x24xf32>
    %637 = math.tanh %636 : vector<8x24xf32>
    %638 = arith.mulf %633, %637 : vector<8x24xf32>
    %cst_139 = arith.constant dense<0.000000e+00> : vector<8x128xf32>
    %639 = tpu.matmul %638, %9, %cst_139 {dimension_numbers = #tpu.dot_dimension_numbers<[1], [0], [0], [1], [0, 0, 1, 1], [], []>} : vector<8x24xf32>, vector<24x128xf32>, vector<8x128xf32> -> vector<8x128xf32>
    %cst_140 = arith.constant dense<0.000000e+00> : vector<8x128xf32>
    %640 = tpu.matmul %575, %10, %cst_140 {dimension_numbers = #tpu.dot_dimension_numbers<[1], [0], [0], [1], [0, 0, 1, 1], [], []>} : vector<8x32xf32>, vector<32x128xf32>, vector<8x128xf32> -> vector<8x128xf32>
    %641 = arith.addf %639, %640 : vector<8x128xf32>
    %642 = vector.broadcast %11 : vector<1x128xf32> to vector<8x128xf32>
    %643 = arith.addf %641, %642 : vector<8x128xf32>
    %644 = vector.extract_strided_slice %643 {offsets = [0, 0], sizes = [8, 32], strides = [1, 1]} : vector<8x128xf32> to vector<8x32xf32>
    %645 = arith.negf %644 : vector<8x32xf32>
    %646 = math.exp %645 : vector<8x32xf32>
    %cst_141 = arith.constant 1.000000e+00 : f32
    %647 = vector.broadcast %cst_141 : f32 to vector<8x32xf32>
    %648 = arith.addf %647, %646 : vector<8x32xf32>
    %649 = arith.divf %647, %648 : vector<8x32xf32>
    %650 = vector.extract_strided_slice %643 {offsets = [0, 32], sizes = [8, 32], strides = [1, 1]} : vector<8x128xf32> to vector<8x32xf32>
    %651 = arith.negf %650 : vector<8x32xf32>
    %652 = math.exp %651 : vector<8x32xf32>
    %cst_142 = arith.constant 1.000000e+00 : f32
    %653 = vector.broadcast %cst_142 : f32 to vector<8x32xf32>
    %654 = arith.addf %653, %652 : vector<8x32xf32>
    %655 = arith.divf %653, %654 : vector<8x32xf32>
    %656 = vector.extract_strided_slice %643 {offsets = [0, 64], sizes = [8, 32], strides = [1, 1]} : vector<8x128xf32> to vector<8x32xf32>
    %657 = math.tanh %656 : vector<8x32xf32>
    %658 = vector.extract_strided_slice %643 {offsets = [0, 96], sizes = [8, 32], strides = [1, 1]} : vector<8x128xf32> to vector<8x32xf32>
    %659 = arith.negf %658 : vector<8x32xf32>
    %660 = math.exp %659 : vector<8x32xf32>
    %cst_143 = arith.constant 1.000000e+00 : f32
    %661 = vector.broadcast %cst_143 : f32 to vector<8x32xf32>
    %662 = arith.addf %661, %660 : vector<8x32xf32>
    %663 = arith.divf %661, %662 : vector<8x32xf32>
    %664 = arith.mulf %655, %573 : vector<8x32xf32>
    %665 = arith.mulf %649, %657 : vector<8x32xf32>
    %666 = arith.addf %664, %665 : vector<8x32xf32>
    %667 = math.tanh %666 : vector<8x32xf32>
    %668 = arith.mulf %663, %667 : vector<8x32xf32>
    %c7_i32 = arith.constant 7 : i32
    %c8_i32_144 = arith.constant 8 : i32
    %669 = arith.muli %c7_i32, %c8_i32_144 : i32
    %670 = tpu.assume_multiple %669, 8 : i32
    %671 = arith.index_cast %670 : i32 to index
    %c0_145 = arith.constant 0 : index
    %672 = vector.load %arg30[%671, %c0_145] : memref<64x64xf32, #tpu.memory_space<vmem>>, vector<8x64xf32>
    %cst_146 = arith.constant dense<0.000000e+00> : vector<8x64xf32>
    %673 = tpu.matmul %608, %4, %cst_146 {dimension_numbers = #tpu.dot_dimension_numbers<[1], [0], [0], [1], [0, 0, 1, 1], [], []>} : vector<8x16xf32>, vector<16x64xf32>, vector<8x64xf32> -> vector<8x64xf32>
    %674 = arith.addf %672, %673 : vector<8x64xf32>
    %675 = vector.broadcast %5 : vector<1x64xf32> to vector<8x64xf32>
    %676 = arith.addf %674, %675 : vector<8x64xf32>
    %677 = vector.extract_strided_slice %676 {offsets = [0, 0], sizes = [8, 16], strides = [1, 1]} : vector<8x64xf32> to vector<8x16xf32>
    %678 = arith.negf %677 : vector<8x16xf32>
    %679 = math.exp %678 : vector<8x16xf32>
    %cst_147 = arith.constant 1.000000e+00 : f32
    %680 = vector.broadcast %cst_147 : f32 to vector<8x16xf32>
    %681 = arith.addf %680, %679 : vector<8x16xf32>
    %682 = arith.divf %680, %681 : vector<8x16xf32>
    %683 = vector.extract_strided_slice %676 {offsets = [0, 16], sizes = [8, 16], strides = [1, 1]} : vector<8x64xf32> to vector<8x16xf32>
    %684 = arith.negf %683 : vector<8x16xf32>
    %685 = math.exp %684 : vector<8x16xf32>
    %cst_148 = arith.constant 1.000000e+00 : f32
    %686 = vector.broadcast %cst_148 : f32 to vector<8x16xf32>
    %687 = arith.addf %686, %685 : vector<8x16xf32>
    %688 = arith.divf %686, %687 : vector<8x16xf32>
    %689 = vector.extract_strided_slice %676 {offsets = [0, 32], sizes = [8, 16], strides = [1, 1]} : vector<8x64xf32> to vector<8x16xf32>
    %690 = math.tanh %689 : vector<8x16xf32>
    %691 = vector.extract_strided_slice %676 {offsets = [0, 48], sizes = [8, 16], strides = [1, 1]} : vector<8x64xf32> to vector<8x16xf32>
    %692 = arith.negf %691 : vector<8x16xf32>
    %693 = math.exp %692 : vector<8x16xf32>
    %cst_149 = arith.constant 1.000000e+00 : f32
    %694 = vector.broadcast %cst_149 : f32 to vector<8x16xf32>
    %695 = arith.addf %694, %693 : vector<8x16xf32>
    %696 = arith.divf %694, %695 : vector<8x16xf32>
    %697 = arith.mulf %688, %606 : vector<8x16xf32>
    %698 = arith.mulf %682, %690 : vector<8x16xf32>
    %699 = arith.addf %697, %698 : vector<8x16xf32>
    %700 = math.tanh %699 : vector<8x16xf32>
    %701 = arith.mulf %696, %700 : vector<8x16xf32>
    %cst_150 = arith.constant dense<0.000000e+00> : vector<8x96xf32>
    %702 = tpu.matmul %701, %6, %cst_150 {dimension_numbers = #tpu.dot_dimension_numbers<[1], [0], [0], [1], [0, 0, 1, 1], [], []>} : vector<8x16xf32>, vector<16x96xf32>, vector<8x96xf32> -> vector<8x96xf32>
    %cst_151 = arith.constant dense<0.000000e+00> : vector<8x96xf32>
    %703 = tpu.matmul %638, %7, %cst_151 {dimension_numbers = #tpu.dot_dimension_numbers<[1], [0], [0], [1], [0, 0, 1, 1], [], []>} : vector<8x24xf32>, vector<24x96xf32>, vector<8x96xf32> -> vector<8x96xf32>
    %704 = arith.addf %702, %703 : vector<8x96xf32>
    %705 = vector.broadcast %8 : vector<1x96xf32> to vector<8x96xf32>
    %706 = arith.addf %704, %705 : vector<8x96xf32>
    %707 = vector.extract_strided_slice %706 {offsets = [0, 0], sizes = [8, 24], strides = [1, 1]} : vector<8x96xf32> to vector<8x24xf32>
    %708 = arith.negf %707 : vector<8x24xf32>
    %709 = math.exp %708 : vector<8x24xf32>
    %cst_152 = arith.constant 1.000000e+00 : f32
    %710 = vector.broadcast %cst_152 : f32 to vector<8x24xf32>
    %711 = arith.addf %710, %709 : vector<8x24xf32>
    %712 = arith.divf %710, %711 : vector<8x24xf32>
    %713 = vector.extract_strided_slice %706 {offsets = [0, 24], sizes = [8, 24], strides = [1, 1]} : vector<8x96xf32> to vector<8x24xf32>
    %714 = arith.negf %713 : vector<8x24xf32>
    %715 = math.exp %714 : vector<8x24xf32>
    %cst_153 = arith.constant 1.000000e+00 : f32
    %716 = vector.broadcast %cst_153 : f32 to vector<8x24xf32>
    %717 = arith.addf %716, %715 : vector<8x24xf32>
    %718 = arith.divf %716, %717 : vector<8x24xf32>
    %719 = vector.extract_strided_slice %706 {offsets = [0, 48], sizes = [8, 24], strides = [1, 1]} : vector<8x96xf32> to vector<8x24xf32>
    %720 = math.tanh %719 : vector<8x24xf32>
    %721 = vector.extract_strided_slice %706 {offsets = [0, 72], sizes = [8, 24], strides = [1, 1]} : vector<8x96xf32> to vector<8x24xf32>
    %722 = arith.negf %721 : vector<8x24xf32>
    %723 = math.exp %722 : vector<8x24xf32>
    %cst_154 = arith.constant 1.000000e+00 : f32
    %724 = vector.broadcast %cst_154 : f32 to vector<8x24xf32>
    %725 = arith.addf %724, %723 : vector<8x24xf32>
    %726 = arith.divf %724, %725 : vector<8x24xf32>
    %727 = arith.mulf %718, %636 : vector<8x24xf32>
    %728 = arith.mulf %712, %720 : vector<8x24xf32>
    %729 = arith.addf %727, %728 : vector<8x24xf32>
    %730 = math.tanh %729 : vector<8x24xf32>
    %731 = arith.mulf %726, %730 : vector<8x24xf32>
    %cst_155 = arith.constant dense<0.000000e+00> : vector<8x128xf32>
    %732 = tpu.matmul %731, %9, %cst_155 {dimension_numbers = #tpu.dot_dimension_numbers<[1], [0], [0], [1], [0, 0, 1, 1], [], []>} : vector<8x24xf32>, vector<24x128xf32>, vector<8x128xf32> -> vector<8x128xf32>
    %cst_156 = arith.constant dense<0.000000e+00> : vector<8x128xf32>
    %733 = tpu.matmul %668, %10, %cst_156 {dimension_numbers = #tpu.dot_dimension_numbers<[1], [0], [0], [1], [0, 0, 1, 1], [], []>} : vector<8x32xf32>, vector<32x128xf32>, vector<8x128xf32> -> vector<8x128xf32>
    %734 = arith.addf %732, %733 : vector<8x128xf32>
    %735 = vector.broadcast %11 : vector<1x128xf32> to vector<8x128xf32>
    %736 = arith.addf %734, %735 : vector<8x128xf32>
    %737 = vector.extract_strided_slice %736 {offsets = [0, 0], sizes = [8, 32], strides = [1, 1]} : vector<8x128xf32> to vector<8x32xf32>
    %738 = arith.negf %737 : vector<8x32xf32>
    %739 = math.exp %738 : vector<8x32xf32>
    %cst_157 = arith.constant 1.000000e+00 : f32
    %740 = vector.broadcast %cst_157 : f32 to vector<8x32xf32>
    %741 = arith.addf %740, %739 : vector<8x32xf32>
    %742 = arith.divf %740, %741 : vector<8x32xf32>
    %743 = vector.extract_strided_slice %736 {offsets = [0, 32], sizes = [8, 32], strides = [1, 1]} : vector<8x128xf32> to vector<8x32xf32>
    %744 = arith.negf %743 : vector<8x32xf32>
    %745 = math.exp %744 : vector<8x32xf32>
    %cst_158 = arith.constant 1.000000e+00 : f32
    %746 = vector.broadcast %cst_158 : f32 to vector<8x32xf32>
    %747 = arith.addf %746, %745 : vector<8x32xf32>
    %748 = arith.divf %746, %747 : vector<8x32xf32>
    %749 = vector.extract_strided_slice %736 {offsets = [0, 64], sizes = [8, 32], strides = [1, 1]} : vector<8x128xf32> to vector<8x32xf32>
    %750 = math.tanh %749 : vector<8x32xf32>
    %751 = vector.extract_strided_slice %736 {offsets = [0, 96], sizes = [8, 32], strides = [1, 1]} : vector<8x128xf32> to vector<8x32xf32>
    %752 = arith.negf %751 : vector<8x32xf32>
    %753 = math.exp %752 : vector<8x32xf32>
    %cst_159 = arith.constant 1.000000e+00 : f32
    %754 = vector.broadcast %cst_159 : f32 to vector<8x32xf32>
    %755 = arith.addf %754, %753 : vector<8x32xf32>
    %756 = arith.divf %754, %755 : vector<8x32xf32>
    %757 = arith.mulf %748, %666 : vector<8x32xf32>
    %758 = arith.mulf %742, %750 : vector<8x32xf32>
    %759 = arith.addf %757, %758 : vector<8x32xf32>
    %760 = math.tanh %759 : vector<8x32xf32>
    %761 = arith.mulf %756, %760 : vector<8x32xf32>
    %c8_i32_160 = arith.constant 8 : i32
    %c0_161 = arith.constant 0 : index
    %c0_162 = arith.constant 0 : index
    %762 = vector.load %arg16[%c0_161, %c0_162] : memref<1x32xf32, #tpu.memory_space<vmem>>, vector<1x32xf32>
    %763 = vector.broadcast %762 : vector<1x32xf32> to vector<8x32xf32>
    %764 = arith.mulf %761, %763 : vector<8x32xf32>
    %cst_163 = arith.constant dense<0.000000e+00> : vector<8xf32>
    %765 = vector.multi_reduction <add>, %764, %cst_163 [1] : vector<8x32xf32> to vector<8xf32>
    %766 = vector.shape_cast %765 : vector<8xf32> to vector<8x1xf32>
    %c0_164 = arith.constant 0 : index
    %c0_165 = arith.constant 0 : index
    %767 = vector.load %arg17[%c0_164, %c0_165] : memref<1x1xf32, #tpu.memory_space<vmem>>, vector<1x1xf32>
    %768 = vector.broadcast %767 : vector<1x1xf32> to vector<8x1xf32>
    %769 = arith.addf %766, %768 : vector<8x1xf32>
    %cst_166 = arith.constant 0.000000e+00 : f32
    %770 = vector.broadcast %cst_166 : f32 to vector<8x1xf32>
    %771 = arith.cmpf oge, %769, %770 : vector<8x1xf32>
    %cst_167 = arith.constant 0.00999999977 : f32
    %772 = vector.broadcast %cst_167 : f32 to vector<8x1xf32>
    %773 = arith.mulf %772, %769 : vector<8x1xf32>
    %774 = arith.select %771, %769, %773 : vector<8x1xi1>, vector<8x1xf32>
    %c0_168 = arith.constant 0 : index
    %c0_169 = arith.constant 0 : index
    %775 = vector.load %arg18[%c0_168, %c0_169] : memref<1x64xf32, #tpu.memory_space<vmem>>, vector<1x64xf32>
    %c0_170 = arith.constant 0 : index
    %c0_171 = arith.constant 0 : index
    %776 = vector.load %arg19[%c0_170, %c0_171] : memref<16x64xf32, #tpu.memory_space<vmem>>, vector<16x64xf32>
    %c0_172 = arith.constant 0 : index
    %c0_173 = arith.constant 0 : index
    %777 = vector.load %arg20[%c0_172, %c0_173] : memref<1x64xf32, #tpu.memory_space<vmem>>, vector<1x64xf32>
    %c0_174 = arith.constant 0 : index
    %c0_175 = arith.constant 0 : index
    %778 = vector.load %arg21[%c0_174, %c0_175] : memref<16x96xf32, #tpu.memory_space<vmem>>, vector<16x96xf32>
    %c0_176 = arith.constant 0 : index
    %c0_177 = arith.constant 0 : index
    %779 = vector.load %arg22[%c0_176, %c0_177] : memref<24x96xf32, #tpu.memory_space<vmem>>, vector<24x96xf32>
    %c0_178 = arith.constant 0 : index
    %c0_179 = arith.constant 0 : index
    %780 = vector.load %arg23[%c0_178, %c0_179] : memref<1x96xf32, #tpu.memory_space<vmem>>, vector<1x96xf32>
    %c0_180 = arith.constant 0 : index
    %c0_181 = arith.constant 0 : index
    %781 = vector.load %arg24[%c0_180, %c0_181] : memref<24x128xf32, #tpu.memory_space<vmem>>, vector<24x128xf32>
    %c0_182 = arith.constant 0 : index
    %c0_183 = arith.constant 0 : index
    %782 = vector.load %arg25[%c0_182, %c0_183] : memref<32x128xf32, #tpu.memory_space<vmem>>, vector<32x128xf32>
    %c0_184 = arith.constant 0 : index
    %c0_185 = arith.constant 0 : index
    %783 = vector.load %arg26[%c0_184, %c0_185] : memref<1x128xf32, #tpu.memory_space<vmem>>, vector<1x128xf32>
    %c0_186 = arith.constant 0 : index
    %c0_187 = arith.constant 0 : index
    %784 = vector.load %arg27[%c0_186, %c0_187] : memref<1x32xf32, #tpu.memory_space<vmem>>, vector<1x32xf32>
    %c0_188 = arith.constant 0 : index
    %c0_189 = arith.constant 0 : index
    %785 = vector.load %arg28[%c0_188, %c0_189] : memref<1x1xf32, #tpu.memory_space<vmem>>, vector<1x1xf32>
    %c0_i32_190 = arith.constant 0 : i32
    %786 = vector.broadcast %774 : vector<8x1xf32> to vector<8x64xf32>
    %787 = vector.broadcast %775 : vector<1x64xf32> to vector<8x64xf32>
    %788 = arith.mulf %786, %787 : vector<8x64xf32>
    %cst_191 = arith.constant dense<0.000000e+00> : vector<8x64xf32>
    %789 = tpu.matmul %701, %776, %cst_191 {dimension_numbers = #tpu.dot_dimension_numbers<[1], [0], [0], [1], [0, 0, 1, 1], [], []>} : vector<8x16xf32>, vector<16x64xf32>, vector<8x64xf32> -> vector<8x64xf32>
    %790 = arith.addf %788, %789 : vector<8x64xf32>
    %791 = vector.broadcast %777 : vector<1x64xf32> to vector<8x64xf32>
    %792 = arith.addf %790, %791 : vector<8x64xf32>
    %793 = vector.extract_strided_slice %792 {offsets = [0, 0], sizes = [8, 16], strides = [1, 1]} : vector<8x64xf32> to vector<8x16xf32>
    %794 = arith.negf %793 : vector<8x16xf32>
    %795 = math.exp %794 : vector<8x16xf32>
    %cst_192 = arith.constant 1.000000e+00 : f32
    %796 = vector.broadcast %cst_192 : f32 to vector<8x16xf32>
    %797 = arith.addf %796, %795 : vector<8x16xf32>
    %798 = arith.divf %796, %797 : vector<8x16xf32>
    %799 = vector.extract_strided_slice %792 {offsets = [0, 16], sizes = [8, 16], strides = [1, 1]} : vector<8x64xf32> to vector<8x16xf32>
    %800 = arith.negf %799 : vector<8x16xf32>
    %801 = math.exp %800 : vector<8x16xf32>
    %cst_193 = arith.constant 1.000000e+00 : f32
    %802 = vector.broadcast %cst_193 : f32 to vector<8x16xf32>
    %803 = arith.addf %802, %801 : vector<8x16xf32>
    %804 = arith.divf %802, %803 : vector<8x16xf32>
    %805 = vector.extract_strided_slice %792 {offsets = [0, 32], sizes = [8, 16], strides = [1, 1]} : vector<8x64xf32> to vector<8x16xf32>
    %806 = math.tanh %805 : vector<8x16xf32>
    %807 = vector.extract_strided_slice %792 {offsets = [0, 48], sizes = [8, 16], strides = [1, 1]} : vector<8x64xf32> to vector<8x16xf32>
    %808 = arith.negf %807 : vector<8x16xf32>
    %809 = math.exp %808 : vector<8x16xf32>
    %cst_194 = arith.constant 1.000000e+00 : f32
    %810 = vector.broadcast %cst_194 : f32 to vector<8x16xf32>
    %811 = arith.addf %810, %809 : vector<8x16xf32>
    %812 = arith.divf %810, %811 : vector<8x16xf32>
    %813 = arith.mulf %804, %699 : vector<8x16xf32>
    %814 = arith.mulf %798, %806 : vector<8x16xf32>
    %815 = arith.addf %813, %814 : vector<8x16xf32>
    %816 = math.tanh %815 : vector<8x16xf32>
    %817 = arith.mulf %812, %816 : vector<8x16xf32>
    %cst_195 = arith.constant dense<0.000000e+00> : vector<8x96xf32>
    %818 = tpu.matmul %817, %778, %cst_195 {dimension_numbers = #tpu.dot_dimension_numbers<[1], [0], [0], [1], [0, 0, 1, 1], [], []>} : vector<8x16xf32>, vector<16x96xf32>, vector<8x96xf32> -> vector<8x96xf32>
    %cst_196 = arith.constant dense<0.000000e+00> : vector<8x96xf32>
    %819 = tpu.matmul %731, %779, %cst_196 {dimension_numbers = #tpu.dot_dimension_numbers<[1], [0], [0], [1], [0, 0, 1, 1], [], []>} : vector<8x24xf32>, vector<24x96xf32>, vector<8x96xf32> -> vector<8x96xf32>
    %820 = arith.addf %818, %819 : vector<8x96xf32>
    %821 = vector.broadcast %780 : vector<1x96xf32> to vector<8x96xf32>
    %822 = arith.addf %820, %821 : vector<8x96xf32>
    %823 = vector.extract_strided_slice %822 {offsets = [0, 0], sizes = [8, 24], strides = [1, 1]} : vector<8x96xf32> to vector<8x24xf32>
    %824 = arith.negf %823 : vector<8x24xf32>
    %825 = math.exp %824 : vector<8x24xf32>
    %cst_197 = arith.constant 1.000000e+00 : f32
    %826 = vector.broadcast %cst_197 : f32 to vector<8x24xf32>
    %827 = arith.addf %826, %825 : vector<8x24xf32>
    %828 = arith.divf %826, %827 : vector<8x24xf32>
    %829 = vector.extract_strided_slice %822 {offsets = [0, 24], sizes = [8, 24], strides = [1, 1]} : vector<8x96xf32> to vector<8x24xf32>
    %830 = arith.negf %829 : vector<8x24xf32>
    %831 = math.exp %830 : vector<8x24xf32>
    %cst_198 = arith.constant 1.000000e+00 : f32
    %832 = vector.broadcast %cst_198 : f32 to vector<8x24xf32>
    %833 = arith.addf %832, %831 : vector<8x24xf32>
    %834 = arith.divf %832, %833 : vector<8x24xf32>
    %835 = vector.extract_strided_slice %822 {offsets = [0, 48], sizes = [8, 24], strides = [1, 1]} : vector<8x96xf32> to vector<8x24xf32>
    %836 = math.tanh %835 : vector<8x24xf32>
    %837 = vector.extract_strided_slice %822 {offsets = [0, 72], sizes = [8, 24], strides = [1, 1]} : vector<8x96xf32> to vector<8x24xf32>
    %838 = arith.negf %837 : vector<8x24xf32>
    %839 = math.exp %838 : vector<8x24xf32>
    %cst_199 = arith.constant 1.000000e+00 : f32
    %840 = vector.broadcast %cst_199 : f32 to vector<8x24xf32>
    %841 = arith.addf %840, %839 : vector<8x24xf32>
    %842 = arith.divf %840, %841 : vector<8x24xf32>
    %843 = arith.mulf %834, %729 : vector<8x24xf32>
    %844 = arith.mulf %828, %836 : vector<8x24xf32>
    %845 = arith.addf %843, %844 : vector<8x24xf32>
    %846 = math.tanh %845 : vector<8x24xf32>
    %847 = arith.mulf %842, %846 : vector<8x24xf32>
    %cst_200 = arith.constant dense<0.000000e+00> : vector<8x128xf32>
    %848 = tpu.matmul %847, %781, %cst_200 {dimension_numbers = #tpu.dot_dimension_numbers<[1], [0], [0], [1], [0, 0, 1, 1], [], []>} : vector<8x24xf32>, vector<24x128xf32>, vector<8x128xf32> -> vector<8x128xf32>
    %cst_201 = arith.constant dense<0.000000e+00> : vector<8x128xf32>
    %849 = tpu.matmul %761, %782, %cst_201 {dimension_numbers = #tpu.dot_dimension_numbers<[1], [0], [0], [1], [0, 0, 1, 1], [], []>} : vector<8x32xf32>, vector<32x128xf32>, vector<8x128xf32> -> vector<8x128xf32>
    %850 = arith.addf %848, %849 : vector<8x128xf32>
    %851 = vector.broadcast %783 : vector<1x128xf32> to vector<8x128xf32>
    %852 = arith.addf %850, %851 : vector<8x128xf32>
    %853 = vector.extract_strided_slice %852 {offsets = [0, 0], sizes = [8, 32], strides = [1, 1]} : vector<8x128xf32> to vector<8x32xf32>
    %854 = arith.negf %853 : vector<8x32xf32>
    %855 = math.exp %854 : vector<8x32xf32>
    %cst_202 = arith.constant 1.000000e+00 : f32
    %856 = vector.broadcast %cst_202 : f32 to vector<8x32xf32>
    %857 = arith.addf %856, %855 : vector<8x32xf32>
    %858 = arith.divf %856, %857 : vector<8x32xf32>
    %859 = vector.extract_strided_slice %852 {offsets = [0, 32], sizes = [8, 32], strides = [1, 1]} : vector<8x128xf32> to vector<8x32xf32>
    %860 = arith.negf %859 : vector<8x32xf32>
    %861 = math.exp %860 : vector<8x32xf32>
    %cst_203 = arith.constant 1.000000e+00 : f32
    %862 = vector.broadcast %cst_203 : f32 to vector<8x32xf32>
    %863 = arith.addf %862, %861 : vector<8x32xf32>
    %864 = arith.divf %862, %863 : vector<8x32xf32>
    %865 = vector.extract_strided_slice %852 {offsets = [0, 64], sizes = [8, 32], strides = [1, 1]} : vector<8x128xf32> to vector<8x32xf32>
    %866 = math.tanh %865 : vector<8x32xf32>
    %867 = vector.extract_strided_slice %852 {offsets = [0, 96], sizes = [8, 32], strides = [1, 1]} : vector<8x128xf32> to vector<8x32xf32>
    %868 = arith.negf %867 : vector<8x32xf32>
    %869 = math.exp %868 : vector<8x32xf32>
    %cst_204 = arith.constant 1.000000e+00 : f32
    %870 = vector.broadcast %cst_204 : f32 to vector<8x32xf32>
    %871 = arith.addf %870, %869 : vector<8x32xf32>
    %872 = arith.divf %870, %871 : vector<8x32xf32>
    %873 = arith.mulf %864, %759 : vector<8x32xf32>
    %874 = arith.mulf %858, %866 : vector<8x32xf32>
    %875 = arith.addf %873, %874 : vector<8x32xf32>
    %876 = math.tanh %875 : vector<8x32xf32>
    %877 = arith.mulf %872, %876 : vector<8x32xf32>
    %878 = vector.broadcast %784 : vector<1x32xf32> to vector<8x32xf32>
    %879 = arith.mulf %877, %878 : vector<8x32xf32>
    %cst_205 = arith.constant dense<0.000000e+00> : vector<8xf32>
    %880 = vector.multi_reduction <add>, %879, %cst_205 [1] : vector<8x32xf32> to vector<8xf32>
    %881 = vector.shape_cast %880 : vector<8xf32> to vector<8x1xf32>
    %882 = vector.broadcast %785 : vector<1x1xf32> to vector<8x1xf32>
    %883 = arith.addf %881, %882 : vector<8x1xf32>
    %cst_206 = arith.constant 0.000000e+00 : f32
    %884 = vector.broadcast %cst_206 : f32 to vector<8x1xf32>
    %885 = arith.cmpf oge, %883, %884 : vector<8x1xf32>
    %cst_207 = arith.constant 0.00999999977 : f32
    %886 = vector.broadcast %cst_207 : f32 to vector<8x1xf32>
    %887 = arith.mulf %886, %883 : vector<8x1xf32>
    %888 = arith.select %885, %883, %887 : vector<8x1xi1>, vector<8x1xf32>
    %889 = arith.index_cast %c0_i32_190 : i32 to index
    %c0_208 = arith.constant 0 : index
    %c0_209 = arith.constant 0 : index
    %890 = vector.load %arg29[%889, %c0_208, %c0_209] : memref<5x8x1xf32, #tpu.memory_space<vmem>>, vector<1x8x1xf32>
    %891 = vector.shape_cast %890 : vector<1x8x1xf32> to vector<8x1xf32>
    %892 = vector.shape_cast %888 : vector<8x1xf32> to vector<1x8x1xf32>
    tpu.vector_store %arg29[%889, %c0_208, %c0_209], %892 {strides = array<i32>} : memref<5x8x1xf32, #tpu.memory_space<vmem>>, vector<1x8x1xf32>,
    %c1_i32_210 = arith.constant 1 : i32
    %893 = vector.broadcast %888 : vector<8x1xf32> to vector<8x64xf32>
    %894 = vector.broadcast %775 : vector<1x64xf32> to vector<8x64xf32>
    %895 = arith.mulf %893, %894 : vector<8x64xf32>
    %cst_211 = arith.constant dense<0.000000e+00> : vector<8x64xf32>
    %896 = tpu.matmul %817, %776, %cst_211 {dimension_numbers = #tpu.dot_dimension_numbers<[1], [0], [0], [1], [0, 0, 1, 1], [], []>} : vector<8x16xf32>, vector<16x64xf32>, vector<8x64xf32> -> vector<8x64xf32>
    %897 = arith.addf %895, %896 : vector<8x64xf32>
    %898 = vector.broadcast %777 : vector<1x64xf32> to vector<8x64xf32>
    %899 = arith.addf %897, %898 : vector<8x64xf32>
    %900 = vector.extract_strided_slice %899 {offsets = [0, 0], sizes = [8, 16], strides = [1, 1]} : vector<8x64xf32> to vector<8x16xf32>
    %901 = arith.negf %900 : vector<8x16xf32>
    %902 = math.exp %901 : vector<8x16xf32>
    %cst_212 = arith.constant 1.000000e+00 : f32
    %903 = vector.broadcast %cst_212 : f32 to vector<8x16xf32>
    %904 = arith.addf %903, %902 : vector<8x16xf32>
    %905 = arith.divf %903, %904 : vector<8x16xf32>
    %906 = vector.extract_strided_slice %899 {offsets = [0, 16], sizes = [8, 16], strides = [1, 1]} : vector<8x64xf32> to vector<8x16xf32>
    %907 = arith.negf %906 : vector<8x16xf32>
    %908 = math.exp %907 : vector<8x16xf32>
    %cst_213 = arith.constant 1.000000e+00 : f32
    %909 = vector.broadcast %cst_213 : f32 to vector<8x16xf32>
    %910 = arith.addf %909, %908 : vector<8x16xf32>
    %911 = arith.divf %909, %910 : vector<8x16xf32>
    %912 = vector.extract_strided_slice %899 {offsets = [0, 32], sizes = [8, 16], strides = [1, 1]} : vector<8x64xf32> to vector<8x16xf32>
    %913 = math.tanh %912 : vector<8x16xf32>
    %914 = vector.extract_strided_slice %899 {offsets = [0, 48], sizes = [8, 16], strides = [1, 1]} : vector<8x64xf32> to vector<8x16xf32>
    %915 = arith.negf %914 : vector<8x16xf32>
    %916 = math.exp %915 : vector<8x16xf32>
    %cst_214 = arith.constant 1.000000e+00 : f32
    %917 = vector.broadcast %cst_214 : f32 to vector<8x16xf32>
    %918 = arith.addf %917, %916 : vector<8x16xf32>
    %919 = arith.divf %917, %918 : vector<8x16xf32>
    %920 = arith.mulf %911, %815 : vector<8x16xf32>
    %921 = arith.mulf %905, %913 : vector<8x16xf32>
    %922 = arith.addf %920, %921 : vector<8x16xf32>
    %923 = math.tanh %922 : vector<8x16xf32>
    %924 = arith.mulf %919, %923 : vector<8x16xf32>
    %cst_215 = arith.constant dense<0.000000e+00> : vector<8x96xf32>
    %925 = tpu.matmul %924, %778, %cst_215 {dimension_numbers = #tpu.dot_dimension_numbers<[1], [0], [0], [1], [0, 0, 1, 1], [], []>} : vector<8x16xf32>, vector<16x96xf32>, vector<8x96xf32> -> vector<8x96xf32>
    %cst_216 = arith.constant dense<0.000000e+00> : vector<8x96xf32>
    %926 = tpu.matmul %847, %779, %cst_216 {dimension_numbers = #tpu.dot_dimension_numbers<[1], [0], [0], [1], [0, 0, 1, 1], [], []>} : vector<8x24xf32>, vector<24x96xf32>, vector<8x96xf32> -> vector<8x96xf32>
    %927 = arith.addf %925, %926 : vector<8x96xf32>
    %928 = vector.broadcast %780 : vector<1x96xf32> to vector<8x96xf32>
    %929 = arith.addf %927, %928 : vector<8x96xf32>
    %930 = vector.extract_strided_slice %929 {offsets = [0, 0], sizes = [8, 24], strides = [1, 1]} : vector<8x96xf32> to vector<8x24xf32>
    %931 = arith.negf %930 : vector<8x24xf32>
    %932 = math.exp %931 : vector<8x24xf32>
    %cst_217 = arith.constant 1.000000e+00 : f32
    %933 = vector.broadcast %cst_217 : f32 to vector<8x24xf32>
    %934 = arith.addf %933, %932 : vector<8x24xf32>
    %935 = arith.divf %933, %934 : vector<8x24xf32>
    %936 = vector.extract_strided_slice %929 {offsets = [0, 24], sizes = [8, 24], strides = [1, 1]} : vector<8x96xf32> to vector<8x24xf32>
    %937 = arith.negf %936 : vector<8x24xf32>
    %938 = math.exp %937 : vector<8x24xf32>
    %cst_218 = arith.constant 1.000000e+00 : f32
    %939 = vector.broadcast %cst_218 : f32 to vector<8x24xf32>
    %940 = arith.addf %939, %938 : vector<8x24xf32>
    %941 = arith.divf %939, %940 : vector<8x24xf32>
    %942 = vector.extract_strided_slice %929 {offsets = [0, 48], sizes = [8, 24], strides = [1, 1]} : vector<8x96xf32> to vector<8x24xf32>
    %943 = math.tanh %942 : vector<8x24xf32>
    %944 = vector.extract_strided_slice %929 {offsets = [0, 72], sizes = [8, 24], strides = [1, 1]} : vector<8x96xf32> to vector<8x24xf32>
    %945 = arith.negf %944 : vector<8x24xf32>
    %946 = math.exp %945 : vector<8x24xf32>
    %cst_219 = arith.constant 1.000000e+00 : f32
    %947 = vector.broadcast %cst_219 : f32 to vector<8x24xf32>
    %948 = arith.addf %947, %946 : vector<8x24xf32>
    %949 = arith.divf %947, %948 : vector<8x24xf32>
    %950 = arith.mulf %941, %845 : vector<8x24xf32>
    %951 = arith.mulf %935, %943 : vector<8x24xf32>
    %952 = arith.addf %950, %951 : vector<8x24xf32>
    %953 = math.tanh %952 : vector<8x24xf32>
    %954 = arith.mulf %949, %953 : vector<8x24xf32>
    %cst_220 = arith.constant dense<0.000000e+00> : vector<8x128xf32>
    %955 = tpu.matmul %954, %781, %cst_220 {dimension_numbers = #tpu.dot_dimension_numbers<[1], [0], [0], [1], [0, 0, 1, 1], [], []>} : vector<8x24xf32>, vector<24x128xf32>, vector<8x128xf32> -> vector<8x128xf32>
    %cst_221 = arith.constant dense<0.000000e+00> : vector<8x128xf32>
    %956 = tpu.matmul %877, %782, %cst_221 {dimension_numbers = #tpu.dot_dimension_numbers<[1], [0], [0], [1], [0, 0, 1, 1], [], []>} : vector<8x32xf32>, vector<32x128xf32>, vector<8x128xf32> -> vector<8x128xf32>
    %957 = arith.addf %955, %956 : vector<8x128xf32>
    %958 = vector.broadcast %783 : vector<1x128xf32> to vector<8x128xf32>
    %959 = arith.addf %957, %958 : vector<8x128xf32>
    %960 = vector.extract_strided_slice %959 {offsets = [0, 0], sizes = [8, 32], strides = [1, 1]} : vector<8x128xf32> to vector<8x32xf32>
    %961 = arith.negf %960 : vector<8x32xf32>
    %962 = math.exp %961 : vector<8x32xf32>
    %cst_222 = arith.constant 1.000000e+00 : f32
    %963 = vector.broadcast %cst_222 : f32 to vector<8x32xf32>
    %964 = arith.addf %963, %962 : vector<8x32xf32>
    %965 = arith.divf %963, %964 : vector<8x32xf32>
    %966 = vector.extract_strided_slice %959 {offsets = [0, 32], sizes = [8, 32], strides = [1, 1]} : vector<8x128xf32> to vector<8x32xf32>
    %967 = arith.negf %966 : vector<8x32xf32>
    %968 = math.exp %967 : vector<8x32xf32>
    %cst_223 = arith.constant 1.000000e+00 : f32
    %969 = vector.broadcast %cst_223 : f32 to vector<8x32xf32>
    %970 = arith.addf %969, %968 : vector<8x32xf32>
    %971 = arith.divf %969, %970 : vector<8x32xf32>
    %972 = vector.extract_strided_slice %959 {offsets = [0, 64], sizes = [8, 32], strides = [1, 1]} : vector<8x128xf32> to vector<8x32xf32>
    %973 = math.tanh %972 : vector<8x32xf32>
    %974 = vector.extract_strided_slice %959 {offsets = [0, 96], sizes = [8, 32], strides = [1, 1]} : vector<8x128xf32> to vector<8x32xf32>
    %975 = arith.negf %974 : vector<8x32xf32>
    %976 = math.exp %975 : vector<8x32xf32>
    %cst_224 = arith.constant 1.000000e+00 : f32
    %977 = vector.broadcast %cst_224 : f32 to vector<8x32xf32>
    %978 = arith.addf %977, %976 : vector<8x32xf32>
    %979 = arith.divf %977, %978 : vector<8x32xf32>
    %980 = arith.mulf %971, %875 : vector<8x32xf32>
    %981 = arith.mulf %965, %973 : vector<8x32xf32>
    %982 = arith.addf %980, %981 : vector<8x32xf32>
    %983 = math.tanh %982 : vector<8x32xf32>
    %984 = arith.mulf %979, %983 : vector<8x32xf32>
    %985 = vector.broadcast %784 : vector<1x32xf32> to vector<8x32xf32>
    %986 = arith.mulf %984, %985 : vector<8x32xf32>
    %cst_225 = arith.constant dense<0.000000e+00> : vector<8xf32>
    %987 = vector.multi_reduction <add>, %986, %cst_225 [1] : vector<8x32xf32> to vector<8xf32>
    %988 = vector.shape_cast %987 : vector<8xf32> to vector<8x1xf32>
    %989 = vector.broadcast %785 : vector<1x1xf32> to vector<8x1xf32>
    %990 = arith.addf %988, %989 : vector<8x1xf32>
    %cst_226 = arith.constant 0.000000e+00 : f32
    %991 = vector.broadcast %cst_226 : f32 to vector<8x1xf32>
    %992 = arith.cmpf oge, %990, %991 : vector<8x1xf32>
    %cst_227 = arith.constant 0.00999999977 : f32
    %993 = vector.broadcast %cst_227 : f32 to vector<8x1xf32>
    %994 = arith.mulf %993, %990 : vector<8x1xf32>
    %995 = arith.select %992, %990, %994 : vector<8x1xi1>, vector<8x1xf32>
    %996 = arith.index_cast %c1_i32_210 : i32 to index
    %c0_228 = arith.constant 0 : index
    %c0_229 = arith.constant 0 : index
    %997 = vector.load %arg29[%996, %c0_228, %c0_229] : memref<5x8x1xf32, #tpu.memory_space<vmem>>, vector<1x8x1xf32>
    %998 = vector.shape_cast %997 : vector<1x8x1xf32> to vector<8x1xf32>
    %999 = vector.shape_cast %995 : vector<8x1xf32> to vector<1x8x1xf32>
    tpu.vector_store %arg29[%996, %c0_228, %c0_229], %999 {strides = array<i32>} : memref<5x8x1xf32, #tpu.memory_space<vmem>>, vector<1x8x1xf32>,
    %c2_i32_230 = arith.constant 2 : i32
    %1000 = vector.broadcast %995 : vector<8x1xf32> to vector<8x64xf32>
    %1001 = vector.broadcast %775 : vector<1x64xf32> to vector<8x64xf32>
    %1002 = arith.mulf %1000, %1001 : vector<8x64xf32>
    %cst_231 = arith.constant dense<0.000000e+00> : vector<8x64xf32>
    %1003 = tpu.matmul %924, %776, %cst_231 {dimension_numbers = #tpu.dot_dimension_numbers<[1], [0], [0], [1], [0, 0, 1, 1], [], []>} : vector<8x16xf32>, vector<16x64xf32>, vector<8x64xf32> -> vector<8x64xf32>
    %1004 = arith.addf %1002, %1003 : vector<8x64xf32>
    %1005 = vector.broadcast %777 : vector<1x64xf32> to vector<8x64xf32>
    %1006 = arith.addf %1004, %1005 : vector<8x64xf32>
    %1007 = vector.extract_strided_slice %1006 {offsets = [0, 0], sizes = [8, 16], strides = [1, 1]} : vector<8x64xf32> to vector<8x16xf32>
    %1008 = arith.negf %1007 : vector<8x16xf32>
    %1009 = math.exp %1008 : vector<8x16xf32>
    %cst_232 = arith.constant 1.000000e+00 : f32
    %1010 = vector.broadcast %cst_232 : f32 to vector<8x16xf32>
    %1011 = arith.addf %1010, %1009 : vector<8x16xf32>
    %1012 = arith.divf %1010, %1011 : vector<8x16xf32>
    %1013 = vector.extract_strided_slice %1006 {offsets = [0, 16], sizes = [8, 16], strides = [1, 1]} : vector<8x64xf32> to vector<8x16xf32>
    %1014 = arith.negf %1013 : vector<8x16xf32>
    %1015 = math.exp %1014 : vector<8x16xf32>
    %cst_233 = arith.constant 1.000000e+00 : f32
    %1016 = vector.broadcast %cst_233 : f32 to vector<8x16xf32>
    %1017 = arith.addf %1016, %1015 : vector<8x16xf32>
    %1018 = arith.divf %1016, %1017 : vector<8x16xf32>
    %1019 = vector.extract_strided_slice %1006 {offsets = [0, 32], sizes = [8, 16], strides = [1, 1]} : vector<8x64xf32> to vector<8x16xf32>
    %1020 = math.tanh %1019 : vector<8x16xf32>
    %1021 = vector.extract_strided_slice %1006 {offsets = [0, 48], sizes = [8, 16], strides = [1, 1]} : vector<8x64xf32> to vector<8x16xf32>
    %1022 = arith.negf %1021 : vector<8x16xf32>
    %1023 = math.exp %1022 : vector<8x16xf32>
    %cst_234 = arith.constant 1.000000e+00 : f32
    %1024 = vector.broadcast %cst_234 : f32 to vector<8x16xf32>
    %1025 = arith.addf %1024, %1023 : vector<8x16xf32>
    %1026 = arith.divf %1024, %1025 : vector<8x16xf32>
    %1027 = arith.mulf %1018, %922 : vector<8x16xf32>
    %1028 = arith.mulf %1012, %1020 : vector<8x16xf32>
    %1029 = arith.addf %1027, %1028 : vector<8x16xf32>
    %1030 = math.tanh %1029 : vector<8x16xf32>
    %1031 = arith.mulf %1026, %1030 : vector<8x16xf32>
    %cst_235 = arith.constant dense<0.000000e+00> : vector<8x96xf32>
    %1032 = tpu.matmul %1031, %778, %cst_235 {dimension_numbers = #tpu.dot_dimension_numbers<[1], [0], [0], [1], [0, 0, 1, 1], [], []>} : vector<8x16xf32>, vector<16x96xf32>, vector<8x96xf32> -> vector<8x96xf32>
    %cst_236 = arith.constant dense<0.000000e+00> : vector<8x96xf32>
    %1033 = tpu.matmul %954, %779, %cst_236 {dimension_numbers = #tpu.dot_dimension_numbers<[1], [0], [0], [1], [0, 0, 1, 1], [], []>} : vector<8x24xf32>, vector<24x96xf32>, vector<8x96xf32> -> vector<8x96xf32>
    %1034 = arith.addf %1032, %1033 : vector<8x96xf32>
    %1035 = vector.broadcast %780 : vector<1x96xf32> to vector<8x96xf32>
    %1036 = arith.addf %1034, %1035 : vector<8x96xf32>
    %1037 = vector.extract_strided_slice %1036 {offsets = [0, 0], sizes = [8, 24], strides = [1, 1]} : vector<8x96xf32> to vector<8x24xf32>
    %1038 = arith.negf %1037 : vector<8x24xf32>
    %1039 = math.exp %1038 : vector<8x24xf32>
    %cst_237 = arith.constant 1.000000e+00 : f32
    %1040 = vector.broadcast %cst_237 : f32 to vector<8x24xf32>
    %1041 = arith.addf %1040, %1039 : vector<8x24xf32>
    %1042 = arith.divf %1040, %1041 : vector<8x24xf32>
    %1043 = vector.extract_strided_slice %1036 {offsets = [0, 24], sizes = [8, 24], strides = [1, 1]} : vector<8x96xf32> to vector<8x24xf32>
    %1044 = arith.negf %1043 : vector<8x24xf32>
    %1045 = math.exp %1044 : vector<8x24xf32>
    %cst_238 = arith.constant 1.000000e+00 : f32
    %1046 = vector.broadcast %cst_238 : f32 to vector<8x24xf32>
    %1047 = arith.addf %1046, %1045 : vector<8x24xf32>
    %1048 = arith.divf %1046, %1047 : vector<8x24xf32>
    %1049 = vector.extract_strided_slice %1036 {offsets = [0, 48], sizes = [8, 24], strides = [1, 1]} : vector<8x96xf32> to vector<8x24xf32>
    %1050 = math.tanh %1049 : vector<8x24xf32>
    %1051 = vector.extract_strided_slice %1036 {offsets = [0, 72], sizes = [8, 24], strides = [1, 1]} : vector<8x96xf32> to vector<8x24xf32>
    %1052 = arith.negf %1051 : vector<8x24xf32>
    %1053 = math.exp %1052 : vector<8x24xf32>
    %cst_239 = arith.constant 1.000000e+00 : f32
    %1054 = vector.broadcast %cst_239 : f32 to vector<8x24xf32>
    %1055 = arith.addf %1054, %1053 : vector<8x24xf32>
    %1056 = arith.divf %1054, %1055 : vector<8x24xf32>
    %1057 = arith.mulf %1048, %952 : vector<8x24xf32>
    %1058 = arith.mulf %1042, %1050 : vector<8x24xf32>
    %1059 = arith.addf %1057, %1058 : vector<8x24xf32>
    %1060 = math.tanh %1059 : vector<8x24xf32>
    %1061 = arith.mulf %1056, %1060 : vector<8x24xf32>
    %cst_240 = arith.constant dense<0.000000e+00> : vector<8x128xf32>
    %1062 = tpu.matmul %1061, %781, %cst_240 {dimension_numbers = #tpu.dot_dimension_numbers<[1], [0], [0], [1], [0, 0, 1, 1], [], []>} : vector<8x24xf32>, vector<24x128xf32>, vector<8x128xf32> -> vector<8x128xf32>
    %cst_241 = arith.constant dense<0.000000e+00> : vector<8x128xf32>
    %1063 = tpu.matmul %984, %782, %cst_241 {dimension_numbers = #tpu.dot_dimension_numbers<[1], [0], [0], [1], [0, 0, 1, 1], [], []>} : vector<8x32xf32>, vector<32x128xf32>, vector<8x128xf32> -> vector<8x128xf32>
    %1064 = arith.addf %1062, %1063 : vector<8x128xf32>
    %1065 = vector.broadcast %783 : vector<1x128xf32> to vector<8x128xf32>
    %1066 = arith.addf %1064, %1065 : vector<8x128xf32>
    %1067 = vector.extract_strided_slice %1066 {offsets = [0, 0], sizes = [8, 32], strides = [1, 1]} : vector<8x128xf32> to vector<8x32xf32>
    %1068 = arith.negf %1067 : vector<8x32xf32>
    %1069 = math.exp %1068 : vector<8x32xf32>
    %cst_242 = arith.constant 1.000000e+00 : f32
    %1070 = vector.broadcast %cst_242 : f32 to vector<8x32xf32>
    %1071 = arith.addf %1070, %1069 : vector<8x32xf32>
    %1072 = arith.divf %1070, %1071 : vector<8x32xf32>
    %1073 = vector.extract_strided_slice %1066 {offsets = [0, 32], sizes = [8, 32], strides = [1, 1]} : vector<8x128xf32> to vector<8x32xf32>
    %1074 = arith.negf %1073 : vector<8x32xf32>
    %1075 = math.exp %1074 : vector<8x32xf32>
    %cst_243 = arith.constant 1.000000e+00 : f32
    %1076 = vector.broadcast %cst_243 : f32 to vector<8x32xf32>
    %1077 = arith.addf %1076, %1075 : vector<8x32xf32>
    %1078 = arith.divf %1076, %1077 : vector<8x32xf32>
    %1079 = vector.extract_strided_slice %1066 {offsets = [0, 64], sizes = [8, 32], strides = [1, 1]} : vector<8x128xf32> to vector<8x32xf32>
    %1080 = math.tanh %1079 : vector<8x32xf32>
    %1081 = vector.extract_strided_slice %1066 {offsets = [0, 96], sizes = [8, 32], strides = [1, 1]} : vector<8x128xf32> to vector<8x32xf32>
    %1082 = arith.negf %1081 : vector<8x32xf32>
    %1083 = math.exp %1082 : vector<8x32xf32>
    %cst_244 = arith.constant 1.000000e+00 : f32
    %1084 = vector.broadcast %cst_244 : f32 to vector<8x32xf32>
    %1085 = arith.addf %1084, %1083 : vector<8x32xf32>
    %1086 = arith.divf %1084, %1085 : vector<8x32xf32>
    %1087 = arith.mulf %1078, %982 : vector<8x32xf32>
    %1088 = arith.mulf %1072, %1080 : vector<8x32xf32>
    %1089 = arith.addf %1087, %1088 : vector<8x32xf32>
    %1090 = math.tanh %1089 : vector<8x32xf32>
    %1091 = arith.mulf %1086, %1090 : vector<8x32xf32>
    %1092 = vector.broadcast %784 : vector<1x32xf32> to vector<8x32xf32>
    %1093 = arith.mulf %1091, %1092 : vector<8x32xf32>
    %cst_245 = arith.constant dense<0.000000e+00> : vector<8xf32>
    %1094 = vector.multi_reduction <add>, %1093, %cst_245 [1] : vector<8x32xf32> to vector<8xf32>
    %1095 = vector.shape_cast %1094 : vector<8xf32> to vector<8x1xf32>
    %1096 = vector.broadcast %785 : vector<1x1xf32> to vector<8x1xf32>
    %1097 = arith.addf %1095, %1096 : vector<8x1xf32>
    %cst_246 = arith.constant 0.000000e+00 : f32
    %1098 = vector.broadcast %cst_246 : f32 to vector<8x1xf32>
    %1099 = arith.cmpf oge, %1097, %1098 : vector<8x1xf32>
    %cst_247 = arith.constant 0.00999999977 : f32
    %1100 = vector.broadcast %cst_247 : f32 to vector<8x1xf32>
    %1101 = arith.mulf %1100, %1097 : vector<8x1xf32>
    %1102 = arith.select %1099, %1097, %1101 : vector<8x1xi1>, vector<8x1xf32>
    %1103 = arith.index_cast %c2_i32_230 : i32 to index
    %c0_248 = arith.constant 0 : index
    %c0_249 = arith.constant 0 : index
    %1104 = vector.load %arg29[%1103, %c0_248, %c0_249] : memref<5x8x1xf32, #tpu.memory_space<vmem>>, vector<1x8x1xf32>
    %1105 = vector.shape_cast %1104 : vector<1x8x1xf32> to vector<8x1xf32>
    %1106 = vector.shape_cast %1102 : vector<8x1xf32> to vector<1x8x1xf32>
    tpu.vector_store %arg29[%1103, %c0_248, %c0_249], %1106 {strides = array<i32>} : memref<5x8x1xf32, #tpu.memory_space<vmem>>, vector<1x8x1xf32>,
    %c3_i32_250 = arith.constant 3 : i32
    %1107 = vector.broadcast %1102 : vector<8x1xf32> to vector<8x64xf32>
    %1108 = vector.broadcast %775 : vector<1x64xf32> to vector<8x64xf32>
    %1109 = arith.mulf %1107, %1108 : vector<8x64xf32>
    %cst_251 = arith.constant dense<0.000000e+00> : vector<8x64xf32>
    %1110 = tpu.matmul %1031, %776, %cst_251 {dimension_numbers = #tpu.dot_dimension_numbers<[1], [0], [0], [1], [0, 0, 1, 1], [], []>} : vector<8x16xf32>, vector<16x64xf32>, vector<8x64xf32> -> vector<8x64xf32>
    %1111 = arith.addf %1109, %1110 : vector<8x64xf32>
    %1112 = vector.broadcast %777 : vector<1x64xf32> to vector<8x64xf32>
    %1113 = arith.addf %1111, %1112 : vector<8x64xf32>
    %1114 = vector.extract_strided_slice %1113 {offsets = [0, 0], sizes = [8, 16], strides = [1, 1]} : vector<8x64xf32> to vector<8x16xf32>
    %1115 = arith.negf %1114 : vector<8x16xf32>
    %1116 = math.exp %1115 : vector<8x16xf32>
    %cst_252 = arith.constant 1.000000e+00 : f32
    %1117 = vector.broadcast %cst_252 : f32 to vector<8x16xf32>
    %1118 = arith.addf %1117, %1116 : vector<8x16xf32>
    %1119 = arith.divf %1117, %1118 : vector<8x16xf32>
    %1120 = vector.extract_strided_slice %1113 {offsets = [0, 16], sizes = [8, 16], strides = [1, 1]} : vector<8x64xf32> to vector<8x16xf32>
    %1121 = arith.negf %1120 : vector<8x16xf32>
    %1122 = math.exp %1121 : vector<8x16xf32>
    %cst_253 = arith.constant 1.000000e+00 : f32
    %1123 = vector.broadcast %cst_253 : f32 to vector<8x16xf32>
    %1124 = arith.addf %1123, %1122 : vector<8x16xf32>
    %1125 = arith.divf %1123, %1124 : vector<8x16xf32>
    %1126 = vector.extract_strided_slice %1113 {offsets = [0, 32], sizes = [8, 16], strides = [1, 1]} : vector<8x64xf32> to vector<8x16xf32>
    %1127 = math.tanh %1126 : vector<8x16xf32>
    %1128 = vector.extract_strided_slice %1113 {offsets = [0, 48], sizes = [8, 16], strides = [1, 1]} : vector<8x64xf32> to vector<8x16xf32>
    %1129 = arith.negf %1128 : vector<8x16xf32>
    %1130 = math.exp %1129 : vector<8x16xf32>
    %cst_254 = arith.constant 1.000000e+00 : f32
    %1131 = vector.broadcast %cst_254 : f32 to vector<8x16xf32>
    %1132 = arith.addf %1131, %1130 : vector<8x16xf32>
    %1133 = arith.divf %1131, %1132 : vector<8x16xf32>
    %1134 = arith.mulf %1125, %1029 : vector<8x16xf32>
    %1135 = arith.mulf %1119, %1127 : vector<8x16xf32>
    %1136 = arith.addf %1134, %1135 : vector<8x16xf32>
    %1137 = math.tanh %1136 : vector<8x16xf32>
    %1138 = arith.mulf %1133, %1137 : vector<8x16xf32>
    %cst_255 = arith.constant dense<0.000000e+00> : vector<8x96xf32>
    %1139 = tpu.matmul %1138, %778, %cst_255 {dimension_numbers = #tpu.dot_dimension_numbers<[1], [0], [0], [1], [0, 0, 1, 1], [], []>} : vector<8x16xf32>, vector<16x96xf32>, vector<8x96xf32> -> vector<8x96xf32>
    %cst_256 = arith.constant dense<0.000000e+00> : vector<8x96xf32>
    %1140 = tpu.matmul %1061, %779, %cst_256 {dimension_numbers = #tpu.dot_dimension_numbers<[1], [0], [0], [1], [0, 0, 1, 1], [], []>} : vector<8x24xf32>, vector<24x96xf32>, vector<8x96xf32> -> vector<8x96xf32>
    %1141 = arith.addf %1139, %1140 : vector<8x96xf32>
    %1142 = vector.broadcast %780 : vector<1x96xf32> to vector<8x96xf32>
    %1143 = arith.addf %1141, %1142 : vector<8x96xf32>
    %1144 = vector.extract_strided_slice %1143 {offsets = [0, 0], sizes = [8, 24], strides = [1, 1]} : vector<8x96xf32> to vector<8x24xf32>
    %1145 = arith.negf %1144 : vector<8x24xf32>
    %1146 = math.exp %1145 : vector<8x24xf32>
    %cst_257 = arith.constant 1.000000e+00 : f32
    %1147 = vector.broadcast %cst_257 : f32 to vector<8x24xf32>
    %1148 = arith.addf %1147, %1146 : vector<8x24xf32>
    %1149 = arith.divf %1147, %1148 : vector<8x24xf32>
    %1150 = vector.extract_strided_slice %1143 {offsets = [0, 24], sizes = [8, 24], strides = [1, 1]} : vector<8x96xf32> to vector<8x24xf32>
    %1151 = arith.negf %1150 : vector<8x24xf32>
    %1152 = math.exp %1151 : vector<8x24xf32>
    %cst_258 = arith.constant 1.000000e+00 : f32
    %1153 = vector.broadcast %cst_258 : f32 to vector<8x24xf32>
    %1154 = arith.addf %1153, %1152 : vector<8x24xf32>
    %1155 = arith.divf %1153, %1154 : vector<8x24xf32>
    %1156 = vector.extract_strided_slice %1143 {offsets = [0, 48], sizes = [8, 24], strides = [1, 1]} : vector<8x96xf32> to vector<8x24xf32>
    %1157 = math.tanh %1156 : vector<8x24xf32>
    %1158 = vector.extract_strided_slice %1143 {offsets = [0, 72], sizes = [8, 24], strides = [1, 1]} : vector<8x96xf32> to vector<8x24xf32>
    %1159 = arith.negf %1158 : vector<8x24xf32>
    %1160 = math.exp %1159 : vector<8x24xf32>
    %cst_259 = arith.constant 1.000000e+00 : f32
    %1161 = vector.broadcast %cst_259 : f32 to vector<8x24xf32>
    %1162 = arith.addf %1161, %1160 : vector<8x24xf32>
    %1163 = arith.divf %1161, %1162 : vector<8x24xf32>
    %1164 = arith.mulf %1155, %1059 : vector<8x24xf32>
    %1165 = arith.mulf %1149, %1157 : vector<8x24xf32>
    %1166 = arith.addf %1164, %1165 : vector<8x24xf32>
    %1167 = math.tanh %1166 : vector<8x24xf32>
    %1168 = arith.mulf %1163, %1167 : vector<8x24xf32>
    %cst_260 = arith.constant dense<0.000000e+00> : vector<8x128xf32>
    %1169 = tpu.matmul %1168, %781, %cst_260 {dimension_numbers = #tpu.dot_dimension_numbers<[1], [0], [0], [1], [0, 0, 1, 1], [], []>} : vector<8x24xf32>, vector<24x128xf32>, vector<8x128xf32> -> vector<8x128xf32>
    %cst_261 = arith.constant dense<0.000000e+00> : vector<8x128xf32>
    %1170 = tpu.matmul %1091, %782, %cst_261 {dimension_numbers = #tpu.dot_dimension_numbers<[1], [0], [0], [1], [0, 0, 1, 1], [], []>} : vector<8x32xf32>, vector<32x128xf32>, vector<8x128xf32> -> vector<8x128xf32>
    %1171 = arith.addf %1169, %1170 : vector<8x128xf32>
    %1172 = vector.broadcast %783 : vector<1x128xf32> to vector<8x128xf32>
    %1173 = arith.addf %1171, %1172 : vector<8x128xf32>
    %1174 = vector.extract_strided_slice %1173 {offsets = [0, 0], sizes = [8, 32], strides = [1, 1]} : vector<8x128xf32> to vector<8x32xf32>
    %1175 = arith.negf %1174 : vector<8x32xf32>
    %1176 = math.exp %1175 : vector<8x32xf32>
    %cst_262 = arith.constant 1.000000e+00 : f32
    %1177 = vector.broadcast %cst_262 : f32 to vector<8x32xf32>
    %1178 = arith.addf %1177, %1176 : vector<8x32xf32>
    %1179 = arith.divf %1177, %1178 : vector<8x32xf32>
    %1180 = vector.extract_strided_slice %1173 {offsets = [0, 32], sizes = [8, 32], strides = [1, 1]} : vector<8x128xf32> to vector<8x32xf32>
    %1181 = arith.negf %1180 : vector<8x32xf32>
    %1182 = math.exp %1181 : vector<8x32xf32>
    %cst_263 = arith.constant 1.000000e+00 : f32
    %1183 = vector.broadcast %cst_263 : f32 to vector<8x32xf32>
    %1184 = arith.addf %1183, %1182 : vector<8x32xf32>
    %1185 = arith.divf %1183, %1184 : vector<8x32xf32>
    %1186 = vector.extract_strided_slice %1173 {offsets = [0, 64], sizes = [8, 32], strides = [1, 1]} : vector<8x128xf32> to vector<8x32xf32>
    %1187 = math.tanh %1186 : vector<8x32xf32>
    %1188 = vector.extract_strided_slice %1173 {offsets = [0, 96], sizes = [8, 32], strides = [1, 1]} : vector<8x128xf32> to vector<8x32xf32>
    %1189 = arith.negf %1188 : vector<8x32xf32>
    %1190 = math.exp %1189 : vector<8x32xf32>
    %cst_264 = arith.constant 1.000000e+00 : f32
    %1191 = vector.broadcast %cst_264 : f32 to vector<8x32xf32>
    %1192 = arith.addf %1191, %1190 : vector<8x32xf32>
    %1193 = arith.divf %1191, %1192 : vector<8x32xf32>
    %1194 = arith.mulf %1185, %1089 : vector<8x32xf32>
    %1195 = arith.mulf %1179, %1187 : vector<8x32xf32>
    %1196 = arith.addf %1194, %1195 : vector<8x32xf32>
    %1197 = math.tanh %1196 : vector<8x32xf32>
    %1198 = arith.mulf %1193, %1197 : vector<8x32xf32>
    %1199 = vector.broadcast %784 : vector<1x32xf32> to vector<8x32xf32>
    %1200 = arith.mulf %1198, %1199 : vector<8x32xf32>
    %cst_265 = arith.constant dense<0.000000e+00> : vector<8xf32>
    %1201 = vector.multi_reduction <add>, %1200, %cst_265 [1] : vector<8x32xf32> to vector<8xf32>
    %1202 = vector.shape_cast %1201 : vector<8xf32> to vector<8x1xf32>
    %1203 = vector.broadcast %785 : vector<1x1xf32> to vector<8x1xf32>
    %1204 = arith.addf %1202, %1203 : vector<8x1xf32>
    %cst_266 = arith.constant 0.000000e+00 : f32
    %1205 = vector.broadcast %cst_266 : f32 to vector<8x1xf32>
    %1206 = arith.cmpf oge, %1204, %1205 : vector<8x1xf32>
    %cst_267 = arith.constant 0.00999999977 : f32
    %1207 = vector.broadcast %cst_267 : f32 to vector<8x1xf32>
    %1208 = arith.mulf %1207, %1204 : vector<8x1xf32>
    %1209 = arith.select %1206, %1204, %1208 : vector<8x1xi1>, vector<8x1xf32>
    %1210 = arith.index_cast %c3_i32_250 : i32 to index
    %c0_268 = arith.constant 0 : index
    %c0_269 = arith.constant 0 : index
    %1211 = vector.load %arg29[%1210, %c0_268, %c0_269] : memref<5x8x1xf32, #tpu.memory_space<vmem>>, vector<1x8x1xf32>
    %1212 = vector.shape_cast %1211 : vector<1x8x1xf32> to vector<8x1xf32>
    %1213 = vector.shape_cast %1209 : vector<8x1xf32> to vector<1x8x1xf32>
    tpu.vector_store %arg29[%1210, %c0_268, %c0_269], %1213 {strides = array<i32>} : memref<5x8x1xf32, #tpu.memory_space<vmem>>, vector<1x8x1xf32>,
    %c4_i32_270 = arith.constant 4 : i32
    %1214 = vector.broadcast %1209 : vector<8x1xf32> to vector<8x64xf32>
    %1215 = vector.broadcast %775 : vector<1x64xf32> to vector<8x64xf32>
    %1216 = arith.mulf %1214, %1215 : vector<8x64xf32>
    %cst_271 = arith.constant dense<0.000000e+00> : vector<8x64xf32>
    %1217 = tpu.matmul %1138, %776, %cst_271 {dimension_numbers = #tpu.dot_dimension_numbers<[1], [0], [0], [1], [0, 0, 1, 1], [], []>} : vector<8x16xf32>, vector<16x64xf32>, vector<8x64xf32> -> vector<8x64xf32>
    %1218 = arith.addf %1216, %1217 : vector<8x64xf32>
    %1219 = vector.broadcast %777 : vector<1x64xf32> to vector<8x64xf32>
    %1220 = arith.addf %1218, %1219 : vector<8x64xf32>
    %1221 = vector.extract_strided_slice %1220 {offsets = [0, 0], sizes = [8, 16], strides = [1, 1]} : vector<8x64xf32> to vector<8x16xf32>
    %1222 = arith.negf %1221 : vector<8x16xf32>
    %1223 = math.exp %1222 : vector<8x16xf32>
    %cst_272 = arith.constant 1.000000e+00 : f32
    %1224 = vector.broadcast %cst_272 : f32 to vector<8x16xf32>
    %1225 = arith.addf %1224, %1223 : vector<8x16xf32>
    %1226 = arith.divf %1224, %1225 : vector<8x16xf32>
    %1227 = vector.extract_strided_slice %1220 {offsets = [0, 16], sizes = [8, 16], strides = [1, 1]} : vector<8x64xf32> to vector<8x16xf32>
    %1228 = arith.negf %1227 : vector<8x16xf32>
    %1229 = math.exp %1228 : vector<8x16xf32>
    %cst_273 = arith.constant 1.000000e+00 : f32
    %1230 = vector.broadcast %cst_273 : f32 to vector<8x16xf32>
    %1231 = arith.addf %1230, %1229 : vector<8x16xf32>
    %1232 = arith.divf %1230, %1231 : vector<8x16xf32>
    %1233 = vector.extract_strided_slice %1220 {offsets = [0, 32], sizes = [8, 16], strides = [1, 1]} : vector<8x64xf32> to vector<8x16xf32>
    %1234 = math.tanh %1233 : vector<8x16xf32>
    %1235 = vector.extract_strided_slice %1220 {offsets = [0, 48], sizes = [8, 16], strides = [1, 1]} : vector<8x64xf32> to vector<8x16xf32>
    %1236 = arith.negf %1235 : vector<8x16xf32>
    %1237 = math.exp %1236 : vector<8x16xf32>
    %cst_274 = arith.constant 1.000000e+00 : f32
    %1238 = vector.broadcast %cst_274 : f32 to vector<8x16xf32>
    %1239 = arith.addf %1238, %1237 : vector<8x16xf32>
    %1240 = arith.divf %1238, %1239 : vector<8x16xf32>
    %1241 = arith.mulf %1232, %1136 : vector<8x16xf32>
    %1242 = arith.mulf %1226, %1234 : vector<8x16xf32>
    %1243 = arith.addf %1241, %1242 : vector<8x16xf32>
    %1244 = math.tanh %1243 : vector<8x16xf32>
    %1245 = arith.mulf %1240, %1244 : vector<8x16xf32>
    %cst_275 = arith.constant dense<0.000000e+00> : vector<8x96xf32>
    %1246 = tpu.matmul %1245, %778, %cst_275 {dimension_numbers = #tpu.dot_dimension_numbers<[1], [0], [0], [1], [0, 0, 1, 1], [], []>} : vector<8x16xf32>, vector<16x96xf32>, vector<8x96xf32> -> vector<8x96xf32>
    %cst_276 = arith.constant dense<0.000000e+00> : vector<8x96xf32>
    %1247 = tpu.matmul %1168, %779, %cst_276 {dimension_numbers = #tpu.dot_dimension_numbers<[1], [0], [0], [1], [0, 0, 1, 1], [], []>} : vector<8x24xf32>, vector<24x96xf32>, vector<8x96xf32> -> vector<8x96xf32>
    %1248 = arith.addf %1246, %1247 : vector<8x96xf32>
    %1249 = vector.broadcast %780 : vector<1x96xf32> to vector<8x96xf32>
    %1250 = arith.addf %1248, %1249 : vector<8x96xf32>
    %1251 = vector.extract_strided_slice %1250 {offsets = [0, 0], sizes = [8, 24], strides = [1, 1]} : vector<8x96xf32> to vector<8x24xf32>
    %1252 = arith.negf %1251 : vector<8x24xf32>
    %1253 = math.exp %1252 : vector<8x24xf32>
    %cst_277 = arith.constant 1.000000e+00 : f32
    %1254 = vector.broadcast %cst_277 : f32 to vector<8x24xf32>
    %1255 = arith.addf %1254, %1253 : vector<8x24xf32>
    %1256 = arith.divf %1254, %1255 : vector<8x24xf32>
    %1257 = vector.extract_strided_slice %1250 {offsets = [0, 24], sizes = [8, 24], strides = [1, 1]} : vector<8x96xf32> to vector<8x24xf32>
    %1258 = arith.negf %1257 : vector<8x24xf32>
    %1259 = math.exp %1258 : vector<8x24xf32>
    %cst_278 = arith.constant 1.000000e+00 : f32
    %1260 = vector.broadcast %cst_278 : f32 to vector<8x24xf32>
    %1261 = arith.addf %1260, %1259 : vector<8x24xf32>
    %1262 = arith.divf %1260, %1261 : vector<8x24xf32>
    %1263 = vector.extract_strided_slice %1250 {offsets = [0, 48], sizes = [8, 24], strides = [1, 1]} : vector<8x96xf32> to vector<8x24xf32>
    %1264 = math.tanh %1263 : vector<8x24xf32>
    %1265 = vector.extract_strided_slice %1250 {offsets = [0, 72], sizes = [8, 24], strides = [1, 1]} : vector<8x96xf32> to vector<8x24xf32>
    %1266 = arith.negf %1265 : vector<8x24xf32>
    %1267 = math.exp %1266 : vector<8x24xf32>
    %cst_279 = arith.constant 1.000000e+00 : f32
    %1268 = vector.broadcast %cst_279 : f32 to vector<8x24xf32>
    %1269 = arith.addf %1268, %1267 : vector<8x24xf32>
    %1270 = arith.divf %1268, %1269 : vector<8x24xf32>
    %1271 = arith.mulf %1262, %1166 : vector<8x24xf32>
    %1272 = arith.mulf %1256, %1264 : vector<8x24xf32>
    %1273 = arith.addf %1271, %1272 : vector<8x24xf32>
    %1274 = math.tanh %1273 : vector<8x24xf32>
    %1275 = arith.mulf %1270, %1274 : vector<8x24xf32>
    %cst_280 = arith.constant dense<0.000000e+00> : vector<8x128xf32>
    %1276 = tpu.matmul %1275, %781, %cst_280 {dimension_numbers = #tpu.dot_dimension_numbers<[1], [0], [0], [1], [0, 0, 1, 1], [], []>} : vector<8x24xf32>, vector<24x128xf32>, vector<8x128xf32> -> vector<8x128xf32>
    %cst_281 = arith.constant dense<0.000000e+00> : vector<8x128xf32>
    %1277 = tpu.matmul %1198, %782, %cst_281 {dimension_numbers = #tpu.dot_dimension_numbers<[1], [0], [0], [1], [0, 0, 1, 1], [], []>} : vector<8x32xf32>, vector<32x128xf32>, vector<8x128xf32> -> vector<8x128xf32>
    %1278 = arith.addf %1276, %1277 : vector<8x128xf32>
    %1279 = vector.broadcast %783 : vector<1x128xf32> to vector<8x128xf32>
    %1280 = arith.addf %1278, %1279 : vector<8x128xf32>
    %1281 = vector.extract_strided_slice %1280 {offsets = [0, 0], sizes = [8, 32], strides = [1, 1]} : vector<8x128xf32> to vector<8x32xf32>
    %1282 = arith.negf %1281 : vector<8x32xf32>
    %1283 = math.exp %1282 : vector<8x32xf32>
    %cst_282 = arith.constant 1.000000e+00 : f32
    %1284 = vector.broadcast %cst_282 : f32 to vector<8x32xf32>
    %1285 = arith.addf %1284, %1283 : vector<8x32xf32>
    %1286 = arith.divf %1284, %1285 : vector<8x32xf32>
    %1287 = vector.extract_strided_slice %1280 {offsets = [0, 32], sizes = [8, 32], strides = [1, 1]} : vector<8x128xf32> to vector<8x32xf32>
    %1288 = arith.negf %1287 : vector<8x32xf32>
    %1289 = math.exp %1288 : vector<8x32xf32>
    %cst_283 = arith.constant 1.000000e+00 : f32
    %1290 = vector.broadcast %cst_283 : f32 to vector<8x32xf32>
    %1291 = arith.addf %1290, %1289 : vector<8x32xf32>
    %1292 = arith.divf %1290, %1291 : vector<8x32xf32>
    %1293 = vector.extract_strided_slice %1280 {offsets = [0, 64], sizes = [8, 32], strides = [1, 1]} : vector<8x128xf32> to vector<8x32xf32>
    %1294 = math.tanh %1293 : vector<8x32xf32>
    %1295 = vector.extract_strided_slice %1280 {offsets = [0, 96], sizes = [8, 32], strides = [1, 1]} : vector<8x128xf32> to vector<8x32xf32>
    %1296 = arith.negf %1295 : vector<8x32xf32>
    %1297 = math.exp %1296 : vector<8x32xf32>
    %cst_284 = arith.constant 1.000000e+00 : f32
    %1298 = vector.broadcast %cst_284 : f32 to vector<8x32xf32>
    %1299 = arith.addf %1298, %1297 : vector<8x32xf32>
    %1300 = arith.divf %1298, %1299 : vector<8x32xf32>
    %1301 = arith.mulf %1292, %1196 : vector<8x32xf32>
    %1302 = arith.mulf %1286, %1294 : vector<8x32xf32>
    %1303 = arith.addf %1301, %1302 : vector<8x32xf32>
    %1304 = math.tanh %1303 : vector<8x32xf32>
    %1305 = arith.mulf %1300, %1304 : vector<8x32xf32>
    %1306 = vector.broadcast %784 : vector<1x32xf32> to vector<8x32xf32>
    %1307 = arith.mulf %1305, %1306 : vector<8x32xf32>
    %cst_285 = arith.constant dense<0.000000e+00> : vector<8xf32>
    %1308 = vector.multi_reduction <add>, %1307, %cst_285 [1] : vector<8x32xf32> to vector<8xf32>
    %1309 = vector.shape_cast %1308 : vector<8xf32> to vector<8x1xf32>
    %1310 = vector.broadcast %785 : vector<1x1xf32> to vector<8x1xf32>
    %1311 = arith.addf %1309, %1310 : vector<8x1xf32>
    %cst_286 = arith.constant 0.000000e+00 : f32
    %1312 = vector.broadcast %cst_286 : f32 to vector<8x1xf32>
    %1313 = arith.cmpf oge, %1311, %1312 : vector<8x1xf32>
    %cst_287 = arith.constant 0.00999999977 : f32
    %1314 = vector.broadcast %cst_287 : f32 to vector<8x1xf32>
    %1315 = arith.mulf %1314, %1311 : vector<8x1xf32>
    %1316 = arith.select %1313, %1311, %1315 : vector<8x1xi1>, vector<8x1xf32>
    %1317 = arith.index_cast %c4_i32_270 : i32 to index
    %c0_288 = arith.constant 0 : index
    %c0_289 = arith.constant 0 : index
    %1318 = vector.load %arg29[%1317, %c0_288, %c0_289] : memref<5x8x1xf32, #tpu.memory_space<vmem>>, vector<1x8x1xf32>
    %1319 = vector.shape_cast %1318 : vector<1x8x1xf32> to vector<8x1xf32>
    %1320 = vector.shape_cast %1316 : vector<8x1xf32> to vector<1x8x1xf32>
    tpu.vector_store %arg29[%1317, %c0_288, %c0_289], %1320 {strides = array<i32>} : memref<5x8x1xf32, #tpu.memory_space<vmem>>, vector<1x8x1xf32>,
    %c5_i32_290 = arith.constant 5 : i32
    return
  }
}

</mosaic_0001>

<llo_original>
// kernel: seq2seq_forward.1
$region0: #{seq2seq_forward.1}
  #allocation0 [shape = 'u32[]', space=smem, size = 0x4, offset = 0x4, fixed_abs, tag = 'smem constant byte address 0x4 - core index']
  #allocation1 [shape = 'u32[144,128]{1,0:T(1,128)}', space=vmem, size = 0x12000, scoped, tag = 'internal scratch']
  #allocation2 [shape = 'f32[64,64]{1,0:T(8,128)}', space=vmem, size = 0x8000, scoped, tag = 'scratch operand']
  #allocation3 [shape = 'f32[1,1]{1,0:T(1,128)S(1)}', space=vmem, size = 0x200, scoped, tag = 'scoped memory for seq2seq_forward.1']
  #allocation4 [shape = 'f32[1,1]{1,0:T(1,128)S(1)}', space=vmem, size = 0x200, scoped, tag = 'scoped memory for seq2seq_forward.1']
  %s0 = inlined_call_operand.smem [shape: u32[30], index: -1, kind: input, shape index: {}]
  %s1 = sld [smem:[%s0]]
  %s2 = scalar_lea.smem %s0, 1
  %s3 = sld [smem:[%s2]]
  %s4 = scalar_lea.smem %s0, 2
  %s5 = sld [smem:[%s4]]
  %s6 = scalar_lea.smem %s0, 3
  %s7 = sld [smem:[%s6]]
  %s8 = scalar_lea.smem %s0, 4
  %s9 = sld [smem:[%s8]]
  %s10 = scalar_lea.smem %s0, 5
  %s11 = sld [smem:[%s10]]
  %s12 = scalar_lea.smem %s0, 6
  %s13 = sld [smem:[%s12]]
  %s14 = scalar_lea.smem %s0, 7
  %s15 = sld [smem:[%s14]]
  %s16 = scalar_lea.smem %s0, 8
  %s17 = sld [smem:[%s16]]
  %s18 = scalar_lea.smem %s0, 9
  %s19 = sld [smem:[%s18]]
  %s20 = scalar_lea.smem %s0, 10
  %s21 = sld [smem:[%s20]]
  %s22 = scalar_lea.smem %s0, 11
  %s23 = sld [smem:[%s22]]
  %s24 = scalar_lea.smem %s0, 12
  %s25 = sld [smem:[%s24]]
  %s26 = scalar_lea.smem %s0, 13
  %s27 = sld [smem:[%s26]]
  %s28 = scalar_lea.smem %s0, 14
  %s29 = sld [smem:[%s28]]
  %s30 = scalar_lea.smem %s0, 15
  %s31 = sld [smem:[%s30]]
  %s32 = scalar_lea.smem %s0, 16
  %s33 = sld [smem:[%s32]]
  %s34 = scalar_lea.smem %s0, 17
  %s35 = sld [smem:[%s34]]
  %s36 = scalar_lea.smem %s0, 18
  %s37 = sld [smem:[%s36]]
  %s38 = scalar_lea.smem %s0, 19
  %s39 = sld [smem:[%s38]]
  %s40 = scalar_lea.smem %s0, 20
  %s41 = sld [smem:[%s40]]
  %s42 = scalar_lea.smem %s0, 21
  %s43 = sld [smem:[%s42]]
  %s44 = scalar_lea.smem %s0, 22
  %s45 = sld [smem:[%s44]]
  %s46 = scalar_lea.smem %s0, 23
  %s47 = sld [smem:[%s46]]
  %s48 = scalar_lea.smem %s0, 24
  %s49 = sld [smem:[%s48]]
  %s50 = scalar_lea.smem %s0, 25
  %s51 = sld [smem:[%s50]]
  %s52 = scalar_lea.smem %s0, 26
  %s53 = sld [smem:[%s52]]
  %s54 = scalar_lea.smem %s0, 27
  %s55 = sld [smem:[%s54]]
  %s56 = scalar_lea.smem %s0, 28
  %s57 = sld [smem:[%s56]]
  %s58 = scalar_lea.smem %s0, 29
  %s59 = sld [smem:[%s58]]
  %s60 = sld [smem:[#allocation0]]
  $region166: #{seq2seq_forward.1} parent=0
    _
  %s62 = ssub.s32 1, %s60
  %s63 = scalar_select 0, %s62, %s60
  %v64 = vstv %s35
  %65 = vst [vmem:[#allocation3] sm:$0x1] %v64
  %v66 = vstv %s57
  %67 = vst [vmem:[#allocation4] sm:$0x1] %v66
  $region1: #{seq2seq_forward.1} parent=0
    #allocation5 [shape = 'u8[8192]{0}', space=vmem, size = 0x2000, scoped, tag = 'input window, operand 2, single buffered']
    #allocation6 [shape = 's32[1]{0}', space=sflag, size = 0x4, scoped, tag = 'scoped memory for seq2seq_forward.1']
    #allocation7 [shape = 'u8[512]{0}', space=vmem, size = 0x400, scoped, tag = 'input window, operand 3, single buffered']
    #allocation8 [shape = 's32[1]{0}', space=sflag, size = 0x4, scoped, tag = 'scoped memory for seq2seq_forward.1']
    #allocation9 [shape = 'u8[512]{0}', space=vmem, size = 0x400, scoped, tag = 'input window, operand 8, single buffered']
    #allocation10 [shape = 'u8[512]{0}', space=vmem, size = 0x400, scoped, tag = 'input window, operand 18, single buffered']
    #allocation11 [shape = 's32[1]{0}', space=sflag, size = 0x4, scoped, tag = 'scoped memory for seq2seq_forward.1']
    #allocation12 [shape = 'u8[8192]{0}', space=vmem, size = 0x2000, scoped, tag = 'input window, operand 19, single buffered']
    #allocation13 [shape = 'u8[512]{0}', space=vmem, size = 0x400, scoped, tag = 'input window, operand 20, single buffered']
    #allocation14 [shape = 's32[1]{0}', space=sflag, size = 0x4, scoped, tag = 'scoped memory for seq2seq_forward.1']
    #allocation15 [shape = 'u8[8192]{0}', space=vmem, size = 0x2000, scoped, tag = 'input window, operand 21, single buffered']
    #allocation16 [shape = 'u8[512]{0}', space=vmem, size = 0x400, scoped, tag = 'input window, operand 23, single buffered']
    #allocation17 [shape = 's32[1]{0}', space=sflag, size = 0x4, scoped, tag = 'scoped memory for seq2seq_forward.1']
    #allocation18 [shape = 'u8[512]{0}', space=vmem, size = 0x400, scoped, tag = 'input window, operand 26, single buffered']
    #allocation19 [shape = 'u8[512]{0}', space=vmem, size = 0x400, scoped, tag = 'input window, operand 27, single buffered']
    #allocation20 [shape = 's32[1]{0}', space=sflag, size = 0x4, scoped, tag = 'scoped memory for seq2seq_forward.1']
    %68 = vsyncpa [#allocation6], 0
    %69 = vsyncpa [#allocation8], 0
    %70 = vsyncpa [#allocation11], 0
    %71 = vsyncpa [#allocation14], 0
    %72 = vsyncpa [#allocation17], 0
    %73 = vsyncpa [#allocation20], 0
    // Predicated region
    $region2: #{seq2seq_forward.1} parent=1 // pred_check
      _
    $region3: #{seq2seq_forward.1} parent=1 // pred_check_branch
      %75 = sbr.rel (0) target = $region5
    $region4: #{seq2seq_forward.1} parent=1 // pred_region
      _
    $region5: #{seq2seq_forward.1} parent=1 // pred_fallthru
      _
    // Predicated region
    $region6: #{seq2seq_forward.1} parent=1 // pred_check
      _
    $region7: #{seq2seq_forward.1} parent=1 // pred_check_branch
      %77 = sbr.rel (0) target = $region9
    $region8: #{seq2seq_forward.1} parent=1 // pred_region
      _
    $region9: #{seq2seq_forward.1} parent=1 // pred_fallthru
      _
    // Predicated region
    $region10: #{seq2seq_forward.1} parent=1 // pred_check
      _
    $region11: #{seq2seq_forward.1} parent=1 // pred_check_branch
      %79 = sbr.rel (0) target = $region13
    $region12: #{seq2seq_forward.1} parent=1 // pred_region
      %s81 = ssub.s32 256, 256
      %82 = vsyncadd [#allocation6], %s81
      %s83 = sshll.u32 [#allocation5], 4
      %s84 = int_to_ptr.vmem [resolvable:$true] %s83
      %89 = dma.hbm_to_vmem [thread:$0]  %s5, 256, %s84, [#allocation6], 128, 128, 8
    $region13: #{seq2seq_forward.1} parent=1 // pred_fallthru
      _
    // Predicated region
    $region14: #{seq2seq_forward.1} parent=1 // pred_check
      _
    $region15: #{seq2seq_forward.1} parent=1 // pred_check_branch
      %91 = sbr.rel (0) target = $region17
    $region16: #{seq2seq_forward.1} parent=1 // pred_region
      %s93 = ssub.s32 16, 16
      %94 = vsyncadd [#allocation8], %s93
      %s96 = sshll.u32 [#allocation7], 4
      %s97 = int_to_ptr.vmem [resolvable:$true] %s96
      %99 = dma.hbm_to_vmem [thread:$0]  %s7, 16, %s97, [#allocation8]
    $region17: #{seq2seq_forward.1} parent=1 // pred_fallthru
      _
    // Predicated region
    $region18: #{seq2seq_forward.1} parent=1 // pred_check
      _
    $region19: #{seq2seq_forward.1} parent=1 // pred_check_branch
      %101 = sbr.rel (0) target = $region21
    $region20: #{seq2seq_forward.1} parent=1 // pred_region
      _
    $region21: #{seq2seq_forward.1} parent=1 // pred_fallthru
      _
    // Predicated region
    $region22: #{seq2seq_forward.1} parent=1 // pred_check
      _
    $region23: #{seq2seq_forward.1} parent=1 // pred_check_branch
      %103 = sbr.rel (0) target = $region25
    $region24: #{seq2seq_forward.1} parent=1 // pred_region
      _
    $region25: #{seq2seq_forward.1} parent=1 // pred_fallthru
      _
    // Predicated region
    $region26: #{seq2seq_forward.1} parent=1 // pred_check
      _
    $region27: #{seq2seq_forward.1} parent=1 // pred_check_branch
      %105 = sbr.rel (0) target = $region29
    $region28: #{seq2seq_forward.1} parent=1 // pred_region
      _
    $region29: #{seq2seq_forward.1} parent=1 // pred_fallthru
      _
    // Predicated region
    $region30: #{seq2seq_forward.1} parent=1 // pred_check
      _
    $region31: #{seq2seq_forward.1} parent=1 // pred_check_branch
      %107 = sbr.rel (0) target = $region33
    $region32: #{seq2seq_forward.1} parent=1 // pred_region
      _
    $region33: #{seq2seq_forward.1} parent=1 // pred_fallthru
      _
    // Predicated region
    $region34: #{seq2seq_forward.1} parent=1 // pred_check
      _
    $region35: #{seq2seq_forward.1} parent=1 // pred_check_branch
      %109 = sbr.rel (0) target = $region37
    $region36: #{seq2seq_forward.1} parent=1 // pred_region
      %s111 = ssub.s32 16, 16
      %112 = vsyncadd [#allocation8], %s111
      %s114 = sshll.u32 [#allocation9], 4
      %s115 = int_to_ptr.vmem [resolvable:$true] %s114
      %117 = dma.hbm_to_vmem [thread:$0]  %s17, 16, %s115, [#allocation8]
    $region37: #{seq2seq_forward.1} parent=1 // pred_fallthru
      _
    // Predicated region
    $region38: #{seq2seq_forward.1} parent=1 // pred_check
      _
    $region39: #{seq2seq_forward.1} parent=1 // pred_check_branch
      %119 = sbr.rel (0) target = $region41
    $region40: #{seq2seq_forward.1} parent=1 // pred_region
      _
    $region41: #{seq2seq_forward.1} parent=1 // pred_fallthru
      _
    // Predicated region
    $region42: #{seq2seq_forward.1} parent=1 // pred_check
      _
    $region43: #{seq2seq_forward.1} parent=1 // pred_check_branch
      %121 = sbr.rel (0) target = $region45
    $region44: #{seq2seq_forward.1} parent=1 // pred_region
      _
    $region45: #{seq2seq_forward.1} parent=1 // pred_fallthru
      _
    // Predicated region
    $region46: #{seq2seq_forward.1} parent=1 // pred_check
      _
    $region47: #{seq2seq_forward.1} parent=1 // pred_check_branch
      %123 = sbr.rel (0) target = $region49
    $region48: #{seq2seq_forward.1} parent=1 // pred_region
      _
    $region49: #{seq2seq_forward.1} parent=1 // pred_fallthru
      _
    // Predicated region
    $region50: #{seq2seq_forward.1} parent=1 // pred_check
      _
    $region51: #{seq2seq_forward.1} parent=1 // pred_check_branch
      %125 = sbr.rel (0) target = $region53
    $region52: #{seq2seq_forward.1} parent=1 // pred_region
      _
    $region53: #{seq2seq_forward.1} parent=1 // pred_fallthru
      _
    // Predicated region
    $region54: #{seq2seq_forward.1} parent=1 // pred_check
      _
    $region55: #{seq2seq_forward.1} parent=1 // pred_check_branch
      %127 = sbr.rel (0) target = $region57
    $region56: #{seq2seq_forward.1} parent=1 // pred_region
      _
    $region57: #{seq2seq_forward.1} parent=1 // pred_fallthru
      _
    // Predicated region
    $region58: #{seq2seq_forward.1} parent=1 // pred_check
      _
    $region59: #{seq2seq_forward.1} parent=1 // pred_check_branch
      %129 = sbr.rel (0) target = $region61
    $region60: #{seq2seq_forward.1} parent=1 // pred_region
      _
    $region61: #{seq2seq_forward.1} parent=1 // pred_fallthru
      _
    // Predicated region
    $region62: #{seq2seq_forward.1} parent=1 // pred_check
      _
    $region63: #{seq2seq_forward.1} parent=1 // pred_check_branch
      %131 = sbr.rel (0) target = $region65
    $region64: #{seq2seq_forward.1} parent=1 // pred_region
      _
    $region65: #{seq2seq_forward.1} parent=1 // pred_fallthru
      _
    // Predicated region
    $region66: #{seq2seq_forward.1} parent=1 // pred_check
      _
    $region67: #{seq2seq_forward.1} parent=1 // pred_check_branch
      %133 = sbr.rel (0) target = $region69
    $region68: #{seq2seq_forward.1} parent=1 // pred_region
      _
    $region69: #{seq2seq_forward.1} parent=1 // pred_fallthru
      _
    // Predicated region
    $region70: #{seq2seq_forward.1} parent=1 // pred_check
      _
    $region71: #{seq2seq_forward.1} parent=1 // pred_check_branch
      %135 = sbr.rel (0) target = $region73
    $region72: #{seq2seq_forward.1} parent=1 // pred_region
      _
    $region73: #{seq2seq_forward.1} parent=1 // pred_fallthru
      _
    // Predicated region
    $region74: #{seq2seq_forward.1} parent=1 // pred_check
      _
    $region75: #{seq2seq_forward.1} parent=1 // pred_check_branch
      %137 = sbr.rel (0) target = $region77
    $region76: #{seq2seq_forward.1} parent=1 // pred_region
      %s139 = ssub.s32 16, 16
      %140 = vsyncadd [#allocation11], %s139
      %s142 = sshll.u32 [#allocation10], 4
      %s143 = int_to_ptr.vmem [resolvable:$true] %s142
      %145 = dma.hbm_to_vmem [thread:$0]  %s37, 16, %s143, [#allocation11]
    $region77: #{seq2seq_forward.1} parent=1 // pred_fallthru
      _
    // Predicated region
    $region78: #{seq2seq_forward.1} parent=1 // pred_check
      _
    $region79: #{seq2seq_forward.1} parent=1 // pred_check_branch
      %147 = sbr.rel (0) target = $region81
    $region80: #{seq2seq_forward.1} parent=1 // pred_region
      %s149 = ssub.s32 256, 256
      %150 = vsyncadd [#allocation11], %s149
      %s151 = sshll.u32 [#allocation12], 4
      %s152 = int_to_ptr.vmem [resolvable:$true] %s151
      %157 = dma.hbm_to_vmem [thread:$0]  %s39, 256, %s152, [#allocation11], 128, 128, 8
    $region81: #{seq2seq_forward.1} parent=1 // pred_fallthru
      _
    // Predicated region
    $region82: #{seq2seq_forward.1} parent=1 // pred_check
      _
    $region83: #{seq2seq_forward.1} parent=1 // pred_check_branch
      %159 = sbr.rel (0) target = $region85
    $region84: #{seq2seq_forward.1} parent=1 // pred_region
      %s161 = ssub.s32 16, 16
      %162 = vsyncadd [#allocation14], %s161
      %s164 = sshll.u32 [#allocation13], 4
      %s165 = int_to_ptr.vmem [resolvable:$true] %s164
      %167 = dma.hbm_to_vmem [thread:$0]  %s41, 16, %s165, [#allocation14]
    $region85: #{seq2seq_forward.1} parent=1 // pred_fallthru
      _
    // Predicated region
    $region86: #{seq2seq_forward.1} parent=1 // pred_check
      _
    $region87: #{seq2seq_forward.1} parent=1 // pred_check_branch
      %169 = sbr.rel (0) target = $region89
    $region88: #{seq2seq_forward.1} parent=1 // pred_region
      %s171 = ssub.s32 256, 256
      %172 = vsyncadd [#allocation14], %s171
      %s173 = sshll.u32 [#allocation15], 4
      %s174 = int_to_ptr.vmem [resolvable:$true] %s173
      %179 = dma.hbm_to_vmem [thread:$0]  %s43, 256, %s174, [#allocation14], 128, 128, 8
    $region89: #{seq2seq_forward.1} parent=1 // pred_fallthru
      _
    // Predicated region
    $region90: #{seq2seq_forward.1} parent=1 // pred_check
      _
    $region91: #{seq2seq_forward.1} parent=1 // pred_check_branch
      %181 = sbr.rel (0) target = $region93
    $region92: #{seq2seq_forward.1} parent=1 // pred_region
      _
    $region93: #{seq2seq_forward.1} parent=1 // pred_fallthru
      _
    // Predicated region
    $region94: #{seq2seq_forward.1} parent=1 // pred_check
      _
    $region95: #{seq2seq_forward.1} parent=1 // pred_check_branch
      %183 = sbr.rel (0) target = $region97
    $region96: #{seq2seq_forward.1} parent=1 // pred_region
      %s185 = ssub.s32 16, 16
      %186 = vsyncadd [#allocation17], %s185
      %s188 = sshll.u32 [#allocation16], 4
      %s189 = int_to_ptr.vmem [resolvable:$true] %s188
      %191 = dma.hbm_to_vmem [thread:$0]  %s47, 16, %s189, [#allocation17]
    $region97: #{seq2seq_forward.1} parent=1 // pred_fallthru
      _
    // Predicated region
    $region98: #{seq2seq_forward.1} parent=1 // pred_check
      _
    $region99: #{seq2seq_forward.1} parent=1 // pred_check_branch
      %193 = sbr.rel (0) target = $region101
    $region100: #{seq2seq_forward.1} parent=1 // pred_region
      _
    $region101: #{seq2seq_forward.1} parent=1 // pred_fallthru
      _
    // Predicated region
    $region102: #{seq2seq_forward.1} parent=1 // pred_check
      _
    $region103: #{seq2seq_forward.1} parent=1 // pred_check_branch
      %195 = sbr.rel (0) target = $region105
    $region104: #{seq2seq_forward.1} parent=1 // pred_region
      _
    $region105: #{seq2seq_forward.1} parent=1 // pred_fallthru
      _
    // Predicated region
    $region106: #{seq2seq_forward.1} parent=1 // pred_check
      _
    $region107: #{seq2seq_forward.1} parent=1 // pred_check_branch
      %197 = sbr.rel (0) target = $region109
    $region108: #{seq2seq_forward.1} parent=1 // pred_region
      %s199 = ssub.s32 16, 16
      %200 = vsyncadd [#allocation17], %s199
      %s202 = sshll.u32 [#allocation18], 4
      %s203 = int_to_ptr.vmem [resolvable:$true] %s202
      %205 = dma.hbm_to_vmem [thread:$0]  %s53, 16, %s203, [#allocation17]
    $region109: #{seq2seq_forward.1} parent=1 // pred_fallthru
      _
    // Predicated region
    $region110: #{seq2seq_forward.1} parent=1 // pred_check
      _
    $region111: #{seq2seq_forward.1} parent=1 // pred_check_branch
      %207 = sbr.rel (0) target = $region113
    $region112: #{seq2seq_forward.1} parent=1 // pred_region
      %s209 = ssub.s32 16, 16
      %210 = vsyncadd [#allocation20], %s209
      %s212 = sshll.u32 [#allocation19], 4
      %s213 = int_to_ptr.vmem [resolvable:$true] %s212
      %215 = dma.hbm_to_vmem [thread:$0]  %s55, 16, %s213, [#allocation20]
    $region113: #{seq2seq_forward.1} parent=1 // pred_fallthru
      _
    // Predicated region
    $region114: #{seq2seq_forward.1} parent=1 // pred_check
      _
    $region115: #{seq2seq_forward.1} parent=1 // pred_check_branch
      %217 = sbr.rel (0) target = $region117
    $region116: #{seq2seq_forward.1} parent=1 // pred_region
      _
    $region117: #{seq2seq_forward.1} parent=1 // pred_fallthru
      _
    // Predicated region
    $region118: #{seq2seq_forward.1} parent=1 // pred_check
      _
    $region119: #{seq2seq_forward.1} parent=1 // pred_check_branch
      %219 = sbr.rel (0) target = $region121
    $region120: #{seq2seq_forward.1} parent=1 // pred_region
      %220 = dma.done [#allocation6], 256
    $region121: #{seq2seq_forward.1} parent=1 // pred_fallthru
      _
    // Predicated region
    $region122: #{seq2seq_forward.1} parent=1 // pred_check
      _
    $region123: #{seq2seq_forward.1} parent=1 // pred_check_branch
      %222 = sbr.rel (0) target = $region125
    $region124: #{seq2seq_forward.1} parent=1 // pred_region
      %223 = dma.done [#allocation8], 16
    $region125: #{seq2seq_forward.1} parent=1 // pred_fallthru
      _
    // Predicated region
    $region126: #{seq2seq_forward.1} parent=1 // pred_check
      _
    $region127: #{seq2seq_forward.1} parent=1 // pred_check_branch
      %225 = sbr.rel (0) target = $region129
    $region128: #{seq2seq_forward.1} parent=1 // pred_region
      %226 = dma.done [#allocation8], 16
    $region129: #{seq2seq_forward.1} parent=1 // pred_fallthru
      _
    // Predicated region
    $region130: #{seq2seq_forward.1} parent=1 // pred_check
      _
    $region131: #{seq2seq_forward.1} parent=1 // pred_check_branch
      %228 = sbr.rel (0) target = $region133
    $region132: #{seq2seq_forward.1} parent=1 // pred_region
      %229 = dma.done [#allocation11], 16
    $region133: #{seq2seq_forward.1} parent=1 // pred_fallthru
      _
    // Predicated region
    $region134: #{seq2seq_forward.1} parent=1 // pred_check
      _
    $region135: #{seq2seq_forward.1} parent=1 // pred_check_branch
      %231 = sbr.rel (0) target = $region137
    $region136: #{seq2seq_forward.1} parent=1 // pred_region
      %232 = dma.done [#allocation11], 256
    $region137: #{seq2seq_forward.1} parent=1 // pred_fallthru
      _
    // Predicated region
    $region138: #{seq2seq_forward.1} parent=1 // pred_check
      _
    $region139: #{seq2seq_forward.1} parent=1 // pred_check_branch
      %234 = sbr.rel (0) target = $region141
    $region140: #{seq2seq_forward.1} parent=1 // pred_region
      %235 = dma.done [#allocation14], 16
    $region141: #{seq2seq_forward.1} parent=1 // pred_fallthru
      _
    // Predicated region
    $region142: #{seq2seq_forward.1} parent=1 // pred_check
      _
    $region143: #{seq2seq_forward.1} parent=1 // pred_check_branch
      %237 = sbr.rel (0) target = $region145
    $region144: #{seq2seq_forward.1} parent=1 // pred_region
      %238 = dma.done [#allocation14], 256
    $region145: #{seq2seq_forward.1} parent=1 // pred_fallthru
      _
    // Predicated region
    $region146: #{seq2seq_forward.1} parent=1 // pred_check
      _
    $region147: #{seq2seq_forward.1} parent=1 // pred_check_branch
      %240 = sbr.rel (0) target = $region149
    $region148: #{seq2seq_forward.1} parent=1 // pred_region
      %241 = dma.done [#allocation17], 16
    $region149: #{seq2seq_forward.1} parent=1 // pred_fallthru
      _
    // Predicated region
    $region150: #{seq2seq_forward.1} parent=1 // pred_check
      _
    $region151: #{seq2seq_forward.1} parent=1 // pred_check_branch
      %243 = sbr.rel (0) target = $region153
    $region152: #{seq2seq_forward.1} parent=1 // pred_region
      %244 = dma.done [#allocation17], 16
    $region153: #{seq2seq_forward.1} parent=1 // pred_fallthru
      _
    // Predicated region
    $region154: #{seq2seq_forward.1} parent=1 // pred_check
      _
    $region155: #{seq2seq_forward.1} parent=1 // pred_check_branch
      %246 = sbr.rel (0) target = $region157
    $region156: #{seq2seq_forward.1} parent=1 // pred_region
      %247 = dma.done [#allocation20], 16
    $region157: #{seq2seq_forward.1} parent=1 // pred_fallthru
      _
    %v248 = vld [vmem:[%s1] sm:$0xff]
    %v249 = vld [vmem:[%s1 + $0x8] sm:$0xff]
    %v250 = vld [vmem:[%s1 + $0x10] sm:$0xff]
    %v251 = vld [vmem:[%s1 + $0x18] sm:$0xff]
    %v252 = vld [vmem:[%s1 + $0x20] sm:$0xff]
    %v253 = vld [vmem:[%s1 + $0x28] sm:$0xff]
    %v254 = vld [vmem:[%s1 + $0x30] sm:$0xff]
    %v255 = vld [vmem:[%s1 + $0x38] sm:$0xff]
    %v256 = vld [vmem:[%s3] sm:$0xff]
    %v257 = vld [vmem:[%s3 + $0x8] sm:$0xff]
    %vm258 = vcmask 130048
    %v260 = vsel %vm258, %v248, 0
    %v263 = vsel %vm258, %v249, 0
    %v266 = vsel %vm258, %v250, 0
    %v269 = vsel %vm258, %v251, 0
    %v272 = vsel %vm258, %v252, 0
    %v275 = vsel %vm258, %v253, 0
    %v278 = vsel %vm258, %v254, 0
    %v281 = vsel %vm258, %v255, 0
    %283 = vmatprep.subr.mxu0 0.0
    %284 = vmatpush1.msra.mxu0 %v256
    %285 = vmatprep.subr.mxu0 0.0
    %286 = vmatpush1.msra.mxu0 %v257
    %287 = vmatprep.subr.mxu0 0.0
    %288 = vmatpush1.msra.mxu0 0.0
    %289 = vmatprep.subr.mxu0 0.0
    %290 = vmatpush1.msra.mxu0 0.0
    %291 = vmatprep.subr.mxu0 0.0
    %292 = vmatpush1.msra.mxu0 0.0
    %293 = vmatprep.subr.mxu0 0.0
    %294 = vmatpush1.msra.mxu0 0.0
    %295 = vmatprep.subr.mxu0 0.0
    %296 = vmatpush1.msra.mxu0 0.0
    %297 = vmatprep.subr.mxu0 0.0
    %298 = vmatpush1.msra.mxu0 0.0
    %299 = vmatprep.subr.mxu0 0.0
    %300 = vmatpush1.msra.mxu0 0.0
    %301 = vmatprep.subr.mxu0 0.0
    %302 = vmatpush1.msra.mxu0 0.0
    %303 = vmatprep.subr.mxu0 0.0
    %304 = vmatpush1.msra.mxu0 0.0
    %305 = vmatprep.subr.mxu0 0.0
    %306 = vmatpush1.msra.mxu0 0.0
    %307 = vmatprep.subr.mxu0 0.0
    %308 = vmatpush1.msra.mxu0 0.0
    %309 = vmatprep.subr.mxu0 0.0
    %310 = vmatpush1.msra.mxu0 0.0
    %311 = vmatprep.subr.mxu0 0.0
    %312 = vmatpush1.msra.mxu0 0.0
    %313 = vmatprep.subr.mxu0 0.0
    %314 = vmatpush1.msra.mxu0 0.0
    %315 = vmatprep.subr.mxu0 0.0
    %316 = vmatpush1.msra.mxu0 0.0
    %317 = vmatprep.subr.mxu0 0.0
    %318 = vmatpush1.msra.mxu0 0.0
    %319 = vmatprep.subr.mxu0 0.0
    %320 = vmatpush1.msra.mxu0 0.0
    %321 = vmatprep.subr.mxu0 0.0
    %322 = vmatpush1.msra.mxu0 0.0
    %323 = vmatprep.subr.mxu0 0.0
    %324 = vmatpush1.msra.mxu0 0.0
    %325 = vmatprep.subr.mxu0 0.0
    %326 = vmatpush1.msra.mxu0 0.0
    %327 = vmatprep.subr.mxu0 0.0
    %328 = vmatpush1.msra.mxu0 0.0
    %329 = vmatprep.subr.mxu0 0.0
    %330 = vmatpush1.msra.mxu0 0.0
    %331 = vmatprep.subr.mxu0 0.0
    %332 = vmatpush1.msra.mxu0 0.0
    %333 = vmatprep.subr.mxu0 0.0
    %334 = vmatpush1.msra.mxu0 0.0
    %335 = vmatprep.subr.mxu0 0.0
    %336 = vmatpush1.msra.mxu0 0.0
    %337 = vmatprep.subr.mxu0 0.0
    %338 = vmatpush1.msra.mxu0 0.0
    %339 = vmatprep.subr.mxu0 0.0
    %340 = vmatpush1.msra.mxu0 0.0
    %341 = vmatprep.subr.mxu0 0.0
    %342 = vmatpush1.msra.mxu0 0.0
    %343 = vmatprep.subr.mxu0 0.0
    %344 = vmatpush1.msra.mxu0 0.0
    %345 = vmatprep.subr.mxu0 0.0
    %346 = vmatpush1.msra.mxu0 0.0
    %347 = vmatprep.mubr.f32.mxu0 0.0
    %348 = vmatmul.mubr.f32.gmra.mrb[0].mxu0 %v260
    %v349 = vpop.f32.mrb[0].mxu0
    %v350 = vadd.f32 0.0, %v349
    %v351 = vpop.f32.mrb[0].mxu0
    %352 = vmatprep.mubr.f32.mxu0 0.0
    %353 = vmatmul.mubr.f32.gmra.mrb[0].mxu0 %v263
    %v354 = vpop.f32.mrb[0].mxu0
    %v355 = vadd.f32 0.0, %v354
    %v356 = vpop.f32.mrb[0].mxu0
    %357 = vmatprep.mubr.f32.mxu0 0.0
    %358 = vmatmul.mubr.f32.gmra.mrb[0].mxu0 %v266
    %v359 = vpop.f32.mrb[0].mxu0
    %v360 = vadd.f32 0.0, %v359
    %v361 = vpop.f32.mrb[0].mxu0
    %362 = vmatprep.mubr.f32.mxu0 0.0
    %363 = vmatmul.mubr.f32.gmra.mrb[0].mxu0 %v269
    %v364 = vpop.f32.mrb[0].mxu0
    %v365 = vadd.f32 0.0, %v364
    %v366 = vpop.f32.mrb[0].mxu0
    %367 = vmatprep.mubr.f32.mxu0 0.0
    %368 = vmatmul.mubr.f32.gmra.mrb[0].mxu0 %v272
    %v369 = vpop.f32.mrb[0].mxu0
    %v370 = vadd.f32 0.0, %v369
    %v371 = vpop.f32.mrb[0].mxu0
    %372 = vmatprep.mubr.f32.mxu0 0.0
    %373 = vmatmul.mubr.f32.gmra.mrb[0].mxu0 %v275
    %v374 = vpop.f32.mrb[0].mxu0
    %v375 = vadd.f32 0.0, %v374
    %v376 = vpop.f32.mrb[0].mxu0
    %377 = vmatprep.mubr.f32.mxu0 0.0
    %378 = vmatmul.mubr.f32.gmra.mrb[0].mxu0 %v278
    %v379 = vpop.f32.mrb[0].mxu0
    %v380 = vadd.f32 0.0, %v379
    %v381 = vpop.f32.mrb[0].mxu0
    %382 = vmatprep.mubr.f32.mxu0 0.0
    %383 = vmatmul.mubr.f32.gmra.mrb[0].mxu0 %v281
    %v384 = vpop.f32.mrb[0].mxu0
    %v385 = vadd.f32 0.0, %v384
    %v386 = vpop.f32.mrb[0].mxu0
    %387 = vdwg.mxu0
    %vm388 = vcmask 523264
    %389 = vst.msk [vmem:[#allocation2] sm:$0xff] %vm388, %v350
    %390 = vst.msk [vmem:[#allocation2 + $0x8] sm:$0xff] %vm388, %v355
    %391 = vst.msk [vmem:[#allocation2 + $0x10] sm:$0xff] %vm388, %v360
    %392 = vst.msk [vmem:[#allocation2 + $0x18] sm:$0xff] %vm388, %v365
    %393 = vst.msk [vmem:[#allocation2 + $0x20] sm:$0xff] %vm388, %v370
    %394 = vst.msk [vmem:[#allocation2 + $0x28] sm:$0xff] %vm388, %v375
    %395 = vst.msk [vmem:[#allocation2 + $0x30] sm:$0xff] %vm388, %v380
    %396 = vst.msk [vmem:[#allocation2 + $0x38] sm:$0xff] %vm388, %v385
    %v397 = vld [vmem:[#allocation5] sm:$0xff]
    %v398 = vld [vmem:[#allocation5 + $0x8] sm:$0xff]
    %v399 = vld [vmem:[#allocation7] sm:$0x1]
    %v400 = vld [vmem:[%s13] sm:$0xff]
    %v401 = vld [vmem:[%s13 + $0x8] sm:$0xff]
    %v402 = vld [vmem:[%s15] sm:$0xff]
    %v403 = vld [vmem:[%s15 + $0x8] sm:$0xff]
    %v404 = vld [vmem:[%s15 + $0x10] sm:$0xff]
    %v405 = vld [vmem:[#allocation9] sm:$0x1]
    %v406 = vld [vmem:[%s23] sm:$0xff]
    %v407 = vld [vmem:[%s23 + $0x8] sm:$0xff]
    %v408 = vld [vmem:[%s23 + $0x10] sm:$0xff]
    %v409 = vld [vmem:[%s25] sm:$0xff]
    %v410 = vld [vmem:[%s25 + $0x8] sm:$0xff]
    %v411 = vld [vmem:[%s25 + $0x10] sm:$0xff]
    %v412 = vld [vmem:[%s25 + $0x18] sm:$0xff]
    %v413 = vld [vmem:[%s27] sm:$0x1]
    %v414 = vld [vmem:[%s9] sm:$0xff]
    %v415 = vld [vmem:[%s11] sm:$0xff]
    %v416 = vld [vmem:[%s19] sm:$0xff]
    %v417 = vld [vmem:[%s21] sm:$0xff]
    %v418 = vld [vmem:[%s29] sm:$0xff]
    %v419 = vld [vmem:[%s31] sm:$0xff]
    %v420 = vld [vmem:[#allocation2] sm:$0xff]
    %v422 = vsel %vm258, %v414, 0
    %424 = vmatprep.subr.mxu0 0.0
    %425 = vmatpush1.msra.mxu0 %v397
    %426 = vmatprep.subr.mxu0 0.0
    %427 = vmatpush1.msra.mxu0 %v398
    %428 = vmatprep.subr.mxu0 0.0
    %429 = vmatpush1.msra.mxu0 0.0
    %430 = vmatprep.subr.mxu0 0.0
    %431 = vmatpush1.msra.mxu0 0.0
    %432 = vmatprep.subr.mxu0 0.0
    %433 = vmatpush1.msra.mxu0 0.0
    %434 = vmatprep.subr.mxu0 0.0
    %435 = vmatpush1.msra.mxu0 0.0
    %436 = vmatprep.subr.mxu0 0.0
    %437 = vmatpush1.msra.mxu0 0.0
    %438 = vmatprep.subr.mxu0 0.0
    %439 = vmatpush1.msra.mxu0 0.0
    %440 = vmatprep.subr.mxu0 0.0
    %441 = vmatpush1.msra.mxu0 0.0
    %442 = vmatprep.subr.mxu0 0.0
    %443 = vmatpush1.msra.mxu0 0.0
    %444 = vmatprep.subr.mxu0 0.0
    %445 = vmatpush1.msra.mxu0 0.0
    %446 = vmatprep.subr.mxu0 0.0
    %447 = vmatpush1.msra.mxu0 0.0
    %448 = vmatprep.subr.mxu0 0.0
    %449 = vmatpush1.msra.mxu0 0.0
    %450 = vmatprep.subr.mxu0 0.0
    %451 = vmatpush1.msra.mxu0 0.0
    %452 = vmatprep.subr.mxu0 0.0
    %453 = vmatpush1.msra.mxu0 0.0
    %454 = vmatprep.subr.mxu0 0.0
    %455 = vmatpush1.msra.mxu0 0.0
    %456 = vmatprep.subr.mxu0 0.0
    %457 = vmatpush1.msra.mxu0 0.0
    %458 = vmatprep.subr.mxu0 0.0
    %459 = vmatpush1.msra.mxu0 0.0
    %460 = vmatprep.subr.mxu0 0.0
    %461 = vmatpush1.msra.mxu0 0.0
    %462 = vmatprep.subr.mxu0 0.0
    %463 = vmatpush1.msra.mxu0 0.0
    %464 = vmatprep.subr.mxu0 0.0
    %465 = vmatpush1.msra.mxu0 0.0
    %466 = vmatprep.subr.mxu0 0.0
    %467 = vmatpush1.msra.mxu0 0.0
    %468 = vmatprep.subr.mxu0 0.0
    %469 = vmatpush1.msra.mxu0 0.0
    %470 = vmatprep.subr.mxu0 0.0
    %471 = vmatpush1.msra.mxu0 0.0
    %472 = vmatprep.subr.mxu0 0.0
    %473 = vmatpush1.msra.mxu0 0.0
    %474 = vmatprep.subr.mxu0 0.0
    %475 = vmatpush1.msra.mxu0 0.0
    %476 = vmatprep.subr.mxu0 0.0
    %477 = vmatpush1.msra.mxu0 0.0
    %478 = vmatprep.subr.mxu0 0.0
    %479 = vmatpush1.msra.mxu0 0.0
    %480 = vmatprep.subr.mxu0 0.0
    %481 = vmatpush1.msra.mxu0 0.0
    %482 = vmatprep.subr.mxu0 0.0
    %483 = vmatpush1.msra.mxu0 0.0
    %484 = vmatprep.subr.mxu0 0.0
    %485 = vmatpush1.msra.mxu0 0.0
    %486 = vmatprep.subr.mxu0 0.0
    %487 = vmatpush1.msra.mxu0 0.0
    %488 = vmatprep.mubr.f32.mxu0 0.0
    %489 = vmatmul.mubr.f32.gmra.mrb[0].mxu0 %v422
    %v490 = vpop.f32.mrb[0].mxu0
    %v491 = vadd.f32 0.0, %v490
    %v492 = vpop.f32.mrb[0].mxu0
    %493 = vdwg.mxu0
    %v494 = vadd.f32 %v420, %v491
    %v496 = vlaneseq
    %v497 = vshrl.u32 %v496, 7
    %v498 = vsub.s32 0, %v497
    %v499 = vrot.slane %v399, %v498
    %v501 = vadd.f32 %v494, %v499
    %v502 = vxor.u32 %v501, 2147483648
    %v503 = vmul.f32 %v502, 1.442695
    %v504 = vpow.pop %v503
    %v505 = vadd.f32 %v504, 1.0
    %v506 = vrcp.pop %v505
    %v507 = vmul.f32 1.0, %v506
    %v508 = vtanh.pop %v501
    %510 = vrot.lane.b32.xlu0 %v415, 16
    %v511 = vpop.permute.xlu0 %510
    %v513 = vmul.f32 %v507, %v511
    %515 = vrot.lane.b32.xlu0 %v508, 96
    %v516 = vpop.permute.xlu0 %515
    %v518 = vmul.f32 %v507, %v516
    %520 = vrot.lane.b32.xlu0 %v518, 16
    %v521 = vpop.permute.xlu0 %520
    %v523 = vadd.f32 %v513, %v521
    %v524 = vtanh.pop %v523
    %526 = vrot.lane.b32.xlu0 %v524, 32
    %v527 = vpop.permute.xlu0 %526
    %v529 = vmul.f32 %v507, %v527
    %vm530 = vcmask 195584
    %v532 = vsel %vm530, %v416, 0
    %534 = vmatprep.subr.mxu0 0.0
    %535 = vmatpush1.msra.mxu0 %v402
    %536 = vmatprep.subr.mxu0 0.0
    %537 = vmatpush1.msra.mxu0 %v403
    %538 = vmatprep.subr.mxu0 0.0
    %539 = vmatpush1.msra.mxu0 %v404
    %540 = vmatprep.subr.mxu0 0.0
    %541 = vmatpush1.msra.mxu0 0.0
    %542 = vmatprep.subr.mxu0 0.0
    %543 = vmatpush1.msra.mxu0 0.0
    %544 = vmatprep.subr.mxu0 0.0
    %545 = vmatpush1.msra.mxu0 0.0
    %546 = vmatprep.subr.mxu0 0.0
    %547 = vmatpush1.msra.mxu0 0.0
    %548 = vmatprep.subr.mxu0 0.0
    %549 = vmatpush1.msra.mxu0 0.0
    %550 = vmatprep.subr.mxu0 0.0
    %551 = vmatpush1.msra.mxu0 0.0
    %552 = vmatprep.subr.mxu0 0.0
    %553 = vmatpush1.msra.mxu0 0.0
    %554 = vmatprep.subr.mxu0 0.0
    %555 = vmatpush1.msra.mxu0 0.0
    %556 = vmatprep.subr.mxu0 0.0
    %557 = vmatpush1.msra.mxu0 0.0
    %558 = vmatprep.subr.mxu0 0.0
    %559 = vmatpush1.msra.mxu0 0.0
    %560 = vmatprep.subr.mxu0 0.0
    %561 = vmatpush1.msra.mxu0 0.0
    %562 = vmatprep.subr.mxu0 0.0
    %563 = vmatpush1.msra.mxu0 0.0
    %564 = vmatprep.subr.mxu0 0.0
    %565 = vmatpush1.msra.mxu0 0.0
    %566 = vmatprep.subr.mxu0 0.0
    %567 = vmatpush1.msra.mxu0 0.0
    %568 = vmatprep.subr.mxu0 0.0
    %569 = vmatpush1.msra.mxu0 0.0
    %570 = vmatprep.subr.mxu0 0.0
    %571 = vmatpush1.msra.mxu0 0.0
    %572 = vmatprep.subr.mxu0 0.0
    %573 = vmatpush1.msra.mxu0 0.0
    %574 = vmatprep.subr.mxu0 0.0
    %575 = vmatpush1.msra.mxu0 0.0
    %576 = vmatprep.subr.mxu0 0.0
    %577 = vmatpush1.msra.mxu0 0.0
    %578 = vmatprep.subr.mxu0 0.0
    %579 = vmatpush1.msra.mxu0 0.0
    %580 = vmatprep.subr.mxu0 0.0
    %581 = vmatpush1.msra.mxu0 0.0
    %582 = vmatprep.subr.mxu0 0.0
    %583 = vmatpush1.msra.mxu0 0.0
    %584 = vmatprep.subr.mxu0 0.0
    %585 = vmatpush1.msra.mxu0 0.0
    %586 = vmatprep.subr.mxu0 0.0
    %587 = vmatpush1.msra.mxu0 0.0
    %588 = vmatprep.subr.mxu0 0.0
    %589 = vmatpush1.msra.mxu0 0.0
    %590 = vmatprep.subr.mxu0 0.0
    %591 = vmatpush1.msra.mxu0 0.0
    %592 = vmatprep.subr.mxu0 0.0
    %593 = vmatpush1.msra.mxu0 0.0
    %594 = vmatprep.subr.mxu0 0.0
    %595 = vmatpush1.msra.mxu0 0.0
    %596 = vmatprep.subr.mxu0 0.0
    %597 = vmatpush1.msra.mxu0 0.0
    %598 = vmatprep.mubr.f32.mxu0 0.0
    %599 = vmatmul.mubr.f32.gmra.mrb[0].mxu0 %v532
    %v600 = vpop.f32.mrb[0].mxu0
    %v601 = vadd.f32 0.0, %v600
    %v602 = vpop.f32.mrb[0].mxu0
    %603 = vdwg.mxu0
    %605 = vrot.lane.b32.xlu0 %v529, 80
    %v606 = vpop.permute.xlu0 %605
    %v607 = vsel %vm258, %v606, 0
    %609 = vmatprep.subr.mxu0 0.0
    %610 = vmatpush1.msra.mxu0 %v400
    %611 = vmatprep.subr.mxu0 0.0
    %612 = vmatpush1.msra.mxu0 %v401
    %613 = vmatprep.subr.mxu0 0.0
    %614 = vmatpush1.msra.mxu0 0.0
    %615 = vmatprep.subr.mxu0 0.0
    %616 = vmatpush1.msra.mxu0 0.0
    %617 = vmatprep.subr.mxu0 0.0
    %618 = vmatpush1.msra.mxu0 0.0
    %619 = vmatprep.subr.mxu0 0.0
    %620 = vmatpush1.msra.mxu0 0.0
    %621 = vmatprep.subr.mxu0 0.0
    %622 = vmatpush1.msra.mxu0 0.0
    %623 = vmatprep.subr.mxu0 0.0
    %624 = vmatpush1.msra.mxu0 0.0
    %625 = vmatprep.subr.mxu0 0.0
    %626 = vmatpush1.msra.mxu0 0.0
    %627 = vmatprep.subr.mxu0 0.0
    %628 = vmatpush1.msra.mxu0 0.0
    %629 = vmatprep.subr.mxu0 0.0
    %630 = vmatpush1.msra.mxu0 0.0
    %631 = vmatprep.subr.mxu0 0.0
    %632 = vmatpush1.msra.mxu0 0.0
    %633 = vmatprep.subr.mxu0 0.0
    %634 = vmatpush1.msra.mxu0 0.0
    %635 = vmatprep.subr.mxu0 0.0
    %636 = vmatpush1.msra.mxu0 0.0
    %637 = vmatprep.subr.mxu0 0.0
    %638 = vmatpush1.msra.mxu0 0.0
    %639 = vmatprep.subr.mxu0 0.0
    %640 = vmatpush1.msra.mxu0 0.0
    %641 = vmatprep.subr.mxu0 0.0
    %642 = vmatpush1.msra.mxu0 0.0
    %643 = vmatprep.subr.mxu0 0.0
    %644 = vmatpush1.msra.mxu0 0.0
    %645 = vmatprep.subr.mxu0 0.0
    %646 = vmatpush1.msra.mxu0 0.0
    %647 = vmatprep.subr.mxu0 0.0
    %648 = vmatpush1.msra.mxu0 0.0
    %649 = vmatprep.subr.mxu0 0.0
    %650 = vmatpush1.msra.mxu0 0.0
    %651 = vmatprep.subr.mxu0 0.0
    %652 = vmatpush1.msra.mxu0 0.0
    %653 = vmatprep.subr.mxu0 0.0
    %654 = vmatpush1.msra.mxu0 0.0
    %655 = vmatprep.subr.mxu0 0.0
    %656 = vmatpush1.msra.mxu0 0.0
    %657 = vmatprep.subr.mxu0 0.0
    %658 = vmatpush1.msra.mxu0 0.0
    %659 = vmatprep.subr.mxu0 0.0
    %660 = vmatpush1.msra.mxu0 0.0
    %661 = vmatprep.subr.mxu0 0.0
    %662 = vmatpush1.msra.mxu0 0.0
    %663 = vmatprep.subr.mxu0 0.0
    %664 = vmatpush1.msra.mxu0 0.0
    %665 = vmatprep.subr.mxu0 0.0
    %666 = vmatpush1.msra.mxu0 0.0
    %667 = vmatprep.subr.mxu0 0.0
    %668 = vmatpush1.msra.mxu0 0.0
    %669 = vmatprep.subr.mxu0 0.0
    %670 = vmatpush1.msra.mxu0 0.0
    %671 = vmatprep.subr.mxu0 0.0
    %672 = vmatpush1.msra.mxu0 0.0
    %673 = vmatprep.mubr.f32.mxu0 0.0
    %674 = vmatmul.mubr.f32.gmra.mrb[0].mxu0 %v607
    %v675 = vpop.f32.mrb[0].mxu0
    %v676 = vadd.f32 %v601, %v675
    %v677 = vpop.f32.mrb[0].mxu0
    %678 = vdwg.mxu0
    %v680 = vlaneseq
    %v681 = vshrl.u32 %v680, 7
    %v682 = vsub.s32 0, %v681
    %v683 = vrot.slane %v405, %v682
    %v685 = vadd.f32 %v676, %v683
    %v686 = vxor.u32 %v685, 2147483648
    %v687 = vmul.f32 %v686, 1.442695
    %v688 = vpow.pop %v687
    %v689 = vadd.f32 %v688, 1.0
    %v690 = vrcp.pop %v689
    %v691 = vmul.f32 1.0, %v690
    %v692 = vtanh.pop %v685
    %694 = vrot.lane.b32.xlu0 %v417, 24
    %v695 = vpop.permute.xlu0 %694
    %v697 = vmul.f32 %v691, %v695
    %699 = vrot.lane.b32.xlu0 %v692, 80
    %v700 = vpop.permute.xlu0 %699
    %v702 = vmul.f32 %v691, %v700
    %704 = vrot.lane.b32.xlu0 %v702, 24
    %v705 = vpop.permute.xlu0 %704
    %v707 = vadd.f32 %v697, %v705
    %v708 = vtanh.pop %v707
    %710 = vrot.lane.b32.xlu0 %v708, 48
    %v711 = vpop.permute.xlu0 %710
    %v713 = vmul.f32 %v691, %v711
    %vm714 = vcmask 261120
    %v716 = vsel %vm714, %v418, 0
    %718 = vmatprep.subr.mxu0 0.0
    %719 = vmatpush1.msra.mxu0 %v409
    %720 = vmatprep.subr.mxu0 0.0
    %721 = vmatpush1.msra.mxu0 %v410
    %722 = vmatprep.subr.mxu0 0.0
    %723 = vmatpush1.msra.mxu0 %v411
    %724 = vmatprep.subr.mxu0 0.0
    %725 = vmatpush1.msra.mxu0 %v412
    %726 = vmatprep.subr.mxu0 0.0
    %727 = vmatpush1.msra.mxu0 0.0
    %728 = vmatprep.subr.mxu0 0.0
    %729 = vmatpush1.msra.mxu0 0.0
    %730 = vmatprep.subr.mxu0 0.0
    %731 = vmatpush1.msra.mxu0 0.0
    %732 = vmatprep.subr.mxu0 0.0
    %733 = vmatpush1.msra.mxu0 0.0
    %734 = vmatprep.subr.mxu0 0.0
    %735 = vmatpush1.msra.mxu0 0.0
    %736 = vmatprep.subr.mxu0 0.0
    %737 = vmatpush1.msra.mxu0 0.0
    %738 = vmatprep.subr.mxu0 0.0
    %739 = vmatpush1.msra.mxu0 0.0
    %740 = vmatprep.subr.mxu0 0.0
    %741 = vmatpush1.msra.mxu0 0.0
    %742 = vmatprep.subr.mxu0 0.0
    %743 = vmatpush1.msra.mxu0 0.0
    %744 = vmatprep.subr.mxu0 0.0
    %745 = vmatpush1.msra.mxu0 0.0
    %746 = vmatprep.subr.mxu0 0.0
    %747 = vmatpush1.msra.mxu0 0.0
    %748 = vmatprep.subr.mxu0 0.0
    %749 = vmatpush1.msra.mxu0 0.0
    %750 = vmatprep.subr.mxu0 0.0
    %751 = vmatpush1.msra.mxu0 0.0
    %752 = vmatprep.subr.mxu0 0.0
    %753 = vmatpush1.msra.mxu0 0.0
    %754 = vmatprep.subr.mxu0 0.0
    %755 = vmatpush1.msra.mxu0 0.0
    %756 = vmatprep.subr.mxu0 0.0
    %757 = vmatpush1.msra.mxu0 0.0
    %758 = vmatprep.subr.mxu0 0.0
    %759 = vmatpush1.msra.mxu0 0.0
    %760 = vmatprep.subr.mxu0 0.0
    %761 = vmatpush1.msra.mxu0 0.0
    %762 = vmatprep.subr.mxu0 0.0
    %763 = vmatpush1.msra.mxu0 0.0
    %764 = vmatprep.subr.mxu0 0.0
    %765 = vmatpush1.msra.mxu0 0.0
    %766 = vmatprep.subr.mxu0 0.0
    %767 = vmatpush1.msra.mxu0 0.0
    %768 = vmatprep.subr.mxu0 0.0
    %769 = vmatpush1.msra.mxu0 0.0
    %770 = vmatprep.subr.mxu0 0.0
    %771 = vmatpush1.msra.mxu0 0.0
    %772 = vmatprep.subr.mxu0 0.0
    %773 = vmatpush1.msra.mxu0 0.0
    %774 = vmatprep.subr.mxu0 0.0
    %775 = vmatpush1.msra.mxu0 0.0
    %776 = vmatprep.subr.mxu0 0.0
    %777 = vmatpush1.msra.mxu0 0.0
    %778 = vmatprep.subr.mxu0 0.0
    %779 = vmatpush1.msra.mxu0 0.0
    %780 = vmatprep.subr.mxu0 0.0
    %781 = vmatpush1.msra.mxu0 0.0
    %782 = vmatprep.mubr.f32.mxu0 0.0
    %783 = vmatmul.mubr.f32.gmra.mrb[0].mxu0 %v716
    %v784 = vpop.f32.mrb[0].mxu0
    %v785 = vadd.f32 0.0, %v784
    %v786 = vpop.f32.mrb[0].mxu0
    %787 = vdwg.mxu0
    %789 = vrot.lane.b32.xlu0 %v713, 56
    %v790 = vpop.permute.xlu0 %789
    %v791 = vsel %vm530, %v790, 0
    %793 = vmatprep.subr.mxu0 0.0
    %794 = vmatpush1.msra.mxu0 %v406
    %795 = vmatprep.subr.mxu0 0.0
    %796 = vmatpush1.msra.mxu0 %v407
    %797 = vmatprep.subr.mxu0 0.0
    %798 = vmatpush1.msra.mxu0 %v408
    %799 = vmatprep.subr.mxu0 0.0
    %800 = vmatpush1.msra.mxu0 0.0
    %801 = vmatprep.subr.mxu0 0.0
    %802 = vmatpush1.msra.mxu0 0.0
    %803 = vmatprep.subr.mxu0 0.0
    %804 = vmatpush1.msra.mxu0 0.0
    %805 = vmatprep.subr.mxu0 0.0
    %806 = vmatpush1.msra.mxu0 0.0
    %807 = vmatprep.subr.mxu0 0.0
    %808 = vmatpush1.msra.mxu0 0.0
    %809 = vmatprep.subr.mxu0 0.0
    %810 = vmatpush1.msra.mxu0 0.0
    %811 = vmatprep.subr.mxu0 0.0
    %812 = vmatpush1.msra.mxu0 0.0
    %813 = vmatprep.subr.mxu0 0.0
    %814 = vmatpush1.msra.mxu0 0.0
    %815 = vmatprep.subr.mxu0 0.0
    %816 = vmatpush1.msra.mxu0 0.0
    %817 = vmatprep.subr.mxu0 0.0
    %818 = vmatpush1.msra.mxu0 0.0
    %819 = vmatprep.subr.mxu0 0.0
    %820 = vmatpush1.msra.mxu0 0.0
    %821 = vmatprep.subr.mxu0 0.0
    %822 = vmatpush1.msra.mxu0 0.0
    %823 = vmatprep.subr.mxu0 0.0
    %824 = vmatpush1.msra.mxu0 0.0
    %825 = vmatprep.subr.mxu0 0.0
    %826 = vmatpush1.msra.mxu0 0.0
    %827 = vmatprep.subr.mxu0 0.0
    %828 = vmatpush1.msra.mxu0 0.0
    %829 = vmatprep.subr.mxu0 0.0
    %830 = vmatpush1.msra.mxu0 0.0
    %831 = vmatprep.subr.mxu0 0.0
    %832 = vmatpush1.msra.mxu0 0.0
    %833 = vmatprep.subr.mxu0 0.0
    %834 = vmatpush1.msra.mxu0 0.0
    %835 = vmatprep.subr.mxu0 0.0
    %836 = vmatpush1.msra.mxu0 0.0
    %837 = vmatprep.subr.mxu0 0.0
    %838 = vmatpush1.msra.mxu0 0.0
    %839 = vmatprep.subr.mxu0 0.0
    %840 = vmatpush1.msra.mxu0 0.0
    %841 = vmatprep.subr.mxu0 0.0
    %842 = vmatpush1.msra.mxu0 0.0
    %843 = vmatprep.subr.mxu0 0.0
    %844 = vmatpush1.msra.mxu0 0.0
    %845 = vmatprep.subr.mxu0 0.0
    %846 = vmatpush1.msra.mxu0 0.0
    %847 = vmatprep.subr.mxu0 0.0
    %848 = vmatpush1.msra.mxu0 0.0
    %849 = vmatprep.subr.mxu0 0.0
    %850 = vmatpush1.msra.mxu0 0.0
    %851 = vmatprep.subr.mxu0 0.0
    %852 = vmatpush1.msra.mxu0 0.0
    %853 = vmatprep.subr.mxu0 0.0
    %854 = vmatpush1.msra.mxu0 0.0
    %855 = vmatprep.subr.mxu0 0.0
    %856 = vmatpush1.msra.mxu0 0.0
    %857 = vmatprep.mubr.f32.mxu0 0.0
    %858 = vmatmul.mubr.f32.gmra.mrb[0].mxu0 %v791
    %v859 = vpop.f32.mrb[0].mxu0
    %v860 = vadd.f32 %v785, %v859
    %v861 = vpop.f32.mrb[0].mxu0
    %862 = vdwg.mxu0
    %v864 = vlaneseq
    %v865 = vshrl.u32 %v864, 7
    %v866 = vsub.s32 0, %v865
    %v867 = vrot.slane %v413, %v866
    %v869 = vadd.f32 %v860, %v867
    %v870 = vxor.u32 %v869, 2147483648
    %v871 = vmul.f32 %v870, 1.442695
    %v872 = vpow.pop %v871
    %v873 = vadd.f32 %v872, 1.0
    %v874 = vrcp.pop %v873
    %v875 = vmul.f32 1.0, %v874
    %v876 = vtanh.pop %v869
    %878 = vrot.lane.b32.xlu0 %v419, 32
    %v879 = vpop.permute.xlu0 %878
    %v881 = vmul.f32 %v875, %v879
    %883 = vrot.lane.b32.xlu0 %v876, 64
    %v884 = vpop.permute.xlu0 %883
    %v886 = vmul.f32 %v875, %v884
    %888 = vrot.lane.b32.xlu0 %v886, 32
    %v889 = vpop.permute.xlu0 %888
    %v891 = vadd.f32 %v881, %v889
    %v892 = vtanh.pop %v891
    %894 = vrot.lane.b32.xlu0 %v892, 64
    %v895 = vpop.permute.xlu0 %894
    %v897 = vmul.f32 %v875, %v895
    %s898 = scalar_lea.vmem [#allocation2], 8
    %v899 = vld [vmem:[%s898] sm:$0xff]
    %900 = vmatprep.subr.mxu0 0.0
    %901 = vmatpush1.msra.mxu0 %v397
    %902 = vmatprep.subr.mxu0 0.0
    %903 = vmatpush1.msra.mxu0 %v398
    %904 = vmatprep.subr.mxu0 0.0
    %905 = vmatpush1.msra.mxu0 0.0
    %906 = vmatprep.subr.mxu0 0.0
    %907 = vmatpush1.msra.mxu0 0.0
    %908 = vmatprep.subr.mxu0 0.0
    %909 = vmatpush1.msra.mxu0 0.0
    %910 = vmatprep.subr.mxu0 0.0
    %911 = vmatpush1.msra.mxu0 0.0
    %912 = vmatprep.subr.mxu0 0.0
    %913 = vmatpush1.msra.mxu0 0.0
    %914 = vmatprep.subr.mxu0 0.0
    %915 = vmatpush1.msra.mxu0 0.0
    %916 = vmatprep.subr.mxu0 0.0
    %917 = vmatpush1.msra.mxu0 0.0
    %918 = vmatprep.subr.mxu0 0.0
    %919 = vmatpush1.msra.mxu0 0.0
    %920 = vmatprep.subr.mxu0 0.0
    %921 = vmatpush1.msra.mxu0 0.0
    %922 = vmatprep.subr.mxu0 0.0
    %923 = vmatpush1.msra.mxu0 0.0
    %924 = vmatprep.subr.mxu0 0.0
    %925 = vmatpush1.msra.mxu0 0.0
    %926 = vmatprep.subr.mxu0 0.0
    %927 = vmatpush1.msra.mxu0 0.0
    %928 = vmatprep.subr.mxu0 0.0
    %929 = vmatpush1.msra.mxu0 0.0
    %930 = vmatprep.subr.mxu0 0.0
    %931 = vmatpush1.msra.mxu0 0.0
    %932 = vmatprep.subr.mxu0 0.0
    %933 = vmatpush1.msra.mxu0 0.0
    %934 = vmatprep.subr.mxu0 0.0
    %935 = vmatpush1.msra.mxu0 0.0
    %936 = vmatprep.subr.mxu0 0.0
    %937 = vmatpush1.msra.mxu0 0.0
    %938 = vmatprep.subr.mxu0 0.0
    %939 = vmatpush1.msra.mxu0 0.0
    %940 = vmatprep.subr.mxu0 0.0
    %941 = vmatpush1.msra.mxu0 0.0
    %942 = vmatprep.subr.mxu0 0.0
    %943 = vmatpush1.msra.mxu0 0.0
    %944 = vmatprep.subr.mxu0 0.0
    %945 = vmatpush1.msra.mxu0 0.0
    %946 = vmatprep.subr.mxu0 0.0
    %947 = vmatpush1.msra.mxu0 0.0
    %948 = vmatprep.subr.mxu0 0.0
    %949 = vmatpush1.msra.mxu0 0.0
    %950 = vmatprep.subr.mxu0 0.0
    %951 = vmatpush1.msra.mxu0 0.0
    %952 = vmatprep.subr.mxu0 0.0
    %953 = vmatpush1.msra.mxu0 0.0
    %954 = vmatprep.subr.mxu0 0.0
    %955 = vmatpush1.msra.mxu0 0.0
    %956 = vmatprep.subr.mxu0 0.0
    %957 = vmatpush1.msra.mxu0 0.0
    %958 = vmatprep.subr.mxu0 0.0
    %959 = vmatpush1.msra.mxu0 0.0
    %960 = vmatprep.subr.mxu0 0.0
    %961 = vmatpush1.msra.mxu0 0.0
    %962 = vmatprep.subr.mxu0 0.0
    %963 = vmatpush1.msra.mxu0 0.0
    %964 = vmatprep.mubr.f32.mxu0 0.0
    %965 = vmatmul.mubr.f32.gmra.mrb[0].mxu0 %v607
    %v966 = vpop.f32.mrb[0].mxu0
    %v967 = vadd.f32 0.0, %v966
    %v968 = vpop.f32.mrb[0].mxu0
    %969 = vdwg.mxu0
    %v970 = vadd.f32 %v899, %v967
    %v971 = vadd.f32 %v970, %v499
    %v972 = vxor.u32 %v971, 2147483648
    %v973 = vmul.f32 %v972, 1.442695
    %v974 = vpow.pop %v973
    %v975 = vadd.f32 %v974, 1.0
    %v976 = vrcp.pop %v975
    %v977 = vmul.f32 1.0, %v976
    %v978 = vtanh.pop %v971
    %v979 = vmul.f32 %v977, %v523
    %981 = vrot.lane.b32.xlu0 %v978, 96
    %v982 = vpop.permute.xlu0 %981
    %v984 = vmul.f32 %v977, %v982
    %986 = vrot.lane.b32.xlu0 %v984, 16
    %v987 = vpop.permute.xlu0 %986
    %v989 = vadd.f32 %v979, %v987
    %v990 = vtanh.pop %v989
    %992 = vrot.lane.b32.xlu0 %v990, 32
    %v993 = vpop.permute.xlu0 %992
    %v995 = vmul.f32 %v977, %v993
    %996 = vmatprep.subr.mxu0 0.0
    %997 = vmatpush1.msra.mxu0 %v402
    %998 = vmatprep.subr.mxu0 0.0
    %999 = vmatpush1.msra.mxu0 %v403
    %1000 = vmatprep.subr.mxu0 0.0
    %1001 = vmatpush1.msra.mxu0 %v404
    %1002 = vmatprep.subr.mxu0 0.0
    %1003 = vmatpush1.msra.mxu0 0.0
    %1004 = vmatprep.subr.mxu0 0.0
    %1005 = vmatpush1.msra.mxu0 0.0
    %1006 = vmatprep.subr.mxu0 0.0
    %1007 = vmatpush1.msra.mxu0 0.0
    %1008 = vmatprep.subr.mxu0 0.0
    %1009 = vmatpush1.msra.mxu0 0.0
    %1010 = vmatprep.subr.mxu0 0.0
    %1011 = vmatpush1.msra.mxu0 0.0
    %1012 = vmatprep.subr.mxu0 0.0
    %1013 = vmatpush1.msra.mxu0 0.0
    %1014 = vmatprep.subr.mxu0 0.0
    %1015 = vmatpush1.msra.mxu0 0.0
    %1016 = vmatprep.subr.mxu0 0.0
    %1017 = vmatpush1.msra.mxu0 0.0
    %1018 = vmatprep.subr.mxu0 0.0
    %1019 = vmatpush1.msra.mxu0 0.0
    %1020 = vmatprep.subr.mxu0 0.0
    %1021 = vmatpush1.msra.mxu0 0.0
    %1022 = vmatprep.subr.mxu0 0.0
    %1023 = vmatpush1.msra.mxu0 0.0
    %1024 = vmatprep.subr.mxu0 0.0
    %1025 = vmatpush1.msra.mxu0 0.0
    %1026 = vmatprep.subr.mxu0 0.0
    %1027 = vmatpush1.msra.mxu0 0.0
    %1028 = vmatprep.subr.mxu0 0.0
    %1029 = vmatpush1.msra.mxu0 0.0
    %1030 = vmatprep.subr.mxu0 0.0
    %1031 = vmatpush1.msra.mxu0 0.0
    %1032 = vmatprep.subr.mxu0 0.0
    %1033 = vmatpush1.msra.mxu0 0.0
    %1034 = vmatprep.subr.mxu0 0.0
    %1035 = vmatpush1.msra.mxu0 0.0
    %1036 = vmatprep.subr.mxu0 0.0
    %1037 = vmatpush1.msra.mxu0 0.0
    %1038 = vmatprep.subr.mxu0 0.0
    %1039 = vmatpush1.msra.mxu0 0.0
    %1040 = vmatprep.subr.mxu0 0.0
    %1041 = vmatpush1.msra.mxu0 0.0
    %1042 = vmatprep.subr.mxu0 0.0
    %1043 = vmatpush1.msra.mxu0 0.0
    %1044 = vmatprep.subr.mxu0 0.0
    %1045 = vmatpush1.msra.mxu0 0.0
    %1046 = vmatprep.subr.mxu0 0.0
    %1047 = vmatpush1.msra.mxu0 0.0
    %1048 = vmatprep.subr.mxu0 0.0
    %1049 = vmatpush1.msra.mxu0 0.0
    %1050 = vmatprep.subr.mxu0 0.0
    %1051 = vmatpush1.msra.mxu0 0.0
    %1052 = vmatprep.subr.mxu0 0.0
    %1053 = vmatpush1.msra.mxu0 0.0
    %1054 = vmatprep.subr.mxu0 0.0
    %1055 = vmatpush1.msra.mxu0 0.0
    %1056 = vmatprep.subr.mxu0 0.0
    %1057 = vmatpush1.msra.mxu0 0.0
    %1058 = vmatprep.subr.mxu0 0.0
    %1059 = vmatpush1.msra.mxu0 0.0
    %1060 = vmatprep.mubr.f32.mxu0 0.0
    %1061 = vmatmul.mubr.f32.gmra.mrb[0].mxu0 %v791
    %v1062 = vpop.f32.mrb[0].mxu0
    %v1063 = vadd.f32 0.0, %v1062
    %v1064 = vpop.f32.mrb[0].mxu0
    %1065 = vdwg.mxu0
    %1067 = vrot.lane.b32.xlu0 %v995, 80
    %v1068 = vpop.permute.xlu0 %1067
    %v1069 = vsel %vm258, %v1068, 0
    %1071 = vmatprep.subr.mxu0 0.0
    %1072 = vmatpush1.msra.mxu0 %v400
    %1073 = vmatprep.subr.mxu0 0.0
    %1074 = vmatpush1.msra.mxu0 %v401
    %1075 = vmatprep.subr.mxu0 0.0
    %1076 = vmatpush1.msra.mxu0 0.0
    %1077 = vmatprep.subr.mxu0 0.0
    %1078 = vmatpush1.msra.mxu0 0.0
    %1079 = vmatprep.subr.mxu0 0.0
    %1080 = vmatpush1.msra.mxu0 0.0
    %1081 = vmatprep.subr.mxu0 0.0
    %1082 = vmatpush1.msra.mxu0 0.0
    %1083 = vmatprep.subr.mxu0 0.0
    %1084 = vmatpush1.msra.mxu0 0.0
    %1085 = vmatprep.subr.mxu0 0.0
    %1086 = vmatpush1.msra.mxu0 0.0
    %1087 = vmatprep.subr.mxu0 0.0
    %1088 = vmatpush1.msra.mxu0 0.0
    %1089 = vmatprep.subr.mxu0 0.0
    %1090 = vmatpush1.msra.mxu0 0.0
    %1091 = vmatprep.subr.mxu0 0.0
    %1092 = vmatpush1.msra.mxu0 0.0
    %1093 = vmatprep.subr.mxu0 0.0
    %1094 = vmatpush1.msra.mxu0 0.0
    %1095 = vmatprep.subr.mxu0 0.0
    %1096 = vmatpush1.msra.mxu0 0.0
    %1097 = vmatprep.subr.mxu0 0.0
    %1098 = vmatpush1.msra.mxu0 0.0
    %1099 = vmatprep.subr.mxu0 0.0
    %1100 = vmatpush1.msra.mxu0 0.0
    %1101 = vmatprep.subr.mxu0 0.0
    %1102 = vmatpush1.msra.mxu0 0.0
    %1103 = vmatprep.subr.mxu0 0.0
    %1104 = vmatpush1.msra.mxu0 0.0
    %1105 = vmatprep.subr.mxu0 0.0
    %1106 = vmatpush1.msra.mxu0 0.0
    %1107 = vmatprep.subr.mxu0 0.0
    %1108 = vmatpush1.msra.mxu0 0.0
    %1109 = vmatprep.subr.mxu0 0.0
    %1110 = vmatpush1.msra.mxu0 0.0
    %1111 = vmatprep.subr.mxu0 0.0
    %1112 = vmatpush1.msra.mxu0 0.0
    %1113 = vmatprep.subr.mxu0 0.0
    %1114 = vmatpush1.msra.mxu0 0.0
    %1115 = vmatprep.subr.mxu0 0.0
    %1116 = vmatpush1.msra.mxu0 0.0
    %1117 = vmatprep.subr.mxu0 0.0
    %1118 = vmatpush1.msra.mxu0 0.0
    %1119 = vmatprep.subr.mxu0 0.0
    %1120 = vmatpush1.msra.mxu0 0.0
    %1121 = vmatprep.subr.mxu0 0.0
    %1122 = vmatpush1.msra.mxu0 0.0
    %1123 = vmatprep.subr.mxu0 0.0
    %1124 = vmatpush1.msra.mxu0 0.0
    %1125 = vmatprep.subr.mxu0 0.0
    %1126 = vmatpush1.msra.mxu0 0.0
    %1127 = vmatprep.subr.mxu0 0.0
    %1128 = vmatpush1.msra.mxu0 0.0
    %1129 = vmatprep.subr.mxu0 0.0
    %1130 = vmatpush1.msra.mxu0 0.0
    %1131 = vmatprep.subr.mxu0 0.0
    %1132 = vmatpush1.msra.mxu0 0.0
    %1133 = vmatprep.subr.mxu0 0.0
    %1134 = vmatpush1.msra.mxu0 0.0
    %1135 = vmatprep.mubr.f32.mxu0 0.0
    %1136 = vmatmul.mubr.f32.gmra.mrb[0].mxu0 %v1069
    %v1137 = vpop.f32.mrb[0].mxu0
    %v1138 = vadd.f32 %v1063, %v1137
    %v1139 = vpop.f32.mrb[0].mxu0
    %1140 = vdwg.mxu0
    %v1141 = vadd.f32 %v1138, %v683
    %v1142 = vxor.u32 %v1141, 2147483648
    %v1143 = vmul.f32 %v1142, 1.442695
    %v1144 = vpow.pop %v1143
    %v1145 = vadd.f32 %v1144, 1.0
    %v1146 = vrcp.pop %v1145
    %v1147 = vmul.f32 1.0, %v1146
    %v1148 = vtanh.pop %v1141
    %v1149 = vmul.f32 %v1147, %v707
    %1151 = vrot.lane.b32.xlu0 %v1148, 80
    %v1152 = vpop.permute.xlu0 %1151
    %v1154 = vmul.f32 %v1147, %v1152
    %1156 = vrot.lane.b32.xlu0 %v1154, 24
    %v1157 = vpop.permute.xlu0 %1156
    %v1159 = vadd.f32 %v1149, %v1157
    %v1160 = vtanh.pop %v1159
    %1162 = vrot.lane.b32.xlu0 %v1160, 48
    %v1163 = vpop.permute.xlu0 %1162
    %v1165 = vmul.f32 %v1147, %v1163
    %1167 = vrot.lane.b32.xlu0 %v897, 32
    %v1168 = vpop.permute.xlu0 %1167
    %v1169 = vsel %vm714, %v1168, 0
    %1171 = vmatprep.subr.mxu0 0.0
    %1172 = vmatpush1.msra.mxu0 %v409
    %1173 = vmatprep.subr.mxu0 0.0
    %1174 = vmatpush1.msra.mxu0 %v410
    %1175 = vmatprep.subr.mxu0 0.0
    %1176 = vmatpush1.msra.mxu0 %v411
    %1177 = vmatprep.subr.mxu0 0.0
    %1178 = vmatpush1.msra.mxu0 %v412
    %1179 = vmatprep.subr.mxu0 0.0
    %1180 = vmatpush1.msra.mxu0 0.0
    %1181 = vmatprep.subr.mxu0 0.0
    %1182 = vmatpush1.msra.mxu0 0.0
    %1183 = vmatprep.subr.mxu0 0.0
    %1184 = vmatpush1.msra.mxu0 0.0
    %1185 = vmatprep.subr.mxu0 0.0
    %1186 = vmatpush1.msra.mxu0 0.0
    %1187 = vmatprep.subr.mxu0 0.0
    %1188 = vmatpush1.msra.mxu0 0.0
    %1189 = vmatprep.subr.mxu0 0.0
    %1190 = vmatpush1.msra.mxu0 0.0
    %1191 = vmatprep.subr.mxu0 0.0
    %1192 = vmatpush1.msra.mxu0 0.0
    %1193 = vmatprep.subr.mxu0 0.0
    %1194 = vmatpush1.msra.mxu0 0.0
    %1195 = vmatprep.subr.mxu0 0.0
    %1196 = vmatpush1.msra.mxu0 0.0
    %1197 = vmatprep.subr.mxu0 0.0
    %1198 = vmatpush1.msra.mxu0 0.0
    %1199 = vmatprep.subr.mxu0 0.0
    %1200 = vmatpush1.msra.mxu0 0.0
    %1201 = vmatprep.subr.mxu0 0.0
    %1202 = vmatpush1.msra.mxu0 0.0
    %1203 = vmatprep.subr.mxu0 0.0
    %1204 = vmatpush1.msra.mxu0 0.0
    %1205 = vmatprep.subr.mxu0 0.0
    %1206 = vmatpush1.msra.mxu0 0.0
    %1207 = vmatprep.subr.mxu0 0.0
    %1208 = vmatpush1.msra.mxu0 0.0
    %1209 = vmatprep.subr.mxu0 0.0
    %1210 = vmatpush1.msra.mxu0 0.0
    %1211 = vmatprep.subr.mxu0 0.0
    %1212 = vmatpush1.msra.mxu0 0.0
    %1213 = vmatprep.subr.mxu0 0.0
    %1214 = vmatpush1.msra.mxu0 0.0
    %1215 = vmatprep.subr.mxu0 0.0
    %1216 = vmatpush1.msra.mxu0 0.0
    %1217 = vmatprep.subr.mxu0 0.0
    %1218 = vmatpush1.msra.mxu0 0.0
    %1219 = vmatprep.subr.mxu0 0.0
    %1220 = vmatpush1.msra.mxu0 0.0
    %1221 = vmatprep.subr.mxu0 0.0
    %1222 = vmatpush1.msra.mxu0 0.0
    %1223 = vmatprep.subr.mxu0 0.0
    %1224 = vmatpush1.msra.mxu0 0.0
    %1225 = vmatprep.subr.mxu0 0.0
    %1226 = vmatpush1.msra.mxu0 0.0
    %1227 = vmatprep.subr.mxu0 0.0
    %1228 = vmatpush1.msra.mxu0 0.0
    %1229 = vmatprep.subr.mxu0 0.0
    %1230 = vmatpush1.msra.mxu0 0.0
    %1231 = vmatprep.subr.mxu0 0.0
    %1232 = vmatpush1.msra.mxu0 0.0
    %1233 = vmatprep.subr.mxu0 0.0
    %1234 = vmatpush1.msra.mxu0 0.0
    %1235 = vmatprep.mubr.f32.mxu0 0.0
    %1236 = vmatmul.mubr.f32.gmra.mrb[0].mxu0 %v1169
    %v1237 = vpop.f32.mrb[0].mxu0
    %v1238 = vadd.f32 0.0, %v1237
    %v1239 = vpop.f32.mrb[0].mxu0
    %1240 = vdwg.mxu0
    %1242 = vrot.lane.b32.xlu0 %v1165, 56
    %v1243 = vpop.permute.xlu0 %1242
    %v1244 = vsel %vm530, %v1243, 0
    %1246 = vmatprep.subr.mxu0 0.0
    %1247 = vmatpush1.msra.mxu0 %v406
    %1248 = vmatprep.subr.mxu0 0.0
    %1249 = vmatpush1.msra.mxu0 %v407
    %1250 = vmatprep.subr.mxu0 0.0
    %1251 = vmatpush1.msra.mxu0 %v408
    %1252 = vmatprep.subr.mxu0 0.0
    %1253 = vmatpush1.msra.mxu0 0.0
    %1254 = vmatprep.subr.mxu0 0.0
    %1255 = vmatpush1.msra.mxu0 0.0
    %1256 = vmatprep.subr.mxu0 0.0
    %1257 = vmatpush1.msra.mxu0 0.0
    %1258 = vmatprep.subr.mxu0 0.0
    %1259 = vmatpush1.msra.mxu0 0.0
    %1260 = vmatprep.subr.mxu0 0.0
    %1261 = vmatpush1.msra.mxu0 0.0
    %1262 = vmatprep.subr.mxu0 0.0
    %1263 = vmatpush1.msra.mxu0 0.0
    %1264 = vmatprep.subr.mxu0 0.0
    %1265 = vmatpush1.msra.mxu0 0.0
    %1266 = vmatprep.subr.mxu0 0.0
    %1267 = vmatpush1.msra.mxu0 0.0
    %1268 = vmatprep.subr.mxu0 0.0
    %1269 = vmatpush1.msra.mxu0 0.0
    %1270 = vmatprep.subr.mxu0 0.0
    %1271 = vmatpush1.msra.mxu0 0.0
    %1272 = vmatprep.subr.mxu0 0.0
    %1273 = vmatpush1.msra.mxu0 0.0
    %1274 = vmatprep.subr.mxu0 0.0
    %1275 = vmatpush1.msra.mxu0 0.0
    %1276 = vmatprep.subr.mxu0 0.0
    %1277 = vmatpush1.msra.mxu0 0.0
    %1278 = vmatprep.subr.mxu0 0.0
    %1279 = vmatpush1.msra.mxu0 0.0
    %1280 = vmatprep.subr.mxu0 0.0
    %1281 = vmatpush1.msra.mxu0 0.0
    %1282 = vmatprep.subr.mxu0 0.0
    %1283 = vmatpush1.msra.mxu0 0.0
    %1284 = vmatprep.subr.mxu0 0.0
    %1285 = vmatpush1.msra.mxu0 0.0
    %1286 = vmatprep.subr.mxu0 0.0
    %1287 = vmatpush1.msra.mxu0 0.0
    %1288 = vmatprep.subr.mxu0 0.0
    %1289 = vmatpush1.msra.mxu0 0.0
    %1290 = vmatprep.subr.mxu0 0.0
    %1291 = vmatpush1.msra.mxu0 0.0
    %1292 = vmatprep.subr.mxu0 0.0
    %1293 = vmatpush1.msra.mxu0 0.0
    %1294 = vmatprep.subr.mxu0 0.0
    %1295 = vmatpush1.msra.mxu0 0.0
    %1296 = vmatprep.subr.mxu0 0.0
    %1297 = vmatpush1.msra.mxu0 0.0
    %1298 = vmatprep.subr.mxu0 0.0
    %1299 = vmatpush1.msra.mxu0 0.0
    %1300 = vmatprep.subr.mxu0 0.0
    %1301 = vmatpush1.msra.mxu0 0.0
    %1302 = vmatprep.subr.mxu0 0.0
    %1303 = vmatpush1.msra.mxu0 0.0
    %1304 = vmatprep.subr.mxu0 0.0
    %1305 = vmatpush1.msra.mxu0 0.0
    %1306 = vmatprep.subr.mxu0 0.0
    %1307 = vmatpush1.msra.mxu0 0.0
    %1308 = vmatprep.subr.mxu0 0.0
    %1309 = vmatpush1.msra.mxu0 0.0
    %1310 = vmatprep.mubr.f32.mxu0 0.0
    %1311 = vmatmul.mubr.f32.gmra.mrb[0].mxu0 %v1244
    %v1312 = vpop.f32.mrb[0].mxu0
    %v1313 = vadd.f32 %v1238, %v1312
    %v1314 = vpop.f32.mrb[0].mxu0
    %1315 = vdwg.mxu0
    %v1316 = vadd.f32 %v1313, %v867
    %v1317 = vxor.u32 %v1316, 2147483648
    %v1318 = vmul.f32 %v1317, 1.442695
    %v1319 = vpow.pop %v1318
    %v1320 = vadd.f32 %v1319, 1.0
    %v1321 = vrcp.pop %v1320
    %v1322 = vmul.f32 1.0, %v1321
    %v1323 = vtanh.pop %v1316
    %v1324 = vmul.f32 %v1322, %v891
    %1326 = vrot.lane.b32.xlu0 %v1323, 64
    %v1327 = vpop.permute.xlu0 %1326
    %v1329 = vmul.f32 %v1322, %v1327
    %1331 = vrot.lane.b32.xlu0 %v1329, 32
    %v1332 = vpop.permute.xlu0 %1331
    %v1334 = vadd.f32 %v1324, %v1332
    %v1335 = vtanh.pop %v1334
    %1337 = vrot.lane.b32.xlu0 %v1335, 64
    %v1338 = vpop.permute.xlu0 %1337
    %v1340 = vmul.f32 %v1322, %v1338
    %s1341 = scalar_lea.vmem [#allocation2], 16
    %v1342 = vld [vmem:[%s1341] sm:$0xff]
    %1343 = vmatprep.subr.mxu0 0.0
    %1344 = vmatpush1.msra.mxu0 %v397
    %1345 = vmatprep.subr.mxu0 0.0
    %1346 = vmatpush1.msra.mxu0 %v398
    %1347 = vmatprep.subr.mxu0 0.0
    %1348 = vmatpush1.msra.mxu0 0.0
    %1349 = vmatprep.subr.mxu0 0.0
    %1350 = vmatpush1.msra.mxu0 0.0
    %1351 = vmatprep.subr.mxu0 0.0
    %1352 = vmatpush1.msra.mxu0 0.0
    %1353 = vmatprep.subr.mxu0 0.0
    %1354 = vmatpush1.msra.mxu0 0.0
    %1355 = vmatprep.subr.mxu0 0.0
    %1356 = vmatpush1.msra.mxu0 0.0
    %1357 = vmatprep.subr.mxu0 0.0
    %1358 = vmatpush1.msra.mxu0 0.0
    %1359 = vmatprep.subr.mxu0 0.0
    %1360 = vmatpush1.msra.mxu0 0.0
    %1361 = vmatprep.subr.mxu0 0.0
    %1362 = vmatpush1.msra.mxu0 0.0
    %1363 = vmatprep.subr.mxu0 0.0
    %1364 = vmatpush1.msra.mxu0 0.0
    %1365 = vmatprep.subr.mxu0 0.0
    %1366 = vmatpush1.msra.mxu0 0.0
    %1367 = vmatprep.subr.mxu0 0.0
    %1368 = vmatpush1.msra.mxu0 0.0
    %1369 = vmatprep.subr.mxu0 0.0
    %1370 = vmatpush1.msra.mxu0 0.0
    %1371 = vmatprep.subr.mxu0 0.0
    %1372 = vmatpush1.msra.mxu0 0.0
    %1373 = vmatprep.subr.mxu0 0.0
    %1374 = vmatpush1.msra.mxu0 0.0
    %1375 = vmatprep.subr.mxu0 0.0
    %1376 = vmatpush1.msra.mxu0 0.0
    %1377 = vmatprep.subr.mxu0 0.0
    %1378 = vmatpush1.msra.mxu0 0.0
    %1379 = vmatprep.subr.mxu0 0.0
    %1380 = vmatpush1.msra.mxu0 0.0
    %1381 = vmatprep.subr.mxu0 0.0
    %1382 = vmatpush1.msra.mxu0 0.0
    %1383 = vmatprep.subr.mxu0 0.0
    %1384 = vmatpush1.msra.mxu0 0.0
    %1385 = vmatprep.subr.mxu0 0.0
    %1386 = vmatpush1.msra.mxu0 0.0
    %1387 = vmatprep.subr.mxu0 0.0
    %1388 = vmatpush1.msra.mxu0 0.0
    %1389 = vmatprep.subr.mxu0 0.0
    %1390 = vmatpush1.msra.mxu0 0.0
    %1391 = vmatprep.subr.mxu0 0.0
    %1392 = vmatpush1.msra.mxu0 0.0
    %1393 = vmatprep.subr.mxu0 0.0
    %1394 = vmatpush1.msra.mxu0 0.0
    %1395 = vmatprep.subr.mxu0 0.0
    %1396 = vmatpush1.msra.mxu0 0.0
    %1397 = vmatprep.subr.mxu0 0.0
    %1398 = vmatpush1.msra.mxu0 0.0
    %1399 = vmatprep.subr.mxu0 0.0
    %1400 = vmatpush1.msra.mxu0 0.0
    %1401 = vmatprep.subr.mxu0 0.0
    %1402 = vmatpush1.msra.mxu0 0.0
    %1403 = vmatprep.subr.mxu0 0.0
    %1404 = vmatpush1.msra.mxu0 0.0
    %1405 = vmatprep.subr.mxu0 0.0
    %1406 = vmatpush1.msra.mxu0 0.0
    %1407 = vmatprep.mubr.f32.mxu0 0.0
    %1408 = vmatmul.mubr.f32.gmra.mrb[0].mxu0 %v1069
    %v1409 = vpop.f32.mrb[0].mxu0
    %v1410 = vadd.f32 0.0, %v1409
    %v1411 = vpop.f32.mrb[0].mxu0
    %1412 = vdwg.mxu0
    %v1413 = vadd.f32 %v1342, %v1410
    %v1414 = vadd.f32 %v1413, %v499
    %v1415 = vxor.u32 %v1414, 2147483648
    %v1416 = vmul.f32 %v1415, 1.442695
    %v1417 = vpow.pop %v1416
    %v1418 = vadd.f32 %v1417, 1.0
    %v1419 = vrcp.pop %v1418
    %v1420 = vmul.f32 1.0, %v1419
    %v1421 = vtanh.pop %v1414
    %v1422 = vmul.f32 %v1420, %v989
    %1424 = vrot.lane.b32.xlu0 %v1421, 96
    %v1425 = vpop.permute.xlu0 %1424
    %v1427 = vmul.f32 %v1420, %v1425
    %1429 = vrot.lane.b32.xlu0 %v1427, 16
    %v1430 = vpop.permute.xlu0 %1429
    %v1432 = vadd.f32 %v1422, %v1430
    %v1433 = vtanh.pop %v1432
    %1435 = vrot.lane.b32.xlu0 %v1433, 32
    %v1436 = vpop.permute.xlu0 %1435
    %v1438 = vmul.f32 %v1420, %v1436
    %1439 = vmatprep.subr.mxu0 0.0
    %1440 = vmatpush1.msra.mxu0 %v402
    %1441 = vmatprep.subr.mxu0 0.0
    %1442 = vmatpush1.msra.mxu0 %v403
    %1443 = vmatprep.subr.mxu0 0.0
    %1444 = vmatpush1.msra.mxu0 %v404
    %1445 = vmatprep.subr.mxu0 0.0
    %1446 = vmatpush1.msra.mxu0 0.0
    %1447 = vmatprep.subr.mxu0 0.0
    %1448 = vmatpush1.msra.mxu0 0.0
    %1449 = vmatprep.subr.mxu0 0.0
    %1450 = vmatpush1.msra.mxu0 0.0
    %1451 = vmatprep.subr.mxu0 0.0
    %1452 = vmatpush1.msra.mxu0 0.0
    %1453 = vmatprep.subr.mxu0 0.0
    %1454 = vmatpush1.msra.mxu0 0.0
    %1455 = vmatprep.subr.mxu0 0.0
    %1456 = vmatpush1.msra.mxu0 0.0
    %1457 = vmatprep.subr.mxu0 0.0
    %1458 = vmatpush1.msra.mxu0 0.0
    %1459 = vmatprep.subr.mxu0 0.0
    %1460 = vmatpush1.msra.mxu0 0.0
    %1461 = vmatprep.subr.mxu0 0.0
    %1462 = vmatpush1.msra.mxu0 0.0
    %1463 = vmatprep.subr.mxu0 0.0
    %1464 = vmatpush1.msra.mxu0 0.0
    %1465 = vmatprep.subr.mxu0 0.0
    %1466 = vmatpush1.msra.mxu0 0.0
    %1467 = vmatprep.subr.mxu0 0.0
    %1468 = vmatpush1.msra.mxu0 0.0
    %1469 = vmatprep.subr.mxu0 0.0
    %1470 = vmatpush1.msra.mxu0 0.0
    %1471 = vmatprep.subr.mxu0 0.0
    %1472 = vmatpush1.msra.mxu0 0.0
    %1473 = vmatprep.subr.mxu0 0.0
    %1474 = vmatpush1.msra.mxu0 0.0
    %1475 = vmatprep.subr.mxu0 0.0
    %1476 = vmatpush1.msra.mxu0 0.0
    %1477 = vmatprep.subr.mxu0 0.0
    %1478 = vmatpush1.msra.mxu0 0.0
    %1479 = vmatprep.subr.mxu0 0.0
    %1480 = vmatpush1.msra.mxu0 0.0
    %1481 = vmatprep.subr.mxu0 0.0
    %1482 = vmatpush1.msra.mxu0 0.0
    %1483 = vmatprep.subr.mxu0 0.0
    %1484 = vmatpush1.msra.mxu0 0.0
    %1485 = vmatprep.subr.mxu0 0.0
    %1486 = vmatpush1.msra.mxu0 0.0
    %1487 = vmatprep.subr.mxu0 0.0
    %1488 = vmatpush1.msra.mxu0 0.0
    %1489 = vmatprep.subr.mxu0 0.0
    %1490 = vmatpush1.msra.mxu0 0.0
    %1491 = vmatprep.subr.mxu0 0.0
    %1492 = vmatpush1.msra.mxu0 0.0
    %1493 = vmatprep.subr.mxu0 0.0
    %1494 = vmatpush1.msra.mxu0 0.0
    %1495 = vmatprep.subr.mxu0 0.0
    %1496 = vmatpush1.msra.mxu0 0.0
    %1497 = vmatprep.subr.mxu0 0.0
    %1498 = vmatpush1.msra.mxu0 0.0
    %1499 = vmatprep.subr.mxu0 0.0
    %1500 = vmatpush1.msra.mxu0 0.0
    %1501 = vmatprep.subr.mxu0 0.0
    %1502 = vmatpush1.msra.mxu0 0.0
    %1503 = vmatprep.mubr.f32.mxu0 0.0
    %1504 = vmatmul.mubr.f32.gmra.mrb[0].mxu0 %v1244
    %v1505 = vpop.f32.mrb[0].mxu0
    %v1506 = vadd.f32 0.0, %v1505
    %v1507 = vpop.f32.mrb[0].mxu0
    %1508 = vdwg.mxu0
    %1510 = vrot.lane.b32.xlu0 %v1438, 80
    %v1511 = vpop.permute.xlu0 %1510
    %v1512 = vsel %vm258, %v1511, 0
    %1514 = vmatprep.subr.mxu0 0.0
    %1515 = vmatpush1.msra.mxu0 %v400
    %1516 = vmatprep.subr.mxu0 0.0
    %1517 = vmatpush1.msra.mxu0 %v401
    %1518 = vmatprep.subr.mxu0 0.0
    %1519 = vmatpush1.msra.mxu0 0.0
    %1520 = vmatprep.subr.mxu0 0.0
    %1521 = vmatpush1.msra.mxu0 0.0
    %1522 = vmatprep.subr.mxu0 0.0
    %1523 = vmatpush1.msra.mxu0 0.0
    %1524 = vmatprep.subr.mxu0 0.0
    %1525 = vmatpush1.msra.mxu0 0.0
    %1526 = vmatprep.subr.mxu0 0.0
    %1527 = vmatpush1.msra.mxu0 0.0
    %1528 = vmatprep.subr.mxu0 0.0
    %1529 = vmatpush1.msra.mxu0 0.0
    %1530 = vmatprep.subr.mxu0 0.0
    %1531 = vmatpush1.msra.mxu0 0.0
    %1532 = vmatprep.subr.mxu0 0.0
    %1533 = vmatpush1.msra.mxu0 0.0
    %1534 = vmatprep.subr.mxu0 0.0
    %1535 = vmatpush1.msra.mxu0 0.0
    %1536 = vmatprep.subr.mxu0 0.0
    %1537 = vmatpush1.msra.mxu0 0.0
    %1538 = vmatprep.subr.mxu0 0.0
    %1539 = vmatpush1.msra.mxu0 0.0
    %1540 = vmatprep.subr.mxu0 0.0
    %1541 = vmatpush1.msra.mxu0 0.0
    %1542 = vmatprep.subr.mxu0 0.0
    %1543 = vmatpush1.msra.mxu0 0.0
    %1544 = vmatprep.subr.mxu0 0.0
    %1545 = vmatpush1.msra.mxu0 0.0
    %1546 = vmatprep.subr.mxu0 0.0
    %1547 = vmatpush1.msra.mxu0 0.0
    %1548 = vmatprep.subr.mxu0 0.0
    %1549 = vmatpush1.msra.mxu0 0.0
    %1550 = vmatprep.subr.mxu0 0.0
    %1551 = vmatpush1.msra.mxu0 0.0
    %1552 = vmatprep.subr.mxu0 0.0
    %1553 = vmatpush1.msra.mxu0 0.0
    %1554 = vmatprep.subr.mxu0 0.0
    %1555 = vmatpush1.msra.mxu0 0.0
    %1556 = vmatprep.subr.mxu0 0.0
    %1557 = vmatpush1.msra.mxu0 0.0
    %1558 = vmatprep.subr.mxu0 0.0
    %1559 = vmatpush1.msra.mxu0 0.0
    %1560 = vmatprep.subr.mxu0 0.0
    %1561 = vmatpush1.msra.mxu0 0.0
    %1562 = vmatprep.subr.mxu0 0.0
    %1563 = vmatpush1.msra.mxu0 0.0
    %1564 = vmatprep.subr.mxu0 0.0
    %1565 = vmatpush1.msra.mxu0 0.0
    %1566 = vmatprep.subr.mxu0 0.0
    %1567 = vmatpush1.msra.mxu0 0.0
    %1568 = vmatprep.subr.mxu0 0.0
    %1569 = vmatpush1.msra.mxu0 0.0
    %1570 = vmatprep.subr.mxu0 0.0
    %1571 = vmatpush1.msra.mxu0 0.0
    %1572 = vmatprep.subr.mxu0 0.0
    %1573 = vmatpush1.msra.mxu0 0.0
    %1574 = vmatprep.subr.mxu0 0.0
    %1575 = vmatpush1.msra.mxu0 0.0
    %1576 = vmatprep.subr.mxu0 0.0
    %1577 = vmatpush1.msra.mxu0 0.0
    %1578 = vmatprep.mubr.f32.mxu0 0.0
    %1579 = vmatmul.mubr.f32.gmra.mrb[0].mxu0 %v1512
    %v1580 = vpop.f32.mrb[0].mxu0
    %v1581 = vadd.f32 %v1506, %v1580
    %v1582 = vpop.f32.mrb[0].mxu0
    %1583 = vdwg.mxu0
    %v1584 = vadd.f32 %v1581, %v683
    %v1585 = vxor.u32 %v1584, 2147483648
    %v1586 = vmul.f32 %v1585, 1.442695
    %v1587 = vpow.pop %v1586
    %v1588 = vadd.f32 %v1587, 1.0
    %v1589 = vrcp.pop %v1588
    %v1590 = vmul.f32 1.0, %v1589
    %v1591 = vtanh.pop %v1584
    %v1592 = vmul.f32 %v1590, %v1159
    %1594 = vrot.lane.b32.xlu0 %v1591, 80
    %v1595 = vpop.permute.xlu0 %1594
    %v1597 = vmul.f32 %v1590, %v1595
    %1599 = vrot.lane.b32.xlu0 %v1597, 24
    %v1600 = vpop.permute.xlu0 %1599
    %v1602 = vadd.f32 %v1592, %v1600
    %v1603 = vtanh.pop %v1602
    %1605 = vrot.lane.b32.xlu0 %v1603, 48
    %v1606 = vpop.permute.xlu0 %1605
    %v1608 = vmul.f32 %v1590, %v1606
    %1610 = vrot.lane.b32.xlu0 %v1340, 32
    %v1611 = vpop.permute.xlu0 %1610
    %v1612 = vsel %vm714, %v1611, 0
    %1614 = vmatprep.subr.mxu0 0.0
    %1615 = vmatpush1.msra.mxu0 %v409
    %1616 = vmatprep.subr.mxu0 0.0
    %1617 = vmatpush1.msra.mxu0 %v410
    %1618 = vmatprep.subr.mxu0 0.0
    %1619 = vmatpush1.msra.mxu0 %v411
    %1620 = vmatprep.subr.mxu0 0.0
    %1621 = vmatpush1.msra.mxu0 %v412
    %1622 = vmatprep.subr.mxu0 0.0
    %1623 = vmatpush1.msra.mxu0 0.0
    %1624 = vmatprep.subr.mxu0 0.0
    %1625 = vmatpush1.msra.mxu0 0.0
    %1626 = vmatprep.subr.mxu0 0.0
    %1627 = vmatpush1.msra.mxu0 0.0
    %1628 = vmatprep.subr.mxu0 0.0
    %1629 = vmatpush1.msra.mxu0 0.0
    %1630 = vmatprep.subr.mxu0 0.0
    %1631 = vmatpush1.msra.mxu0 0.0
    %1632 = vmatprep.subr.mxu0 0.0
    %1633 = vmatpush1.msra.mxu0 0.0
    %1634 = vmatprep.subr.mxu0 0.0
    %1635 = vmatpush1.msra.mxu0 0.0
    %1636 = vmatprep.subr.mxu0 0.0
    %1637 = vmatpush1.msra.mxu0 0.0
    %1638 = vmatprep.subr.mxu0 0.0
    %1639 = vmatpush1.msra.mxu0 0.0
    %1640 = vmatprep.subr.mxu0 0.0
    %1641 = vmatpush1.msra.mxu0 0.0
    %1642 = vmatprep.subr.mxu0 0.0
    %1643 = vmatpush1.msra.mxu0 0.0
    %1644 = vmatprep.subr.mxu0 0.0
    %1645 = vmatpush1.msra.mxu0 0.0
    %1646 = vmatprep.subr.mxu0 0.0
    %1647 = vmatpush1.msra.mxu0 0.0
    %1648 = vmatprep.subr.mxu0 0.0
    %1649 = vmatpush1.msra.mxu0 0.0
    %1650 = vmatprep.subr.mxu0 0.0
    %1651 = vmatpush1.msra.mxu0 0.0
    %1652 = vmatprep.subr.mxu0 0.0
    %1653 = vmatpush1.msra.mxu0 0.0
    %1654 = vmatprep.subr.mxu0 0.0
    %1655 = vmatpush1.msra.mxu0 0.0
    %1656 = vmatprep.subr.mxu0 0.0
    %1657 = vmatpush1.msra.mxu0 0.0
    %1658 = vmatprep.subr.mxu0 0.0
    %1659 = vmatpush1.msra.mxu0 0.0
    %1660 = vmatprep.subr.mxu0 0.0
    %1661 = vmatpush1.msra.mxu0 0.0
    %1662 = vmatprep.subr.mxu0 0.0
    %1663 = vmatpush1.msra.mxu0 0.0
    %1664 = vmatprep.subr.mxu0 0.0
    %1665 = vmatpush1.msra.mxu0 0.0
    %1666 = vmatprep.subr.mxu0 0.0
    %1667 = vmatpush1.msra.mxu0 0.0
    %1668 = vmatprep.subr.mxu0 0.0
    %1669 = vmatpush1.msra.mxu0 0.0
    %1670 = vmatprep.subr.mxu0 0.0
    %1671 = vmatpush1.msra.mxu0 0.0
    %1672 = vmatprep.subr.mxu0 0.0
    %1673 = vmatpush1.msra.mxu0 0.0
    %1674 = vmatprep.subr.mxu0 0.0
    %1675 = vmatpush1.msra.mxu0 0.0
    %1676 = vmatprep.subr.mxu0 0.0
    %1677 = vmatpush1.msra.mxu0 0.0
    %1678 = vmatprep.mubr.f32.mxu0 0.0
    %1679 = vmatmul.mubr.f32.gmra.mrb[0].mxu0 %v1612
    %v1680 = vpop.f32.mrb[0].mxu0
    %v1681 = vadd.f32 0.0, %v1680
    %v1682 = vpop.f32.mrb[0].mxu0
    %1683 = vdwg.mxu0
    %1685 = vrot.lane.b32.xlu0 %v1608, 56
    %v1686 = vpop.permute.xlu0 %1685
    %v1687 = vsel %vm530, %v1686, 0
    %1689 = vmatprep.subr.mxu0 0.0
    %1690 = vmatpush1.msra.mxu0 %v406
    %1691 = vmatprep.subr.mxu0 0.0
    %1692 = vmatpush1.msra.mxu0 %v407
    %1693 = vmatprep.subr.mxu0 0.0
    %1694 = vmatpush1.msra.mxu0 %v408
    %1695 = vmatprep.subr.mxu0 0.0
    %1696 = vmatpush1.msra.mxu0 0.0
    %1697 = vmatprep.subr.mxu0 0.0
    %1698 = vmatpush1.msra.mxu0 0.0
    %1699 = vmatprep.subr.mxu0 0.0
    %1700 = vmatpush1.msra.mxu0 0.0
    %1701 = vmatprep.subr.mxu0 0.0
    %1702 = vmatpush1.msra.mxu0 0.0
    %1703 = vmatprep.subr.mxu0 0.0
    %1704 = vmatpush1.msra.mxu0 0.0
    %1705 = vmatprep.subr.mxu0 0.0
    %1706 = vmatpush1.msra.mxu0 0.0
    %1707 = vmatprep.subr.mxu0 0.0
    %1708 = vmatpush1.msra.mxu0 0.0
    %1709 = vmatprep.subr.mxu0 0.0
    %1710 = vmatpush1.msra.mxu0 0.0
    %1711 = vmatprep.subr.mxu0 0.0
    %1712 = vmatpush1.msra.mxu0 0.0
    %1713 = vmatprep.subr.mxu0 0.0
    %1714 = vmatpush1.msra.mxu0 0.0
    %1715 = vmatprep.subr.mxu0 0.0
    %1716 = vmatpush1.msra.mxu0 0.0
    %1717 = vmatprep.subr.mxu0 0.0
    %1718 = vmatpush1.msra.mxu0 0.0
    %1719 = vmatprep.subr.mxu0 0.0
    %1720 = vmatpush1.msra.mxu0 0.0
    %1721 = vmatprep.subr.mxu0 0.0
    %1722 = vmatpush1.msra.mxu0 0.0
    %1723 = vmatprep.subr.mxu0 0.0
    %1724 = vmatpush1.msra.mxu0 0.0
    %1725 = vmatprep.subr.mxu0 0.0
    %1726 = vmatpush1.msra.mxu0 0.0
    %1727 = vmatprep.subr.mxu0 0.0
    %1728 = vmatpush1.msra.mxu0 0.0
    %1729 = vmatprep.subr.mxu0 0.0
    %1730 = vmatpush1.msra.mxu0 0.0
    %1731 = vmatprep.subr.mxu0 0.0
    %1732 = vmatpush1.msra.mxu0 0.0
    %1733 = vmatprep.subr.mxu0 0.0
    %1734 = vmatpush1.msra.mxu0 0.0
    %1735 = vmatprep.subr.mxu0 0.0
    %1736 = vmatpush1.msra.mxu0 0.0
    %1737 = vmatprep.subr.mxu0 0.0
    %1738 = vmatpush1.msra.mxu0 0.0
    %1739 = vmatprep.subr.mxu0 0.0
    %1740 = vmatpush1.msra.mxu0 0.0
    %1741 = vmatprep.subr.mxu0 0.0
    %1742 = vmatpush1.msra.mxu0 0.0
    %1743 = vmatprep.subr.mxu0 0.0
    %1744 = vmatpush1.msra.mxu0 0.0
    %1745 = vmatprep.subr.mxu0 0.0
    %1746 = vmatpush1.msra.mxu0 0.0
    %1747 = vmatprep.subr.mxu0 0.0
    %1748 = vmatpush1.msra.mxu0 0.0
    %1749 = vmatprep.subr.mxu0 0.0
    %1750 = vmatpush1.msra.mxu0 0.0
    %1751 = vmatprep.subr.mxu0 0.0
    %1752 = vmatpush1.msra.mxu0 0.0
    %1753 = vmatprep.mubr.f32.mxu0 0.0
    %1754 = vmatmul.mubr.f32.gmra.mrb[0].mxu0 %v1687
    %v1755 = vpop.f32.mrb[0].mxu0
    %v1756 = vadd.f32 %v1681, %v1755
    %v1757 = vpop.f32.mrb[0].mxu0
    %1758 = vdwg.mxu0
    %v1759 = vadd.f32 %v1756, %v867
    %v1760 = vxor.u32 %v1759, 2147483648
    %v1761 = vmul.f32 %v1760, 1.442695
    %v1762 = vpow.pop %v1761
    %v1763 = vadd.f32 %v1762, 1.0
    %v1764 = vrcp.pop %v1763
    %v1765 = vmul.f32 1.0, %v1764
    %v1766 = vtanh.pop %v1759
    %v1767 = vmul.f32 %v1765, %v1334
    %1769 = vrot.lane.b32.xlu0 %v1766, 64
    %v1770 = vpop.permute.xlu0 %1769
    %v1772 = vmul.f32 %v1765, %v1770
    %1774 = vrot.lane.b32.xlu0 %v1772, 32
    %v1775 = vpop.permute.xlu0 %1774
    %v1777 = vadd.f32 %v1767, %v1775
    %v1778 = vtanh.pop %v1777
    %1780 = vrot.lane.b32.xlu0 %v1778, 64
    %v1781 = vpop.permute.xlu0 %1780
    %v1783 = vmul.f32 %v1765, %v1781
    %s1784 = scalar_lea.vmem [#allocation2], 24
    %v1785 = vld [vmem:[%s1784] sm:$0xff]
    %1786 = vmatprep.subr.mxu0 0.0
    %1787 = vmatpush1.msra.mxu0 %v397
    %1788 = vmatprep.subr.mxu0 0.0
    %1789 = vmatpush1.msra.mxu0 %v398
    %1790 = vmatprep.subr.mxu0 0.0
    %1791 = vmatpush1.msra.mxu0 0.0
    %1792 = vmatprep.subr.mxu0 0.0
    %1793 = vmatpush1.msra.mxu0 0.0
    %1794 = vmatprep.subr.mxu0 0.0
    %1795 = vmatpush1.msra.mxu0 0.0
    %1796 = vmatprep.subr.mxu0 0.0
    %1797 = vmatpush1.msra.mxu0 0.0
    %1798 = vmatprep.subr.mxu0 0.0
    %1799 = vmatpush1.msra.mxu0 0.0
    %1800 = vmatprep.subr.mxu0 0.0
    %1801 = vmatpush1.msra.mxu0 0.0
    %1802 = vmatprep.subr.mxu0 0.0
    %1803 = vmatpush1.msra.mxu0 0.0
    %1804 = vmatprep.subr.mxu0 0.0
    %1805 = vmatpush1.msra.mxu0 0.0
    %1806 = vmatprep.subr.mxu0 0.0
    %1807 = vmatpush1.msra.mxu0 0.0
    %1808 = vmatprep.subr.mxu0 0.0
    %1809 = vmatpush1.msra.mxu0 0.0
    %1810 = vmatprep.subr.mxu0 0.0
    %1811 = vmatpush1.msra.mxu0 0.0
    %1812 = vmatprep.subr.mxu0 0.0
    %1813 = vmatpush1.msra.mxu0 0.0
    %1814 = vmatprep.subr.mxu0 0.0
    %1815 = vmatpush1.msra.mxu0 0.0
    %1816 = vmatprep.subr.mxu0 0.0
    %1817 = vmatpush1.msra.mxu0 0.0
    %1818 = vmatprep.subr.mxu0 0.0
    %1819 = vmatpush1.msra.mxu0 0.0
    %1820 = vmatprep.subr.mxu0 0.0
    %1821 = vmatpush1.msra.mxu0 0.0
    %1822 = vmatprep.subr.mxu0 0.0
    %1823 = vmatpush1.msra.mxu0 0.0
    %1824 = vmatprep.subr.mxu0 0.0
    %1825 = vmatpush1.msra.mxu0 0.0
    %1826 = vmatprep.subr.mxu0 0.0
    %1827 = vmatpush1.msra.mxu0 0.0
    %1828 = vmatprep.subr.mxu0 0.0
    %1829 = vmatpush1.msra.mxu0 0.0
    %1830 = vmatprep.subr.mxu0 0.0
    %1831 = vmatpush1.msra.mxu0 0.0
    %1832 = vmatprep.subr.mxu0 0.0
    %1833 = vmatpush1.msra.mxu0 0.0
    %1834 = vmatprep.subr.mxu0 0.0
    %1835 = vmatpush1.msra.mxu0 0.0
    %1836 = vmatprep.subr.mxu0 0.0
    %1837 = vmatpush1.msra.mxu0 0.0
    %1838 = vmatprep.subr.mxu0 0.0
    %1839 = vmatpush1.msra.mxu0 0.0
    %1840 = vmatprep.subr.mxu0 0.0
    %1841 = vmatpush1.msra.mxu0 0.0
    %1842 = vmatprep.subr.mxu0 0.0
    %1843 = vmatpush1.msra.mxu0 0.0
    %1844 = vmatprep.subr.mxu0 0.0
    %1845 = vmatpush1.msra.mxu0 0.0
    %1846 = vmatprep.subr.mxu0 0.0
    %1847 = vmatpush1.msra.mxu0 0.0
    %1848 = vmatprep.subr.mxu0 0.0
    %1849 = vmatpush1.msra.mxu0 0.0
    %1850 = vmatprep.mubr.f32.mxu0 0.0
    %1851 = vmatmul.mubr.f32.gmra.mrb[0].mxu0 %v1512
    %v1852 = vpop.f32.mrb[0].mxu0
    %v1853 = vadd.f32 0.0, %v1852
    %v1854 = vpop.f32.mrb[0].mxu0
    %1855 = vdwg.mxu0
    %v1856 = vadd.f32 %v1785, %v1853
    %v1857 = vadd.f32 %v1856, %v499
    %v1858 = vxor.u32 %v1857, 2147483648
    %v1859 = vmul.f32 %v1858, 1.442695
    %v1860 = vpow.pop %v1859
    %v1861 = vadd.f32 %v1860, 1.0
    %v1862 = vrcp.pop %v1861
    %v1863 = vmul.f32 1.0, %v1862
    %v1864 = vtanh.pop %v1857
    %v1865 = vmul.f32 %v1863, %v1432
    %1867 = vrot.lane.b32.xlu0 %v1864, 96
    %v1868 = vpop.permute.xlu0 %1867
    %v1870 = vmul.f32 %v1863, %v1868
    %1872 = vrot.lane.b32.xlu0 %v1870, 16
    %v1873 = vpop.permute.xlu0 %1872
    %v1875 = vadd.f32 %v1865, %v1873
    %v1876 = vtanh.pop %v1875
    %1878 = vrot.lane.b32.xlu0 %v1876, 32
    %v1879 = vpop.permute.xlu0 %1878
    %v1881 = vmul.f32 %v1863, %v1879
    %1882 = vmatprep.subr.mxu0 0.0
    %1883 = vmatpush1.msra.mxu0 %v402
    %1884 = vmatprep.subr.mxu0 0.0
    %1885 = vmatpush1.msra.mxu0 %v403
    %1886 = vmatprep.subr.mxu0 0.0
    %1887 = vmatpush1.msra.mxu0 %v404
    %1888 = vmatprep.subr.mxu0 0.0
    %1889 = vmatpush1.msra.mxu0 0.0
    %1890 = vmatprep.subr.mxu0 0.0
    %1891 = vmatpush1.msra.mxu0 0.0
    %1892 = vmatprep.subr.mxu0 0.0
    %1893 = vmatpush1.msra.mxu0 0.0
    %1894 = vmatprep.subr.mxu0 0.0
    %1895 = vmatpush1.msra.mxu0 0.0
    %1896 = vmatprep.subr.mxu0 0.0
    %1897 = vmatpush1.msra.mxu0 0.0
    %1898 = vmatprep.subr.mxu0 0.0
    %1899 = vmatpush1.msra.mxu0 0.0
    %1900 = vmatprep.subr.mxu0 0.0
    %1901 = vmatpush1.msra.mxu0 0.0
    %1902 = vmatprep.subr.mxu0 0.0
    %1903 = vmatpush1.msra.mxu0 0.0
    %1904 = vmatprep.subr.mxu0 0.0
    %1905 = vmatpush1.msra.mxu0 0.0
    %1906 = vmatprep.subr.mxu0 0.0
    %1907 = vmatpush1.msra.mxu0 0.0
    %1908 = vmatprep.subr.mxu0 0.0
    %1909 = vmatpush1.msra.mxu0 0.0
    %1910 = vmatprep.subr.mxu0 0.0
    %1911 = vmatpush1.msra.mxu0 0.0
    %1912 = vmatprep.subr.mxu0 0.0
    %1913 = vmatpush1.msra.mxu0 0.0
    %1914 = vmatprep.subr.mxu0 0.0
    %1915 = vmatpush1.msra.mxu0 0.0
    %1916 = vmatprep.subr.mxu0 0.0
    %1917 = vmatpush1.msra.mxu0 0.0
    %1918 = vmatprep.subr.mxu0 0.0
    %1919 = vmatpush1.msra.mxu0 0.0
    %1920 = vmatprep.subr.mxu0 0.0
    %1921 = vmatpush1.msra.mxu0 0.0
    %1922 = vmatprep.subr.mxu0 0.0
    %1923 = vmatpush1.msra.mxu0 0.0
    %1924 = vmatprep.subr.mxu0 0.0
    %1925 = vmatpush1.msra.mxu0 0.0
    %1926 = vmatprep.subr.mxu0 0.0
    %1927 = vmatpush1.msra.mxu0 0.0
    %1928 = vmatprep.subr.mxu0 0.0
    %1929 = vmatpush1.msra.mxu0 0.0
    %1930 = vmatprep.subr.mxu0 0.0
    %1931 = vmatpush1.msra.mxu0 0.0
    %1932 = vmatprep.subr.mxu0 0.0
    %1933 = vmatpush1.msra.mxu0 0.0
    %1934 = vmatprep.subr.mxu0 0.0
    %1935 = vmatpush1.msra.mxu0 0.0
    %1936 = vmatprep.subr.mxu0 0.0
    %1937 = vmatpush1.msra.mxu0 0.0
    %1938 = vmatprep.subr.mxu0 0.0
    %1939 = vmatpush1.msra.mxu0 0.0
    %1940 = vmatprep.subr.mxu0 0.0
    %1941 = vmatpush1.msra.mxu0 0.0
    %1942 = vmatprep.subr.mxu0 0.0
    %1943 = vmatpush1.msra.mxu0 0.0
    %1944 = vmatprep.subr.mxu0 0.0
    %1945 = vmatpush1.msra.mxu0 0.0
    %1946 = vmatprep.mubr.f32.mxu0 0.0
    %1947 = vmatmul.mubr.f32.gmra.mrb[0].mxu0 %v1687
    %v1948 = vpop.f32.mrb[0].mxu0
    %v1949 = vadd.f32 0.0, %v1948
    %v1950 = vpop.f32.mrb[0].mxu0
    %1951 = vdwg.mxu0
    %1953 = vrot.lane.b32.xlu0 %v1881, 80
    %v1954 = vpop.permute.xlu0 %1953
    %v1955 = vsel %vm258, %v1954, 0
    %1957 = vmatprep.subr.mxu0 0.0
    %1958 = vmatpush1.msra.mxu0 %v400
    %1959 = vmatprep.subr.mxu0 0.0
    %1960 = vmatpush1.msra.mxu0 %v401
    %1961 = vmatprep.subr.mxu0 0.0
    %1962 = vmatpush1.msra.mxu0 0.0
    %1963 = vmatprep.subr.mxu0 0.0
    %1964 = vmatpush1.msra.mxu0 0.0
    %1965 = vmatprep.subr.mxu0 0.0
    %1966 = vmatpush1.msra.mxu0 0.0
    %1967 = vmatprep.subr.mxu0 0.0
    %1968 = vmatpush1.msra.mxu0 0.0
    %1969 = vmatprep.subr.mxu0 0.0
    %1970 = vmatpush1.msra.mxu0 0.0
    %1971 = vmatprep.subr.mxu0 0.0
    %1972 = vmatpush1.msra.mxu0 0.0
    %1973 = vmatprep.subr.mxu0 0.0
    %1974 = vmatpush1.msra.mxu0 0.0
    %1975 = vmatprep.subr.mxu0 0.0
    %1976 = vmatpush1.msra.mxu0 0.0
    %1977 = vmatprep.subr.mxu0 0.0
    %1978 = vmatpush1.msra.mxu0 0.0
    %1979 = vmatprep.subr.mxu0 0.0
    %1980 = vmatpush1.msra.mxu0 0.0
    %1981 = vmatprep.subr.mxu0 0.0
    %1982 = vmatpush1.msra.mxu0 0.0
    %1983 = vmatprep.subr.mxu0 0.0
    %1984 = vmatpush1.msra.mxu0 0.0
    %1985 = vmatprep.subr.mxu0 0.0
    %1986 = vmatpush1.msra.mxu0 0.0
    %1987 = vmatprep.subr.mxu0 0.0
    %1988 = vmatpush1.msra.mxu0 0.0
    %1989 = vmatprep.subr.mxu0 0.0
    %1990 = vmatpush1.msra.mxu0 0.0
    %1991 = vmatprep.subr.mxu0 0.0
    %1992 = vmatpush1.msra.mxu0 0.0
    %1993 = vmatprep.subr.mxu0 0.0
    %1994 = vmatpush1.msra.mxu0 0.0
    %1995 = vmatprep.subr.mxu0 0.0
    %1996 = vmatpush1.msra.mxu0 0.0
    %1997 = vmatprep.subr.mxu0 0.0
    %1998 = vmatpush1.msra.mxu0 0.0
    %1999 = vmatprep.subr.mxu0 0.0
    %2000 = vmatpush1.msra.mxu0 0.0
    %2001 = vmatprep.subr.mxu0 0.0
    %2002 = vmatpush1.msra.mxu0 0.0
    %2003 = vmatprep.subr.mxu0 0.0
    %2004 = vmatpush1.msra.mxu0 0.0
    %2005 = vmatprep.subr.mxu0 0.0
    %2006 = vmatpush1.msra.mxu0 0.0
    %2007 = vmatprep.subr.mxu0 0.0
    %2008 = vmatpush1.msra.mxu0 0.0
    %2009 = vmatprep.subr.mxu0 0.0
    %2010 = vmatpush1.msra.mxu0 0.0
    %2011 = vmatprep.subr.mxu0 0.0
    %2012 = vmatpush1.msra.mxu0 0.0
    %2013 = vmatprep.subr.mxu0 0.0
    %2014 = vmatpush1.msra.mxu0 0.0
    %2015 = vmatprep.subr.mxu0 0.0
    %2016 = vmatpush1.msra.mxu0 0.0
    %2017 = vmatprep.subr.mxu0 0.0
    %2018 = vmatpush1.msra.mxu0 0.0
    %2019 = vmatprep.subr.mxu0 0.0
    %2020 = vmatpush1.msra.mxu0 0.0
    %2021 = vmatprep.mubr.f32.mxu0 0.0
    %2022 = vmatmul.mubr.f32.gmra.mrb[0].mxu0 %v1955
    %v2023 = vpop.f32.mrb[0].mxu0
    %v2024 = vadd.f32 %v1949, %v2023
    %v2025 = vpop.f32.mrb[0].mxu0
    %2026 = vdwg.mxu0
    %v2027 = vadd.f32 %v2024, %v683
    %v2028 = vxor.u32 %v2027, 2147483648
    %v2029 = vmul.f32 %v2028, 1.442695
    %v2030 = vpow.pop %v2029
    %v2031 = vadd.f32 %v2030, 1.0
    %v2032 = vrcp.pop %v2031
    %v2033 = vmul.f32 1.0, %v2032
    %v2034 = vtanh.pop %v2027
    %v2035 = vmul.f32 %v2033, %v1602
    %2037 = vrot.lane.b32.xlu0 %v2034, 80
    %v2038 = vpop.permute.xlu0 %2037
    %v2040 = vmul.f32 %v2033, %v2038
    %2042 = vrot.lane.b32.xlu0 %v2040, 24
    %v2043 = vpop.permute.xlu0 %2042
    %v2045 = vadd.f32 %v2035, %v2043
    %v2046 = vtanh.pop %v2045
    %2048 = vrot.lane.b32.xlu0 %v2046, 48
    %v2049 = vpop.permute.xlu0 %2048
    %v2051 = vmul.f32 %v2033, %v2049
    %2053 = vrot.lane.b32.xlu0 %v1783, 32
    %v2054 = vpop.permute.xlu0 %2053
    %v2055 = vsel %vm714, %v2054, 0
    %2057 = vmatprep.subr.mxu0 0.0
    %2058 = vmatpush1.msra.mxu0 %v409
    %2059 = vmatprep.subr.mxu0 0.0
    %2060 = vmatpush1.msra.mxu0 %v410
    %2061 = vmatprep.subr.mxu0 0.0
    %2062 = vmatpush1.msra.mxu0 %v411
    %2063 = vmatprep.subr.mxu0 0.0
    %2064 = vmatpush1.msra.mxu0 %v412
    %2065 = vmatprep.subr.mxu0 0.0
    %2066 = vmatpush1.msra.mxu0 0.0
    %2067 = vmatprep.subr.mxu0 0.0
    %2068 = vmatpush1.msra.mxu0 0.0
    %2069 = vmatprep.subr.mxu0 0.0
    %2070 = vmatpush1.msra.mxu0 0.0
    %2071 = vmatprep.subr.mxu0 0.0
    %2072 = vmatpush1.msra.mxu0 0.0
    %2073 = vmatprep.subr.mxu0 0.0
    %2074 = vmatpush1.msra.mxu0 0.0
    %2075 = vmatprep.subr.mxu0 0.0
    %2076 = vmatpush1.msra.mxu0 0.0
    %2077 = vmatprep.subr.mxu0 0.0
    %2078 = vmatpush1.msra.mxu0 0.0
    %2079 = vmatprep.subr.mxu0 0.0
    %2080 = vmatpush1.msra.mxu0 0.0
    %2081 = vmatprep.subr.mxu0 0.0
    %2082 = vmatpush1.msra.mxu0 0.0
    %2083 = vmatprep.subr.mxu0 0.0
    %2084 = vmatpush1.msra.mxu0 0.0
    %2085 = vmatprep.subr.mxu0 0.0
    %2086 = vmatpush1.msra.mxu0 0.0
    %2087 = vmatprep.subr.mxu0 0.0
    %2088 = vmatpush1.msra.mxu0 0.0
    %2089 = vmatprep.subr.mxu0 0.0
    %2090 = vmatpush1.msra.mxu0 0.0
    %2091 = vmatprep.subr.mxu0 0.0
    %2092 = vmatpush1.msra.mxu0 0.0
    %2093 = vmatprep.subr.mxu0 0.0
    %2094 = vmatpush1.msra.mxu0 0.0
    %2095 = vmatprep.subr.mxu0 0.0
    %2096 = vmatpush1.msra.mxu0 0.0
    %2097 = vmatprep.subr.mxu0 0.0
    %2098 = vmatpush1.msra.mxu0 0.0
    %2099 = vmatprep.subr.mxu0 0.0
    %2100 = vmatpush1.msra.mxu0 0.0
    %2101 = vmatprep.subr.mxu0 0.0
    %2102 = vmatpush1.msra.mxu0 0.0
    %2103 = vmatprep.subr.mxu0 0.0
    %2104 = vmatpush1.msra.mxu0 0.0
    %2105 = vmatprep.subr.mxu0 0.0
    %2106 = vmatpush1.msra.mxu0 0.0
    %2107 = vmatprep.subr.mxu0 0.0
    %2108 = vmatpush1.msra.mxu0 0.0
    %2109 = vmatprep.subr.mxu0 0.0
    %2110 = vmatpush1.msra.mxu0 0.0
    %2111 = vmatprep.subr.mxu0 0.0
    %2112 = vmatpush1.msra.mxu0 0.0
    %2113 = vmatprep.subr.mxu0 0.0
    %2114 = vmatpush1.msra.mxu0 0.0
    %2115 = vmatprep.subr.mxu0 0.0
    %2116 = vmatpush1.msra.mxu0 0.0
    %2117 = vmatprep.subr.mxu0 0.0
    %2118 = vmatpush1.msra.mxu0 0.0
    %2119 = vmatprep.subr.mxu0 0.0
    %2120 = vmatpush1.msra.mxu0 0.0
    %2121 = vmatprep.mubr.f32.mxu0 0.0
    %2122 = vmatmul.mubr.f32.gmra.mrb[0].mxu0 %v2055
    %v2123 = vpop.f32.mrb[0].mxu0
    %v2124 = vadd.f32 0.0, %v2123
    %v2125 = vpop.f32.mrb[0].mxu0
    %2126 = vdwg.mxu0
    %2128 = vrot.lane.b32.xlu0 %v2051, 56
    %v2129 = vpop.permute.xlu0 %2128
    %v2130 = vsel %vm530, %v2129, 0
    %2132 = vmatprep.subr.mxu0 0.0
    %2133 = vmatpush1.msra.mxu0 %v406
    %2134 = vmatprep.subr.mxu0 0.0
    %2135 = vmatpush1.msra.mxu0 %v407
    %2136 = vmatprep.subr.mxu0 0.0
    %2137 = vmatpush1.msra.mxu0 %v408
    %2138 = vmatprep.subr.mxu0 0.0
    %2139 = vmatpush1.msra.mxu0 0.0
    %2140 = vmatprep.subr.mxu0 0.0
    %2141 = vmatpush1.msra.mxu0 0.0
    %2142 = vmatprep.subr.mxu0 0.0
    %2143 = vmatpush1.msra.mxu0 0.0
    %2144 = vmatprep.subr.mxu0 0.0
    %2145 = vmatpush1.msra.mxu0 0.0
    %2146 = vmatprep.subr.mxu0 0.0
    %2147 = vmatpush1.msra.mxu0 0.0
    %2148 = vmatprep.subr.mxu0 0.0
    %2149 = vmatpush1.msra.mxu0 0.0
    %2150 = vmatprep.subr.mxu0 0.0
    %2151 = vmatpush1.msra.mxu0 0.0
    %2152 = vmatprep.subr.mxu0 0.0
    %2153 = vmatpush1.msra.mxu0 0.0
    %2154 = vmatprep.subr.mxu0 0.0
    %2155 = vmatpush1.msra.mxu0 0.0
    %2156 = vmatprep.subr.mxu0 0.0
    %2157 = vmatpush1.msra.mxu0 0.0
    %2158 = vmatprep.subr.mxu0 0.0
    %2159 = vmatpush1.msra.mxu0 0.0
    %2160 = vmatprep.subr.mxu0 0.0
    %2161 = vmatpush1.msra.mxu0 0.0
    %2162 = vmatprep.subr.mxu0 0.0
    %2163 = vmatpush1.msra.mxu0 0.0
    %2164 = vmatprep.subr.mxu0 0.0
    %2165 = vmatpush1.msra.mxu0 0.0
    %2166 = vmatprep.subr.mxu0 0.0
    %2167 = vmatpush1.msra.mxu0 0.0
    %2168 = vmatprep.subr.mxu0 0.0
    %2169 = vmatpush1.msra.mxu0 0.0
    %2170 = vmatprep.subr.mxu0 0.0
    %2171 = vmatpush1.msra.mxu0 0.0
    %2172 = vmatprep.subr.mxu0 0.0
    %2173 = vmatpush1.msra.mxu0 0.0
    %2174 = vmatprep.subr.mxu0 0.0
    %2175 = vmatpush1.msra.mxu0 0.0
    %2176 = vmatprep.subr.mxu0 0.0
    %2177 = vmatpush1.msra.mxu0 0.0
    %2178 = vmatprep.subr.mxu0 0.0
    %2179 = vmatpush1.msra.mxu0 0.0
    %2180 = vmatprep.subr.mxu0 0.0
    %2181 = vmatpush1.msra.mxu0 0.0
    %2182 = vmatprep.subr.mxu0 0.0
    %2183 = vmatpush1.msra.mxu0 0.0
    %2184 = vmatprep.subr.mxu0 0.0
    %2185 = vmatpush1.msra.mxu0 0.0
    %2186 = vmatprep.subr.mxu0 0.0
    %2187 = vmatpush1.msra.mxu0 0.0
    %2188 = vmatprep.subr.mxu0 0.0
    %2189 = vmatpush1.msra.mxu0 0.0
    %2190 = vmatprep.subr.mxu0 0.0
    %2191 = vmatpush1.msra.mxu0 0.0
    %2192 = vmatprep.subr.mxu0 0.0
    %2193 = vmatpush1.msra.mxu0 0.0
    %2194 = vmatprep.subr.mxu0 0.0
    %2195 = vmatpush1.msra.mxu0 0.0
    %2196 = vmatprep.mubr.f32.mxu0 0.0
    %2197 = vmatmul.mubr.f32.gmra.mrb[0].mxu0 %v2130
    %v2198 = vpop.f32.mrb[0].mxu0
    %v2199 = vadd.f32 %v2124, %v2198
    %v2200 = vpop.f32.mrb[0].mxu0
    %2201 = vdwg.mxu0
    %v2202 = vadd.f32 %v2199, %v867
    %v2203 = vxor.u32 %v2202, 2147483648
    %v2204 = vmul.f32 %v2203, 1.442695
    %v2205 = vpow.pop %v2204
    %v2206 = vadd.f32 %v2205, 1.0
    %v2207 = vrcp.pop %v2206
    %v2208 = vmul.f32 1.0, %v2207
    %v2209 = vtanh.pop %v2202
    %v2210 = vmul.f32 %v2208, %v1777
    %2212 = vrot.lane.b32.xlu0 %v2209, 64
    %v2213 = vpop.permute.xlu0 %2212
    %v2215 = vmul.f32 %v2208, %v2213
    %2217 = vrot.lane.b32.xlu0 %v2215, 32
    %v2218 = vpop.permute.xlu0 %2217
    %v2220 = vadd.f32 %v2210, %v2218
    %v2221 = vtanh.pop %v2220
    %2223 = vrot.lane.b32.xlu0 %v2221, 64
    %v2224 = vpop.permute.xlu0 %2223
    %v2226 = vmul.f32 %v2208, %v2224
    %s2227 = scalar_lea.vmem [#allocation2], 32
    %v2228 = vld [vmem:[%s2227] sm:$0xff]
    %2229 = vmatprep.subr.mxu0 0.0
    %2230 = vmatpush1.msra.mxu0 %v397
    %2231 = vmatprep.subr.mxu0 0.0
    %2232 = vmatpush1.msra.mxu0 %v398
    %2233 = vmatprep.subr.mxu0 0.0
    %2234 = vmatpush1.msra.mxu0 0.0
    %2235 = vmatprep.subr.mxu0 0.0
    %2236 = vmatpush1.msra.mxu0 0.0
    %2237 = vmatprep.subr.mxu0 0.0
    %2238 = vmatpush1.msra.mxu0 0.0
    %2239 = vmatprep.subr.mxu0 0.0
    %2240 = vmatpush1.msra.mxu0 0.0
    %2241 = vmatprep.subr.mxu0 0.0
    %2242 = vmatpush1.msra.mxu0 0.0
    %2243 = vmatprep.subr.mxu0 0.0
    %2244 = vmatpush1.msra.mxu0 0.0
    %2245 = vmatprep.subr.mxu0 0.0
    %2246 = vmatpush1.msra.mxu0 0.0
    %2247 = vmatprep.subr.mxu0 0.0
    %2248 = vmatpush1.msra.mxu0 0.0
    %2249 = vmatprep.subr.mxu0 0.0
    %2250 = vmatpush1.msra.mxu0 0.0
    %2251 = vmatprep.subr.mxu0 0.0
    %2252 = vmatpush1.msra.mxu0 0.0
    %2253 = vmatprep.subr.mxu0 0.0
    %2254 = vmatpush1.msra.mxu0 0.0
    %2255 = vmatprep.subr.mxu0 0.0
    %2256 = vmatpush1.msra.mxu0 0.0
    %2257 = vmatprep.subr.mxu0 0.0
    %2258 = vmatpush1.msra.mxu0 0.0
    %2259 = vmatprep.subr.mxu0 0.0
    %2260 = vmatpush1.msra.mxu0 0.0
    %2261 = vmatprep.subr.mxu0 0.0
    %2262 = vmatpush1.msra.mxu0 0.0
    %2263 = vmatprep.subr.mxu0 0.0
    %2264 = vmatpush1.msra.mxu0 0.0
    %2265 = vmatprep.subr.mxu0 0.0
    %2266 = vmatpush1.msra.mxu0 0.0
    %2267 = vmatprep.subr.mxu0 0.0
    %2268 = vmatpush1.msra.mxu0 0.0
    %2269 = vmatprep.subr.mxu0 0.0
    %2270 = vmatpush1.msra.mxu0 0.0
    %2271 = vmatprep.subr.mxu0 0.0
    %2272 = vmatpush1.msra.mxu0 0.0
    %2273 = vmatprep.subr.mxu0 0.0
    %2274 = vmatpush1.msra.mxu0 0.0
    %2275 = vmatprep.subr.mxu0 0.0
    %2276 = vmatpush1.msra.mxu0 0.0
    %2277 = vmatprep.subr.mxu0 0.0
    %2278 = vmatpush1.msra.mxu0 0.0
    %2279 = vmatprep.subr.mxu0 0.0
    %2280 = vmatpush1.msra.mxu0 0.0
    %2281 = vmatprep.subr.mxu0 0.0
    %2282 = vmatpush1.msra.mxu0 0.0
    %2283 = vmatprep.subr.mxu0 0.0
    %2284 = vmatpush1.msra.mxu0 0.0
    %2285 = vmatprep.subr.mxu0 0.0
    %2286 = vmatpush1.msra.mxu0 0.0
    %2287 = vmatprep.subr.mxu0 0.0
    %2288 = vmatpush1.msra.mxu0 0.0
    %2289 = vmatprep.subr.mxu0 0.0
    %2290 = vmatpush1.msra.mxu0 0.0
    %2291 = vmatprep.subr.mxu0 0.0
    %2292 = vmatpush1.msra.mxu0 0.0
    %2293 = vmatprep.mubr.f32.mxu0 0.0
    %2294 = vmatmul.mubr.f32.gmra.mrb[0].mxu0 %v1955
    %v2295 = vpop.f32.mrb[0].mxu0
    %v2296 = vadd.f32 0.0, %v2295
    %v2297 = vpop.f32.mrb[0].mxu0
    %2298 = vdwg.mxu0
    %v2299 = vadd.f32 %v2228, %v2296
    %v2300 = vadd.f32 %v2299, %v499
    %v2301 = vxor.u32 %v2300, 2147483648
    %v2302 = vmul.f32 %v2301, 1.442695
    %v2303 = vpow.pop %v2302
    %v2304 = vadd.f32 %v2303, 1.0
    %v2305 = vrcp.pop %v2304
    %v2306 = vmul.f32 1.0, %v2305
    %v2307 = vtanh.pop %v2300
    %v2308 = vmul.f32 %v2306, %v1875
    %2310 = vrot.lane.b32.xlu0 %v2307, 96
    %v2311 = vpop.permute.xlu0 %2310
    %v2313 = vmul.f32 %v2306, %v2311
    %2315 = vrot.lane.b32.xlu0 %v2313, 16
    %v2316 = vpop.permute.xlu0 %2315
    %v2318 = vadd.f32 %v2308, %v2316
    %v2319 = vtanh.pop %v2318
    %2321 = vrot.lane.b32.xlu0 %v2319, 32
    %v2322 = vpop.permute.xlu0 %2321
    %v2324 = vmul.f32 %v2306, %v2322
    %2325 = vmatprep.subr.mxu0 0.0
    %2326 = vmatpush1.msra.mxu0 %v402
    %2327 = vmatprep.subr.mxu0 0.0
    %2328 = vmatpush1.msra.mxu0 %v403
    %2329 = vmatprep.subr.mxu0 0.0
    %2330 = vmatpush1.msra.mxu0 %v404
    %2331 = vmatprep.subr.mxu0 0.0
    %2332 = vmatpush1.msra.mxu0 0.0
    %2333 = vmatprep.subr.mxu0 0.0
    %2334 = vmatpush1.msra.mxu0 0.0
    %2335 = vmatprep.subr.mxu0 0.0
    %2336 = vmatpush1.msra.mxu0 0.0
    %2337 = vmatprep.subr.mxu0 0.0
    %2338 = vmatpush1.msra.mxu0 0.0
    %2339 = vmatprep.subr.mxu0 0.0
    %2340 = vmatpush1.msra.mxu0 0.0
    %2341 = vmatprep.subr.mxu0 0.0
    %2342 = vmatpush1.msra.mxu0 0.0
    %2343 = vmatprep.subr.mxu0 0.0
    %2344 = vmatpush1.msra.mxu0 0.0
    %2345 = vmatprep.subr.mxu0 0.0
    %2346 = vmatpush1.msra.mxu0 0.0
    %2347 = vmatprep.subr.mxu0 0.0
    %2348 = vmatpush1.msra.mxu0 0.0
    %2349 = vmatprep.subr.mxu0 0.0
    %2350 = vmatpush1.msra.mxu0 0.0
    %2351 = vmatprep.subr.mxu0 0.0
    %2352 = vmatpush1.msra.mxu0 0.0
    %2353 = vmatprep.subr.mxu0 0.0
    %2354 = vmatpush1.msra.mxu0 0.0
    %2355 = vmatprep.subr.mxu0 0.0
    %2356 = vmatpush1.msra.mxu0 0.0
    %2357 = vmatprep.subr.mxu0 0.0
    %2358 = vmatpush1.msra.mxu0 0.0
    %2359 = vmatprep.subr.mxu0 0.0
    %2360 = vmatpush1.msra.mxu0 0.0
    %2361 = vmatprep.subr.mxu0 0.0
    %2362 = vmatpush1.msra.mxu0 0.0
    %2363 = vmatprep.subr.mxu0 0.0
    %2364 = vmatpush1.msra.mxu0 0.0
    %2365 = vmatprep.subr.mxu0 0.0
    %2366 = vmatpush1.msra.mxu0 0.0
    %2367 = vmatprep.subr.mxu0 0.0
    %2368 = vmatpush1.msra.mxu0 0.0
    %2369 = vmatprep.subr.mxu0 0.0
    %2370 = vmatpush1.msra.mxu0 0.0
    %2371 = vmatprep.subr.mxu0 0.0
    %2372 = vmatpush1.msra.mxu0 0.0
    %2373 = vmatprep.subr.mxu0 0.0
    %2374 = vmatpush1.msra.mxu0 0.0
    %2375 = vmatprep.subr.mxu0 0.0
    %2376 = vmatpush1.msra.mxu0 0.0
    %2377 = vmatprep.subr.mxu0 0.0
    %2378 = vmatpush1.msra.mxu0 0.0
    %2379 = vmatprep.subr.mxu0 0.0
    %2380 = vmatpush1.msra.mxu0 0.0
    %2381 = vmatprep.subr.mxu0 0.0
    %2382 = vmatpush1.msra.mxu0 0.0
    %2383 = vmatprep.subr.mxu0 0.0
    %2384 = vmatpush1.msra.mxu0 0.0
    %2385 = vmatprep.subr.mxu0 0.0
    %2386 = vmatpush1.msra.mxu0 0.0
    %2387 = vmatprep.subr.mxu0 0.0
    %2388 = vmatpush1.msra.mxu0 0.0
    %2389 = vmatprep.mubr.f32.mxu0 0.0
    %2390 = vmatmul.mubr.f32.gmra.mrb[0].mxu0 %v2130
    %v2391 = vpop.f32.mrb[0].mxu0
    %v2392 = vadd.f32 0.0, %v2391
    %v2393 = vpop.f32.mrb[0].mxu0
    %2394 = vdwg.mxu0
    %2396 = vrot.lane.b32.xlu0 %v2324, 80
    %v2397 = vpop.permute.xlu0 %2396
    %v2398 = vsel %vm258, %v2397, 0
    %2400 = vmatprep.subr.mxu0 0.0
    %2401 = vmatpush1.msra.mxu0 %v400
    %2402 = vmatprep.subr.mxu0 0.0
    %2403 = vmatpush1.msra.mxu0 %v401
    %2404 = vmatprep.subr.mxu0 0.0
    %2405 = vmatpush1.msra.mxu0 0.0
    %2406 = vmatprep.subr.mxu0 0.0
    %2407 = vmatpush1.msra.mxu0 0.0
    %2408 = vmatprep.subr.mxu0 0.0
    %2409 = vmatpush1.msra.mxu0 0.0
    %2410 = vmatprep.subr.mxu0 0.0
    %2411 = vmatpush1.msra.mxu0 0.0
    %2412 = vmatprep.subr.mxu0 0.0
    %2413 = vmatpush1.msra.mxu0 0.0
    %2414 = vmatprep.subr.mxu0 0.0
    %2415 = vmatpush1.msra.mxu0 0.0
    %2416 = vmatprep.subr.mxu0 0.0
    %2417 = vmatpush1.msra.mxu0 0.0
    %2418 = vmatprep.subr.mxu0 0.0
    %2419 = vmatpush1.msra.mxu0 0.0
    %2420 = vmatprep.subr.mxu0 0.0
    %2421 = vmatpush1.msra.mxu0 0.0
    %2422 = vmatprep.subr.mxu0 0.0
    %2423 = vmatpush1.msra.mxu0 0.0
    %2424 = vmatprep.subr.mxu0 0.0
    %2425 = vmatpush1.msra.mxu0 0.0
    %2426 = vmatprep.subr.mxu0 0.0
    %2427 = vmatpush1.msra.mxu0 0.0
    %2428 = vmatprep.subr.mxu0 0.0
    %2429 = vmatpush1.msra.mxu0 0.0
    %2430 = vmatprep.subr.mxu0 0.0
    %2431 = vmatpush1.msra.mxu0 0.0
    %2432 = vmatprep.subr.mxu0 0.0
    %2433 = vmatpush1.msra.mxu0 0.0
    %2434 = vmatprep.subr.mxu0 0.0
    %2435 = vmatpush1.msra.mxu0 0.0
    %2436 = vmatprep.subr.mxu0 0.0
    %2437 = vmatpush1.msra.mxu0 0.0
    %2438 = vmatprep.subr.mxu0 0.0
    %2439 = vmatpush1.msra.mxu0 0.0
    %2440 = vmatprep.subr.mxu0 0.0
    %2441 = vmatpush1.msra.mxu0 0.0
    %2442 = vmatprep.subr.mxu0 0.0
    %2443 = vmatpush1.msra.mxu0 0.0
    %2444 = vmatprep.subr.mxu0 0.0
    %2445 = vmatpush1.msra.mxu0 0.0
    %2446 = vmatprep.subr.mxu0 0.0
    %2447 = vmatpush1.msra.mxu0 0.0
    %2448 = vmatprep.subr.mxu0 0.0
    %2449 = vmatpush1.msra.mxu0 0.0
    %2450 = vmatprep.subr.mxu0 0.0
    %2451 = vmatpush1.msra.mxu0 0.0
    %2452 = vmatprep.subr.mxu0 0.0
    %2453 = vmatpush1.msra.mxu0 0.0
    %2454 = vmatprep.subr.mxu0 0.0
    %2455 = vmatpush1.msra.mxu0 0.0
    %2456 = vmatprep.subr.mxu0 0.0
    %2457 = vmatpush1.msra.mxu0 0.0
    %2458 = vmatprep.subr.mxu0 0.0
    %2459 = vmatpush1.msra.mxu0 0.0
    %2460 = vmatprep.subr.mxu0 0.0
    %2461 = vmatpush1.msra.mxu0 0.0
    %2462 = vmatprep.subr.mxu0 0.0
    %2463 = vmatpush1.msra.mxu0 0.0
    %2464 = vmatprep.mubr.f32.mxu0 0.0
    %2465 = vmatmul.mubr.f32.gmra.mrb[0].mxu0 %v2398
    %v2466 = vpop.f32.mrb[0].mxu0
    %v2467 = vadd.f32 %v2392, %v2466
    %v2468 = vpop.f32.mrb[0].mxu0
    %2469 = vdwg.mxu0
    %v2470 = vadd.f32 %v2467, %v683
    %v2471 = vxor.u32 %v2470, 2147483648
    %v2472 = vmul.f32 %v2471, 1.442695
    %v2473 = vpow.pop %v2472
    %v2474 = vadd.f32 %v2473, 1.0
    %v2475 = vrcp.pop %v2474
    %v2476 = vmul.f32 1.0, %v2475
    %v2477 = vtanh.pop %v2470
    %v2478 = vmul.f32 %v2476, %v2045
    %2480 = vrot.lane.b32.xlu0 %v2477, 80
    %v2481 = vpop.permute.xlu0 %2480
    %v2483 = vmul.f32 %v2476, %v2481
    %2485 = vrot.lane.b32.xlu0 %v2483, 24
    %v2486 = vpop.permute.xlu0 %2485
    %v2488 = vadd.f32 %v2478, %v2486
    %v2489 = vtanh.pop %v2488
    %2491 = vrot.lane.b32.xlu0 %v2489, 48
    %v2492 = vpop.permute.xlu0 %2491
    %v2494 = vmul.f32 %v2476, %v2492
    %2496 = vrot.lane.b32.xlu0 %v2226, 32
    %v2497 = vpop.permute.xlu0 %2496
    %v2498 = vsel %vm714, %v2497, 0
    %2500 = vmatprep.subr.mxu0 0.0
    %2501 = vmatpush1.msra.mxu0 %v409
    %2502 = vmatprep.subr.mxu0 0.0
    %2503 = vmatpush1.msra.mxu0 %v410
    %2504 = vmatprep.subr.mxu0 0.0
    %2505 = vmatpush1.msra.mxu0 %v411
    %2506 = vmatprep.subr.mxu0 0.0
    %2507 = vmatpush1.msra.mxu0 %v412
    %2508 = vmatprep.subr.mxu0 0.0
    %2509 = vmatpush1.msra.mxu0 0.0
    %2510 = vmatprep.subr.mxu0 0.0
    %2511 = vmatpush1.msra.mxu0 0.0
    %2512 = vmatprep.subr.mxu0 0.0
    %2513 = vmatpush1.msra.mxu0 0.0
    %2514 = vmatprep.subr.mxu0 0.0
    %2515 = vmatpush1.msra.mxu0 0.0
    %2516 = vmatprep.subr.mxu0 0.0
    %2517 = vmatpush1.msra.mxu0 0.0
    %2518 = vmatprep.subr.mxu0 0.0
    %2519 = vmatpush1.msra.mxu0 0.0
    %2520 = vmatprep.subr.mxu0 0.0
    %2521 = vmatpush1.msra.mxu0 0.0
    %2522 = vmatprep.subr.mxu0 0.0
    %2523 = vmatpush1.msra.mxu0 0.0
    %2524 = vmatprep.subr.mxu0 0.0
    %2525 = vmatpush1.msra.mxu0 0.0
    %2526 = vmatprep.subr.mxu0 0.0
    %2527 = vmatpush1.msra.mxu0 0.0
    %2528 = vmatprep.subr.mxu0 0.0
    %2529 = vmatpush1.msra.mxu0 0.0
    %2530 = vmatprep.subr.mxu0 0.0
    %2531 = vmatpush1.msra.mxu0 0.0
    %2532 = vmatprep.subr.mxu0 0.0
    %2533 = vmatpush1.msra.mxu0 0.0
    %2534 = vmatprep.subr.mxu0 0.0
    %2535 = vmatpush1.msra.mxu0 0.0
    %2536 = vmatprep.subr.mxu0 0.0
    %2537 = vmatpush1.msra.mxu0 0.0
    %2538 = vmatprep.subr.mxu0 0.0
    %2539 = vmatpush1.msra.mxu0 0.0
    %2540 = vmatprep.subr.mxu0 0.0
    %2541 = vmatpush1.msra.mxu0 0.0
    %2542 = vmatprep.subr.mxu0 0.0
    %2543 = vmatpush1.msra.mxu0 0.0
    %2544 = vmatprep.subr.mxu0 0.0
    %2545 = vmatpush1.msra.mxu0 0.0
    %2546 = vmatprep.subr.mxu0 0.0
    %2547 = vmatpush1.msra.mxu0 0.0
    %2548 = vmatprep.subr.mxu0 0.0
    %2549 = vmatpush1.msra.mxu0 0.0
    %2550 = vmatprep.subr.mxu0 0.0
    %2551 = vmatpush1.msra.mxu0 0.0
    %2552 = vmatprep.subr.mxu0 0.0
    %2553 = vmatpush1.msra.mxu0 0.0
    %2554 = vmatprep.subr.mxu0 0.0
    %2555 = vmatpush1.msra.mxu0 0.0
    %2556 = vmatprep.subr.mxu0 0.0
    %2557 = vmatpush1.msra.mxu0 0.0
    %2558 = vmatprep.subr.mxu0 0.0
    %2559 = vmatpush1.msra.mxu0 0.0
    %2560 = vmatprep.subr.mxu0 0.0
    %2561 = vmatpush1.msra.mxu0 0.0
    %2562 = vmatprep.subr.mxu0 0.0
    %2563 = vmatpush1.msra.mxu0 0.0
    %2564 = vmatprep.mubr.f32.mxu0 0.0
    %2565 = vmatmul.mubr.f32.gmra.mrb[0].mxu0 %v2498
    %v2566 = vpop.f32.mrb[0].mxu0
    %v2567 = vadd.f32 0.0, %v2566
    %v2568 = vpop.f32.mrb[0].mxu0
    %2569 = vdwg.mxu0
    %2571 = vrot.lane.b32.xlu0 %v2494, 56
    %v2572 = vpop.permute.xlu0 %2571
    %v2573 = vsel %vm530, %v2572, 0
    %2575 = vmatprep.subr.mxu0 0.0
    %2576 = vmatpush1.msra.mxu0 %v406
    %2577 = vmatprep.subr.mxu0 0.0
    %2578 = vmatpush1.msra.mxu0 %v407
    %2579 = vmatprep.subr.mxu0 0.0
    %2580 = vmatpush1.msra.mxu0 %v408
    %2581 = vmatprep.subr.mxu0 0.0
    %2582 = vmatpush1.msra.mxu0 0.0
    %2583 = vmatprep.subr.mxu0 0.0
    %2584 = vmatpush1.msra.mxu0 0.0
    %2585 = vmatprep.subr.mxu0 0.0
    %2586 = vmatpush1.msra.mxu0 0.0
    %2587 = vmatprep.subr.mxu0 0.0
    %2588 = vmatpush1.msra.mxu0 0.0
    %2589 = vmatprep.subr.mxu0 0.0
    %2590 = vmatpush1.msra.mxu0 0.0
    %2591 = vmatprep.subr.mxu0 0.0
    %2592 = vmatpush1.msra.mxu0 0.0
    %2593 = vmatprep.subr.mxu0 0.0
    %2594 = vmatpush1.msra.mxu0 0.0
    %2595 = vmatprep.subr.mxu0 0.0
    %2596 = vmatpush1.msra.mxu0 0.0
    %2597 = vmatprep.subr.mxu0 0.0
    %2598 = vmatpush1.msra.mxu0 0.0
    %2599 = vmatprep.subr.mxu0 0.0
    %2600 = vmatpush1.msra.mxu0 0.0
    %2601 = vmatprep.subr.mxu0 0.0
    %2602 = vmatpush1.msra.mxu0 0.0
    %2603 = vmatprep.subr.mxu0 0.0
    %2604 = vmatpush1.msra.mxu0 0.0
    %2605 = vmatprep.subr.mxu0 0.0
    %2606 = vmatpush1.msra.mxu0 0.0
    %2607 = vmatprep.subr.mxu0 0.0
    %2608 = vmatpush1.msra.mxu0 0.0
    %2609 = vmatprep.subr.mxu0 0.0
    %2610 = vmatpush1.msra.mxu0 0.0
    %2611 = vmatprep.subr.mxu0 0.0
    %2612 = vmatpush1.msra.mxu0 0.0
    %2613 = vmatprep.subr.mxu0 0.0
    %2614 = vmatpush1.msra.mxu0 0.0
    %2615 = vmatprep.subr.mxu0 0.0
    %2616 = vmatpush1.msra.mxu0 0.0
    %2617 = vmatprep.subr.mxu0 0.0
    %2618 = vmatpush1.msra.mxu0 0.0
    %2619 = vmatprep.subr.mxu0 0.0
    %2620 = vmatpush1.msra.mxu0 0.0
    %2621 = vmatprep.subr.mxu0 0.0
    %2622 = vmatpush1.msra.mxu0 0.0
    %2623 = vmatprep.subr.mxu0 0.0
    %2624 = vmatpush1.msra.mxu0 0.0
    %2625 = vmatprep.subr.mxu0 0.0
    %2626 = vmatpush1.msra.mxu0 0.0
    %2627 = vmatprep.subr.mxu0 0.0
    %2628 = vmatpush1.msra.mxu0 0.0
    %2629 = vmatprep.subr.mxu0 0.0
    %2630 = vmatpush1.msra.mxu0 0.0
    %2631 = vmatprep.subr.mxu0 0.0
    %2632 = vmatpush1.msra.mxu0 0.0
    %2633 = vmatprep.subr.mxu0 0.0
    %2634 = vmatpush1.msra.mxu0 0.0
    %2635 = vmatprep.subr.mxu0 0.0
    %2636 = vmatpush1.msra.mxu0 0.0
    %2637 = vmatprep.subr.mxu0 0.0
    %2638 = vmatpush1.msra.mxu0 0.0
    %2639 = vmatprep.mubr.f32.mxu0 0.0
    %2640 = vmatmul.mubr.f32.gmra.mrb[0].mxu0 %v2573
    %v2641 = vpop.f32.mrb[0].mxu0
    %v2642 = vadd.f32 %v2567, %v2641
    %v2643 = vpop.f32.mrb[0].mxu0
    %2644 = vdwg.mxu0
    %v2645 = vadd.f32 %v2642, %v867
    %v2646 = vxor.u32 %v2645, 2147483648
    %v2647 = vmul.f32 %v2646, 1.442695
    %v2648 = vpow.pop %v2647
    %v2649 = vadd.f32 %v2648, 1.0
    %v2650 = vrcp.pop %v2649
    %v2651 = vmul.f32 1.0, %v2650
    %v2652 = vtanh.pop %v2645
    %v2653 = vmul.f32 %v2651, %v2220
    %2655 = vrot.lane.b32.xlu0 %v2652, 64
    %v2656 = vpop.permute.xlu0 %2655
    %v2658 = vmul.f32 %v2651, %v2656
    %2660 = vrot.lane.b32.xlu0 %v2658, 32
    %v2661 = vpop.permute.xlu0 %2660
    %v2663 = vadd.f32 %v2653, %v2661
    %v2664 = vtanh.pop %v2663
    %2666 = vrot.lane.b32.xlu0 %v2664, 64
    %v2667 = vpop.permute.xlu0 %2666
    %v2669 = vmul.f32 %v2651, %v2667
    %s2670 = scalar_lea.vmem [#allocation2], 40
    %v2671 = vld [vmem:[%s2670] sm:$0xff]
    %2672 = vmatprep.subr.mxu0 0.0
    %2673 = vmatpush1.msra.mxu0 %v397
    %2674 = vmatprep.subr.mxu0 0.0
    %2675 = vmatpush1.msra.mxu0 %v398
    %2676 = vmatprep.subr.mxu0 0.0
    %2677 = vmatpush1.msra.mxu0 0.0
    %2678 = vmatprep.subr.mxu0 0.0
    %2679 = vmatpush1.msra.mxu0 0.0
    %2680 = vmatprep.subr.mxu0 0.0
    %2681 = vmatpush1.msra.mxu0 0.0
    %2682 = vmatprep.subr.mxu0 0.0
    %2683 = vmatpush1.msra.mxu0 0.0
    %2684 = vmatprep.subr.mxu0 0.0
    %2685 = vmatpush1.msra.mxu0 0.0
    %2686 = vmatprep.subr.mxu0 0.0
    %2687 = vmatpush1.msra.mxu0 0.0
    %2688 = vmatprep.subr.mxu0 0.0
    %2689 = vmatpush1.msra.mxu0 0.0
    %2690 = vmatprep.subr.mxu0 0.0
    %2691 = vmatpush1.msra.mxu0 0.0
    %2692 = vmatprep.subr.mxu0 0.0
    %2693 = vmatpush1.msra.mxu0 0.0
    %2694 = vmatprep.subr.mxu0 0.0
    %2695 = vmatpush1.msra.mxu0 0.0
    %2696 = vmatprep.subr.mxu0 0.0
    %2697 = vmatpush1.msra.mxu0 0.0
    %2698 = vmatprep.subr.mxu0 0.0
    %2699 = vmatpush1.msra.mxu0 0.0
    %2700 = vmatprep.subr.mxu0 0.0
    %2701 = vmatpush1.msra.mxu0 0.0
    %2702 = vmatprep.subr.mxu0 0.0
    %2703 = vmatpush1.msra.mxu0 0.0
    %2704 = vmatprep.subr.mxu0 0.0
    %2705 = vmatpush1.msra.mxu0 0.0
    %2706 = vmatprep.subr.mxu0 0.0
    %2707 = vmatpush1.msra.mxu0 0.0
    %2708 = vmatprep.subr.mxu0 0.0
    %2709 = vmatpush1.msra.mxu0 0.0
    %2710 = vmatprep.subr.mxu0 0.0
    %2711 = vmatpush1.msra.mxu0 0.0
    %2712 = vmatprep.subr.mxu0 0.0
    %2713 = vmatpush1.msra.mxu0 0.0
    %2714 = vmatprep.subr.mxu0 0.0
    %2715 = vmatpush1.msra.mxu0 0.0
    %2716 = vmatprep.subr.mxu0 0.0
    %2717 = vmatpush1.msra.mxu0 0.0
    %2718 = vmatprep.subr.mxu0 0.0
    %2719 = vmatpush1.msra.mxu0 0.0
    %2720 = vmatprep.subr.mxu0 0.0
    %2721 = vmatpush1.msra.mxu0 0.0
    %2722 = vmatprep.subr.mxu0 0.0
    %2723 = vmatpush1.msra.mxu0 0.0
    %2724 = vmatprep.subr.mxu0 0.0
    %2725 = vmatpush1.msra.mxu0 0.0
    %2726 = vmatprep.subr.mxu0 0.0
    %2727 = vmatpush1.msra.mxu0 0.0
    %2728 = vmatprep.subr.mxu0 0.0
    %2729 = vmatpush1.msra.mxu0 0.0
    %2730 = vmatprep.subr.mxu0 0.0
    %2731 = vmatpush1.msra.mxu0 0.0
    %2732 = vmatprep.subr.mxu0 0.0
    %2733 = vmatpush1.msra.mxu0 0.0
    %2734 = vmatprep.subr.mxu0 0.0
    %2735 = vmatpush1.msra.mxu0 0.0
    %2736 = vmatprep.mubr.f32.mxu0 0.0
    %2737 = vmatmul.mubr.f32.gmra.mrb[0].mxu0 %v2398
    %v2738 = vpop.f32.mrb[0].mxu0
    %v2739 = vadd.f32 0.0, %v2738
    %v2740 = vpop.f32.mrb[0].mxu0
    %2741 = vdwg.mxu0
    %v2742 = vadd.f32 %v2671, %v2739
    %v2743 = vadd.f32 %v2742, %v499
    %v2744 = vxor.u32 %v2743, 2147483648
    %v2745 = vmul.f32 %v2744, 1.442695
    %v2746 = vpow.pop %v2745
    %v2747 = vadd.f32 %v2746, 1.0
    %v2748 = vrcp.pop %v2747
    %v2749 = vmul.f32 1.0, %v2748
    %v2750 = vtanh.pop %v2743
    %v2751 = vmul.f32 %v2749, %v2318
    %2753 = vrot.lane.b32.xlu0 %v2750, 96
    %v2754 = vpop.permute.xlu0 %2753
    %v2756 = vmul.f32 %v2749, %v2754
    %2758 = vrot.lane.b32.xlu0 %v2756, 16
    %v2759 = vpop.permute.xlu0 %2758
    %v2761 = vadd.f32 %v2751, %v2759
    %v2762 = vtanh.pop %v2761
    %2764 = vrot.lane.b32.xlu0 %v2762, 32
    %v2765 = vpop.permute.xlu0 %2764
    %v2767 = vmul.f32 %v2749, %v2765
    %2768 = vmatprep.subr.mxu0 0.0
    %2769 = vmatpush1.msra.mxu0 %v402
    %2770 = vmatprep.subr.mxu0 0.0
    %2771 = vmatpush1.msra.mxu0 %v403
    %2772 = vmatprep.subr.mxu0 0.0
    %2773 = vmatpush1.msra.mxu0 %v404
    %2774 = vmatprep.subr.mxu0 0.0
    %2775 = vmatpush1.msra.mxu0 0.0
    %2776 = vmatprep.subr.mxu0 0.0
    %2777 = vmatpush1.msra.mxu0 0.0
    %2778 = vmatprep.subr.mxu0 0.0
    %2779 = vmatpush1.msra.mxu0 0.0
    %2780 = vmatprep.subr.mxu0 0.0
    %2781 = vmatpush1.msra.mxu0 0.0
    %2782 = vmatprep.subr.mxu0 0.0
    %2783 = vmatpush1.msra.mxu0 0.0
    %2784 = vmatprep.subr.mxu0 0.0
    %2785 = vmatpush1.msra.mxu0 0.0
    %2786 = vmatprep.subr.mxu0 0.0
    %2787 = vmatpush1.msra.mxu0 0.0
    %2788 = vmatprep.subr.mxu0 0.0
    %2789 = vmatpush1.msra.mxu0 0.0
    %2790 = vmatprep.subr.mxu0 0.0
    %2791 = vmatpush1.msra.mxu0 0.0
    %2792 = vmatprep.subr.mxu0 0.0
    %2793 = vmatpush1.msra.mxu0 0.0
    %2794 = vmatprep.subr.mxu0 0.0
    %2795 = vmatpush1.msra.mxu0 0.0
    %2796 = vmatprep.subr.mxu0 0.0
    %2797 = vmatpush1.msra.mxu0 0.0
    %2798 = vmatprep.subr.mxu0 0.0
    %2799 = vmatpush1.msra.mxu0 0.0
    %2800 = vmatprep.subr.mxu0 0.0
    %2801 = vmatpush1.msra.mxu0 0.0
    %2802 = vmatprep.subr.mxu0 0.0
    %2803 = vmatpush1.msra.mxu0 0.0
    %2804 = vmatprep.subr.mxu0 0.0
    %2805 = vmatpush1.msra.mxu0 0.0
    %2806 = vmatprep.subr.mxu0 0.0
    %2807 = vmatpush1.msra.mxu0 0.0
    %2808 = vmatprep.subr.mxu0 0.0
    %2809 = vmatpush1.msra.mxu0 0.0
    %2810 = vmatprep.subr.mxu0 0.0
    %2811 = vmatpush1.msra.mxu0 0.0
    %2812 = vmatprep.subr.mxu0 0.0
    %2813 = vmatpush1.msra.mxu0 0.0
    %2814 = vmatprep.subr.mxu0 0.0
    %2815 = vmatpush1.msra.mxu0 0.0
    %2816 = vmatprep.subr.mxu0 0.0
    %2817 = vmatpush1.msra.mxu0 0.0
    %2818 = vmatprep.subr.mxu0 0.0
    %2819 = vmatpush1.msra.mxu0 0.0
    %2820 = vmatprep.subr.mxu0 0.0
    %2821 = vmatpush1.msra.mxu0 0.0
    %2822 = vmatprep.subr.mxu0 0.0
    %2823 = vmatpush1.msra.mxu0 0.0
    %2824 = vmatprep.subr.mxu0 0.0
    %2825 = vmatpush1.msra.mxu0 0.0
    %2826 = vmatprep.subr.mxu0 0.0
    %2827 = vmatpush1.msra.mxu0 0.0
    %2828 = vmatprep.subr.mxu0 0.0
    %2829 = vmatpush1.msra.mxu0 0.0
    %2830 = vmatprep.subr.mxu0 0.0
    %2831 = vmatpush1.msra.mxu0 0.0
    %2832 = vmatprep.mubr.f32.mxu0 0.0
    %2833 = vmatmul.mubr.f32.gmra.mrb[0].mxu0 %v2573
    %v2834 = vpop.f32.mrb[0].mxu0
    %v2835 = vadd.f32 0.0, %v2834
    %v2836 = vpop.f32.mrb[0].mxu0
    %2837 = vdwg.mxu0
    %2839 = vrot.lane.b32.xlu0 %v2767, 80
    %v2840 = vpop.permute.xlu0 %2839
    %v2841 = vsel %vm258, %v2840, 0
    %2843 = vmatprep.subr.mxu0 0.0
    %2844 = vmatpush1.msra.mxu0 %v400
    %2845 = vmatprep.subr.mxu0 0.0
    %2846 = vmatpush1.msra.mxu0 %v401
    %2847 = vmatprep.subr.mxu0 0.0
    %2848 = vmatpush1.msra.mxu0 0.0
    %2849 = vmatprep.subr.mxu0 0.0
    %2850 = vmatpush1.msra.mxu0 0.0
    %2851 = vmatprep.subr.mxu0 0.0
    %2852 = vmatpush1.msra.mxu0 0.0
    %2853 = vmatprep.subr.mxu0 0.0
    %2854 = vmatpush1.msra.mxu0 0.0
    %2855 = vmatprep.subr.mxu0 0.0
    %2856 = vmatpush1.msra.mxu0 0.0
    %2857 = vmatprep.subr.mxu0 0.0
    %2858 = vmatpush1.msra.mxu0 0.0
    %2859 = vmatprep.subr.mxu0 0.0
    %2860 = vmatpush1.msra.mxu0 0.0
    %2861 = vmatprep.subr.mxu0 0.0
    %2862 = vmatpush1.msra.mxu0 0.0
    %2863 = vmatprep.subr.mxu0 0.0
    %2864 = vmatpush1.msra.mxu0 0.0
    %2865 = vmatprep.subr.mxu0 0.0
    %2866 = vmatpush1.msra.mxu0 0.0
    %2867 = vmatprep.subr.mxu0 0.0
    %2868 = vmatpush1.msra.mxu0 0.0
    %2869 = vmatprep.subr.mxu0 0.0
    %2870 = vmatpush1.msra.mxu0 0.0
    %2871 = vmatprep.subr.mxu0 0.0
    %2872 = vmatpush1.msra.mxu0 0.0
    %2873 = vmatprep.subr.mxu0 0.0
    %2874 = vmatpush1.msra.mxu0 0.0
    %2875 = vmatprep.subr.mxu0 0.0
    %2876 = vmatpush1.msra.mxu0 0.0
    %2877 = vmatprep.subr.mxu0 0.0
    %2878 = vmatpush1.msra.mxu0 0.0
    %2879 = vmatprep.subr.mxu0 0.0
    %2880 = vmatpush1.msra.mxu0 0.0
    %2881 = vmatprep.subr.mxu0 0.0
    %2882 = vmatpush1.msra.mxu0 0.0
    %2883 = vmatprep.subr.mxu0 0.0
    %2884 = vmatpush1.msra.mxu0 0.0
    %2885 = vmatprep.subr.mxu0 0.0
    %2886 = vmatpush1.msra.mxu0 0.0
    %2887 = vmatprep.subr.mxu0 0.0
    %2888 = vmatpush1.msra.mxu0 0.0
    %2889 = vmatprep.subr.mxu0 0.0
    %2890 = vmatpush1.msra.mxu0 0.0
    %2891 = vmatprep.subr.mxu0 0.0
    %2892 = vmatpush1.msra.mxu0 0.0
    %2893 = vmatprep.subr.mxu0 0.0
    %2894 = vmatpush1.msra.mxu0 0.0
    %2895 = vmatprep.subr.mxu0 0.0
    %2896 = vmatpush1.msra.mxu0 0.0
    %2897 = vmatprep.subr.mxu0 0.0
    %2898 = vmatpush1.msra.mxu0 0.0
    %2899 = vmatprep.subr.mxu0 0.0
    %2900 = vmatpush1.msra.mxu0 0.0
    %2901 = vmatprep.subr.mxu0 0.0
    %2902 = vmatpush1.msra.mxu0 0.0
    %2903 = vmatprep.subr.mxu0 0.0
    %2904 = vmatpush1.msra.mxu0 0.0
    %2905 = vmatprep.subr.mxu0 0.0
    %2906 = vmatpush1.msra.mxu0 0.0
    %2907 = vmatprep.mubr.f32.mxu0 0.0
    %2908 = vmatmul.mubr.f32.gmra.mrb[0].mxu0 %v2841
    %v2909 = vpop.f32.mrb[0].mxu0
    %v2910 = vadd.f32 %v2835, %v2909
    %v2911 = vpop.f32.mrb[0].mxu0
    %2912 = vdwg.mxu0
    %v2913 = vadd.f32 %v2910, %v683
    %v2914 = vxor.u32 %v2913, 2147483648
    %v2915 = vmul.f32 %v2914, 1.442695
    %v2916 = vpow.pop %v2915
    %v2917 = vadd.f32 %v2916, 1.0
    %v2918 = vrcp.pop %v2917
    %v2919 = vmul.f32 1.0, %v2918
    %v2920 = vtanh.pop %v2913
    %v2921 = vmul.f32 %v2919, %v2488
    %2923 = vrot.lane.b32.xlu0 %v2920, 80
    %v2924 = vpop.permute.xlu0 %2923
    %v2926 = vmul.f32 %v2919, %v2924
    %2928 = vrot.lane.b32.xlu0 %v2926, 24
    %v2929 = vpop.permute.xlu0 %2928
    %v2931 = vadd.f32 %v2921, %v2929
    %v2932 = vtanh.pop %v2931
    %2934 = vrot.lane.b32.xlu0 %v2932, 48
    %v2935 = vpop.permute.xlu0 %2934
    %v2937 = vmul.f32 %v2919, %v2935
    %2939 = vrot.lane.b32.xlu0 %v2669, 32
    %v2940 = vpop.permute.xlu0 %2939
    %v2941 = vsel %vm714, %v2940, 0
    %2943 = vmatprep.subr.mxu0 0.0
    %2944 = vmatpush1.msra.mxu0 %v409
    %2945 = vmatprep.subr.mxu0 0.0
    %2946 = vmatpush1.msra.mxu0 %v410
    %2947 = vmatprep.subr.mxu0 0.0
    %2948 = vmatpush1.msra.mxu0 %v411
    %2949 = vmatprep.subr.mxu0 0.0
    %2950 = vmatpush1.msra.mxu0 %v412
    %2951 = vmatprep.subr.mxu0 0.0
    %2952 = vmatpush1.msra.mxu0 0.0
    %2953 = vmatprep.subr.mxu0 0.0
    %2954 = vmatpush1.msra.mxu0 0.0
    %2955 = vmatprep.subr.mxu0 0.0
    %2956 = vmatpush1.msra.mxu0 0.0
    %2957 = vmatprep.subr.mxu0 0.0
    %2958 = vmatpush1.msra.mxu0 0.0
    %2959 = vmatprep.subr.mxu0 0.0
    %2960 = vmatpush1.msra.mxu0 0.0
    %2961 = vmatprep.subr.mxu0 0.0
    %2962 = vmatpush1.msra.mxu0 0.0
    %2963 = vmatprep.subr.mxu0 0.0
    %2964 = vmatpush1.msra.mxu0 0.0
    %2965 = vmatprep.subr.mxu0 0.0
    %2966 = vmatpush1.msra.mxu0 0.0
    %2967 = vmatprep.subr.mxu0 0.0
    %2968 = vmatpush1.msra.mxu0 0.0
    %2969 = vmatprep.subr.mxu0 0.0
    %2970 = vmatpush1.msra.mxu0 0.0
    %2971 = vmatprep.subr.mxu0 0.0
    %2972 = vmatpush1.msra.mxu0 0.0
    %2973 = vmatprep.subr.mxu0 0.0
    %2974 = vmatpush1.msra.mxu0 0.0
    %2975 = vmatprep.subr.mxu0 0.0
    %2976 = vmatpush1.msra.mxu0 0.0
    %2977 = vmatprep.subr.mxu0 0.0
    %2978 = vmatpush1.msra.mxu0 0.0
    %2979 = vmatprep.subr.mxu0 0.0
    %2980 = vmatpush1.msra.mxu0 0.0
    %2981 = vmatprep.subr.mxu0 0.0
    %2982 = vmatpush1.msra.mxu0 0.0
    %2983 = vmatprep.subr.mxu0 0.0
    %2984 = vmatpush1.msra.mxu0 0.0
    %2985 = vmatprep.subr.mxu0 0.0
    %2986 = vmatpush1.msra.mxu0 0.0
    %2987 = vmatprep.subr.mxu0 0.0
    %2988 = vmatpush1.msra.mxu0 0.0
    %2989 = vmatprep.subr.mxu0 0.0
    %2990 = vmatpush1.msra.mxu0 0.0
    %2991 = vmatprep.subr.mxu0 0.0
    %2992 = vmatpush1.msra.mxu0 0.0
    %2993 = vmatprep.subr.mxu0 0.0
    %2994 = vmatpush1.msra.mxu0 0.0
    %2995 = vmatprep.subr.mxu0 0.0
    %2996 = vmatpush1.msra.mxu0 0.0
    %2997 = vmatprep.subr.mxu0 0.0
    %2998 = vmatpush1.msra.mxu0 0.0
    %2999 = vmatprep.subr.mxu0 0.0
    %3000 = vmatpush1.msra.mxu0 0.0
    %3001 = vmatprep.subr.mxu0 0.0
    %3002 = vmatpush1.msra.mxu0 0.0
    %3003 = vmatprep.subr.mxu0 0.0
    %3004 = vmatpush1.msra.mxu0 0.0
    %3005 = vmatprep.subr.mxu0 0.0
    %3006 = vmatpush1.msra.mxu0 0.0
    %3007 = vmatprep.mubr.f32.mxu0 0.0
    %3008 = vmatmul.mubr.f32.gmra.mrb[0].mxu0 %v2941
    %v3009 = vpop.f32.mrb[0].mxu0
    %v3010 = vadd.f32 0.0, %v3009
    %v3011 = vpop.f32.mrb[0].mxu0
    %3012 = vdwg.mxu0
    %3014 = vrot.lane.b32.xlu0 %v2937, 56
    %v3015 = vpop.permute.xlu0 %3014
    %v3016 = vsel %vm530, %v3015, 0
    %3018 = vmatprep.subr.mxu0 0.0
    %3019 = vmatpush1.msra.mxu0 %v406
    %3020 = vmatprep.subr.mxu0 0.0
    %3021 = vmatpush1.msra.mxu0 %v407
    %3022 = vmatprep.subr.mxu0 0.0
    %3023 = vmatpush1.msra.mxu0 %v408
    %3024 = vmatprep.subr.mxu0 0.0
    %3025 = vmatpush1.msra.mxu0 0.0
    %3026 = vmatprep.subr.mxu0 0.0
    %3027 = vmatpush1.msra.mxu0 0.0
    %3028 = vmatprep.subr.mxu0 0.0
    %3029 = vmatpush1.msra.mxu0 0.0
    %3030 = vmatprep.subr.mxu0 0.0
    %3031 = vmatpush1.msra.mxu0 0.0
    %3032 = vmatprep.subr.mxu0 0.0
    %3033 = vmatpush1.msra.mxu0 0.0
    %3034 = vmatprep.subr.mxu0 0.0
    %3035 = vmatpush1.msra.mxu0 0.0
    %3036 = vmatprep.subr.mxu0 0.0
    %3037 = vmatpush1.msra.mxu0 0.0
    %3038 = vmatprep.subr.mxu0 0.0
    %3039 = vmatpush1.msra.mxu0 0.0
    %3040 = vmatprep.subr.mxu0 0.0
    %3041 = vmatpush1.msra.mxu0 0.0
    %3042 = vmatprep.subr.mxu0 0.0
    %3043 = vmatpush1.msra.mxu0 0.0
    %3044 = vmatprep.subr.mxu0 0.0
    %3045 = vmatpush1.msra.mxu0 0.0
    %3046 = vmatprep.subr.mxu0 0.0
    %3047 = vmatpush1.msra.mxu0 0.0
    %3048 = vmatprep.subr.mxu0 0.0
    %3049 = vmatpush1.msra.mxu0 0.0
    %3050 = vmatprep.subr.mxu0 0.0
    %3051 = vmatpush1.msra.mxu0 0.0
    %3052 = vmatprep.subr.mxu0 0.0
    %3053 = vmatpush1.msra.mxu0 0.0
    %3054 = vmatprep.subr.mxu0 0.0
    %3055 = vmatpush1.msra.mxu0 0.0
    %3056 = vmatprep.subr.mxu0 0.0
    %3057 = vmatpush1.msra.mxu0 0.0
    %3058 = vmatprep.subr.mxu0 0.0
    %3059 = vmatpush1.msra.mxu0 0.0
    %3060 = vmatprep.subr.mxu0 0.0
    %3061 = vmatpush1.msra.mxu0 0.0
    %3062 = vmatprep.subr.mxu0 0.0
    %3063 = vmatpush1.msra.mxu0 0.0
    %3064 = vmatprep.subr.mxu0 0.0
    %3065 = vmatpush1.msra.mxu0 0.0
    %3066 = vmatprep.subr.mxu0 0.0
    %3067 = vmatpush1.msra.mxu0 0.0
    %3068 = vmatprep.subr.mxu0 0.0
    %3069 = vmatpush1.msra.mxu0 0.0
    %3070 = vmatprep.subr.mxu0 0.0
    %3071 = vmatpush1.msra.mxu0 0.0
    %3072 = vmatprep.subr.mxu0 0.0
    %3073 = vmatpush1.msra.mxu0 0.0
    %3074 = vmatprep.subr.mxu0 0.0
    %3075 = vmatpush1.msra.mxu0 0.0
    %3076 = vmatprep.subr.mxu0 0.0
    %3077 = vmatpush1.msra.mxu0 0.0
    %3078 = vmatprep.subr.mxu0 0.0
    %3079 = vmatpush1.msra.mxu0 0.0
    %3080 = vmatprep.subr.mxu0 0.0
    %3081 = vmatpush1.msra.mxu0 0.0
    %3082 = vmatprep.mubr.f32.mxu0 0.0
    %3083 = vmatmul.mubr.f32.gmra.mrb[0].mxu0 %v3016
    %v3084 = vpop.f32.mrb[0].mxu0
    %v3085 = vadd.f32 %v3010, %v3084
    %v3086 = vpop.f32.mrb[0].mxu0
    %3087 = vdwg.mxu0
    %v3088 = vadd.f32 %v3085, %v867
    %v3089 = vxor.u32 %v3088, 2147483648
    %v3090 = vmul.f32 %v3089, 1.442695
    %v3091 = vpow.pop %v3090
    %v3092 = vadd.f32 %v3091, 1.0
    %v3093 = vrcp.pop %v3092
    %v3094 = vmul.f32 1.0, %v3093
    %v3095 = vtanh.pop %v3088
    %v3096 = vmul.f32 %v3094, %v2663
    %3098 = vrot.lane.b32.xlu0 %v3095, 64
    %v3099 = vpop.permute.xlu0 %3098
    %v3101 = vmul.f32 %v3094, %v3099
    %3103 = vrot.lane.b32.xlu0 %v3101, 32
    %v3104 = vpop.permute.xlu0 %3103
    %v3106 = vadd.f32 %v3096, %v3104
    %v3107 = vtanh.pop %v3106
    %3109 = vrot.lane.b32.xlu0 %v3107, 64
    %v3110 = vpop.permute.xlu0 %3109
    %v3112 = vmul.f32 %v3094, %v3110
    %s3113 = scalar_lea.vmem [#allocation2], 48
    %v3114 = vld [vmem:[%s3113] sm:$0xff]
    %3115 = vmatprep.subr.mxu0 0.0
    %3116 = vmatpush1.msra.mxu0 %v397
    %3117 = vmatprep.subr.mxu0 0.0
    %3118 = vmatpush1.msra.mxu0 %v398
    %3119 = vmatprep.subr.mxu0 0.0
    %3120 = vmatpush1.msra.mxu0 0.0
    %3121 = vmatprep.subr.mxu0 0.0
    %3122 = vmatpush1.msra.mxu0 0.0
    %3123 = vmatprep.subr.mxu0 0.0
    %3124 = vmatpush1.msra.mxu0 0.0
    %3125 = vmatprep.subr.mxu0 0.0
    %3126 = vmatpush1.msra.mxu0 0.0
    %3127 = vmatprep.subr.mxu0 0.0
    %3128 = vmatpush1.msra.mxu0 0.0
    %3129 = vmatprep.subr.mxu0 0.0
    %3130 = vmatpush1.msra.mxu0 0.0
    %3131 = vmatprep.subr.mxu0 0.0
    %3132 = vmatpush1.msra.mxu0 0.0
    %3133 = vmatprep.subr.mxu0 0.0
    %3134 = vmatpush1.msra.mxu0 0.0
    %3135 = vmatprep.subr.mxu0 0.0
    %3136 = vmatpush1.msra.mxu0 0.0
    %3137 = vmatprep.subr.mxu0 0.0
    %3138 = vmatpush1.msra.mxu0 0.0
    %3139 = vmatprep.subr.mxu0 0.0
    %3140 = vmatpush1.msra.mxu0 0.0
    %3141 = vmatprep.subr.mxu0 0.0
    %3142 = vmatpush1.msra.mxu0 0.0
    %3143 = vmatprep.subr.mxu0 0.0
    %3144 = vmatpush1.msra.mxu0 0.0
    %3145 = vmatprep.subr.mxu0 0.0
    %3146 = vmatpush1.msra.mxu0 0.0
    %3147 = vmatprep.subr.mxu0 0.0
    %3148 = vmatpush1.msra.mxu0 0.0
    %3149 = vmatprep.subr.mxu0 0.0
    %3150 = vmatpush1.msra.mxu0 0.0
    %3151 = vmatprep.subr.mxu0 0.0
    %3152 = vmatpush1.msra.mxu0 0.0
    %3153 = vmatprep.subr.mxu0 0.0
    %3154 = vmatpush1.msra.mxu0 0.0
    %3155 = vmatprep.subr.mxu0 0.0
    %3156 = vmatpush1.msra.mxu0 0.0
    %3157 = vmatprep.subr.mxu0 0.0
    %3158 = vmatpush1.msra.mxu0 0.0
    %3159 = vmatprep.subr.mxu0 0.0
    %3160 = vmatpush1.msra.mxu0 0.0
    %3161 = vmatprep.subr.mxu0 0.0
    %3162 = vmatpush1.msra.mxu0 0.0
    %3163 = vmatprep.subr.mxu0 0.0
    %3164 = vmatpush1.msra.mxu0 0.0
    %3165 = vmatprep.subr.mxu0 0.0
    %3166 = vmatpush1.msra.mxu0 0.0
    %3167 = vmatprep.subr.mxu0 0.0
    %3168 = vmatpush1.msra.mxu0 0.0
    %3169 = vmatprep.subr.mxu0 0.0
    %3170 = vmatpush1.msra.mxu0 0.0
    %3171 = vmatprep.subr.mxu0 0.0
    %3172 = vmatpush1.msra.mxu0 0.0
    %3173 = vmatprep.subr.mxu0 0.0
    %3174 = vmatpush1.msra.mxu0 0.0
    %3175 = vmatprep.subr.mxu0 0.0
    %3176 = vmatpush1.msra.mxu0 0.0
    %3177 = vmatprep.subr.mxu0 0.0
    %3178 = vmatpush1.msra.mxu0 0.0
    %3179 = vmatprep.mubr.f32.mxu0 0.0
    %3180 = vmatmul.mubr.f32.gmra.mrb[0].mxu0 %v2841
    %v3181 = vpop.f32.mrb[0].mxu0
    %v3182 = vadd.f32 0.0, %v3181
    %v3183 = vpop.f32.mrb[0].mxu0
    %3184 = vdwg.mxu0
    %v3185 = vadd.f32 %v3114, %v3182
    %v3186 = vadd.f32 %v3185, %v499
    %v3187 = vxor.u32 %v3186, 2147483648
    %v3188 = vmul.f32 %v3187, 1.442695
    %v3189 = vpow.pop %v3188
    %v3190 = vadd.f32 %v3189, 1.0
    %v3191 = vrcp.pop %v3190
    %v3192 = vmul.f32 1.0, %v3191
    %v3193 = vtanh.pop %v3186
    %v3194 = vmul.f32 %v3192, %v2761
    %3196 = vrot.lane.b32.xlu0 %v3193, 96
    %v3197 = vpop.permute.xlu0 %3196
    %v3199 = vmul.f32 %v3192, %v3197
    %3201 = vrot.lane.b32.xlu0 %v3199, 16
    %v3202 = vpop.permute.xlu0 %3201
    %v3204 = vadd.f32 %v3194, %v3202
    %v3205 = vtanh.pop %v3204
    %3207 = vrot.lane.b32.xlu0 %v3205, 32
    %v3208 = vpop.permute.xlu0 %3207
    %v3210 = vmul.f32 %v3192, %v3208
    %3211 = vmatprep.subr.mxu0 0.0
    %3212 = vmatpush1.msra.mxu0 %v402
    %3213 = vmatprep.subr.mxu0 0.0
    %3214 = vmatpush1.msra.mxu0 %v403
    %3215 = vmatprep.subr.mxu0 0.0
    %3216 = vmatpush1.msra.mxu0 %v404
    %3217 = vmatprep.subr.mxu0 0.0
    %3218 = vmatpush1.msra.mxu0 0.0
    %3219 = vmatprep.subr.mxu0 0.0
    %3220 = vmatpush1.msra.mxu0 0.0
    %3221 = vmatprep.subr.mxu0 0.0
    %3222 = vmatpush1.msra.mxu0 0.0
    %3223 = vmatprep.subr.mxu0 0.0
    %3224 = vmatpush1.msra.mxu0 0.0
    %3225 = vmatprep.subr.mxu0 0.0
    %3226 = vmatpush1.msra.mxu0 0.0
    %3227 = vmatprep.subr.mxu0 0.0
    %3228 = vmatpush1.msra.mxu0 0.0
    %3229 = vmatprep.subr.mxu0 0.0
    %3230 = vmatpush1.msra.mxu0 0.0
    %3231 = vmatprep.subr.mxu0 0.0
    %3232 = vmatpush1.msra.mxu0 0.0
    %3233 = vmatprep.subr.mxu0 0.0
    %3234 = vmatpush1.msra.mxu0 0.0
    %3235 = vmatprep.subr.mxu0 0.0
    %3236 = vmatpush1.msra.mxu0 0.0
    %3237 = vmatprep.subr.mxu0 0.0
    %3238 = vmatpush1.msra.mxu0 0.0
    %3239 = vmatprep.subr.mxu0 0.0
    %3240 = vmatpush1.msra.mxu0 0.0
    %3241 = vmatprep.subr.mxu0 0.0
    %3242 = vmatpush1.msra.mxu0 0.0
    %3243 = vmatprep.subr.mxu0 0.0
    %3244 = vmatpush1.msra.mxu0 0.0
    %3245 = vmatprep.subr.mxu0 0.0
    %3246 = vmatpush1.msra.mxu0 0.0
    %3247 = vmatprep.subr.mxu0 0.0
    %3248 = vmatpush1.msra.mxu0 0.0
    %3249 = vmatprep.subr.mxu0 0.0
    %3250 = vmatpush1.msra.mxu0 0.0
    %3251 = vmatprep.subr.mxu0 0.0
    %3252 = vmatpush1.msra.mxu0 0.0
    %3253 = vmatprep.subr.mxu0 0.0
    %3254 = vmatpush1.msra.mxu0 0.0
    %3255 = vmatprep.subr.mxu0 0.0
    %3256 = vmatpush1.msra.mxu0 0.0
    %3257 = vmatprep.subr.mxu0 0.0
    %3258 = vmatpush1.msra.mxu0 0.0
    %3259 = vmatprep.subr.mxu0 0.0
    %3260 = vmatpush1.msra.mxu0 0.0
    %3261 = vmatprep.subr.mxu0 0.0
    %3262 = vmatpush1.msra.mxu0 0.0
    %3263 = vmatprep.subr.mxu0 0.0
    %3264 = vmatpush1.msra.mxu0 0.0
    %3265 = vmatprep.subr.mxu0 0.0
    %3266 = vmatpush1.msra.mxu0 0.0
    %3267 = vmatprep.subr.mxu0 0.0
    %3268 = vmatpush1.msra.mxu0 0.0
    %3269 = vmatprep.subr.mxu0 0.0
    %3270 = vmatpush1.msra.mxu0 0.0
    %3271 = vmatprep.subr.mxu0 0.0
    %3272 = vmatpush1.msra.mxu0 0.0
    %3273 = vmatprep.subr.mxu0 0.0
    %3274 = vmatpush1.msra.mxu0 0.0
    %3275 = vmatprep.mubr.f32.mxu0 0.0
    %3276 = vmatmul.mubr.f32.gmra.mrb[0].mxu0 %v3016
    %v3277 = vpop.f32.mrb[0].mxu0
    %v3278 = vadd.f32 0.0, %v3277
    %v3279 = vpop.f32.mrb[0].mxu0
    %3280 = vdwg.mxu0
    %3282 = vrot.lane.b32.xlu0 %v3210, 80
    %v3283 = vpop.permute.xlu0 %3282
    %v3284 = vsel %vm258, %v3283, 0
    %3286 = vmatprep.subr.mxu0 0.0
    %3287 = vmatpush1.msra.mxu0 %v400
    %3288 = vmatprep.subr.mxu0 0.0
    %3289 = vmatpush1.msra.mxu0 %v401
    %3290 = vmatprep.subr.mxu0 0.0
    %3291 = vmatpush1.msra.mxu0 0.0
    %3292 = vmatprep.subr.mxu0 0.0
    %3293 = vmatpush1.msra.mxu0 0.0
    %3294 = vmatprep.subr.mxu0 0.0
    %3295 = vmatpush1.msra.mxu0 0.0
    %3296 = vmatprep.subr.mxu0 0.0
    %3297 = vmatpush1.msra.mxu0 0.0
    %3298 = vmatprep.subr.mxu0 0.0
    %3299 = vmatpush1.msra.mxu0 0.0
    %3300 = vmatprep.subr.mxu0 0.0
    %3301 = vmatpush1.msra.mxu0 0.0
    %3302 = vmatprep.subr.mxu0 0.0
    %3303 = vmatpush1.msra.mxu0 0.0
    %3304 = vmatprep.subr.mxu0 0.0
    %3305 = vmatpush1.msra.mxu0 0.0
    %3306 = vmatprep.subr.mxu0 0.0
    %3307 = vmatpush1.msra.mxu0 0.0
    %3308 = vmatprep.subr.mxu0 0.0
    %3309 = vmatpush1.msra.mxu0 0.0
    %3310 = vmatprep.subr.mxu0 0.0
    %3311 = vmatpush1.msra.mxu0 0.0
    %3312 = vmatprep.subr.mxu0 0.0
    %3313 = vmatpush1.msra.mxu0 0.0
    %3314 = vmatprep.subr.mxu0 0.0
    %3315 = vmatpush1.msra.mxu0 0.0
    %3316 = vmatprep.subr.mxu0 0.0
    %3317 = vmatpush1.msra.mxu0 0.0
    %3318 = vmatprep.subr.mxu0 0.0
    %3319 = vmatpush1.msra.mxu0 0.0
    %3320 = vmatprep.subr.mxu0 0.0
    %3321 = vmatpush1.msra.mxu0 0.0
    %3322 = vmatprep.subr.mxu0 0.0
    %3323 = vmatpush1.msra.mxu0 0.0
    %3324 = vmatprep.subr.mxu0 0.0
    %3325 = vmatpush1.msra.mxu0 0.0
    %3326 = vmatprep.subr.mxu0 0.0
    %3327 = vmatpush1.msra.mxu0 0.0
    %3328 = vmatprep.subr.mxu0 0.0
    %3329 = vmatpush1.msra.mxu0 0.0
    %3330 = vmatprep.subr.mxu0 0.0
    %3331 = vmatpush1.msra.mxu0 0.0
    %3332 = vmatprep.subr.mxu0 0.0
    %3333 = vmatpush1.msra.mxu0 0.0
    %3334 = vmatprep.subr.mxu0 0.0
    %3335 = vmatpush1.msra.mxu0 0.0
    %3336 = vmatprep.subr.mxu0 0.0
    %3337 = vmatpush1.msra.mxu0 0.0
    %3338 = vmatprep.subr.mxu0 0.0
    %3339 = vmatpush1.msra.mxu0 0.0
    %3340 = vmatprep.subr.mxu0 0.0
    %3341 = vmatpush1.msra.mxu0 0.0
    %3342 = vmatprep.subr.mxu0 0.0
    %3343 = vmatpush1.msra.mxu0 0.0
    %3344 = vmatprep.subr.mxu0 0.0
    %3345 = vmatpush1.msra.mxu0 0.0
    %3346 = vmatprep.subr.mxu0 0.0
    %3347 = vmatpush1.msra.mxu0 0.0
    %3348 = vmatprep.subr.mxu0 0.0
    %3349 = vmatpush1.msra.mxu0 0.0
    %3350 = vmatprep.mubr.f32.mxu0 0.0
    %3351 = vmatmul.mubr.f32.gmra.mrb[0].mxu0 %v3284
    %v3352 = vpop.f32.mrb[0].mxu0
    %v3353 = vadd.f32 %v3278, %v3352
    %v3354 = vpop.f32.mrb[0].mxu0
    %3355 = vdwg.mxu0
    %v3356 = vadd.f32 %v3353, %v683
    %v3357 = vxor.u32 %v3356, 2147483648
    %v3358 = vmul.f32 %v3357, 1.442695
    %v3359 = vpow.pop %v3358
    %v3360 = vadd.f32 %v3359, 1.0
    %v3361 = vrcp.pop %v3360
    %v3362 = vmul.f32 1.0, %v3361
    %v3363 = vtanh.pop %v3356
    %v3364 = vmul.f32 %v3362, %v2931
    %3366 = vrot.lane.b32.xlu0 %v3363, 80
    %v3367 = vpop.permute.xlu0 %3366
    %v3369 = vmul.f32 %v3362, %v3367
    %3371 = vrot.lane.b32.xlu0 %v3369, 24
    %v3372 = vpop.permute.xlu0 %3371
    %v3374 = vadd.f32 %v3364, %v3372
    %v3375 = vtanh.pop %v3374
    %3377 = vrot.lane.b32.xlu0 %v3375, 48
    %v3378 = vpop.permute.xlu0 %3377
    %v3380 = vmul.f32 %v3362, %v3378
    %3382 = vrot.lane.b32.xlu0 %v3112, 32
    %v3383 = vpop.permute.xlu0 %3382
    %v3384 = vsel %vm714, %v3383, 0
    %3386 = vmatprep.subr.mxu0 0.0
    %3387 = vmatpush1.msra.mxu0 %v409
    %3388 = vmatprep.subr.mxu0 0.0
    %3389 = vmatpush1.msra.mxu0 %v410
    %3390 = vmatprep.subr.mxu0 0.0
    %3391 = vmatpush1.msra.mxu0 %v411
    %3392 = vmatprep.subr.mxu0 0.0
    %3393 = vmatpush1.msra.mxu0 %v412
    %3394 = vmatprep.subr.mxu0 0.0
    %3395 = vmatpush1.msra.mxu0 0.0
    %3396 = vmatprep.subr.mxu0 0.0
    %3397 = vmatpush1.msra.mxu0 0.0
    %3398 = vmatprep.subr.mxu0 0.0
    %3399 = vmatpush1.msra.mxu0 0.0
    %3400 = vmatprep.subr.mxu0 0.0
    %3401 = vmatpush1.msra.mxu0 0.0
    %3402 = vmatprep.subr.mxu0 0.0
    %3403 = vmatpush1.msra.mxu0 0.0
    %3404 = vmatprep.subr.mxu0 0.0
    %3405 = vmatpush1.msra.mxu0 0.0
    %3406 = vmatprep.subr.mxu0 0.0
    %3407 = vmatpush1.msra.mxu0 0.0
    %3408 = vmatprep.subr.mxu0 0.0
    %3409 = vmatpush1.msra.mxu0 0.0
    %3410 = vmatprep.subr.mxu0 0.0
    %3411 = vmatpush1.msra.mxu0 0.0
    %3412 = vmatprep.subr.mxu0 0.0
    %3413 = vmatpush1.msra.mxu0 0.0
    %3414 = vmatprep.subr.mxu0 0.0
    %3415 = vmatpush1.msra.mxu0 0.0
    %3416 = vmatprep.subr.mxu0 0.0
    %3417 = vmatpush1.msra.mxu0 0.0
    %3418 = vmatprep.subr.mxu0 0.0
    %3419 = vmatpush1.msra.mxu0 0.0
    %3420 = vmatprep.subr.mxu0 0.0
    %3421 = vmatpush1.msra.mxu0 0.0
    %3422 = vmatprep.subr.mxu0 0.0
    %3423 = vmatpush1.msra.mxu0 0.0
    %3424 = vmatprep.subr.mxu0 0.0
    %3425 = vmatpush1.msra.mxu0 0.0
    %3426 = vmatprep.subr.mxu0 0.0
    %3427 = vmatpush1.msra.mxu0 0.0
    %3428 = vmatprep.subr.mxu0 0.0
    %3429 = vmatpush1.msra.mxu0 0.0
    %3430 = vmatprep.subr.mxu0 0.0
    %3431 = vmatpush1.msra.mxu0 0.0
    %3432 = vmatprep.subr.mxu0 0.0
    %3433 = vmatpush1.msra.mxu0 0.0
    %3434 = vmatprep.subr.mxu0 0.0
    %3435 = vmatpush1.msra.mxu0 0.0
    %3436 = vmatprep.subr.mxu0 0.0
    %3437 = vmatpush1.msra.mxu0 0.0
    %3438 = vmatprep.subr.mxu0 0.0
    %3439 = vmatpush1.msra.mxu0 0.0
    %3440 = vmatprep.subr.mxu0 0.0
    %3441 = vmatpush1.msra.mxu0 0.0
    %3442 = vmatprep.subr.mxu0 0.0
    %3443 = vmatpush1.msra.mxu0 0.0
    %3444 = vmatprep.subr.mxu0 0.0
    %3445 = vmatpush1.msra.mxu0 0.0
    %3446 = vmatprep.subr.mxu0 0.0
    %3447 = vmatpush1.msra.mxu0 0.0
    %3448 = vmatprep.subr.mxu0 0.0
    %3449 = vmatpush1.msra.mxu0 0.0
    %3450 = vmatprep.mubr.f32.mxu0 0.0
    %3451 = vmatmul.mubr.f32.gmra.mrb[0].mxu0 %v3384
    %v3452 = vpop.f32.mrb[0].mxu0
    %v3453 = vadd.f32 0.0, %v3452
    %v3454 = vpop.f32.mrb[0].mxu0
    %3455 = vdwg.mxu0
    %3457 = vrot.lane.b32.xlu0 %v3380, 56
    %v3458 = vpop.permute.xlu0 %3457
    %v3459 = vsel %vm530, %v3458, 0
    %3461 = vmatprep.subr.mxu0 0.0
    %3462 = vmatpush1.msra.mxu0 %v406
    %3463 = vmatprep.subr.mxu0 0.0
    %3464 = vmatpush1.msra.mxu0 %v407
    %3465 = vmatprep.subr.mxu0 0.0
    %3466 = vmatpush1.msra.mxu0 %v408
    %3467 = vmatprep.subr.mxu0 0.0
    %3468 = vmatpush1.msra.mxu0 0.0
    %3469 = vmatprep.subr.mxu0 0.0
    %3470 = vmatpush1.msra.mxu0 0.0
    %3471 = vmatprep.subr.mxu0 0.0
    %3472 = vmatpush1.msra.mxu0 0.0
    %3473 = vmatprep.subr.mxu0 0.0
    %3474 = vmatpush1.msra.mxu0 0.0
    %3475 = vmatprep.subr.mxu0 0.0
    %3476 = vmatpush1.msra.mxu0 0.0
    %3477 = vmatprep.subr.mxu0 0.0
    %3478 = vmatpush1.msra.mxu0 0.0
    %3479 = vmatprep.subr.mxu0 0.0
    %3480 = vmatpush1.msra.mxu0 0.0
    %3481 = vmatprep.subr.mxu0 0.0
    %3482 = vmatpush1.msra.mxu0 0.0
    %3483 = vmatprep.subr.mxu0 0.0
    %3484 = vmatpush1.msra.mxu0 0.0
    %3485 = vmatprep.subr.mxu0 0.0
    %3486 = vmatpush1.msra.mxu0 0.0
    %3487 = vmatprep.subr.mxu0 0.0
    %3488 = vmatpush1.msra.mxu0 0.0
    %3489 = vmatprep.subr.mxu0 0.0
    %3490 = vmatpush1.msra.mxu0 0.0
    %3491 = vmatprep.subr.mxu0 0.0
    %3492 = vmatpush1.msra.mxu0 0.0
    %3493 = vmatprep.subr.mxu0 0.0
    %3494 = vmatpush1.msra.mxu0 0.0
    %3495 = vmatprep.subr.mxu0 0.0
    %3496 = vmatpush1.msra.mxu0 0.0
    %3497 = vmatprep.subr.mxu0 0.0
    %3498 = vmatpush1.msra.mxu0 0.0
    %3499 = vmatprep.subr.mxu0 0.0
    %3500 = vmatpush1.msra.mxu0 0.0
    %3501 = vmatprep.subr.mxu0 0.0
    %3502 = vmatpush1.msra.mxu0 0.0
    %3503 = vmatprep.subr.mxu0 0.0
    %3504 = vmatpush1.msra.mxu0 0.0
    %3505 = vmatprep.subr.mxu0 0.0
    %3506 = vmatpush1.msra.mxu0 0.0
    %3507 = vmatprep.subr.mxu0 0.0
    %3508 = vmatpush1.msra.mxu0 0.0
    %3509 = vmatprep.subr.mxu0 0.0
    %3510 = vmatpush1.msra.mxu0 0.0
    %3511 = vmatprep.subr.mxu0 0.0
    %3512 = vmatpush1.msra.mxu0 0.0
    %3513 = vmatprep.subr.mxu0 0.0
    %3514 = vmatpush1.msra.mxu0 0.0
    %3515 = vmatprep.subr.mxu0 0.0
    %3516 = vmatpush1.msra.mxu0 0.0
    %3517 = vmatprep.subr.mxu0 0.0
    %3518 = vmatpush1.msra.mxu0 0.0
    %3519 = vmatprep.subr.mxu0 0.0
    %3520 = vmatpush1.msra.mxu0 0.0
    %3521 = vmatprep.subr.mxu0 0.0
    %3522 = vmatpush1.msra.mxu0 0.0
    %3523 = vmatprep.subr.mxu0 0.0
    %3524 = vmatpush1.msra.mxu0 0.0
    %3525 = vmatprep.mubr.f32.mxu0 0.0
    %3526 = vmatmul.mubr.f32.gmra.mrb[0].mxu0 %v3459
    %v3527 = vpop.f32.mrb[0].mxu0
    %v3528 = vadd.f32 %v3453, %v3527
    %v3529 = vpop.f32.mrb[0].mxu0
    %3530 = vdwg.mxu0
    %v3531 = vadd.f32 %v3528, %v867
    %v3532 = vxor.u32 %v3531, 2147483648
    %v3533 = vmul.f32 %v3532, 1.442695
    %v3534 = vpow.pop %v3533
    %v3535 = vadd.f32 %v3534, 1.0
    %v3536 = vrcp.pop %v3535
    %v3537 = vmul.f32 1.0, %v3536
    %v3538 = vtanh.pop %v3531
    %v3539 = vmul.f32 %v3537, %v3106
    %3541 = vrot.lane.b32.xlu0 %v3538, 64
    %v3542 = vpop.permute.xlu0 %3541
    %v3544 = vmul.f32 %v3537, %v3542
    %3546 = vrot.lane.b32.xlu0 %v3544, 32
    %v3547 = vpop.permute.xlu0 %3546
    %v3549 = vadd.f32 %v3539, %v3547
    %v3550 = vtanh.pop %v3549
    %3552 = vrot.lane.b32.xlu0 %v3550, 64
    %v3553 = vpop.permute.xlu0 %3552
    %v3555 = vmul.f32 %v3537, %v3553
    %s3556 = scalar_lea.vmem [#allocation2], 56
    %v3557 = vld [vmem:[%s3556] sm:$0xff]
    %3558 = vmatprep.subr.mxu0 0.0
    %3559 = vmatpush1.msra.mxu0 %v397
    %3560 = vmatprep.subr.mxu0 0.0
    %3561 = vmatpush1.msra.mxu0 %v398
    %3562 = vmatprep.subr.mxu0 0.0
    %3563 = vmatpush1.msra.mxu0 0.0
    %3564 = vmatprep.subr.mxu0 0.0
    %3565 = vmatpush1.msra.mxu0 0.0
    %3566 = vmatprep.subr.mxu0 0.0
    %3567 = vmatpush1.msra.mxu0 0.0
    %3568 = vmatprep.subr.mxu0 0.0
    %3569 = vmatpush1.msra.mxu0 0.0
    %3570 = vmatprep.subr.mxu0 0.0
    %3571 = vmatpush1.msra.mxu0 0.0
    %3572 = vmatprep.subr.mxu0 0.0
    %3573 = vmatpush1.msra.mxu0 0.0
    %3574 = vmatprep.subr.mxu0 0.0
    %3575 = vmatpush1.msra.mxu0 0.0
    %3576 = vmatprep.subr.mxu0 0.0
    %3577 = vmatpush1.msra.mxu0 0.0
    %3578 = vmatprep.subr.mxu0 0.0
    %3579 = vmatpush1.msra.mxu0 0.0
    %3580 = vmatprep.subr.mxu0 0.0
    %3581 = vmatpush1.msra.mxu0 0.0
    %3582 = vmatprep.subr.mxu0 0.0
    %3583 = vmatpush1.msra.mxu0 0.0
    %3584 = vmatprep.subr.mxu0 0.0
    %3585 = vmatpush1.msra.mxu0 0.0
    %3586 = vmatprep.subr.mxu0 0.0
    %3587 = vmatpush1.msra.mxu0 0.0
    %3588 = vmatprep.subr.mxu0 0.0
    %3589 = vmatpush1.msra.mxu0 0.0
    %3590 = vmatprep.subr.mxu0 0.0
    %3591 = vmatpush1.msra.mxu0 0.0
    %3592 = vmatprep.subr.mxu0 0.0
    %3593 = vmatpush1.msra.mxu0 0.0
    %3594 = vmatprep.subr.mxu0 0.0
    %3595 = vmatpush1.msra.mxu0 0.0
    %3596 = vmatprep.subr.mxu0 0.0
    %3597 = vmatpush1.msra.mxu0 0.0
    %3598 = vmatprep.subr.mxu0 0.0
    %3599 = vmatpush1.msra.mxu0 0.0
    %3600 = vmatprep.subr.mxu0 0.0
    %3601 = vmatpush1.msra.mxu0 0.0
    %3602 = vmatprep.subr.mxu0 0.0
    %3603 = vmatpush1.msra.mxu0 0.0
    %3604 = vmatprep.subr.mxu0 0.0
    %3605 = vmatpush1.msra.mxu0 0.0
    %3606 = vmatprep.subr.mxu0 0.0
    %3607 = vmatpush1.msra.mxu0 0.0
    %3608 = vmatprep.subr.mxu0 0.0
    %3609 = vmatpush1.msra.mxu0 0.0
    %3610 = vmatprep.subr.mxu0 0.0
    %3611 = vmatpush1.msra.mxu0 0.0
    %3612 = vmatprep.subr.mxu0 0.0
    %3613 = vmatpush1.msra.mxu0 0.0
    %3614 = vmatprep.subr.mxu0 0.0
    %3615 = vmatpush1.msra.mxu0 0.0
    %3616 = vmatprep.subr.mxu0 0.0
    %3617 = vmatpush1.msra.mxu0 0.0
    %3618 = vmatprep.subr.mxu0 0.0
    %3619 = vmatpush1.msra.mxu0 0.0
    %3620 = vmatprep.subr.mxu0 0.0
    %3621 = vmatpush1.msra.mxu0 0.0
    %3622 = vmatprep.mubr.f32.mxu0 0.0
    %3623 = vmatmul.mubr.f32.gmra.mrb[0].mxu0 %v3284
    %v3624 = vpop.f32.mrb[0].mxu0
    %v3625 = vadd.f32 0.0, %v3624
    %v3626 = vpop.f32.mrb[0].mxu0
    %3627 = vdwg.mxu0
    %v3628 = vadd.f32 %v3557, %v3625
    %v3629 = vadd.f32 %v3628, %v499
    %v3630 = vxor.u32 %v3629, 2147483648
    %v3631 = vmul.f32 %v3630, 1.442695
    %v3632 = vpow.pop %v3631
    %v3633 = vadd.f32 %v3632, 1.0
    %v3634 = vrcp.pop %v3633
    %v3635 = vmul.f32 1.0, %v3634
    %v3636 = vtanh.pop %v3629
    %v3637 = vmul.f32 %v3635, %v3204
    %3639 = vrot.lane.b32.xlu0 %v3636, 96
    %v3640 = vpop.permute.xlu0 %3639
    %v3642 = vmul.f32 %v3635, %v3640
    %3644 = vrot.lane.b32.xlu0 %v3642, 16
    %v3645 = vpop.permute.xlu0 %3644
    %v3647 = vadd.f32 %v3637, %v3645
    %v3648 = vtanh.pop %v3647
    %3650 = vrot.lane.b32.xlu0 %v3648, 32
    %v3651 = vpop.permute.xlu0 %3650
    %v3653 = vmul.f32 %v3635, %v3651
    %3654 = vmatprep.subr.mxu0 0.0
    %3655 = vmatpush1.msra.mxu0 %v402
    %3656 = vmatprep.subr.mxu0 0.0
    %3657 = vmatpush1.msra.mxu0 %v403
    %3658 = vmatprep.subr.mxu0 0.0
    %3659 = vmatpush1.msra.mxu0 %v404
    %3660 = vmatprep.subr.mxu0 0.0
    %3661 = vmatpush1.msra.mxu0 0.0
    %3662 = vmatprep.subr.mxu0 0.0
    %3663 = vmatpush1.msra.mxu0 0.0
    %3664 = vmatprep.subr.mxu0 0.0
    %3665 = vmatpush1.msra.mxu0 0.0
    %3666 = vmatprep.subr.mxu0 0.0
    %3667 = vmatpush1.msra.mxu0 0.0
    %3668 = vmatprep.subr.mxu0 0.0
    %3669 = vmatpush1.msra.mxu0 0.0
    %3670 = vmatprep.subr.mxu0 0.0
    %3671 = vmatpush1.msra.mxu0 0.0
    %3672 = vmatprep.subr.mxu0 0.0
    %3673 = vmatpush1.msra.mxu0 0.0
    %3674 = vmatprep.subr.mxu0 0.0
    %3675 = vmatpush1.msra.mxu0 0.0
    %3676 = vmatprep.subr.mxu0 0.0
    %3677 = vmatpush1.msra.mxu0 0.0
    %3678 = vmatprep.subr.mxu0 0.0
    %3679 = vmatpush1.msra.mxu0 0.0
    %3680 = vmatprep.subr.mxu0 0.0
    %3681 = vmatpush1.msra.mxu0 0.0
    %3682 = vmatprep.subr.mxu0 0.0
    %3683 = vmatpush1.msra.mxu0 0.0
    %3684 = vmatprep.subr.mxu0 0.0
    %3685 = vmatpush1.msra.mxu0 0.0
    %3686 = vmatprep.subr.mxu0 0.0
    %3687 = vmatpush1.msra.mxu0 0.0
    %3688 = vmatprep.subr.mxu0 0.0
    %3689 = vmatpush1.msra.mxu0 0.0
    %3690 = vmatprep.subr.mxu0 0.0
    %3691 = vmatpush1.msra.mxu0 0.0
    %3692 = vmatprep.subr.mxu0 0.0
    %3693 = vmatpush1.msra.mxu0 0.0
    %3694 = vmatprep.subr.mxu0 0.0
    %3695 = vmatpush1.msra.mxu0 0.0
    %3696 = vmatprep.subr.mxu0 0.0
    %3697 = vmatpush1.msra.mxu0 0.0
    %3698 = vmatprep.subr.mxu0 0.0
    %3699 = vmatpush1.msra.mxu0 0.0
    %3700 = vmatprep.subr.mxu0 0.0
    %3701 = vmatpush1.msra.mxu0 0.0
    %3702 = vmatprep.subr.mxu0 0.0
    %3703 = vmatpush1.msra.mxu0 0.0
    %3704 = vmatprep.subr.mxu0 0.0
    %3705 = vmatpush1.msra.mxu0 0.0
    %3706 = vmatprep.subr.mxu0 0.0
    %3707 = vmatpush1.msra.mxu0 0.0
    %3708 = vmatprep.subr.mxu0 0.0
    %3709 = vmatpush1.msra.mxu0 0.0
    %3710 = vmatprep.subr.mxu0 0.0
    %3711 = vmatpush1.msra.mxu0 0.0
    %3712 = vmatprep.subr.mxu0 0.0
    %3713 = vmatpush1.msra.mxu0 0.0
    %3714 = vmatprep.subr.mxu0 0.0
    %3715 = vmatpush1.msra.mxu0 0.0
    %3716 = vmatprep.subr.mxu0 0.0
    %3717 = vmatpush1.msra.mxu0 0.0
    %3718 = vmatprep.mubr.f32.mxu0 0.0
    %3719 = vmatmul.mubr.f32.gmra.mrb[0].mxu0 %v3459
    %v3720 = vpop.f32.mrb[0].mxu0
    %v3721 = vadd.f32 0.0, %v3720
    %v3722 = vpop.f32.mrb[0].mxu0
    %3723 = vdwg.mxu0
    %3725 = vrot.lane.b32.xlu0 %v3653, 80
    %v3726 = vpop.permute.xlu0 %3725
    %v3727 = vsel %vm258, %v3726, 0
    %3729 = vmatprep.subr.mxu0 0.0
    %3730 = vmatpush1.msra.mxu0 %v400
    %3731 = vmatprep.subr.mxu0 0.0
    %3732 = vmatpush1.msra.mxu0 %v401
    %3733 = vmatprep.subr.mxu0 0.0
    %3734 = vmatpush1.msra.mxu0 0.0
    %3735 = vmatprep.subr.mxu0 0.0
    %3736 = vmatpush1.msra.mxu0 0.0
    %3737 = vmatprep.subr.mxu0 0.0
    %3738 = vmatpush1.msra.mxu0 0.0
    %3739 = vmatprep.subr.mxu0 0.0
    %3740 = vmatpush1.msra.mxu0 0.0
    %3741 = vmatprep.subr.mxu0 0.0
    %3742 = vmatpush1.msra.mxu0 0.0
    %3743 = vmatprep.subr.mxu0 0.0
    %3744 = vmatpush1.msra.mxu0 0.0
    %3745 = vmatprep.subr.mxu0 0.0
    %3746 = vmatpush1.msra.mxu0 0.0
    %3747 = vmatprep.subr.mxu0 0.0
    %3748 = vmatpush1.msra.mxu0 0.0
    %3749 = vmatprep.subr.mxu0 0.0
    %3750 = vmatpush1.msra.mxu0 0.0
    %3751 = vmatprep.subr.mxu0 0.0
    %3752 = vmatpush1.msra.mxu0 0.0
    %3753 = vmatprep.subr.mxu0 0.0
    %3754 = vmatpush1.msra.mxu0 0.0
    %3755 = vmatprep.subr.mxu0 0.0
    %3756 = vmatpush1.msra.mxu0 0.0
    %3757 = vmatprep.subr.mxu0 0.0
    %3758 = vmatpush1.msra.mxu0 0.0
    %3759 = vmatprep.subr.mxu0 0.0
    %3760 = vmatpush1.msra.mxu0 0.0
    %3761 = vmatprep.subr.mxu0 0.0
    %3762 = vmatpush1.msra.mxu0 0.0
    %3763 = vmatprep.subr.mxu0 0.0
    %3764 = vmatpush1.msra.mxu0 0.0
    %3765 = vmatprep.subr.mxu0 0.0
    %3766 = vmatpush1.msra.mxu0 0.0
    %3767 = vmatprep.subr.mxu0 0.0
    %3768 = vmatpush1.msra.mxu0 0.0
    %3769 = vmatprep.subr.mxu0 0.0
    %3770 = vmatpush1.msra.mxu0 0.0
    %3771 = vmatprep.subr.mxu0 0.0
    %3772 = vmatpush1.msra.mxu0 0.0
    %3773 = vmatprep.subr.mxu0 0.0
    %3774 = vmatpush1.msra.mxu0 0.0
    %3775 = vmatprep.subr.mxu0 0.0
    %3776 = vmatpush1.msra.mxu0 0.0
    %3777 = vmatprep.subr.mxu0 0.0
    %3778 = vmatpush1.msra.mxu0 0.0
    %3779 = vmatprep.subr.mxu0 0.0
    %3780 = vmatpush1.msra.mxu0 0.0
    %3781 = vmatprep.subr.mxu0 0.0
    %3782 = vmatpush1.msra.mxu0 0.0
    %3783 = vmatprep.subr.mxu0 0.0
    %3784 = vmatpush1.msra.mxu0 0.0
    %3785 = vmatprep.subr.mxu0 0.0
    %3786 = vmatpush1.msra.mxu0 0.0
    %3787 = vmatprep.subr.mxu0 0.0
    %3788 = vmatpush1.msra.mxu0 0.0
    %3789 = vmatprep.subr.mxu0 0.0
    %3790 = vmatpush1.msra.mxu0 0.0
    %3791 = vmatprep.subr.mxu0 0.0
    %3792 = vmatpush1.msra.mxu0 0.0
    %3793 = vmatprep.mubr.f32.mxu0 0.0
    %3794 = vmatmul.mubr.f32.gmra.mrb[0].mxu0 %v3727
    %v3795 = vpop.f32.mrb[0].mxu0
    %v3796 = vadd.f32 %v3721, %v3795
    %v3797 = vpop.f32.mrb[0].mxu0
    %3798 = vdwg.mxu0
    %v3799 = vadd.f32 %v3796, %v683
    %v3800 = vxor.u32 %v3799, 2147483648
    %v3801 = vmul.f32 %v3800, 1.442695
    %v3802 = vpow.pop %v3801
    %v3803 = vadd.f32 %v3802, 1.0
    %v3804 = vrcp.pop %v3803
    %v3805 = vmul.f32 1.0, %v3804
    %v3806 = vtanh.pop %v3799
    %v3807 = vmul.f32 %v3805, %v3374
    %3809 = vrot.lane.b32.xlu0 %v3806, 80
    %v3810 = vpop.permute.xlu0 %3809
    %v3812 = vmul.f32 %v3805, %v3810
    %3814 = vrot.lane.b32.xlu0 %v3812, 24
    %v3815 = vpop.permute.xlu0 %3814
    %v3817 = vadd.f32 %v3807, %v3815
    %v3818 = vtanh.pop %v3817
    %3820 = vrot.lane.b32.xlu0 %v3818, 48
    %v3821 = vpop.permute.xlu0 %3820
    %v3823 = vmul.f32 %v3805, %v3821
    %3825 = vrot.lane.b32.xlu0 %v3555, 32
    %v3826 = vpop.permute.xlu0 %3825
    %v3827 = vsel %vm714, %v3826, 0
    %3829 = vmatprep.subr.mxu0 0.0
    %3830 = vmatpush1.msra.mxu0 %v409
    %3831 = vmatprep.subr.mxu0 0.0
    %3832 = vmatpush1.msra.mxu0 %v410
    %3833 = vmatprep.subr.mxu0 0.0
    %3834 = vmatpush1.msra.mxu0 %v411
    %3835 = vmatprep.subr.mxu0 0.0
    %3836 = vmatpush1.msra.mxu0 %v412
    %3837 = vmatprep.subr.mxu0 0.0
    %3838 = vmatpush1.msra.mxu0 0.0
    %3839 = vmatprep.subr.mxu0 0.0
    %3840 = vmatpush1.msra.mxu0 0.0
    %3841 = vmatprep.subr.mxu0 0.0
    %3842 = vmatpush1.msra.mxu0 0.0
    %3843 = vmatprep.subr.mxu0 0.0
    %3844 = vmatpush1.msra.mxu0 0.0
    %3845 = vmatprep.subr.mxu0 0.0
    %3846 = vmatpush1.msra.mxu0 0.0
    %3847 = vmatprep.subr.mxu0 0.0
    %3848 = vmatpush1.msra.mxu0 0.0
    %3849 = vmatprep.subr.mxu0 0.0
    %3850 = vmatpush1.msra.mxu0 0.0
    %3851 = vmatprep.subr.mxu0 0.0
    %3852 = vmatpush1.msra.mxu0 0.0
    %3853 = vmatprep.subr.mxu0 0.0
    %3854 = vmatpush1.msra.mxu0 0.0
    %3855 = vmatprep.subr.mxu0 0.0
    %3856 = vmatpush1.msra.mxu0 0.0
    %3857 = vmatprep.subr.mxu0 0.0
    %3858 = vmatpush1.msra.mxu0 0.0
    %3859 = vmatprep.subr.mxu0 0.0
    %3860 = vmatpush1.msra.mxu0 0.0
    %3861 = vmatprep.subr.mxu0 0.0
    %3862 = vmatpush1.msra.mxu0 0.0
    %3863 = vmatprep.subr.mxu0 0.0
    %3864 = vmatpush1.msra.mxu0 0.0
    %3865 = vmatprep.subr.mxu0 0.0
    %3866 = vmatpush1.msra.mxu0 0.0
    %3867 = vmatprep.subr.mxu0 0.0
    %3868 = vmatpush1.msra.mxu0 0.0
    %3869 = vmatprep.subr.mxu0 0.0
    %3870 = vmatpush1.msra.mxu0 0.0
    %3871 = vmatprep.subr.mxu0 0.0
    %3872 = vmatpush1.msra.mxu0 0.0
    %3873 = vmatprep.subr.mxu0 0.0
    %3874 = vmatpush1.msra.mxu0 0.0
    %3875 = vmatprep.subr.mxu0 0.0
    %3876 = vmatpush1.msra.mxu0 0.0
    %3877 = vmatprep.subr.mxu0 0.0
    %3878 = vmatpush1.msra.mxu0 0.0
    %3879 = vmatprep.subr.mxu0 0.0
    %3880 = vmatpush1.msra.mxu0 0.0
    %3881 = vmatprep.subr.mxu0 0.0
    %3882 = vmatpush1.msra.mxu0 0.0
    %3883 = vmatprep.subr.mxu0 0.0
    %3884 = vmatpush1.msra.mxu0 0.0
    %3885 = vmatprep.subr.mxu0 0.0
    %3886 = vmatpush1.msra.mxu0 0.0
    %3887 = vmatprep.subr.mxu0 0.0
    %3888 = vmatpush1.msra.mxu0 0.0
    %3889 = vmatprep.subr.mxu0 0.0
    %3890 = vmatpush1.msra.mxu0 0.0
    %3891 = vmatprep.subr.mxu0 0.0
    %3892 = vmatpush1.msra.mxu0 0.0
    %3893 = vmatprep.mubr.f32.mxu0 0.0
    %3894 = vmatmul.mubr.f32.gmra.mrb[0].mxu0 %v3827
    %v3895 = vpop.f32.mrb[0].mxu0
    %v3896 = vadd.f32 0.0, %v3895
    %v3897 = vpop.f32.mrb[0].mxu0
    %3898 = vdwg.mxu0
    %3900 = vrot.lane.b32.xlu0 %v3823, 56
    %v3901 = vpop.permute.xlu0 %3900
    %v3902 = vsel %vm530, %v3901, 0
    %3904 = vmatprep.subr.mxu0 0.0
    %3905 = vmatpush1.msra.mxu0 %v406
    %3906 = vmatprep.subr.mxu0 0.0
    %3907 = vmatpush1.msra.mxu0 %v407
    %3908 = vmatprep.subr.mxu0 0.0
    %3909 = vmatpush1.msra.mxu0 %v408
    %3910 = vmatprep.subr.mxu0 0.0
    %3911 = vmatpush1.msra.mxu0 0.0
    %3912 = vmatprep.subr.mxu0 0.0
    %3913 = vmatpush1.msra.mxu0 0.0
    %3914 = vmatprep.subr.mxu0 0.0
    %3915 = vmatpush1.msra.mxu0 0.0
    %3916 = vmatprep.subr.mxu0 0.0
    %3917 = vmatpush1.msra.mxu0 0.0
    %3918 = vmatprep.subr.mxu0 0.0
    %3919 = vmatpush1.msra.mxu0 0.0
    %3920 = vmatprep.subr.mxu0 0.0
    %3921 = vmatpush1.msra.mxu0 0.0
    %3922 = vmatprep.subr.mxu0 0.0
    %3923 = vmatpush1.msra.mxu0 0.0
    %3924 = vmatprep.subr.mxu0 0.0
    %3925 = vmatpush1.msra.mxu0 0.0
    %3926 = vmatprep.subr.mxu0 0.0
    %3927 = vmatpush1.msra.mxu0 0.0
    %3928 = vmatprep.subr.mxu0 0.0
    %3929 = vmatpush1.msra.mxu0 0.0
    %3930 = vmatprep.subr.mxu0 0.0
    %3931 = vmatpush1.msra.mxu0 0.0
    %3932 = vmatprep.subr.mxu0 0.0
    %3933 = vmatpush1.msra.mxu0 0.0
    %3934 = vmatprep.subr.mxu0 0.0
    %3935 = vmatpush1.msra.mxu0 0.0
    %3936 = vmatprep.subr.mxu0 0.0
    %3937 = vmatpush1.msra.mxu0 0.0
    %3938 = vmatprep.subr.mxu0 0.0
    %3939 = vmatpush1.msra.mxu0 0.0
    %3940 = vmatprep.subr.mxu0 0.0
    %3941 = vmatpush1.msra.mxu0 0.0
    %3942 = vmatprep.subr.mxu0 0.0
    %3943 = vmatpush1.msra.mxu0 0.0
    %3944 = vmatprep.subr.mxu0 0.0
    %3945 = vmatpush1.msra.mxu0 0.0
    %3946 = vmatprep.subr.mxu0 0.0
    %3947 = vmatpush1.msra.mxu0 0.0
    %3948 = vmatprep.subr.mxu0 0.0
    %3949 = vmatpush1.msra.mxu0 0.0
    %3950 = vmatprep.subr.mxu0 0.0
    %3951 = vmatpush1.msra.mxu0 0.0
    %3952 = vmatprep.subr.mxu0 0.0
    %3953 = vmatpush1.msra.mxu0 0.0
    %3954 = vmatprep.subr.mxu0 0.0
    %3955 = vmatpush1.msra.mxu0 0.0
    %3956 = vmatprep.subr.mxu0 0.0
    %3957 = vmatpush1.msra.mxu0 0.0
    %3958 = vmatprep.subr.mxu0 0.0
    %3959 = vmatpush1.msra.mxu0 0.0
    %3960 = vmatprep.subr.mxu0 0.0
    %3961 = vmatpush1.msra.mxu0 0.0
    %3962 = vmatprep.subr.mxu0 0.0
    %3963 = vmatpush1.msra.mxu0 0.0
    %3964 = vmatprep.subr.mxu0 0.0
    %3965 = vmatpush1.msra.mxu0 0.0
    %3966 = vmatprep.subr.mxu0 0.0
    %3967 = vmatpush1.msra.mxu0 0.0
    %3968 = vmatprep.mubr.f32.mxu0 0.0
    %3969 = vmatmul.mubr.f32.gmra.mrb[0].mxu0 %v3902
    %v3970 = vpop.f32.mrb[0].mxu0
    %v3971 = vadd.f32 %v3896, %v3970
    %v3972 = vpop.f32.mrb[0].mxu0
    %3973 = vdwg.mxu0
    %v3974 = vadd.f32 %v3971, %v867
    %v3975 = vxor.u32 %v3974, 2147483648
    %v3976 = vmul.f32 %v3975, 1.442695
    %v3977 = vpow.pop %v3976
    %v3978 = vadd.f32 %v3977, 1.0
    %v3979 = vrcp.pop %v3978
    %v3980 = vmul.f32 1.0, %v3979
    %v3981 = vtanh.pop %v3974
    %v3982 = vmul.f32 %v3980, %v3549
    %3984 = vrot.lane.b32.xlu0 %v3981, 64
    %v3985 = vpop.permute.xlu0 %3984
    %v3987 = vmul.f32 %v3980, %v3985
    %3989 = vrot.lane.b32.xlu0 %v3987, 32
    %v3990 = vpop.permute.xlu0 %3989
    %v3992 = vadd.f32 %v3982, %v3990
    %v3993 = vtanh.pop %v3992
    %3995 = vrot.lane.b32.xlu0 %v3993, 64
    %v3996 = vpop.permute.xlu0 %3995
    %v3998 = vmul.f32 %v3980, %v3996
    %v3999 = vld [vmem:[%s33] sm:$0x1]
    %v4001 = vlaneseq
    %v4002 = vshrl.u32 %v4001, 7
    %v4003 = vsub.s32 0, %v4002
    %v4004 = vrot.slane %v3999, %v4003
    %4005 = vrot.lane.b32.xlu0 %v4004, 96
    %v4006 = vpop.permute.xlu0 %4005
    %v4008 = vmul.f32 %v3998, %v4006
    %4010 = vrot.lane.b32.xlu0 %v4008, 32
    %v4011 = vpop.permute.xlu0 %4010
    %v4013 = vsel %vm714, %v4011, 0.0
    %4014 = vadd.xlane.f32.xlu0 %v4013
    %v4015 = vpop.xlane.xlu0 %4014
    %v4016 = vld [vmem:[#allocation3] sm:$0x1]
    %v4018 = vlaneseq
    %v4019 = vshrl.u32 %v4018, 7
    %v4020 = vsub.s32 0, %v4019
    %v4021 = vrot.slane %v4016, %v4020
    %v4023 = vadd.f32 %v4015, %v4021
    %vm4024 = vcmp.ge.f32.partialorder %v4023, 0.0
    %v4025 = vmul.f32 %v4023, 0.01
    %v4026 = vsel %vm4024, %v4023, %v4025
    %v4027 = vld [vmem:[#allocation10] sm:$0x1]
    %v4028 = vld [vmem:[#allocation12] sm:$0xff]
    %v4029 = vld [vmem:[#allocation12 + $0x8] sm:$0xff]
    %v4030 = vld [vmem:[#allocation13] sm:$0x1]
    %v4031 = vld [vmem:[#allocation15] sm:$0xff]
    %v4032 = vld [vmem:[#allocation15 + $0x8] sm:$0xff]
    %v4033 = vld [vmem:[%s45] sm:$0xff]
    %v4034 = vld [vmem:[%s45 + $0x8] sm:$0xff]
    %v4035 = vld [vmem:[%s45 + $0x10] sm:$0xff]
    %v4036 = vld [vmem:[#allocation16] sm:$0x1]
    %v4037 = vld [vmem:[%s49] sm:$0xff]
    %v4038 = vld [vmem:[%s49 + $0x8] sm:$0xff]
    %v4039 = vld [vmem:[%s49 + $0x10] sm:$0xff]
    %v4040 = vld [vmem:[%s51] sm:$0xff]
    %v4041 = vld [vmem:[%s51 + $0x8] sm:$0xff]
    %v4042 = vld [vmem:[%s51 + $0x10] sm:$0xff]
    %v4043 = vld [vmem:[%s51 + $0x18] sm:$0xff]
    %v4044 = vld [vmem:[#allocation18] sm:$0x1]
    %v4045 = vld [vmem:[#allocation19] sm:$0x1]
    %v4046 = vld [vmem:[#allocation4] sm:$0x1]
    %4048 = vset.pattern.permute.xlu0 0
    %4049 = vperm.xlu0 %4048, %v4026
    %v4050 = vpop.permute.xlu0 %4049
    %v4053 = vlaneseq
    %v4054 = vshrl.u32 %v4053, 7
    %v4055 = vsub.s32 0, %v4054
    %v4056 = vrot.slane %v4027, %v4055
    %v4058 = vmul.f32 %v4050, %v4056
    %4059 = vmatprep.subr.mxu0 0.0
    %4060 = vmatpush1.msra.mxu0 %v4028
    %4061 = vmatprep.subr.mxu0 0.0
    %4062 = vmatpush1.msra.mxu0 %v4029
    %4063 = vmatprep.subr.mxu0 0.0
    %4064 = vmatpush1.msra.mxu0 0.0
    %4065 = vmatprep.subr.mxu0 0.0
    %4066 = vmatpush1.msra.mxu0 0.0
    %4067 = vmatprep.subr.mxu0 0.0
    %4068 = vmatpush1.msra.mxu0 0.0
    %4069 = vmatprep.subr.mxu0 0.0
    %4070 = vmatpush1.msra.mxu0 0.0
    %4071 = vmatprep.subr.mxu0 0.0
    %4072 = vmatpush1.msra.mxu0 0.0
    %4073 = vmatprep.subr.mxu0 0.0
    %4074 = vmatpush1.msra.mxu0 0.0
    %4075 = vmatprep.subr.mxu0 0.0
    %4076 = vmatpush1.msra.mxu0 0.0
    %4077 = vmatprep.subr.mxu0 0.0
    %4078 = vmatpush1.msra.mxu0 0.0
    %4079 = vmatprep.subr.mxu0 0.0
    %4080 = vmatpush1.msra.mxu0 0.0
    %4081 = vmatprep.subr.mxu0 0.0
    %4082 = vmatpush1.msra.mxu0 0.0
    %4083 = vmatprep.subr.mxu0 0.0
    %4084 = vmatpush1.msra.mxu0 0.0
    %4085 = vmatprep.subr.mxu0 0.0
    %4086 = vmatpush1.msra.mxu0 0.0
    %4087 = vmatprep.subr.mxu0 0.0
    %4088 = vmatpush1.msra.mxu0 0.0
    %4089 = vmatprep.subr.mxu0 0.0
    %4090 = vmatpush1.msra.mxu0 0.0
    %4091 = vmatprep.subr.mxu0 0.0
    %4092 = vmatpush1.msra.mxu0 0.0
    %4093 = vmatprep.subr.mxu0 0.0
    %4094 = vmatpush1.msra.mxu0 0.0
    %4095 = vmatprep.subr.mxu0 0.0
    %4096 = vmatpush1.msra.mxu0 0.0
    %4097 = vmatprep.subr.mxu0 0.0
    %4098 = vmatpush1.msra.mxu0 0.0
    %4099 = vmatprep.subr.mxu0 0.0
    %4100 = vmatpush1.msra.mxu0 0.0
    %4101 = vmatprep.subr.mxu0 0.0
    %4102 = vmatpush1.msra.mxu0 0.0
    %4103 = vmatprep.subr.mxu0 0.0
    %4104 = vmatpush1.msra.mxu0 0.0
    %4105 = vmatprep.subr.mxu0 0.0
    %4106 = vmatpush1.msra.mxu0 0.0
    %4107 = vmatprep.subr.mxu0 0.0
    %4108 = vmatpush1.msra.mxu0 0.0
    %4109 = vmatprep.subr.mxu0 0.0
    %4110 = vmatpush1.msra.mxu0 0.0
    %4111 = vmatprep.subr.mxu0 0.0
    %4112 = vmatpush1.msra.mxu0 0.0
    %4113 = vmatprep.subr.mxu0 0.0
    %4114 = vmatpush1.msra.mxu0 0.0
    %4115 = vmatprep.subr.mxu0 0.0
    %4116 = vmatpush1.msra.mxu0 0.0
    %4117 = vmatprep.subr.mxu0 0.0
    %4118 = vmatpush1.msra.mxu0 0.0
    %4119 = vmatprep.subr.mxu0 0.0
    %4120 = vmatpush1.msra.mxu0 0.0
    %4121 = vmatprep.subr.mxu0 0.0
    %4122 = vmatpush1.msra.mxu0 0.0
    %4123 = vmatprep.mubr.f32.mxu0 0.0
    %4124 = vmatmul.mubr.f32.gmra.mrb[0].mxu0 %v3727
    %v4125 = vpop.f32.mrb[0].mxu0
    %v4126 = vadd.f32 0.0, %v4125
    %v4127 = vpop.f32.mrb[0].mxu0
    %4128 = vdwg.mxu0
    %v4129 = vadd.f32 %v4058, %v4126
    %v4131 = vlaneseq
    %v4132 = vshrl.u32 %v4131, 7
    %v4133 = vsub.s32 0, %v4132
    %v4134 = vrot.slane %v4030, %v4133
    %v4136 = vadd.f32 %v4129, %v4134
    %v4137 = vxor.u32 %v4136, 2147483648
    %v4138 = vmul.f32 %v4137, 1.442695
    %v4139 = vpow.pop %v4138
    %v4140 = vadd.f32 %v4139, 1.0
    %v4141 = vrcp.pop %v4140
    %v4142 = vmul.f32 1.0, %v4141
    %v4143 = vtanh.pop %v4136
    %v4144 = vmul.f32 %v4142, %v3647
    %4146 = vrot.lane.b32.xlu0 %v4143, 96
    %v4147 = vpop.permute.xlu0 %4146
    %v4149 = vmul.f32 %v4142, %v4147
    %4151 = vrot.lane.b32.xlu0 %v4149, 16
    %v4152 = vpop.permute.xlu0 %4151
    %v4154 = vadd.f32 %v4144, %v4152
    %v4155 = vtanh.pop %v4154
    %4157 = vrot.lane.b32.xlu0 %v4155, 32
    %v4158 = vpop.permute.xlu0 %4157
    %v4160 = vmul.f32 %v4142, %v4158
    %4161 = vmatprep.subr.mxu0 0.0
    %4162 = vmatpush1.msra.mxu0 %v4033
    %4163 = vmatprep.subr.mxu0 0.0
    %4164 = vmatpush1.msra.mxu0 %v4034
    %4165 = vmatprep.subr.mxu0 0.0
    %4166 = vmatpush1.msra.mxu0 %v4035
    %4167 = vmatprep.subr.mxu0 0.0
    %4168 = vmatpush1.msra.mxu0 0.0
    %4169 = vmatprep.subr.mxu0 0.0
    %4170 = vmatpush1.msra.mxu0 0.0
    %4171 = vmatprep.subr.mxu0 0.0
    %4172 = vmatpush1.msra.mxu0 0.0
    %4173 = vmatprep.subr.mxu0 0.0
    %4174 = vmatpush1.msra.mxu0 0.0
    %4175 = vmatprep.subr.mxu0 0.0
    %4176 = vmatpush1.msra.mxu0 0.0
    %4177 = vmatprep.subr.mxu0 0.0
    %4178 = vmatpush1.msra.mxu0 0.0
    %4179 = vmatprep.subr.mxu0 0.0
    %4180 = vmatpush1.msra.mxu0 0.0
    %4181 = vmatprep.subr.mxu0 0.0
    %4182 = vmatpush1.msra.mxu0 0.0
    %4183 = vmatprep.subr.mxu0 0.0
    %4184 = vmatpush1.msra.mxu0 0.0
    %4185 = vmatprep.subr.mxu0 0.0
    %4186 = vmatpush1.msra.mxu0 0.0
    %4187 = vmatprep.subr.mxu0 0.0
    %4188 = vmatpush1.msra.mxu0 0.0
    %4189 = vmatprep.subr.mxu0 0.0
    %4190 = vmatpush1.msra.mxu0 0.0
    %4191 = vmatprep.subr.mxu0 0.0
    %4192 = vmatpush1.msra.mxu0 0.0
    %4193 = vmatprep.subr.mxu0 0.0
    %4194 = vmatpush1.msra.mxu0 0.0
    %4195 = vmatprep.subr.mxu0 0.0
    %4196 = vmatpush1.msra.mxu0 0.0
    %4197 = vmatprep.subr.mxu0 0.0
    %4198 = vmatpush1.msra.mxu0 0.0
    %4199 = vmatprep.subr.mxu0 0.0
    %4200 = vmatpush1.msra.mxu0 0.0
    %4201 = vmatprep.subr.mxu0 0.0
    %4202 = vmatpush1.msra.mxu0 0.0
    %4203 = vmatprep.subr.mxu0 0.0
    %4204 = vmatpush1.msra.mxu0 0.0
    %4205 = vmatprep.subr.mxu0 0.0
    %4206 = vmatpush1.msra.mxu0 0.0
    %4207 = vmatprep.subr.mxu0 0.0
    %4208 = vmatpush1.msra.mxu0 0.0
    %4209 = vmatprep.subr.mxu0 0.0
    %4210 = vmatpush1.msra.mxu0 0.0
    %4211 = vmatprep.subr.mxu0 0.0
    %4212 = vmatpush1.msra.mxu0 0.0
    %4213 = vmatprep.subr.mxu0 0.0
    %4214 = vmatpush1.msra.mxu0 0.0
    %4215 = vmatprep.subr.mxu0 0.0
    %4216 = vmatpush1.msra.mxu0 0.0
    %4217 = vmatprep.subr.mxu0 0.0
    %4218 = vmatpush1.msra.mxu0 0.0
    %4219 = vmatprep.subr.mxu0 0.0
    %4220 = vmatpush1.msra.mxu0 0.0
    %4221 = vmatprep.subr.mxu0 0.0
    %4222 = vmatpush1.msra.mxu0 0.0
    %4223 = vmatprep.subr.mxu0 0.0
    %4224 = vmatpush1.msra.mxu0 0.0
    %4225 = vmatprep.mubr.f32.mxu0 0.0
    %4226 = vmatmul.mubr.f32.gmra.mrb[0].mxu0 %v3902
    %v4227 = vpop.f32.mrb[0].mxu0
    %v4228 = vadd.f32 0.0, %v4227
    %v4229 = vpop.f32.mrb[0].mxu0
    %4230 = vdwg.mxu0
    %4232 = vrot.lane.b32.xlu0 %v4160, 80
    %v4233 = vpop.permute.xlu0 %4232
    %v4234 = vsel %vm258, %v4233, 0
    %4236 = vmatprep.subr.mxu0 0.0
    %4237 = vmatpush1.msra.mxu0 %v4031
    %4238 = vmatprep.subr.mxu0 0.0
    %4239 = vmatpush1.msra.mxu0 %v4032
    %4240 = vmatprep.subr.mxu0 0.0
    %4241 = vmatpush1.msra.mxu0 0.0
    %4242 = vmatprep.subr.mxu0 0.0
    %4243 = vmatpush1.msra.mxu0 0.0
    %4244 = vmatprep.subr.mxu0 0.0
    %4245 = vmatpush1.msra.mxu0 0.0
    %4246 = vmatprep.subr.mxu0 0.0
    %4247 = vmatpush1.msra.mxu0 0.0
    %4248 = vmatprep.subr.mxu0 0.0
    %4249 = vmatpush1.msra.mxu0 0.0
    %4250 = vmatprep.subr.mxu0 0.0
    %4251 = vmatpush1.msra.mxu0 0.0
    %4252 = vmatprep.subr.mxu0 0.0
    %4253 = vmatpush1.msra.mxu0 0.0
    %4254 = vmatprep.subr.mxu0 0.0
    %4255 = vmatpush1.msra.mxu0 0.0
    %4256 = vmatprep.subr.mxu0 0.0
    %4257 = vmatpush1.msra.mxu0 0.0
    %4258 = vmatprep.subr.mxu0 0.0
    %4259 = vmatpush1.msra.mxu0 0.0
    %4260 = vmatprep.subr.mxu0 0.0
    %4261 = vmatpush1.msra.mxu0 0.0
    %4262 = vmatprep.subr.mxu0 0.0
    %4263 = vmatpush1.msra.mxu0 0.0
    %4264 = vmatprep.subr.mxu0 0.0
    %4265 = vmatpush1.msra.mxu0 0.0
    %4266 = vmatprep.subr.mxu0 0.0
    %4267 = vmatpush1.msra.mxu0 0.0
    %4268 = vmatprep.subr.mxu0 0.0
    %4269 = vmatpush1.msra.mxu0 0.0
    %4270 = vmatprep.subr.mxu0 0.0
    %4271 = vmatpush1.msra.mxu0 0.0
    %4272 = vmatprep.subr.mxu0 0.0
    %4273 = vmatpush1.msra.mxu0 0.0
    %4274 = vmatprep.subr.mxu0 0.0
    %4275 = vmatpush1.msra.mxu0 0.0
    %4276 = vmatprep.subr.mxu0 0.0
    %4277 = vmatpush1.msra.mxu0 0.0
    %4278 = vmatprep.subr.mxu0 0.0
    %4279 = vmatpush1.msra.mxu0 0.0
    %4280 = vmatprep.subr.mxu0 0.0
    %4281 = vmatpush1.msra.mxu0 0.0
    %4282 = vmatprep.subr.mxu0 0.0
    %4283 = vmatpush1.msra.mxu0 0.0
    %4284 = vmatprep.subr.mxu0 0.0
    %4285 = vmatpush1.msra.mxu0 0.0
    %4286 = vmatprep.subr.mxu0 0.0
    %4287 = vmatpush1.msra.mxu0 0.0
    %4288 = vmatprep.subr.mxu0 0.0
    %4289 = vmatpush1.msra.mxu0 0.0
    %4290 = vmatprep.subr.mxu0 0.0
    %4291 = vmatpush1.msra.mxu0 0.0
    %4292 = vmatprep.subr.mxu0 0.0
    %4293 = vmatpush1.msra.mxu0 0.0
    %4294 = vmatprep.subr.mxu0 0.0
    %4295 = vmatpush1.msra.mxu0 0.0
    %4296 = vmatprep.subr.mxu0 0.0
    %4297 = vmatpush1.msra.mxu0 0.0
    %4298 = vmatprep.subr.mxu0 0.0
    %4299 = vmatpush1.msra.mxu0 0.0
    %4300 = vmatprep.mubr.f32.mxu0 0.0
    %4301 = vmatmul.mubr.f32.gmra.mrb[0].mxu0 %v4234
    %v4302 = vpop.f32.mrb[0].mxu0
    %v4303 = vadd.f32 %v4228, %v4302
    %v4304 = vpop.f32.mrb[0].mxu0
    %4305 = vdwg.mxu0
    %v4307 = vlaneseq
    %v4308 = vshrl.u32 %v4307, 7
    %v4309 = vsub.s32 0, %v4308
    %v4310 = vrot.slane %v4036, %v4309
    %v4312 = vadd.f32 %v4303, %v4310
    %v4313 = vxor.u32 %v4312, 2147483648
    %v4314 = vmul.f32 %v4313, 1.442695
    %v4315 = vpow.pop %v4314
    %v4316 = vadd.f32 %v4315, 1.0
    %v4317 = vrcp.pop %v4316
    %v4318 = vmul.f32 1.0, %v4317
    %v4319 = vtanh.pop %v4312
    %v4320 = vmul.f32 %v4318, %v3817
    %4322 = vrot.lane.b32.xlu0 %v4319, 80
    %v4323 = vpop.permute.xlu0 %4322
    %v4325 = vmul.f32 %v4318, %v4323
    %4327 = vrot.lane.b32.xlu0 %v4325, 24
    %v4328 = vpop.permute.xlu0 %4327
    %v4330 = vadd.f32 %v4320, %v4328
    %v4331 = vtanh.pop %v4330
    %4333 = vrot.lane.b32.xlu0 %v4331, 48
    %v4334 = vpop.permute.xlu0 %4333
    %v4336 = vmul.f32 %v4318, %v4334
    %4338 = vrot.lane.b32.xlu0 %v3998, 32
    %v4339 = vpop.permute.xlu0 %4338
    %v4340 = vsel %vm714, %v4339, 0
    %4342 = vmatprep.subr.mxu0 0.0
    %4343 = vmatpush1.msra.mxu0 %v4040
    %4344 = vmatprep.subr.mxu0 0.0
    %4345 = vmatpush1.msra.mxu0 %v4041
    %4346 = vmatprep.subr.mxu0 0.0
    %4347 = vmatpush1.msra.mxu0 %v4042
    %4348 = vmatprep.subr.mxu0 0.0
    %4349 = vmatpush1.msra.mxu0 %v4043
    %4350 = vmatprep.subr.mxu0 0.0
    %4351 = vmatpush1.msra.mxu0 0.0
    %4352 = vmatprep.subr.mxu0 0.0
    %4353 = vmatpush1.msra.mxu0 0.0
    %4354 = vmatprep.subr.mxu0 0.0
    %4355 = vmatpush1.msra.mxu0 0.0
    %4356 = vmatprep.subr.mxu0 0.0
    %4357 = vmatpush1.msra.mxu0 0.0
    %4358 = vmatprep.subr.mxu0 0.0
    %4359 = vmatpush1.msra.mxu0 0.0
    %4360 = vmatprep.subr.mxu0 0.0
    %4361 = vmatpush1.msra.mxu0 0.0
    %4362 = vmatprep.subr.mxu0 0.0
    %4363 = vmatpush1.msra.mxu0 0.0
    %4364 = vmatprep.subr.mxu0 0.0
    %4365 = vmatpush1.msra.mxu0 0.0
    %4366 = vmatprep.subr.mxu0 0.0
    %4367 = vmatpush1.msra.mxu0 0.0
    %4368 = vmatprep.subr.mxu0 0.0
    %4369 = vmatpush1.msra.mxu0 0.0
    %4370 = vmatprep.subr.mxu0 0.0
    %4371 = vmatpush1.msra.mxu0 0.0
    %4372 = vmatprep.subr.mxu0 0.0
    %4373 = vmatpush1.msra.mxu0 0.0
    %4374 = vmatprep.subr.mxu0 0.0
    %4375 = vmatpush1.msra.mxu0 0.0
    %4376 = vmatprep.subr.mxu0 0.0
    %4377 = vmatpush1.msra.mxu0 0.0
    %4378 = vmatprep.subr.mxu0 0.0
    %4379 = vmatpush1.msra.mxu0 0.0
    %4380 = vmatprep.subr.mxu0 0.0
    %4381 = vmatpush1.msra.mxu0 0.0
    %4382 = vmatprep.subr.mxu0 0.0
    %4383 = vmatpush1.msra.mxu0 0.0
    %4384 = vmatprep.subr.mxu0 0.0
    %4385 = vmatpush1.msra.mxu0 0.0
    %4386 = vmatprep.subr.mxu0 0.0
    %4387 = vmatpush1.msra.mxu0 0.0
    %4388 = vmatprep.subr.mxu0 0.0
    %4389 = vmatpush1.msra.mxu0 0.0
    %4390 = vmatprep.subr.mxu0 0.0
    %4391 = vmatpush1.msra.mxu0 0.0
    %4392 = vmatprep.subr.mxu0 0.0
    %4393 = vmatpush1.msra.mxu0 0.0
    %4394 = vmatprep.subr.mxu0 0.0
    %4395 = vmatpush1.msra.mxu0 0.0
    %4396 = vmatprep.subr.mxu0 0.0
    %4397 = vmatpush1.msra.mxu0 0.0
    %4398 = vmatprep.subr.mxu0 0.0
    %4399 = vmatpush1.msra.mxu0 0.0
    %4400 = vmatprep.subr.mxu0 0.0
    %4401 = vmatpush1.msra.mxu0 0.0
    %4402 = vmatprep.subr.mxu0 0.0
    %4403 = vmatpush1.msra.mxu0 0.0
    %4404 = vmatprep.subr.mxu0 0.0
    %4405 = vmatpush1.msra.mxu0 0.0
    %4406 = vmatprep.mubr.f32.mxu0 0.0
    %4407 = vmatmul.mubr.f32.gmra.mrb[0].mxu0 %v4340
    %v4408 = vpop.f32.mrb[0].mxu0
    %v4409 = vadd.f32 0.0, %v4408
    %v4410 = vpop.f32.mrb[0].mxu0
    %4411 = vdwg.mxu0
    %4413 = vrot.lane.b32.xlu0 %v4336, 56
    %v4414 = vpop.permute.xlu0 %4413
    %v4415 = vsel %vm530, %v4414, 0
    %4417 = vmatprep.subr.mxu0 0.0
    %4418 = vmatpush1.msra.mxu0 %v4037
    %4419 = vmatprep.subr.mxu0 0.0
    %4420 = vmatpush1.msra.mxu0 %v4038
    %4421 = vmatprep.subr.mxu0 0.0
    %4422 = vmatpush1.msra.mxu0 %v4039
    %4423 = vmatprep.subr.mxu0 0.0
    %4424 = vmatpush1.msra.mxu0 0.0
    %4425 = vmatprep.subr.mxu0 0.0
    %4426 = vmatpush1.msra.mxu0 0.0
    %4427 = vmatprep.subr.mxu0 0.0
    %4428 = vmatpush1.msra.mxu0 0.0
    %4429 = vmatprep.subr.mxu0 0.0
    %4430 = vmatpush1.msra.mxu0 0.0
    %4431 = vmatprep.subr.mxu0 0.0
    %4432 = vmatpush1.msra.mxu0 0.0
    %4433 = vmatprep.subr.mxu0 0.0
    %4434 = vmatpush1.msra.mxu0 0.0
    %4435 = vmatprep.subr.mxu0 0.0
    %4436 = vmatpush1.msra.mxu0 0.0
    %4437 = vmatprep.subr.mxu0 0.0
    %4438 = vmatpush1.msra.mxu0 0.0
    %4439 = vmatprep.subr.mxu0 0.0
    %4440 = vmatpush1.msra.mxu0 0.0
    %4441 = vmatprep.subr.mxu0 0.0
    %4442 = vmatpush1.msra.mxu0 0.0
    %4443 = vmatprep.subr.mxu0 0.0
    %4444 = vmatpush1.msra.mxu0 0.0
    %4445 = vmatprep.subr.mxu0 0.0
    %4446 = vmatpush1.msra.mxu0 0.0
    %4447 = vmatprep.subr.mxu0 0.0
    %4448 = vmatpush1.msra.mxu0 0.0
    %4449 = vmatprep.subr.mxu0 0.0
    %4450 = vmatpush1.msra.mxu0 0.0
    %4451 = vmatprep.subr.mxu0 0.0
    %4452 = vmatpush1.msra.mxu0 0.0
    %4453 = vmatprep.subr.mxu0 0.0
    %4454 = vmatpush1.msra.mxu0 0.0
    %4455 = vmatprep.subr.mxu0 0.0
    %4456 = vmatpush1.msra.mxu0 0.0
    %4457 = vmatprep.subr.mxu0 0.0
    %4458 = vmatpush1.msra.mxu0 0.0
    %4459 = vmatprep.subr.mxu0 0.0
    %4460 = vmatpush1.msra.mxu0 0.0
    %4461 = vmatprep.subr.mxu0 0.0
    %4462 = vmatpush1.msra.mxu0 0.0
    %4463 = vmatprep.subr.mxu0 0.0
    %4464 = vmatpush1.msra.mxu0 0.0
    %4465 = vmatprep.subr.mxu0 0.0
    %4466 = vmatpush1.msra.mxu0 0.0
    %4467 = vmatprep.subr.mxu0 0.0
    %4468 = vmatpush1.msra.mxu0 0.0
    %4469 = vmatprep.subr.mxu0 0.0
    %4470 = vmatpush1.msra.mxu0 0.0
    %4471 = vmatprep.subr.mxu0 0.0
    %4472 = vmatpush1.msra.mxu0 0.0
    %4473 = vmatprep.subr.mxu0 0.0
    %4474 = vmatpush1.msra.mxu0 0.0
    %4475 = vmatprep.subr.mxu0 0.0
    %4476 = vmatpush1.msra.mxu0 0.0
    %4477 = vmatprep.subr.mxu0 0.0
    %4478 = vmatpush1.msra.mxu0 0.0
    %4479 = vmatprep.subr.mxu0 0.0
    %4480 = vmatpush1.msra.mxu0 0.0
    %4481 = vmatprep.mubr.f32.mxu0 0.0
    %4482 = vmatmul.mubr.f32.gmra.mrb[0].mxu0 %v4415
    %v4483 = vpop.f32.mrb[0].mxu0
    %v4484 = vadd.f32 %v4409, %v4483
    %v4485 = vpop.f32.mrb[0].mxu0
    %4486 = vdwg.mxu0
    %v4488 = vlaneseq
    %v4489 = vshrl.u32 %v4488, 7
    %v4490 = vsub.s32 0, %v4489
    %v4491 = vrot.slane %v4044, %v4490
    %v4493 = vadd.f32 %v4484, %v4491
    %v4494 = vxor.u32 %v4493, 2147483648
    %v4495 = vmul.f32 %v4494, 1.442695
    %v4496 = vpow.pop %v4495
    %v4497 = vadd.f32 %v4496, 1.0
    %v4498 = vrcp.pop %v4497
    %v4499 = vmul.f32 1.0, %v4498
    %v4500 = vtanh.pop %v4493
    %v4501 = vmul.f32 %v4499, %v3992
    %4503 = vrot.lane.b32.xlu0 %v4500, 64
    %v4504 = vpop.permute.xlu0 %4503
    %v4506 = vmul.f32 %v4499, %v4504
    %4508 = vrot.lane.b32.xlu0 %v4506, 32
    %v4509 = vpop.permute.xlu0 %4508
    %v4511 = vadd.f32 %v4501, %v4509
    %v4512 = vtanh.pop %v4511
    %4514 = vrot.lane.b32.xlu0 %v4512, 64
    %v4515 = vpop.permute.xlu0 %4514
    %v4517 = vmul.f32 %v4499, %v4515
    %v4519 = vlaneseq
    %v4520 = vshrl.u32 %v4519, 7
    %v4521 = vsub.s32 0, %v4520
    %v4522 = vrot.slane %v4045, %v4521
    %4523 = vrot.lane.b32.xlu0 %v4522, 96
    %v4524 = vpop.permute.xlu0 %4523
    %v4526 = vmul.f32 %v4517, %v4524
    %4528 = vrot.lane.b32.xlu0 %v4526, 32
    %v4529 = vpop.permute.xlu0 %4528
    %v4531 = vsel %vm714, %v4529, 0.0
    %4532 = vadd.xlane.f32.xlu0 %v4531
    %v4533 = vpop.xlane.xlu0 %4532
    %v4535 = vlaneseq
    %v4536 = vshrl.u32 %v4535, 7
    %v4537 = vsub.s32 0, %v4536
    %v4538 = vrot.slane %v4046, %v4537
    %v4540 = vadd.f32 %v4533, %v4538
    %vm4541 = vcmp.ge.f32.partialorder %v4540, 0.0
    %v4542 = vmul.f32 %v4540, 0.01
    %v4543 = vsel %vm4541, %v4540, %v4542
    %vm4544 = vcmask 7168
    %4545 = vst.msk [vmem:[%s59] sm:$0xff] %vm4544, %v4543
    %4547 = vset.pattern.permute.xlu0 0
    %4548 = vperm.xlu0 %4547, %v4543
    %v4549 = vpop.permute.xlu0 %4548
    %v4551 = vmul.f32 %v4549, %v4056
    %4552 = vmatprep.subr.mxu0 0.0
    %4553 = vmatpush1.msra.mxu0 %v4028
    %4554 = vmatprep.subr.mxu0 0.0
    %4555 = vmatpush1.msra.mxu0 %v4029
    %4556 = vmatprep.subr.mxu0 0.0
    %4557 = vmatpush1.msra.mxu0 0.0
    %4558 = vmatprep.subr.mxu0 0.0
    %4559 = vmatpush1.msra.mxu0 0.0
    %4560 = vmatprep.subr.mxu0 0.0
    %4561 = vmatpush1.msra.mxu0 0.0
    %4562 = vmatprep.subr.mxu0 0.0
    %4563 = vmatpush1.msra.mxu0 0.0
    %4564 = vmatprep.subr.mxu0 0.0
    %4565 = vmatpush1.msra.mxu0 0.0
    %4566 = vmatprep.subr.mxu0 0.0
    %4567 = vmatpush1.msra.mxu0 0.0
    %4568 = vmatprep.subr.mxu0 0.0
    %4569 = vmatpush1.msra.mxu0 0.0
    %4570 = vmatprep.subr.mxu0 0.0
    %4571 = vmatpush1.msra.mxu0 0.0
    %4572 = vmatprep.subr.mxu0 0.0
    %4573 = vmatpush1.msra.mxu0 0.0
    %4574 = vmatprep.subr.mxu0 0.0
    %4575 = vmatpush1.msra.mxu0 0.0
    %4576 = vmatprep.subr.mxu0 0.0
    %4577 = vmatpush1.msra.mxu0 0.0
    %4578 = vmatprep.subr.mxu0 0.0
    %4579 = vmatpush1.msra.mxu0 0.0
    %4580 = vmatprep.subr.mxu0 0.0
    %4581 = vmatpush1.msra.mxu0 0.0
    %4582 = vmatprep.subr.mxu0 0.0
    %4583 = vmatpush1.msra.mxu0 0.0
    %4584 = vmatprep.subr.mxu0 0.0
    %4585 = vmatpush1.msra.mxu0 0.0
    %4586 = vmatprep.subr.mxu0 0.0
    %4587 = vmatpush1.msra.mxu0 0.0
    %4588 = vmatprep.subr.mxu0 0.0
    %4589 = vmatpush1.msra.mxu0 0.0
    %4590 = vmatprep.subr.mxu0 0.0
    %4591 = vmatpush1.msra.mxu0 0.0
    %4592 = vmatprep.subr.mxu0 0.0
    %4593 = vmatpush1.msra.mxu0 0.0
    %4594 = vmatprep.subr.mxu0 0.0
    %4595 = vmatpush1.msra.mxu0 0.0
    %4596 = vmatprep.subr.mxu0 0.0
    %4597 = vmatpush1.msra.mxu0 0.0
    %4598 = vmatprep.subr.mxu0 0.0
    %4599 = vmatpush1.msra.mxu0 0.0
    %4600 = vmatprep.subr.mxu0 0.0
    %4601 = vmatpush1.msra.mxu0 0.0
    %4602 = vmatprep.subr.mxu0 0.0
    %4603 = vmatpush1.msra.mxu0 0.0
    %4604 = vmatprep.subr.mxu0 0.0
    %4605 = vmatpush1.msra.mxu0 0.0
    %4606 = vmatprep.subr.mxu0 0.0
    %4607 = vmatpush1.msra.mxu0 0.0
    %4608 = vmatprep.subr.mxu0 0.0
    %4609 = vmatpush1.msra.mxu0 0.0
    %4610 = vmatprep.subr.mxu0 0.0
    %4611 = vmatpush1.msra.mxu0 0.0
    %4612 = vmatprep.subr.mxu0 0.0
    %4613 = vmatpush1.msra.mxu0 0.0
    %4614 = vmatprep.subr.mxu0 0.0
    %4615 = vmatpush1.msra.mxu0 0.0
    %4616 = vmatprep.mubr.f32.mxu0 0.0
    %4617 = vmatmul.mubr.f32.gmra.mrb[0].mxu0 %v4234
    %v4618 = vpop.f32.mrb[0].mxu0
    %v4619 = vadd.f32 0.0, %v4618
    %v4620 = vpop.f32.mrb[0].mxu0
    %4621 = vdwg.mxu0
    %v4622 = vadd.f32 %v4551, %v4619
    %v4623 = vadd.f32 %v4622, %v4134
    %v4624 = vxor.u32 %v4623, 2147483648
    %v4625 = vmul.f32 %v4624, 1.442695
    %v4626 = vpow.pop %v4625
    %v4627 = vadd.f32 %v4626, 1.0
    %v4628 = vrcp.pop %v4627
    %v4629 = vmul.f32 1.0, %v4628
    %v4630 = vtanh.pop %v4623
    %v4631 = vmul.f32 %v4629, %v4154
    %4633 = vrot.lane.b32.xlu0 %v4630, 96
    %v4634 = vpop.permute.xlu0 %4633
    %v4636 = vmul.f32 %v4629, %v4634
    %4638 = vrot.lane.b32.xlu0 %v4636, 16
    %v4639 = vpop.permute.xlu0 %4638
    %v4641 = vadd.f32 %v4631, %v4639
    %v4642 = vtanh.pop %v4641
    %4644 = vrot.lane.b32.xlu0 %v4642, 32
    %v4645 = vpop.permute.xlu0 %4644
    %v4647 = vmul.f32 %v4629, %v4645
    %4648 = vmatprep.subr.mxu0 0.0
    %4649 = vmatpush1.msra.mxu0 %v4033
    %4650 = vmatprep.subr.mxu0 0.0
    %4651 = vmatpush1.msra.mxu0 %v4034
    %4652 = vmatprep.subr.mxu0 0.0
    %4653 = vmatpush1.msra.mxu0 %v4035
    %4654 = vmatprep.subr.mxu0 0.0
    %4655 = vmatpush1.msra.mxu0 0.0
    %4656 = vmatprep.subr.mxu0 0.0
    %4657 = vmatpush1.msra.mxu0 0.0
    %4658 = vmatprep.subr.mxu0 0.0
    %4659 = vmatpush1.msra.mxu0 0.0
    %4660 = vmatprep.subr.mxu0 0.0
    %4661 = vmatpush1.msra.mxu0 0.0
    %4662 = vmatprep.subr.mxu0 0.0
    %4663 = vmatpush1.msra.mxu0 0.0
    %4664 = vmatprep.subr.mxu0 0.0
    %4665 = vmatpush1.msra.mxu0 0.0
    %4666 = vmatprep.subr.mxu0 0.0
    %4667 = vmatpush1.msra.mxu0 0.0
    %4668 = vmatprep.subr.mxu0 0.0
    %4669 = vmatpush1.msra.mxu0 0.0
    %4670 = vmatprep.subr.mxu0 0.0
    %4671 = vmatpush1.msra.mxu0 0.0
    %4672 = vmatprep.subr.mxu0 0.0
    %4673 = vmatpush1.msra.mxu0 0.0
    %4674 = vmatprep.subr.mxu0 0.0
    %4675 = vmatpush1.msra.mxu0 0.0
    %4676 = vmatprep.subr.mxu0 0.0
    %4677 = vmatpush1.msra.mxu0 0.0
    %4678 = vmatprep.subr.mxu0 0.0
    %4679 = vmatpush1.msra.mxu0 0.0
    %4680 = vmatprep.subr.mxu0 0.0
    %4681 = vmatpush1.msra.mxu0 0.0
    %4682 = vmatprep.subr.mxu0 0.0
    %4683 = vmatpush1.msra.mxu0 0.0
    %4684 = vmatprep.subr.mxu0 0.0
    %4685 = vmatpush1.msra.mxu0 0.0
    %4686 = vmatprep.subr.mxu0 0.0
    %4687 = vmatpush1.msra.mxu0 0.0
    %4688 = vmatprep.subr.mxu0 0.0
    %4689 = vmatpush1.msra.mxu0 0.0
    %4690 = vmatprep.subr.mxu0 0.0
    %4691 = vmatpush1.msra.mxu0 0.0
    %4692 = vmatprep.subr.mxu0 0.0
    %4693 = vmatpush1.msra.mxu0 0.0
    %4694 = vmatprep.subr.mxu0 0.0
    %4695 = vmatpush1.msra.mxu0 0.0
    %4696 = vmatprep.subr.mxu0 0.0
    %4697 = vmatpush1.msra.mxu0 0.0
    %4698 = vmatprep.subr.mxu0 0.0
    %4699 = vmatpush1.msra.mxu0 0.0
    %4700 = vmatprep.subr.mxu0 0.0
    %4701 = vmatpush1.msra.mxu0 0.0
    %4702 = vmatprep.subr.mxu0 0.0
    %4703 = vmatpush1.msra.mxu0 0.0
    %4704 = vmatprep.subr.mxu0 0.0
    %4705 = vmatpush1.msra.mxu0 0.0
    %4706 = vmatprep.subr.mxu0 0.0
    %4707 = vmatpush1.msra.mxu0 0.0
    %4708 = vmatprep.subr.mxu0 0.0
    %4709 = vmatpush1.msra.mxu0 0.0
    %4710 = vmatprep.subr.mxu0 0.0
    %4711 = vmatpush1.msra.mxu0 0.0
    %4712 = vmatprep.mubr.f32.mxu0 0.0
    %4713 = vmatmul.mubr.f32.gmra.mrb[0].mxu0 %v4415
    %v4714 = vpop.f32.mrb[0].mxu0
    %v4715 = vadd.f32 0.0, %v4714
    %v4716 = vpop.f32.mrb[0].mxu0
    %4717 = vdwg.mxu0
    %4719 = vrot.lane.b32.xlu0 %v4647, 80
    %v4720 = vpop.permute.xlu0 %4719
    %v4721 = vsel %vm258, %v4720, 0
    %4723 = vmatprep.subr.mxu0 0.0
    %4724 = vmatpush1.msra.mxu0 %v4031
    %4725 = vmatprep.subr.mxu0 0.0
    %4726 = vmatpush1.msra.mxu0 %v4032
    %4727 = vmatprep.subr.mxu0 0.0
    %4728 = vmatpush1.msra.mxu0 0.0
    %4729 = vmatprep.subr.mxu0 0.0
    %4730 = vmatpush1.msra.mxu0 0.0
    %4731 = vmatprep.subr.mxu0 0.0
    %4732 = vmatpush1.msra.mxu0 0.0
    %4733 = vmatprep.subr.mxu0 0.0
    %4734 = vmatpush1.msra.mxu0 0.0
    %4735 = vmatprep.subr.mxu0 0.0
    %4736 = vmatpush1.msra.mxu0 0.0
    %4737 = vmatprep.subr.mxu0 0.0
    %4738 = vmatpush1.msra.mxu0 0.0
    %4739 = vmatprep.subr.mxu0 0.0
    %4740 = vmatpush1.msra.mxu0 0.0
    %4741 = vmatprep.subr.mxu0 0.0
    %4742 = vmatpush1.msra.mxu0 0.0
    %4743 = vmatprep.subr.mxu0 0.0
    %4744 = vmatpush1.msra.mxu0 0.0
    %4745 = vmatprep.subr.mxu0 0.0
    %4746 = vmatpush1.msra.mxu0 0.0
    %4747 = vmatprep.subr.mxu0 0.0
    %4748 = vmatpush1.msra.mxu0 0.0
    %4749 = vmatprep.subr.mxu0 0.0
    %4750 = vmatpush1.msra.mxu0 0.0
    %4751 = vmatprep.subr.mxu0 0.0
    %4752 = vmatpush1.msra.mxu0 0.0
    %4753 = vmatprep.subr.mxu0 0.0
    %4754 = vmatpush1.msra.mxu0 0.0
    %4755 = vmatprep.subr.mxu0 0.0
    %4756 = vmatpush1.msra.mxu0 0.0
    %4757 = vmatprep.subr.mxu0 0.0
    %4758 = vmatpush1.msra.mxu0 0.0
    %4759 = vmatprep.subr.mxu0 0.0
    %4760 = vmatpush1.msra.mxu0 0.0
    %4761 = vmatprep.subr.mxu0 0.0
    %4762 = vmatpush1.msra.mxu0 0.0
    %4763 = vmatprep.subr.mxu0 0.0
    %4764 = vmatpush1.msra.mxu0 0.0
    %4765 = vmatprep.subr.mxu0 0.0
    %4766 = vmatpush1.msra.mxu0 0.0
    %4767 = vmatprep.subr.mxu0 0.0
    %4768 = vmatpush1.msra.mxu0 0.0
    %4769 = vmatprep.subr.mxu0 0.0
    %4770 = vmatpush1.msra.mxu0 0.0
    %4771 = vmatprep.subr.mxu0 0.0
    %4772 = vmatpush1.msra.mxu0 0.0
    %4773 = vmatprep.subr.mxu0 0.0
    %4774 = vmatpush1.msra.mxu0 0.0
    %4775 = vmatprep.subr.mxu0 0.0
    %4776 = vmatpush1.msra.mxu0 0.0
    %4777 = vmatprep.subr.mxu0 0.0
    %4778 = vmatpush1.msra.mxu0 0.0
    %4779 = vmatprep.subr.mxu0 0.0
    %4780 = vmatpush1.msra.mxu0 0.0
    %4781 = vmatprep.subr.mxu0 0.0
    %4782 = vmatpush1.msra.mxu0 0.0
    %4783 = vmatprep.subr.mxu0 0.0
    %4784 = vmatpush1.msra.mxu0 0.0
    %4785 = vmatprep.subr.mxu0 0.0
    %4786 = vmatpush1.msra.mxu0 0.0
    %4787 = vmatprep.mubr.f32.mxu0 0.0
    %4788 = vmatmul.mubr.f32.gmra.mrb[0].mxu0 %v4721
    %v4789 = vpop.f32.mrb[0].mxu0
    %v4790 = vadd.f32 %v4715, %v4789
    %v4791 = vpop.f32.mrb[0].mxu0
    %4792 = vdwg.mxu0
    %v4793 = vadd.f32 %v4790, %v4310
    %v4794 = vxor.u32 %v4793, 2147483648
    %v4795 = vmul.f32 %v4794, 1.442695
    %v4796 = vpow.pop %v4795
    %v4797 = vadd.f32 %v4796, 1.0
    %v4798 = vrcp.pop %v4797
    %v4799 = vmul.f32 1.0, %v4798
    %v4800 = vtanh.pop %v4793
    %v4801 = vmul.f32 %v4799, %v4330
    %4803 = vrot.lane.b32.xlu0 %v4800, 80
    %v4804 = vpop.permute.xlu0 %4803
    %v4806 = vmul.f32 %v4799, %v4804
    %4808 = vrot.lane.b32.xlu0 %v4806, 24
    %v4809 = vpop.permute.xlu0 %4808
    %v4811 = vadd.f32 %v4801, %v4809
    %v4812 = vtanh.pop %v4811
    %4814 = vrot.lane.b32.xlu0 %v4812, 48
    %v4815 = vpop.permute.xlu0 %4814
    %v4817 = vmul.f32 %v4799, %v4815
    %4819 = vrot.lane.b32.xlu0 %v4517, 32
    %v4820 = vpop.permute.xlu0 %4819
    %v4821 = vsel %vm714, %v4820, 0
    %4823 = vmatprep.subr.mxu0 0.0
    %4824 = vmatpush1.msra.mxu0 %v4040
    %4825 = vmatprep.subr.mxu0 0.0
    %4826 = vmatpush1.msra.mxu0 %v4041
    %4827 = vmatprep.subr.mxu0 0.0
    %4828 = vmatpush1.msra.mxu0 %v4042
    %4829 = vmatprep.subr.mxu0 0.0
    %4830 = vmatpush1.msra.mxu0 %v4043
    %4831 = vmatprep.subr.mxu0 0.0
    %4832 = vmatpush1.msra.mxu0 0.0
    %4833 = vmatprep.subr.mxu0 0.0
    %4834 = vmatpush1.msra.mxu0 0.0
    %4835 = vmatprep.subr.mxu0 0.0
    %4836 = vmatpush1.msra.mxu0 0.0
    %4837 = vmatprep.subr.mxu0 0.0
    %4838 = vmatpush1.msra.mxu0 0.0
    %4839 = vmatprep.subr.mxu0 0.0
    %4840 = vmatpush1.msra.mxu0 0.0
    %4841 = vmatprep.subr.mxu0 0.0
    %4842 = vmatpush1.msra.mxu0 0.0
    %4843 = vmatprep.subr.mxu0 0.0
    %4844 = vmatpush1.msra.mxu0 0.0
    %4845 = vmatprep.subr.mxu0 0.0
    %4846 = vmatpush1.msra.mxu0 0.0
    %4847 = vmatprep.subr.mxu0 0.0
    %4848 = vmatpush1.msra.mxu0 0.0
    %4849 = vmatprep.subr.mxu0 0.0
    %4850 = vmatpush1.msra.mxu0 0.0
    %4851 = vmatprep.subr.mxu0 0.0
    %4852 = vmatpush1.msra.mxu0 0.0
    %4853 = vmatprep.subr.mxu0 0.0
    %4854 = vmatpush1.msra.mxu0 0.0
    %4855 = vmatprep.subr.mxu0 0.0
    %4856 = vmatpush1.msra.mxu0 0.0
    %4857 = vmatprep.subr.mxu0 0.0
    %4858 = vmatpush1.msra.mxu0 0.0
    %4859 = vmatprep.subr.mxu0 0.0
    %4860 = vmatpush1.msra.mxu0 0.0
    %4861 = vmatprep.subr.mxu0 0.0
    %4862 = vmatpush1.msra.mxu0 0.0
    %4863 = vmatprep.subr.mxu0 0.0
    %4864 = vmatpush1.msra.mxu0 0.0
    %4865 = vmatprep.subr.mxu0 0.0
    %4866 = vmatpush1.msra.mxu0 0.0
    %4867 = vmatprep.subr.mxu0 0.0
    %4868 = vmatpush1.msra.mxu0 0.0
    %4869 = vmatprep.subr.mxu0 0.0
    %4870 = vmatpush1.msra.mxu0 0.0
    %4871 = vmatprep.subr.mxu0 0.0
    %4872 = vmatpush1.msra.mxu0 0.0
    %4873 = vmatprep.subr.mxu0 0.0
    %4874 = vmatpush1.msra.mxu0 0.0
    %4875 = vmatprep.subr.mxu0 0.0
    %4876 = vmatpush1.msra.mxu0 0.0
    %4877 = vmatprep.subr.mxu0 0.0
    %4878 = vmatpush1.msra.mxu0 0.0
    %4879 = vmatprep.subr.mxu0 0.0
    %4880 = vmatpush1.msra.mxu0 0.0
    %4881 = vmatprep.subr.mxu0 0.0
    %4882 = vmatpush1.msra.mxu0 0.0
    %4883 = vmatprep.subr.mxu0 0.0
    %4884 = vmatpush1.msra.mxu0 0.0
    %4885 = vmatprep.subr.mxu0 0.0
    %4886 = vmatpush1.msra.mxu0 0.0
    %4887 = vmatprep.mubr.f32.mxu0 0.0
    %4888 = vmatmul.mubr.f32.gmra.mrb[0].mxu0 %v4821
    %v4889 = vpop.f32.mrb[0].mxu0
    %v4890 = vadd.f32 0.0, %v4889
    %v4891 = vpop.f32.mrb[0].mxu0
    %4892 = vdwg.mxu0
    %4894 = vrot.lane.b32.xlu0 %v4817, 56
    %v4895 = vpop.permute.xlu0 %4894
    %v4896 = vsel %vm530, %v4895, 0
    %4898 = vmatprep.subr.mxu0 0.0
    %4899 = vmatpush1.msra.mxu0 %v4037
    %4900 = vmatprep.subr.mxu0 0.0
    %4901 = vmatpush1.msra.mxu0 %v4038
    %4902 = vmatprep.subr.mxu0 0.0
    %4903 = vmatpush1.msra.mxu0 %v4039
    %4904 = vmatprep.subr.mxu0 0.0
    %4905 = vmatpush1.msra.mxu0 0.0
    %4906 = vmatprep.subr.mxu0 0.0
    %4907 = vmatpush1.msra.mxu0 0.0
    %4908 = vmatprep.subr.mxu0 0.0
    %4909 = vmatpush1.msra.mxu0 0.0
    %4910 = vmatprep.subr.mxu0 0.0
    %4911 = vmatpush1.msra.mxu0 0.0
    %4912 = vmatprep.subr.mxu0 0.0
    %4913 = vmatpush1.msra.mxu0 0.0
    %4914 = vmatprep.subr.mxu0 0.0
    %4915 = vmatpush1.msra.mxu0 0.0
    %4916 = vmatprep.subr.mxu0 0.0
    %4917 = vmatpush1.msra.mxu0 0.0
    %4918 = vmatprep.subr.mxu0 0.0
    %4919 = vmatpush1.msra.mxu0 0.0
    %4920 = vmatprep.subr.mxu0 0.0
    %4921 = vmatpush1.msra.mxu0 0.0
    %4922 = vmatprep.subr.mxu0 0.0
    %4923 = vmatpush1.msra.mxu0 0.0
    %4924 = vmatprep.subr.mxu0 0.0
    %4925 = vmatpush1.msra.mxu0 0.0
    %4926 = vmatprep.subr.mxu0 0.0
    %4927 = vmatpush1.msra.mxu0 0.0
    %4928 = vmatprep.subr.mxu0 0.0
    %4929 = vmatpush1.msra.mxu0 0.0
    %4930 = vmatprep.subr.mxu0 0.0
    %4931 = vmatpush1.msra.mxu0 0.0
    %4932 = vmatprep.subr.mxu0 0.0
    %4933 = vmatpush1.msra.mxu0 0.0
    %4934 = vmatprep.subr.mxu0 0.0
    %4935 = vmatpush1.msra.mxu0 0.0
    %4936 = vmatprep.subr.mxu0 0.0
    %4937 = vmatpush1.msra.mxu0 0.0
    %4938 = vmatprep.subr.mxu0 0.0
    %4939 = vmatpush1.msra.mxu0 0.0
    %4940 = vmatprep.subr.mxu0 0.0
    %4941 = vmatpush1.msra.mxu0 0.0
    %4942 = vmatprep.subr.mxu0 0.0
    %4943 = vmatpush1.msra.mxu0 0.0
    %4944 = vmatprep.subr.mxu0 0.0
    %4945 = vmatpush1.msra.mxu0 0.0
    %4946 = vmatprep.subr.mxu0 0.0
    %4947 = vmatpush1.msra.mxu0 0.0
    %4948 = vmatprep.subr.mxu0 0.0
    %4949 = vmatpush1.msra.mxu0 0.0
    %4950 = vmatprep.subr.mxu0 0.0
    %4951 = vmatpush1.msra.mxu0 0.0
    %4952 = vmatprep.subr.mxu0 0.0
    %4953 = vmatpush1.msra.mxu0 0.0
    %4954 = vmatprep.subr.mxu0 0.0
    %4955 = vmatpush1.msra.mxu0 0.0
    %4956 = vmatprep.subr.mxu0 0.0
    %4957 = vmatpush1.msra.mxu0 0.0
    %4958 = vmatprep.subr.mxu0 0.0
    %4959 = vmatpush1.msra.mxu0 0.0
    %4960 = vmatprep.subr.mxu0 0.0
    %4961 = vmatpush1.msra.mxu0 0.0
    %4962 = vmatprep.mubr.f32.mxu0 0.0
    %4963 = vmatmul.mubr.f32.gmra.mrb[0].mxu0 %v4896
    %v4964 = vpop.f32.mrb[0].mxu0
    %v4965 = vadd.f32 %v4890, %v4964
    %v4966 = vpop.f32.mrb[0].mxu0
    %4967 = vdwg.mxu0
    %v4968 = vadd.f32 %v4965, %v4491
    %v4969 = vxor.u32 %v4968, 2147483648
    %v4970 = vmul.f32 %v4969, 1.442695
    %v4971 = vpow.pop %v4970
    %v4972 = vadd.f32 %v4971, 1.0
    %v4973 = vrcp.pop %v4972
    %v4974 = vmul.f32 1.0, %v4973
    %v4975 = vtanh.pop %v4968
    %v4976 = vmul.f32 %v4974, %v4511
    %4978 = vrot.lane.b32.xlu0 %v4975, 64
    %v4979 = vpop.permute.xlu0 %4978
    %v4981 = vmul.f32 %v4974, %v4979
    %4983 = vrot.lane.b32.xlu0 %v4981, 32
    %v4984 = vpop.permute.xlu0 %4983
    %v4986 = vadd.f32 %v4976, %v4984
    %v4987 = vtanh.pop %v4986
    %4989 = vrot.lane.b32.xlu0 %v4987, 64
    %v4990 = vpop.permute.xlu0 %4989
    %v4992 = vmul.f32 %v4974, %v4990
    %v4993 = vmul.f32 %v4992, %v4524
    %4995 = vrot.lane.b32.xlu0 %v4993, 32
    %v4996 = vpop.permute.xlu0 %4995
    %v4998 = vsel %vm714, %v4996, 0.0
    %4999 = vadd.xlane.f32.xlu0 %v4998
    %v5000 = vpop.xlane.xlu0 %4999
    %v5001 = vadd.f32 %v5000, %v4538
    %vm5002 = vcmp.ge.f32.partialorder %v5001, 0.0
    %v5003 = vmul.f32 %v5001, 0.01
    %v5004 = vsel %vm5002, %v5001, %v5003
    %s5005 = scalar_lea.vmem %s59, 8
    %5006 = vst.msk [vmem:[%s5005] sm:$0xff] %vm4544, %v5004
    %5008 = vset.pattern.permute.xlu0 0
    %5009 = vperm.xlu0 %5008, %v5004
    %v5010 = vpop.permute.xlu0 %5009
    %v5012 = vmul.f32 %v5010, %v4056
    %5013 = vmatprep.subr.mxu0 0.0
    %5014 = vmatpush1.msra.mxu0 %v4028
    %5015 = vmatprep.subr.mxu0 0.0
    %5016 = vmatpush1.msra.mxu0 %v4029
    %5017 = vmatprep.subr.mxu0 0.0
    %5018 = vmatpush1.msra.mxu0 0.0
    %5019 = vmatprep.subr.mxu0 0.0
    %5020 = vmatpush1.msra.mxu0 0.0
    %5021 = vmatprep.subr.mxu0 0.0
    %5022 = vmatpush1.msra.mxu0 0.0
    %5023 = vmatprep.subr.mxu0 0.0
    %5024 = vmatpush1.msra.mxu0 0.0
    %5025 = vmatprep.subr.mxu0 0.0
    %5026 = vmatpush1.msra.mxu0 0.0
    %5027 = vmatprep.subr.mxu0 0.0
    %5028 = vmatpush1.msra.mxu0 0.0
    %5029 = vmatprep.subr.mxu0 0.0
    %5030 = vmatpush1.msra.mxu0 0.0
    %5031 = vmatprep.subr.mxu0 0.0
    %5032 = vmatpush1.msra.mxu0 0.0
    %5033 = vmatprep.subr.mxu0 0.0
    %5034 = vmatpush1.msra.mxu0 0.0
    %5035 = vmatprep.subr.mxu0 0.0
    %5036 = vmatpush1.msra.mxu0 0.0
    %5037 = vmatprep.subr.mxu0 0.0
    %5038 = vmatpush1.msra.mxu0 0.0
    %5039 = vmatprep.subr.mxu0 0.0
    %5040 = vmatpush1.msra.mxu0 0.0
    %5041 = vmatprep.subr.mxu0 0.0
    %5042 = vmatpush1.msra.mxu0 0.0
    %5043 = vmatprep.subr.mxu0 0.0
    %5044 = vmatpush1.msra.mxu0 0.0
    %5045 = vmatprep.subr.mxu0 0.0
    %5046 = vmatpush1.msra.mxu0 0.0
    %5047 = vmatprep.subr.mxu0 0.0
    %5048 = vmatpush1.msra.mxu0 0.0
    %5049 = vmatprep.subr.mxu0 0.0
    %5050 = vmatpush1.msra.mxu0 0.0
    %5051 = vmatprep.subr.mxu0 0.0
    %5052 = vmatpush1.msra.mxu0 0.0
    %5053 = vmatprep.subr.mxu0 0.0
    %5054 = vmatpush1.msra.mxu0 0.0
    %5055 = vmatprep.subr.mxu0 0.0
    %5056 = vmatpush1.msra.mxu0 0.0
    %5057 = vmatprep.subr.mxu0 0.0
    %5058 = vmatpush1.msra.mxu0 0.0
    %5059 = vmatprep.subr.mxu0 0.0
    %5060 = vmatpush1.msra.mxu0 0.0
    %5061 = vmatprep.subr.mxu0 0.0
    %5062 = vmatpush1.msra.mxu0 0.0
    %5063 = vmatprep.subr.mxu0 0.0
    %5064 = vmatpush1.msra.mxu0 0.0
    %5065 = vmatprep.subr.mxu0 0.0
    %5066 = vmatpush1.msra.mxu0 0.0
    %5067 = vmatprep.subr.mxu0 0.0
    %5068 = vmatpush1.msra.mxu0 0.0
    %5069 = vmatprep.subr.mxu0 0.0
    %5070 = vmatpush1.msra.mxu0 0.0
    %5071 = vmatprep.subr.mxu0 0.0
    %5072 = vmatpush1.msra.mxu0 0.0
    %5073 = vmatprep.subr.mxu0 0.0
    %5074 = vmatpush1.msra.mxu0 0.0
    %5075 = vmatprep.subr.mxu0 0.0
    %5076 = vmatpush1.msra.mxu0 0.0
    %5077 = vmatprep.mubr.f32.mxu0 0.0
    %5078 = vmatmul.mubr.f32.gmra.mrb[0].mxu0 %v4721
    %v5079 = vpop.f32.mrb[0].mxu0
    %v5080 = vadd.f32 0.0, %v5079
    %v5081 = vpop.f32.mrb[0].mxu0
    %5082 = vdwg.mxu0
    %v5083 = vadd.f32 %v5012, %v5080
    %v5084 = vadd.f32 %v5083, %v4134
    %v5085 = vxor.u32 %v5084, 2147483648
    %v5086 = vmul.f32 %v5085, 1.442695
    %v5087 = vpow.pop %v5086
    %v5088 = vadd.f32 %v5087, 1.0
    %v5089 = vrcp.pop %v5088
    %v5090 = vmul.f32 1.0, %v5089
    %v5091 = vtanh.pop %v5084
    %v5092 = vmul.f32 %v5090, %v4641
    %5094 = vrot.lane.b32.xlu0 %v5091, 96
    %v5095 = vpop.permute.xlu0 %5094
    %v5097 = vmul.f32 %v5090, %v5095
    %5099 = vrot.lane.b32.xlu0 %v5097, 16
    %v5100 = vpop.permute.xlu0 %5099
    %v5102 = vadd.f32 %v5092, %v5100
    %v5103 = vtanh.pop %v5102
    %5105 = vrot.lane.b32.xlu0 %v5103, 32
    %v5106 = vpop.permute.xlu0 %5105
    %v5108 = vmul.f32 %v5090, %v5106
    %5109 = vmatprep.subr.mxu0 0.0
    %5110 = vmatpush1.msra.mxu0 %v4033
    %5111 = vmatprep.subr.mxu0 0.0
    %5112 = vmatpush1.msra.mxu0 %v4034
    %5113 = vmatprep.subr.mxu0 0.0
    %5114 = vmatpush1.msra.mxu0 %v4035
    %5115 = vmatprep.subr.mxu0 0.0
    %5116 = vmatpush1.msra.mxu0 0.0
    %5117 = vmatprep.subr.mxu0 0.0
    %5118 = vmatpush1.msra.mxu0 0.0
    %5119 = vmatprep.subr.mxu0 0.0
    %5120 = vmatpush1.msra.mxu0 0.0
    %5121 = vmatprep.subr.mxu0 0.0
    %5122 = vmatpush1.msra.mxu0 0.0
    %5123 = vmatprep.subr.mxu0 0.0
    %5124 = vmatpush1.msra.mxu0 0.0
    %5125 = vmatprep.subr.mxu0 0.0
    %5126 = vmatpush1.msra.mxu0 0.0
    %5127 = vmatprep.subr.mxu0 0.0
    %5128 = vmatpush1.msra.mxu0 0.0
    %5129 = vmatprep.subr.mxu0 0.0
    %5130 = vmatpush1.msra.mxu0 0.0
    %5131 = vmatprep.subr.mxu0 0.0
    %5132 = vmatpush1.msra.mxu0 0.0
    %5133 = vmatprep.subr.mxu0 0.0
    %5134 = vmatpush1.msra.mxu0 0.0
    %5135 = vmatprep.subr.mxu0 0.0
    %5136 = vmatpush1.msra.mxu0 0.0
    %5137 = vmatprep.subr.mxu0 0.0
    %5138 = vmatpush1.msra.mxu0 0.0
    %5139 = vmatprep.subr.mxu0 0.0
    %5140 = vmatpush1.msra.mxu0 0.0
    %5141 = vmatprep.subr.mxu0 0.0
    %5142 = vmatpush1.msra.mxu0 0.0
    %5143 = vmatprep.subr.mxu0 0.0
    %5144 = vmatpush1.msra.mxu0 0.0
    %5145 = vmatprep.subr.mxu0 0.0
    %5146 = vmatpush1.msra.mxu0 0.0
    %5147 = vmatprep.subr.mxu0 0.0
    %5148 = vmatpush1.msra.mxu0 0.0
    %5149 = vmatprep.subr.mxu0 0.0
    %5150 = vmatpush1.msra.mxu0 0.0
    %5151 = vmatprep.subr.mxu0 0.0
    %5152 = vmatpush1.msra.mxu0 0.0
    %5153 = vmatprep.subr.mxu0 0.0
    %5154 = vmatpush1.msra.mxu0 0.0
    %5155 = vmatprep.subr.mxu0 0.0
    %5156 = vmatpush1.msra.mxu0 0.0
    %5157 = vmatprep.subr.mxu0 0.0
    %5158 = vmatpush1.msra.mxu0 0.0
    %5159 = vmatprep.subr.mxu0 0.0
    %5160 = vmatpush1.msra.mxu0 0.0
    %5161 = vmatprep.subr.mxu0 0.0
    %5162 = vmatpush1.msra.mxu0 0.0
    %5163 = vmatprep.subr.mxu0 0.0
    %5164 = vmatpush1.msra.mxu0 0.0
    %5165 = vmatprep.subr.mxu0 0.0
    %5166 = vmatpush1.msra.mxu0 0.0
    %5167 = vmatprep.subr.mxu0 0.0
    %5168 = vmatpush1.msra.mxu0 0.0
    %5169 = vmatprep.subr.mxu0 0.0
    %5170 = vmatpush1.msra.mxu0 0.0
    %5171 = vmatprep.subr.mxu0 0.0
    %5172 = vmatpush1.msra.mxu0 0.0
    %5173 = vmatprep.mubr.f32.mxu0 0.0
    %5174 = vmatmul.mubr.f32.gmra.mrb[0].mxu0 %v4896
    %v5175 = vpop.f32.mrb[0].mxu0
    %v5176 = vadd.f32 0.0, %v5175
    %v5177 = vpop.f32.mrb[0].mxu0
    %5178 = vdwg.mxu0
    %5180 = vrot.lane.b32.xlu0 %v5108, 80
    %v5181 = vpop.permute.xlu0 %5180
    %v5182 = vsel %vm258, %v5181, 0
    %5184 = vmatprep.subr.mxu0 0.0
    %5185 = vmatpush1.msra.mxu0 %v4031
    %5186 = vmatprep.subr.mxu0 0.0
    %5187 = vmatpush1.msra.mxu0 %v4032
    %5188 = vmatprep.subr.mxu0 0.0
    %5189 = vmatpush1.msra.mxu0 0.0
    %5190 = vmatprep.subr.mxu0 0.0
    %5191 = vmatpush1.msra.mxu0 0.0
    %5192 = vmatprep.subr.mxu0 0.0
    %5193 = vmatpush1.msra.mxu0 0.0
    %5194 = vmatprep.subr.mxu0 0.0
    %5195 = vmatpush1.msra.mxu0 0.0
    %5196 = vmatprep.subr.mxu0 0.0
    %5197 = vmatpush1.msra.mxu0 0.0
    %5198 = vmatprep.subr.mxu0 0.0
    %5199 = vmatpush1.msra.mxu0 0.0
    %5200 = vmatprep.subr.mxu0 0.0
    %5201 = vmatpush1.msra.mxu0 0.0
    %5202 = vmatprep.subr.mxu0 0.0
    %5203 = vmatpush1.msra.mxu0 0.0
    %5204 = vmatprep.subr.mxu0 0.0
    %5205 = vmatpush1.msra.mxu0 0.0
    %5206 = vmatprep.subr.mxu0 0.0
    %5207 = vmatpush1.msra.mxu0 0.0
    %5208 = vmatprep.subr.mxu0 0.0
    %5209 = vmatpush1.msra.mxu0 0.0
    %5210 = vmatprep.subr.mxu0 0.0
    %5211 = vmatpush1.msra.mxu0 0.0
    %5212 = vmatprep.subr.mxu0 0.0
    %5213 = vmatpush1.msra.mxu0 0.0
    %5214 = vmatprep.subr.mxu0 0.0
    %5215 = vmatpush1.msra.mxu0 0.0
    %5216 = vmatprep.subr.mxu0 0.0
    %5217 = vmatpush1.msra.mxu0 0.0
    %5218 = vmatprep.subr.mxu0 0.0
    %5219 = vmatpush1.msra.mxu0 0.0
    %5220 = vmatprep.subr.mxu0 0.0
    %5221 = vmatpush1.msra.mxu0 0.0
    %5222 = vmatprep.subr.mxu0 0.0
    %5223 = vmatpush1.msra.mxu0 0.0
    %5224 = vmatprep.subr.mxu0 0.0
    %5225 = vmatpush1.msra.mxu0 0.0
    %5226 = vmatprep.subr.mxu0 0.0
    %5227 = vmatpush1.msra.mxu0 0.0
    %5228 = vmatprep.subr.mxu0 0.0
    %5229 = vmatpush1.msra.mxu0 0.0
    %5230 = vmatprep.subr.mxu0 0.0
    %5231 = vmatpush1.msra.mxu0 0.0
    %5232 = vmatprep.subr.mxu0 0.0
    %5233 = vmatpush1.msra.mxu0 0.0
    %5234 = vmatprep.subr.mxu0 0.0
    %5235 = vmatpush1.msra.mxu0 0.0
    %5236 = vmatprep.subr.mxu0 0.0
    %5237 = vmatpush1.msra.mxu0 0.0
    %5238 = vmatprep.subr.mxu0 0.0
    %5239 = vmatpush1.msra.mxu0 0.0
    %5240 = vmatprep.subr.mxu0 0.0
    %5241 = vmatpush1.msra.mxu0 0.0
    %5242 = vmatprep.subr.mxu0 0.0
    %5243 = vmatpush1.msra.mxu0 0.0
    %5244 = vmatprep.subr.mxu0 0.0
    %5245 = vmatpush1.msra.mxu0 0.0
    %5246 = vmatprep.subr.mxu0 0.0
    %5247 = vmatpush1.msra.mxu0 0.0
    %5248 = vmatprep.mubr.f32.mxu0 0.0
    %5249 = vmatmul.mubr.f32.gmra.mrb[0].mxu0 %v5182
    %v5250 = vpop.f32.mrb[0].mxu0
    %v5251 = vadd.f32 %v5176, %v5250
    %v5252 = vpop.f32.mrb[0].mxu0
    %5253 = vdwg.mxu0
    %v5254 = vadd.f32 %v5251, %v4310
    %v5255 = vxor.u32 %v5254, 2147483648
    %v5256 = vmul.f32 %v5255, 1.442695
    %v5257 = vpow.pop %v5256
    %v5258 = vadd.f32 %v5257, 1.0
    %v5259 = vrcp.pop %v5258
    %v5260 = vmul.f32 1.0, %v5259
    %v5261 = vtanh.pop %v5254
    %v5262 = vmul.f32 %v5260, %v4811
    %5264 = vrot.lane.b32.xlu0 %v5261, 80
    %v5265 = vpop.permute.xlu0 %5264
    %v5267 = vmul.f32 %v5260, %v5265
    %5269 = vrot.lane.b32.xlu0 %v5267, 24
    %v5270 = vpop.permute.xlu0 %5269
    %v5272 = vadd.f32 %v5262, %v5270
    %v5273 = vtanh.pop %v5272
    %5275 = vrot.lane.b32.xlu0 %v5273, 48
    %v5276 = vpop.permute.xlu0 %5275
    %v5278 = vmul.f32 %v5260, %v5276
    %5280 = vrot.lane.b32.xlu0 %v4992, 32
    %v5281 = vpop.permute.xlu0 %5280
    %v5282 = vsel %vm714, %v5281, 0
    %5284 = vmatprep.subr.mxu0 0.0
    %5285 = vmatpush1.msra.mxu0 %v4040
    %5286 = vmatprep.subr.mxu0 0.0
    %5287 = vmatpush1.msra.mxu0 %v4041
    %5288 = vmatprep.subr.mxu0 0.0
    %5289 = vmatpush1.msra.mxu0 %v4042
    %5290 = vmatprep.subr.mxu0 0.0
    %5291 = vmatpush1.msra.mxu0 %v4043
    %5292 = vmatprep.subr.mxu0 0.0
    %5293 = vmatpush1.msra.mxu0 0.0
    %5294 = vmatprep.subr.mxu0 0.0
    %5295 = vmatpush1.msra.mxu0 0.0
    %5296 = vmatprep.subr.mxu0 0.0
    %5297 = vmatpush1.msra.mxu0 0.0
    %5298 = vmatprep.subr.mxu0 0.0
    %5299 = vmatpush1.msra.mxu0 0.0
    %5300 = vmatprep.subr.mxu0 0.0
    %5301 = vmatpush1.msra.mxu0 0.0
    %5302 = vmatprep.subr.mxu0 0.0
    %5303 = vmatpush1.msra.mxu0 0.0
    %5304 = vmatprep.subr.mxu0 0.0
    %5305 = vmatpush1.msra.mxu0 0.0
    %5306 = vmatprep.subr.mxu0 0.0
    %5307 = vmatpush1.msra.mxu0 0.0
    %5308 = vmatprep.subr.mxu0 0.0
    %5309 = vmatpush1.msra.mxu0 0.0
    %5310 = vmatprep.subr.mxu0 0.0
    %5311 = vmatpush1.msra.mxu0 0.0
    %5312 = vmatprep.subr.mxu0 0.0
    %5313 = vmatpush1.msra.mxu0 0.0
    %5314 = vmatprep.subr.mxu0 0.0
    %5315 = vmatpush1.msra.mxu0 0.0
    %5316 = vmatprep.subr.mxu0 0.0
    %5317 = vmatpush1.msra.mxu0 0.0
    %5318 = vmatprep.subr.mxu0 0.0
    %5319 = vmatpush1.msra.mxu0 0.0
    %5320 = vmatprep.subr.mxu0 0.0
    %5321 = vmatpush1.msra.mxu0 0.0
    %5322 = vmatprep.subr.mxu0 0.0
    %5323 = vmatpush1.msra.mxu0 0.0
    %5324 = vmatprep.subr.mxu0 0.0
    %5325 = vmatpush1.msra.mxu0 0.0
    %5326 = vmatprep.subr.mxu0 0.0
    %5327 = vmatpush1.msra.mxu0 0.0
    %5328 = vmatprep.subr.mxu0 0.0
    %5329 = vmatpush1.msra.mxu0 0.0
    %5330 = vmatprep.subr.mxu0 0.0
    %5331 = vmatpush1.msra.mxu0 0.0
    %5332 = vmatprep.subr.mxu0 0.0
    %5333 = vmatpush1.msra.mxu0 0.0
    %5334 = vmatprep.subr.mxu0 0.0
    %5335 = vmatpush1.msra.mxu0 0.0
    %5336 = vmatprep.subr.mxu0 0.0
    %5337 = vmatpush1.msra.mxu0 0.0
    %5338 = vmatprep.subr.mxu0 0.0
    %5339 = vmatpush1.msra.mxu0 0.0
    %5340 = vmatprep.subr.mxu0 0.0
    %5341 = vmatpush1.msra.mxu0 0.0
    %5342 = vmatprep.subr.mxu0 0.0
    %5343 = vmatpush1.msra.mxu0 0.0
    %5344 = vmatprep.subr.mxu0 0.0
    %5345 = vmatpush1.msra.mxu0 0.0
    %5346 = vmatprep.subr.mxu0 0.0
    %5347 = vmatpush1.msra.mxu0 0.0
    %5348 = vmatprep.mubr.f32.mxu0 0.0
    %5349 = vmatmul.mubr.f32.gmra.mrb[0].mxu0 %v5282
    %v5350 = vpop.f32.mrb[0].mxu0
    %v5351 = vadd.f32 0.0, %v5350
    %v5352 = vpop.f32.mrb[0].mxu0
    %5353 = vdwg.mxu0
    %5355 = vrot.lane.b32.xlu0 %v5278, 56
    %v5356 = vpop.permute.xlu0 %5355
    %v5357 = vsel %vm530, %v5356, 0
    %5359 = vmatprep.subr.mxu0 0.0
    %5360 = vmatpush1.msra.mxu0 %v4037
    %5361 = vmatprep.subr.mxu0 0.0
    %5362 = vmatpush1.msra.mxu0 %v4038
    %5363 = vmatprep.subr.mxu0 0.0
    %5364 = vmatpush1.msra.mxu0 %v4039
    %5365 = vmatprep.subr.mxu0 0.0
    %5366 = vmatpush1.msra.mxu0 0.0
    %5367 = vmatprep.subr.mxu0 0.0
    %5368 = vmatpush1.msra.mxu0 0.0
    %5369 = vmatprep.subr.mxu0 0.0
    %5370 = vmatpush1.msra.mxu0 0.0
    %5371 = vmatprep.subr.mxu0 0.0
    %5372 = vmatpush1.msra.mxu0 0.0
    %5373 = vmatprep.subr.mxu0 0.0
    %5374 = vmatpush1.msra.mxu0 0.0
    %5375 = vmatprep.subr.mxu0 0.0
    %5376 = vmatpush1.msra.mxu0 0.0
    %5377 = vmatprep.subr.mxu0 0.0
    %5378 = vmatpush1.msra.mxu0 0.0
    %5379 = vmatprep.subr.mxu0 0.0
    %5380 = vmatpush1.msra.mxu0 0.0
    %5381 = vmatprep.subr.mxu0 0.0
    %5382 = vmatpush1.msra.mxu0 0.0
    %5383 = vmatprep.subr.mxu0 0.0
    %5384 = vmatpush1.msra.mxu0 0.0
    %5385 = vmatprep.subr.mxu0 0.0
    %5386 = vmatpush1.msra.mxu0 0.0
    %5387 = vmatprep.subr.mxu0 0.0
    %5388 = vmatpush1.msra.mxu0 0.0
    %5389 = vmatprep.subr.mxu0 0.0
    %5390 = vmatpush1.msra.mxu0 0.0
    %5391 = vmatprep.subr.mxu0 0.0
    %5392 = vmatpush1.msra.mxu0 0.0
    %5393 = vmatprep.subr.mxu0 0.0
    %5394 = vmatpush1.msra.mxu0 0.0
    %5395 = vmatprep.subr.mxu0 0.0
    %5396 = vmatpush1.msra.mxu0 0.0
    %5397 = vmatprep.subr.mxu0 0.0
    %5398 = vmatpush1.msra.mxu0 0.0
    %5399 = vmatprep.subr.mxu0 0.0
    %5400 = vmatpush1.msra.mxu0 0.0
    %5401 = vmatprep.subr.mxu0 0.0
    %5402 = vmatpush1.msra.mxu0 0.0
    %5403 = vmatprep.subr.mxu0 0.0
    %5404 = vmatpush1.msra.mxu0 0.0
    %5405 = vmatprep.subr.mxu0 0.0
    %5406 = vmatpush1.msra.mxu0 0.0
    %5407 = vmatprep.subr.mxu0 0.0
    %5408 = vmatpush1.msra.mxu0 0.0
    %5409 = vmatprep.subr.mxu0 0.0
    %5410 = vmatpush1.msra.mxu0 0.0
    %5411 = vmatprep.subr.mxu0 0.0
    %5412 = vmatpush1.msra.mxu0 0.0
    %5413 = vmatprep.subr.mxu0 0.0
    %5414 = vmatpush1.msra.mxu0 0.0
    %5415 = vmatprep.subr.mxu0 0.0
    %5416 = vmatpush1.msra.mxu0 0.0
    %5417 = vmatprep.subr.mxu0 0.0
    %5418 = vmatpush1.msra.mxu0 0.0
    %5419 = vmatprep.subr.mxu0 0.0
    %5420 = vmatpush1.msra.mxu0 0.0
    %5421 = vmatprep.subr.mxu0 0.0
    %5422 = vmatpush1.msra.mxu0 0.0
    %5423 = vmatprep.mubr.f32.mxu0 0.0
    %5424 = vmatmul.mubr.f32.gmra.mrb[0].mxu0 %v5357
    %v5425 = vpop.f32.mrb[0].mxu0
    %v5426 = vadd.f32 %v5351, %v5425
    %v5427 = vpop.f32.mrb[0].mxu0
    %5428 = vdwg.mxu0
    %v5429 = vadd.f32 %v5426, %v4491
    %v5430 = vxor.u32 %v5429, 2147483648
    %v5431 = vmul.f32 %v5430, 1.442695
    %v5432 = vpow.pop %v5431
    %v5433 = vadd.f32 %v5432, 1.0
    %v5434 = vrcp.pop %v5433
    %v5435 = vmul.f32 1.0, %v5434
    %v5436 = vtanh.pop %v5429
    %v5437 = vmul.f32 %v5435, %v4986
    %5439 = vrot.lane.b32.xlu0 %v5436, 64
    %v5440 = vpop.permute.xlu0 %5439
    %v5442 = vmul.f32 %v5435, %v5440
    %5444 = vrot.lane.b32.xlu0 %v5442, 32
    %v5445 = vpop.permute.xlu0 %5444
    %v5447 = vadd.f32 %v5437, %v5445
    %v5448 = vtanh.pop %v5447
    %5450 = vrot.lane.b32.xlu0 %v5448, 64
    %v5451 = vpop.permute.xlu0 %5450
    %v5453 = vmul.f32 %v5435, %v5451
    %v5454 = vmul.f32 %v5453, %v4524
    %5456 = vrot.lane.b32.xlu0 %v5454, 32
    %v5457 = vpop.permute.xlu0 %5456
    %v5459 = vsel %vm714, %v5457, 0.0
    %5460 = vadd.xlane.f32.xlu0 %v5459
    %v5461 = vpop.xlane.xlu0 %5460
    %v5462 = vadd.f32 %v5461, %v4538
    %vm5463 = vcmp.ge.f32.partialorder %v5462, 0.0
    %v5464 = vmul.f32 %v5462, 0.01
    %v5465 = vsel %vm5463, %v5462, %v5464
    %s5466 = scalar_lea.vmem %s59, 16
    %5467 = vst.msk [vmem:[%s5466] sm:$0xff] %vm4544, %v5465
    %5469 = vset.pattern.permute.xlu0 0
    %5470 = vperm.xlu0 %5469, %v5465
    %v5471 = vpop.permute.xlu0 %5470
    %v5473 = vmul.f32 %v5471, %v4056
    %5474 = vmatprep.subr.mxu0 0.0
    %5475 = vmatpush1.msra.mxu0 %v4028
    %5476 = vmatprep.subr.mxu0 0.0
    %5477 = vmatpush1.msra.mxu0 %v4029
    %5478 = vmatprep.subr.mxu0 0.0
    %5479 = vmatpush1.msra.mxu0 0.0
    %5480 = vmatprep.subr.mxu0 0.0
    %5481 = vmatpush1.msra.mxu0 0.0
    %5482 = vmatprep.subr.mxu0 0.0
    %5483 = vmatpush1.msra.mxu0 0.0
    %5484 = vmatprep.subr.mxu0 0.0
    %5485 = vmatpush1.msra.mxu0 0.0
    %5486 = vmatprep.subr.mxu0 0.0
    %5487 = vmatpush1.msra.mxu0 0.0
    %5488 = vmatprep.subr.mxu0 0.0
    %5489 = vmatpush1.msra.mxu0 0.0
    %5490 = vmatprep.subr.mxu0 0.0
    %5491 = vmatpush1.msra.mxu0 0.0
    %5492 = vmatprep.subr.mxu0 0.0
    %5493 = vmatpush1.msra.mxu0 0.0
    %5494 = vmatprep.subr.mxu0 0.0
    %5495 = vmatpush1.msra.mxu0 0.0
    %5496 = vmatprep.subr.mxu0 0.0
    %5497 = vmatpush1.msra.mxu0 0.0
    %5498 = vmatprep.subr.mxu0 0.0
    %5499 = vmatpush1.msra.mxu0 0.0
    %5500 = vmatprep.subr.mxu0 0.0
    %5501 = vmatpush1.msra.mxu0 0.0
    %5502 = vmatprep.subr.mxu0 0.0
    %5503 = vmatpush1.msra.mxu0 0.0
    %5504 = vmatprep.subr.mxu0 0.0
    %5505 = vmatpush1.msra.mxu0 0.0
    %5506 = vmatprep.subr.mxu0 0.0
    %5507 = vmatpush1.msra.mxu0 0.0
    %5508 = vmatprep.subr.mxu0 0.0
    %5509 = vmatpush1.msra.mxu0 0.0
    %5510 = vmatprep.subr.mxu0 0.0
    %5511 = vmatpush1.msra.mxu0 0.0
    %5512 = vmatprep.subr.mxu0 0.0
    %5513 = vmatpush1.msra.mxu0 0.0
    %5514 = vmatprep.subr.mxu0 0.0
    %5515 = vmatpush1.msra.mxu0 0.0
    %5516 = vmatprep.subr.mxu0 0.0
    %5517 = vmatpush1.msra.mxu0 0.0
    %5518 = vmatprep.subr.mxu0 0.0
    %5519 = vmatpush1.msra.mxu0 0.0
    %5520 = vmatprep.subr.mxu0 0.0
    %5521 = vmatpush1.msra.mxu0 0.0
    %5522 = vmatprep.subr.mxu0 0.0
    %5523 = vmatpush1.msra.mxu0 0.0
    %5524 = vmatprep.subr.mxu0 0.0
    %5525 = vmatpush1.msra.mxu0 0.0
    %5526 = vmatprep.subr.mxu0 0.0
    %5527 = vmatpush1.msra.mxu0 0.0
    %5528 = vmatprep.subr.mxu0 0.0
    %5529 = vmatpush1.msra.mxu0 0.0
    %5530 = vmatprep.subr.mxu0 0.0
    %5531 = vmatpush1.msra.mxu0 0.0
    %5532 = vmatprep.subr.mxu0 0.0
    %5533 = vmatpush1.msra.mxu0 0.0
    %5534 = vmatprep.subr.mxu0 0.0
    %5535 = vmatpush1.msra.mxu0 0.0
    %5536 = vmatprep.subr.mxu0 0.0
    %5537 = vmatpush1.msra.mxu0 0.0
    %5538 = vmatprep.mubr.f32.mxu0 0.0
    %5539 = vmatmul.mubr.f32.gmra.mrb[0].mxu0 %v5182
    %v5540 = vpop.f32.mrb[0].mxu0
    %v5541 = vadd.f32 0.0, %v5540
    %v5542 = vpop.f32.mrb[0].mxu0
    %5543 = vdwg.mxu0
    %v5544 = vadd.f32 %v5473, %v5541
    %v5545 = vadd.f32 %v5544, %v4134
    %v5546 = vxor.u32 %v5545, 2147483648
    %v5547 = vmul.f32 %v5546, 1.442695
    %v5548 = vpow.pop %v5547
    %v5549 = vadd.f32 %v5548, 1.0
    %v5550 = vrcp.pop %v5549
    %v5551 = vmul.f32 1.0, %v5550
    %v5552 = vtanh.pop %v5545
    %v5553 = vmul.f32 %v5551, %v5102
    %5555 = vrot.lane.b32.xlu0 %v5552, 96
    %v5556 = vpop.permute.xlu0 %5555
    %v5558 = vmul.f32 %v5551, %v5556
    %5560 = vrot.lane.b32.xlu0 %v5558, 16
    %v5561 = vpop.permute.xlu0 %5560
    %v5563 = vadd.f32 %v5553, %v5561
    %v5564 = vtanh.pop %v5563
    %5566 = vrot.lane.b32.xlu0 %v5564, 32
    %v5567 = vpop.permute.xlu0 %5566
    %v5569 = vmul.f32 %v5551, %v5567
    %5570 = vmatprep.subr.mxu0 0.0
    %5571 = vmatpush1.msra.mxu0 %v4033
    %5572 = vmatprep.subr.mxu0 0.0
    %5573 = vmatpush1.msra.mxu0 %v4034
    %5574 = vmatprep.subr.mxu0 0.0
    %5575 = vmatpush1.msra.mxu0 %v4035
    %5576 = vmatprep.subr.mxu0 0.0
    %5577 = vmatpush1.msra.mxu0 0.0
    %5578 = vmatprep.subr.mxu0 0.0
    %5579 = vmatpush1.msra.mxu0 0.0
    %5580 = vmatprep.subr.mxu0 0.0
    %5581 = vmatpush1.msra.mxu0 0.0
    %5582 = vmatprep.subr.mxu0 0.0
    %5583 = vmatpush1.msra.mxu0 0.0
    %5584 = vmatprep.subr.mxu0 0.0
    %5585 = vmatpush1.msra.mxu0 0.0
    %5586 = vmatprep.subr.mxu0 0.0
    %5587 = vmatpush1.msra.mxu0 0.0
    %5588 = vmatprep.subr.mxu0 0.0
    %5589 = vmatpush1.msra.mxu0 0.0
    %5590 = vmatprep.subr.mxu0 0.0
    %5591 = vmatpush1.msra.mxu0 0.0
    %5592 = vmatprep.subr.mxu0 0.0
    %5593 = vmatpush1.msra.mxu0 0.0
    %5594 = vmatprep.subr.mxu0 0.0
    %5595 = vmatpush1.msra.mxu0 0.0
    %5596 = vmatprep.subr.mxu0 0.0
    %5597 = vmatpush1.msra.mxu0 0.0
    %5598 = vmatprep.subr.mxu0 0.0
    %5599 = vmatpush1.msra.mxu0 0.0
    %5600 = vmatprep.subr.mxu0 0.0
    %5601 = vmatpush1.msra.mxu0 0.0
    %5602 = vmatprep.subr.mxu0 0.0
    %5603 = vmatpush1.msra.mxu0 0.0
    %5604 = vmatprep.subr.mxu0 0.0
    %5605 = vmatpush1.msra.mxu0 0.0
    %5606 = vmatprep.subr.mxu0 0.0
    %5607 = vmatpush1.msra.mxu0 0.0
    %5608 = vmatprep.subr.mxu0 0.0
    %5609 = vmatpush1.msra.mxu0 0.0
    %5610 = vmatprep.subr.mxu0 0.0
    %5611 = vmatpush1.msra.mxu0 0.0
    %5612 = vmatprep.subr.mxu0 0.0
    %5613 = vmatpush1.msra.mxu0 0.0
    %5614 = vmatprep.subr.mxu0 0.0
    %5615 = vmatpush1.msra.mxu0 0.0
    %5616 = vmatprep.subr.mxu0 0.0
    %5617 = vmatpush1.msra.mxu0 0.0
    %5618 = vmatprep.subr.mxu0 0.0
    %5619 = vmatpush1.msra.mxu0 0.0
    %5620 = vmatprep.subr.mxu0 0.0
    %5621 = vmatpush1.msra.mxu0 0.0
    %5622 = vmatprep.subr.mxu0 0.0
    %5623 = vmatpush1.msra.mxu0 0.0
    %5624 = vmatprep.subr.mxu0 0.0
    %5625 = vmatpush1.msra.mxu0 0.0
    %5626 = vmatprep.subr.mxu0 0.0
    %5627 = vmatpush1.msra.mxu0 0.0
    %5628 = vmatprep.subr.mxu0 0.0
    %5629 = vmatpush1.msra.mxu0 0.0
    %5630 = vmatprep.subr.mxu0 0.0
    %5631 = vmatpush1.msra.mxu0 0.0
    %5632 = vmatprep.subr.mxu0 0.0
    %5633 = vmatpush1.msra.mxu0 0.0
    %5634 = vmatprep.mubr.f32.mxu0 0.0
    %5635 = vmatmul.mubr.f32.gmra.mrb[0].mxu0 %v5357
    %v5636 = vpop.f32.mrb[0].mxu0
    %v5637 = vadd.f32 0.0, %v5636
    %v5638 = vpop.f32.mrb[0].mxu0
    %5639 = vdwg.mxu0
    %5641 = vrot.lane.b32.xlu0 %v5569, 80
    %v5642 = vpop.permute.xlu0 %5641
    %v5643 = vsel %vm258, %v5642, 0
    %5645 = vmatprep.subr.mxu0 0.0
    %5646 = vmatpush1.msra.mxu0 %v4031
    %5647 = vmatprep.subr.mxu0 0.0
    %5648 = vmatpush1.msra.mxu0 %v4032
    %5649 = vmatprep.subr.mxu0 0.0
    %5650 = vmatpush1.msra.mxu0 0.0
    %5651 = vmatprep.subr.mxu0 0.0
    %5652 = vmatpush1.msra.mxu0 0.0
    %5653 = vmatprep.subr.mxu0 0.0
    %5654 = vmatpush1.msra.mxu0 0.0
    %5655 = vmatprep.subr.mxu0 0.0
    %5656 = vmatpush1.msra.mxu0 0.0
    %5657 = vmatprep.subr.mxu0 0.0
    %5658 = vmatpush1.msra.mxu0 0.0
    %5659 = vmatprep.subr.mxu0 0.0
    %5660 = vmatpush1.msra.mxu0 0.0
    %5661 = vmatprep.subr.mxu0 0.0
    %5662 = vmatpush1.msra.mxu0 0.0
    %5663 = vmatprep.subr.mxu0 0.0
    %5664 = vmatpush1.msra.mxu0 0.0
    %5665 = vmatprep.subr.mxu0 0.0
    %5666 = vmatpush1.msra.mxu0 0.0
    %5667 = vmatprep.subr.mxu0 0.0
    %5668 = vmatpush1.msra.mxu0 0.0
    %5669 = vmatprep.subr.mxu0 0.0
    %5670 = vmatpush1.msra.mxu0 0.0
    %5671 = vmatprep.subr.mxu0 0.0
    %5672 = vmatpush1.msra.mxu0 0.0
    %5673 = vmatprep.subr.mxu0 0.0
    %5674 = vmatpush1.msra.mxu0 0.0
    %5675 = vmatprep.subr.mxu0 0.0
    %5676 = vmatpush1.msra.mxu0 0.0
    %5677 = vmatprep.subr.mxu0 0.0
    %5678 = vmatpush1.msra.mxu0 0.0
    %5679 = vmatprep.subr.mxu0 0.0
    %5680 = vmatpush1.msra.mxu0 0.0
    %5681 = vmatprep.subr.mxu0 0.0
    %5682 = vmatpush1.msra.mxu0 0.0
    %5683 = vmatprep.subr.mxu0 0.0
    %5684 = vmatpush1.msra.mxu0 0.0
    %5685 = vmatprep.subr.mxu0 0.0
    %5686 = vmatpush1.msra.mxu0 0.0
    %5687 = vmatprep.subr.mxu0 0.0
    %5688 = vmatpush1.msra.mxu0 0.0
    %5689 = vmatprep.subr.mxu0 0.0
    %5690 = vmatpush1.msra.mxu0 0.0
    %5691 = vmatprep.subr.mxu0 0.0
    %5692 = vmatpush1.msra.mxu0 0.0
    %5693 = vmatprep.subr.mxu0 0.0
    %5694 = vmatpush1.msra.mxu0 0.0
    %5695 = vmatprep.subr.mxu0 0.0
    %5696 = vmatpush1.msra.mxu0 0.0
    %5697 = vmatprep.subr.mxu0 0.0
    %5698 = vmatpush1.msra.mxu0 0.0
    %5699 = vmatprep.subr.mxu0 0.0
    %5700 = vmatpush1.msra.mxu0 0.0
    %5701 = vmatprep.subr.mxu0 0.0
    %5702 = vmatpush1.msra.mxu0 0.0
    %5703 = vmatprep.subr.mxu0 0.0
    %5704 = vmatpush1.msra.mxu0 0.0
    %5705 = vmatprep.subr.mxu0 0.0
    %5706 = vmatpush1.msra.mxu0 0.0
    %5707 = vmatprep.subr.mxu0 0.0
    %5708 = vmatpush1.msra.mxu0 0.0
    %5709 = vmatprep.mubr.f32.mxu0 0.0
    %5710 = vmatmul.mubr.f32.gmra.mrb[0].mxu0 %v5643
    %v5711 = vpop.f32.mrb[0].mxu0
    %v5712 = vadd.f32 %v5637, %v5711
    %v5713 = vpop.f32.mrb[0].mxu0
    %5714 = vdwg.mxu0
    %v5715 = vadd.f32 %v5712, %v4310
    %v5716 = vxor.u32 %v5715, 2147483648
    %v5717 = vmul.f32 %v5716, 1.442695
    %v5718 = vpow.pop %v5717
    %v5719 = vadd.f32 %v5718, 1.0
    %v5720 = vrcp.pop %v5719
    %v5721 = vmul.f32 1.0, %v5720
    %v5722 = vtanh.pop %v5715
    %v5723 = vmul.f32 %v5721, %v5272
    %5725 = vrot.lane.b32.xlu0 %v5722, 80
    %v5726 = vpop.permute.xlu0 %5725
    %v5728 = vmul.f32 %v5721, %v5726
    %5730 = vrot.lane.b32.xlu0 %v5728, 24
    %v5731 = vpop.permute.xlu0 %5730
    %v5733 = vadd.f32 %v5723, %v5731
    %v5734 = vtanh.pop %v5733
    %5736 = vrot.lane.b32.xlu0 %v5734, 48
    %v5737 = vpop.permute.xlu0 %5736
    %v5739 = vmul.f32 %v5721, %v5737
    %5741 = vrot.lane.b32.xlu0 %v5453, 32
    %v5742 = vpop.permute.xlu0 %5741
    %v5743 = vsel %vm714, %v5742, 0
    %5745 = vmatprep.subr.mxu0 0.0
    %5746 = vmatpush1.msra.mxu0 %v4040
    %5747 = vmatprep.subr.mxu0 0.0
    %5748 = vmatpush1.msra.mxu0 %v4041
    %5749 = vmatprep.subr.mxu0 0.0
    %5750 = vmatpush1.msra.mxu0 %v4042
    %5751 = vmatprep.subr.mxu0 0.0
    %5752 = vmatpush1.msra.mxu0 %v4043
    %5753 = vmatprep.subr.mxu0 0.0
    %5754 = vmatpush1.msra.mxu0 0.0
    %5755 = vmatprep.subr.mxu0 0.0
    %5756 = vmatpush1.msra.mxu0 0.0
    %5757 = vmatprep.subr.mxu0 0.0
    %5758 = vmatpush1.msra.mxu0 0.0
    %5759 = vmatprep.subr.mxu0 0.0
    %5760 = vmatpush1.msra.mxu0 0.0
    %5761 = vmatprep.subr.mxu0 0.0
    %5762 = vmatpush1.msra.mxu0 0.0
    %5763 = vmatprep.subr.mxu0 0.0
    %5764 = vmatpush1.msra.mxu0 0.0
    %5765 = vmatprep.subr.mxu0 0.0
    %5766 = vmatpush1.msra.mxu0 0.0
    %5767 = vmatprep.subr.mxu0 0.0
    %5768 = vmatpush1.msra.mxu0 0.0
    %5769 = vmatprep.subr.mxu0 0.0
    %5770 = vmatpush1.msra.mxu0 0.0
    %5771 = vmatprep.subr.mxu0 0.0
    %5772 = vmatpush1.msra.mxu0 0.0
    %5773 = vmatprep.subr.mxu0 0.0
    %5774 = vmatpush1.msra.mxu0 0.0
    %5775 = vmatprep.subr.mxu0 0.0
    %5776 = vmatpush1.msra.mxu0 0.0
    %5777 = vmatprep.subr.mxu0 0.0
    %5778 = vmatpush1.msra.mxu0 0.0
    %5779 = vmatprep.subr.mxu0 0.0
    %5780 = vmatpush1.msra.mxu0 0.0
    %5781 = vmatprep.subr.mxu0 0.0
    %5782 = vmatpush1.msra.mxu0 0.0
    %5783 = vmatprep.subr.mxu0 0.0
    %5784 = vmatpush1.msra.mxu0 0.0
    %5785 = vmatprep.subr.mxu0 0.0
    %5786 = vmatpush1.msra.mxu0 0.0
    %5787 = vmatprep.subr.mxu0 0.0
    %5788 = vmatpush1.msra.mxu0 0.0
    %5789 = vmatprep.subr.mxu0 0.0
    %5790 = vmatpush1.msra.mxu0 0.0
    %5791 = vmatprep.subr.mxu0 0.0
    %5792 = vmatpush1.msra.mxu0 0.0
    %5793 = vmatprep.subr.mxu0 0.0
    %5794 = vmatpush1.msra.mxu0 0.0
    %5795 = vmatprep.subr.mxu0 0.0
    %5796 = vmatpush1.msra.mxu0 0.0
    %5797 = vmatprep.subr.mxu0 0.0
    %5798 = vmatpush1.msra.mxu0 0.0
    %5799 = vmatprep.subr.mxu0 0.0
    %5800 = vmatpush1.msra.mxu0 0.0
    %5801 = vmatprep.subr.mxu0 0.0
    %5802 = vmatpush1.msra.mxu0 0.0
    %5803 = vmatprep.subr.mxu0 0.0
    %5804 = vmatpush1.msra.mxu0 0.0
    %5805 = vmatprep.subr.mxu0 0.0
    %5806 = vmatpush1.msra.mxu0 0.0
    %5807 = vmatprep.subr.mxu0 0.0
    %5808 = vmatpush1.msra.mxu0 0.0
    %5809 = vmatprep.mubr.f32.mxu0 0.0
    %5810 = vmatmul.mubr.f32.gmra.mrb[0].mxu0 %v5743
    %v5811 = vpop.f32.mrb[0].mxu0
    %v5812 = vadd.f32 0.0, %v5811
    %v5813 = vpop.f32.mrb[0].mxu0
    %5814 = vdwg.mxu0
    %5816 = vrot.lane.b32.xlu0 %v5739, 56
    %v5817 = vpop.permute.xlu0 %5816
    %v5818 = vsel %vm530, %v5817, 0
    %5820 = vmatprep.subr.mxu0 0.0
    %5821 = vmatpush1.msra.mxu0 %v4037
    %5822 = vmatprep.subr.mxu0 0.0
    %5823 = vmatpush1.msra.mxu0 %v4038
    %5824 = vmatprep.subr.mxu0 0.0
    %5825 = vmatpush1.msra.mxu0 %v4039
    %5826 = vmatprep.subr.mxu0 0.0
    %5827 = vmatpush1.msra.mxu0 0.0
    %5828 = vmatprep.subr.mxu0 0.0
    %5829 = vmatpush1.msra.mxu0 0.0
    %5830 = vmatprep.subr.mxu0 0.0
    %5831 = vmatpush1.msra.mxu0 0.0
    %5832 = vmatprep.subr.mxu0 0.0
    %5833 = vmatpush1.msra.mxu0 0.0
    %5834 = vmatprep.subr.mxu0 0.0
    %5835 = vmatpush1.msra.mxu0 0.0
    %5836 = vmatprep.subr.mxu0 0.0
    %5837 = vmatpush1.msra.mxu0 0.0
    %5838 = vmatprep.subr.mxu0 0.0
    %5839 = vmatpush1.msra.mxu0 0.0
    %5840 = vmatprep.subr.mxu0 0.0
    %5841 = vmatpush1.msra.mxu0 0.0
    %5842 = vmatprep.subr.mxu0 0.0
    %5843 = vmatpush1.msra.mxu0 0.0
    %5844 = vmatprep.subr.mxu0 0.0
    %5845 = vmatpush1.msra.mxu0 0.0
    %5846 = vmatprep.subr.mxu0 0.0
    %5847 = vmatpush1.msra.mxu0 0.0
    %5848 = vmatprep.subr.mxu0 0.0
    %5849 = vmatpush1.msra.mxu0 0.0
    %5850 = vmatprep.subr.mxu0 0.0
    %5851 = vmatpush1.msra.mxu0 0.0
    %5852 = vmatprep.subr.mxu0 0.0
    %5853 = vmatpush1.msra.mxu0 0.0
    %5854 = vmatprep.subr.mxu0 0.0
    %5855 = vmatpush1.msra.mxu0 0.0
    %5856 = vmatprep.subr.mxu0 0.0
    %5857 = vmatpush1.msra.mxu0 0.0
    %5858 = vmatprep.subr.mxu0 0.0
    %5859 = vmatpush1.msra.mxu0 0.0
    %5860 = vmatprep.subr.mxu0 0.0
    %5861 = vmatpush1.msra.mxu0 0.0
    %5862 = vmatprep.subr.mxu0 0.0
    %5863 = vmatpush1.msra.mxu0 0.0
    %5864 = vmatprep.subr.mxu0 0.0
    %5865 = vmatpush1.msra.mxu0 0.0
    %5866 = vmatprep.subr.mxu0 0.0
    %5867 = vmatpush1.msra.mxu0 0.0
    %5868 = vmatprep.subr.mxu0 0.0
    %5869 = vmatpush1.msra.mxu0 0.0
    %5870 = vmatprep.subr.mxu0 0.0
    %5871 = vmatpush1.msra.mxu0 0.0
    %5872 = vmatprep.subr.mxu0 0.0
    %5873 = vmatpush1.msra.mxu0 0.0
    %5874 = vmatprep.subr.mxu0 0.0
    %5875 = vmatpush1.msra.mxu0 0.0
    %5876 = vmatprep.subr.mxu0 0.0
    %5877 = vmatpush1.msra.mxu0 0.0
    %5878 = vmatprep.subr.mxu0 0.0
    %5879 = vmatpush1.msra.mxu0 0.0
    %5880 = vmatprep.subr.mxu0 0.0
    %5881 = vmatpush1.msra.mxu0 0.0
    %5882 = vmatprep.subr.mxu0 0.0
    %5883 = vmatpush1.msra.mxu0 0.0
    %5884 = vmatprep.mubr.f32.mxu0 0.0
    %5885 = vmatmul.mubr.f32.gmra.mrb[0].mxu0 %v5818
    %v5886 = vpop.f32.mrb[0].mxu0
    %v5887 = vadd.f32 %v5812, %v5886
    %v5888 = vpop.f32.mrb[0].mxu0
    %5889 = vdwg.mxu0
    %v5890 = vadd.f32 %v5887, %v4491
    %v5891 = vxor.u32 %v5890, 2147483648
    %v5892 = vmul.f32 %v5891, 1.442695
    %v5893 = vpow.pop %v5892
    %v5894 = vadd.f32 %v5893, 1.0
    %v5895 = vrcp.pop %v5894
    %v5896 = vmul.f32 1.0, %v5895
    %v5897 = vtanh.pop %v5890
    %v5898 = vmul.f32 %v5896, %v5447
    %5900 = vrot.lane.b32.xlu0 %v5897, 64
    %v5901 = vpop.permute.xlu0 %5900
    %v5903 = vmul.f32 %v5896, %v5901
    %5905 = vrot.lane.b32.xlu0 %v5903, 32
    %v5906 = vpop.permute.xlu0 %5905
    %v5908 = vadd.f32 %v5898, %v5906
    %v5909 = vtanh.pop %v5908
    %5911 = vrot.lane.b32.xlu0 %v5909, 64
    %v5912 = vpop.permute.xlu0 %5911
    %v5914 = vmul.f32 %v5896, %v5912
    %v5915 = vmul.f32 %v5914, %v4524
    %5917 = vrot.lane.b32.xlu0 %v5915, 32
    %v5918 = vpop.permute.xlu0 %5917
    %v5920 = vsel %vm714, %v5918, 0.0
    %5921 = vadd.xlane.f32.xlu0 %v5920
    %v5922 = vpop.xlane.xlu0 %5921
    %v5923 = vadd.f32 %v5922, %v4538
    %vm5924 = vcmp.ge.f32.partialorder %v5923, 0.0
    %v5925 = vmul.f32 %v5923, 0.01
    %v5926 = vsel %vm5924, %v5923, %v5925
    %s5927 = scalar_lea.vmem %s59, 24
    %5928 = vst.msk [vmem:[%s5927] sm:$0xff] %vm4544, %v5926
    %5930 = vset.pattern.permute.xlu0 0
    %5931 = vperm.xlu0 %5930, %v5926
    %v5932 = vpop.permute.xlu0 %5931
    %v5934 = vmul.f32 %v5932, %v4056
    %5935 = vmatprep.subr.mxu0 0.0
    %5936 = vmatpush1.msra.mxu0 %v4028
    %5937 = vmatprep.subr.mxu0 0.0
    %5938 = vmatpush1.msra.mxu0 %v4029
    %5939 = vmatprep.subr.mxu0 0.0
    %5940 = vmatpush1.msra.mxu0 0.0
    %5941 = vmatprep.subr.mxu0 0.0
    %5942 = vmatpush1.msra.mxu0 0.0
    %5943 = vmatprep.subr.mxu0 0.0
    %5944 = vmatpush1.msra.mxu0 0.0
    %5945 = vmatprep.subr.mxu0 0.0
    %5946 = vmatpush1.msra.mxu0 0.0
    %5947 = vmatprep.subr.mxu0 0.0
    %5948 = vmatpush1.msra.mxu0 0.0
    %5949 = vmatprep.subr.mxu0 0.0
    %5950 = vmatpush1.msra.mxu0 0.0
    %5951 = vmatprep.subr.mxu0 0.0
    %5952 = vmatpush1.msra.mxu0 0.0
    %5953 = vmatprep.subr.mxu0 0.0
    %5954 = vmatpush1.msra.mxu0 0.0
    %5955 = vmatprep.subr.mxu0 0.0
    %5956 = vmatpush1.msra.mxu0 0.0
    %5957 = vmatprep.subr.mxu0 0.0
    %5958 = vmatpush1.msra.mxu0 0.0
    %5959 = vmatprep.subr.mxu0 0.0
    %5960 = vmatpush1.msra.mxu0 0.0
    %5961 = vmatprep.subr.mxu0 0.0
    %5962 = vmatpush1.msra.mxu0 0.0
    %5963 = vmatprep.subr.mxu0 0.0
    %5964 = vmatpush1.msra.mxu0 0.0
    %5965 = vmatprep.subr.mxu0 0.0
    %5966 = vmatpush1.msra.mxu0 0.0
    %5967 = vmatprep.subr.mxu0 0.0
    %5968 = vmatpush1.msra.mxu0 0.0
    %5969 = vmatprep.subr.mxu0 0.0
    %5970 = vmatpush1.msra.mxu0 0.0
    %5971 = vmatprep.subr.mxu0 0.0
    %5972 = vmatpush1.msra.mxu0 0.0
    %5973 = vmatprep.subr.mxu0 0.0
    %5974 = vmatpush1.msra.mxu0 0.0
    %5975 = vmatprep.subr.mxu0 0.0
    %5976 = vmatpush1.msra.mxu0 0.0
    %5977 = vmatprep.subr.mxu0 0.0
    %5978 = vmatpush1.msra.mxu0 0.0
    %5979 = vmatprep.subr.mxu0 0.0
    %5980 = vmatpush1.msra.mxu0 0.0
    %5981 = vmatprep.subr.mxu0 0.0
    %5982 = vmatpush1.msra.mxu0 0.0
    %5983 = vmatprep.subr.mxu0 0.0
    %5984 = vmatpush1.msra.mxu0 0.0
    %5985 = vmatprep.subr.mxu0 0.0
    %5986 = vmatpush1.msra.mxu0 0.0
    %5987 = vmatprep.subr.mxu0 0.0
    %5988 = vmatpush1.msra.mxu0 0.0
    %5989 = vmatprep.subr.mxu0 0.0
    %5990 = vmatpush1.msra.mxu0 0.0
    %5991 = vmatprep.subr.mxu0 0.0
    %5992 = vmatpush1.msra.mxu0 0.0
    %5993 = vmatprep.subr.mxu0 0.0
    %5994 = vmatpush1.msra.mxu0 0.0
    %5995 = vmatprep.subr.mxu0 0.0
    %5996 = vmatpush1.msra.mxu0 0.0
    %5997 = vmatprep.subr.mxu0 0.0
    %5998 = vmatpush1.msra.mxu0 0.0
    %5999 = vmatprep.mubr.f32.mxu0 0.0
    %6000 = vmatmul.mubr.f32.gmra.mrb[0].mxu0 %v5643
    %v6001 = vpop.f32.mrb[0].mxu0
    %v6002 = vadd.f32 0.0, %v6001
    %v6003 = vpop.f32.mrb[0].mxu0
    %6004 = vdwg.mxu0
    %v6005 = vadd.f32 %v5934, %v6002
    %v6006 = vadd.f32 %v6005, %v4134
    %v6007 = vxor.u32 %v6006, 2147483648
    %v6008 = vmul.f32 %v6007, 1.442695
    %v6009 = vpow.pop %v6008
    %v6010 = vadd.f32 %v6009, 1.0
    %v6011 = vrcp.pop %v6010
    %v6012 = vmul.f32 1.0, %v6011
    %v6013 = vtanh.pop %v6006
    %v6014 = vmul.f32 %v6012, %v5563
    %6016 = vrot.lane.b32.xlu0 %v6013, 96
    %v6017 = vpop.permute.xlu0 %6016
    %v6019 = vmul.f32 %v6012, %v6017
    %6021 = vrot.lane.b32.xlu0 %v6019, 16
    %v6022 = vpop.permute.xlu0 %6021
    %v6024 = vadd.f32 %v6014, %v6022
    %v6025 = vtanh.pop %v6024
    %6027 = vrot.lane.b32.xlu0 %v6025, 32
    %v6028 = vpop.permute.xlu0 %6027
    %v6030 = vmul.f32 %v6012, %v6028
    %6031 = vmatprep.subr.mxu0 0.0
    %6032 = vmatpush1.msra.mxu0 %v4033
    %6033 = vmatprep.subr.mxu0 0.0
    %6034 = vmatpush1.msra.mxu0 %v4034
    %6035 = vmatprep.subr.mxu0 0.0
    %6036 = vmatpush1.msra.mxu0 %v4035
    %6037 = vmatprep.subr.mxu0 0.0
    %6038 = vmatpush1.msra.mxu0 0.0
    %6039 = vmatprep.subr.mxu0 0.0
    %6040 = vmatpush1.msra.mxu0 0.0
    %6041 = vmatprep.subr.mxu0 0.0
    %6042 = vmatpush1.msra.mxu0 0.0
    %6043 = vmatprep.subr.mxu0 0.0
    %6044 = vmatpush1.msra.mxu0 0.0
    %6045 = vmatprep.subr.mxu0 0.0
    %6046 = vmatpush1.msra.mxu0 0.0
    %6047 = vmatprep.subr.mxu0 0.0
    %6048 = vmatpush1.msra.mxu0 0.0
    %6049 = vmatprep.subr.mxu0 0.0
    %6050 = vmatpush1.msra.mxu0 0.0
    %6051 = vmatprep.subr.mxu0 0.0
    %6052 = vmatpush1.msra.mxu0 0.0
    %6053 = vmatprep.subr.mxu0 0.0
    %6054 = vmatpush1.msra.mxu0 0.0
    %6055 = vmatprep.subr.mxu0 0.0
    %6056 = vmatpush1.msra.mxu0 0.0
    %6057 = vmatprep.subr.mxu0 0.0
    %6058 = vmatpush1.msra.mxu0 0.0
    %6059 = vmatprep.subr.mxu0 0.0
    %6060 = vmatpush1.msra.mxu0 0.0
    %6061 = vmatprep.subr.mxu0 0.0
    %6062 = vmatpush1.msra.mxu0 0.0
    %6063 = vmatprep.subr.mxu0 0.0
    %6064 = vmatpush1.msra.mxu0 0.0
    %6065 = vmatprep.subr.mxu0 0.0
    %6066 = vmatpush1.msra.mxu0 0.0
    %6067 = vmatprep.subr.mxu0 0.0
    %6068 = vmatpush1.msra.mxu0 0.0
    %6069 = vmatprep.subr.mxu0 0.0
    %6070 = vmatpush1.msra.mxu0 0.0
    %6071 = vmatprep.subr.mxu0 0.0
    %6072 = vmatpush1.msra.mxu0 0.0
    %6073 = vmatprep.subr.mxu0 0.0
    %6074 = vmatpush1.msra.mxu0 0.0
    %6075 = vmatprep.subr.mxu0 0.0
    %6076 = vmatpush1.msra.mxu0 0.0
    %6077 = vmatprep.subr.mxu0 0.0
    %6078 = vmatpush1.msra.mxu0 0.0
    %6079 = vmatprep.subr.mxu0 0.0
    %6080 = vmatpush1.msra.mxu0 0.0
    %6081 = vmatprep.subr.mxu0 0.0
    %6082 = vmatpush1.msra.mxu0 0.0
    %6083 = vmatprep.subr.mxu0 0.0
    %6084 = vmatpush1.msra.mxu0 0.0
    %6085 = vmatprep.subr.mxu0 0.0
    %6086 = vmatpush1.msra.mxu0 0.0
    %6087 = vmatprep.subr.mxu0 0.0
    %6088 = vmatpush1.msra.mxu0 0.0
    %6089 = vmatprep.subr.mxu0 0.0
    %6090 = vmatpush1.msra.mxu0 0.0
    %6091 = vmatprep.subr.mxu0 0.0
    %6092 = vmatpush1.msra.mxu0 0.0
    %6093 = vmatprep.subr.mxu0 0.0
    %6094 = vmatpush1.msra.mxu0 0.0
    %6095 = vmatprep.mubr.f32.mxu0 0.0
    %6096 = vmatmul.mubr.f32.gmra.mrb[0].mxu0 %v5818
    %v6097 = vpop.f32.mrb[0].mxu0
    %v6098 = vadd.f32 0.0, %v6097
    %v6099 = vpop.f32.mrb[0].mxu0
    %6100 = vdwg.mxu0
    %6102 = vrot.lane.b32.xlu0 %v6030, 80
    %v6103 = vpop.permute.xlu0 %6102
    %v6104 = vsel %vm258, %v6103, 0
    %6106 = vmatprep.subr.mxu0 0.0
    %6107 = vmatpush1.msra.mxu0 %v4031
    %6108 = vmatprep.subr.mxu0 0.0
    %6109 = vmatpush1.msra.mxu0 %v4032
    %6110 = vmatprep.subr.mxu0 0.0
    %6111 = vmatpush1.msra.mxu0 0.0
    %6112 = vmatprep.subr.mxu0 0.0
    %6113 = vmatpush1.msra.mxu0 0.0
    %6114 = vmatprep.subr.mxu0 0.0
    %6115 = vmatpush1.msra.mxu0 0.0
    %6116 = vmatprep.subr.mxu0 0.0
    %6117 = vmatpush1.msra.mxu0 0.0
    %6118 = vmatprep.subr.mxu0 0.0
    %6119 = vmatpush1.msra.mxu0 0.0
    %6120 = vmatprep.subr.mxu0 0.0
    %6121 = vmatpush1.msra.mxu0 0.0
    %6122 = vmatprep.subr.mxu0 0.0
    %6123 = vmatpush1.msra.mxu0 0.0
    %6124 = vmatprep.subr.mxu0 0.0
    %6125 = vmatpush1.msra.mxu0 0.0
    %6126 = vmatprep.subr.mxu0 0.0
    %6127 = vmatpush1.msra.mxu0 0.0
    %6128 = vmatprep.subr.mxu0 0.0
    %6129 = vmatpush1.msra.mxu0 0.0
    %6130 = vmatprep.subr.mxu0 0.0
    %6131 = vmatpush1.msra.mxu0 0.0
    %6132 = vmatprep.subr.mxu0 0.0
    %6133 = vmatpush1.msra.mxu0 0.0
    %6134 = vmatprep.subr.mxu0 0.0
    %6135 = vmatpush1.msra.mxu0 0.0
    %6136 = vmatprep.subr.mxu0 0.0
    %6137 = vmatpush1.msra.mxu0 0.0
    %6138 = vmatprep.subr.mxu0 0.0
    %6139 = vmatpush1.msra.mxu0 0.0
    %6140 = vmatprep.subr.mxu0 0.0
    %6141 = vmatpush1.msra.mxu0 0.0
    %6142 = vmatprep.subr.mxu0 0.0
    %6143 = vmatpush1.msra.mxu0 0.0
    %6144 = vmatprep.subr.mxu0 0.0
    %6145 = vmatpush1.msra.mxu0 0.0
    %6146 = vmatprep.subr.mxu0 0.0
    %6147 = vmatpush1.msra.mxu0 0.0
    %6148 = vmatprep.subr.mxu0 0.0
    %6149 = vmatpush1.msra.mxu0 0.0
    %6150 = vmatprep.subr.mxu0 0.0
    %6151 = vmatpush1.msra.mxu0 0.0
    %6152 = vmatprep.subr.mxu0 0.0
    %6153 = vmatpush1.msra.mxu0 0.0
    %6154 = vmatprep.subr.mxu0 0.0
    %6155 = vmatpush1.msra.mxu0 0.0
    %6156 = vmatprep.subr.mxu0 0.0
    %6157 = vmatpush1.msra.mxu0 0.0
    %6158 = vmatprep.subr.mxu0 0.0
    %6159 = vmatpush1.msra.mxu0 0.0
    %6160 = vmatprep.subr.mxu0 0.0
    %6161 = vmatpush1.msra.mxu0 0.0
    %6162 = vmatprep.subr.mxu0 0.0
    %6163 = vmatpush1.msra.mxu0 0.0
    %6164 = vmatprep.subr.mxu0 0.0
    %6165 = vmatpush1.msra.mxu0 0.0
    %6166 = vmatprep.subr.mxu0 0.0
    %6167 = vmatpush1.msra.mxu0 0.0
    %6168 = vmatprep.subr.mxu0 0.0
    %6169 = vmatpush1.msra.mxu0 0.0
    %6170 = vmatprep.mubr.f32.mxu0 0.0
    %6171 = vmatmul.mubr.f32.gmra.mrb[0].mxu0 %v6104
    %v6172 = vpop.f32.mrb[0].mxu0
    %v6173 = vadd.f32 %v6098, %v6172
    %v6174 = vpop.f32.mrb[0].mxu0
    %6175 = vdwg.mxu0
    %v6176 = vadd.f32 %v6173, %v4310
    %v6177 = vxor.u32 %v6176, 2147483648
    %v6178 = vmul.f32 %v6177, 1.442695
    %v6179 = vpow.pop %v6178
    %v6180 = vadd.f32 %v6179, 1.0
    %v6181 = vrcp.pop %v6180
    %v6182 = vmul.f32 1.0, %v6181
    %v6183 = vtanh.pop %v6176
    %v6184 = vmul.f32 %v6182, %v5733
    %6186 = vrot.lane.b32.xlu0 %v6183, 80
    %v6187 = vpop.permute.xlu0 %6186
    %v6189 = vmul.f32 %v6182, %v6187
    %6191 = vrot.lane.b32.xlu0 %v6189, 24
    %v6192 = vpop.permute.xlu0 %6191
    %v6194 = vadd.f32 %v6184, %v6192
    %v6195 = vtanh.pop %v6194
    %6197 = vrot.lane.b32.xlu0 %v6195, 48
    %v6198 = vpop.permute.xlu0 %6197
    %v6200 = vmul.f32 %v6182, %v6198
    %6202 = vrot.lane.b32.xlu0 %v5914, 32
    %v6203 = vpop.permute.xlu0 %6202
    %v6204 = vsel %vm714, %v6203, 0
    %6206 = vmatprep.subr.mxu0 0.0
    %6207 = vmatpush1.msra.mxu0 %v4040
    %6208 = vmatprep.subr.mxu0 0.0
    %6209 = vmatpush1.msra.mxu0 %v4041
    %6210 = vmatprep.subr.mxu0 0.0
    %6211 = vmatpush1.msra.mxu0 %v4042
    %6212 = vmatprep.subr.mxu0 0.0
    %6213 = vmatpush1.msra.mxu0 %v4043
    %6214 = vmatprep.subr.mxu0 0.0
    %6215 = vmatpush1.msra.mxu0 0.0
    %6216 = vmatprep.subr.mxu0 0.0
    %6217 = vmatpush1.msra.mxu0 0.0
    %6218 = vmatprep.subr.mxu0 0.0
    %6219 = vmatpush1.msra.mxu0 0.0
    %6220 = vmatprep.subr.mxu0 0.0
    %6221 = vmatpush1.msra.mxu0 0.0
    %6222 = vmatprep.subr.mxu0 0.0
    %6223 = vmatpush1.msra.mxu0 0.0
    %6224 = vmatprep.subr.mxu0 0.0
    %6225 = vmatpush1.msra.mxu0 0.0
    %6226 = vmatprep.subr.mxu0 0.0
    %6227 = vmatpush1.msra.mxu0 0.0
    %6228 = vmatprep.subr.mxu0 0.0
    %6229 = vmatpush1.msra.mxu0 0.0
    %6230 = vmatprep.subr.mxu0 0.0
    %6231 = vmatpush1.msra.mxu0 0.0
    %6232 = vmatprep.subr.mxu0 0.0
    %6233 = vmatpush1.msra.mxu0 0.0
    %6234 = vmatprep.subr.mxu0 0.0
    %6235 = vmatpush1.msra.mxu0 0.0
    %6236 = vmatprep.subr.mxu0 0.0
    %6237 = vmatpush1.msra.mxu0 0.0
    %6238 = vmatprep.subr.mxu0 0.0
    %6239 = vmatpush1.msra.mxu0 0.0
    %6240 = vmatprep.subr.mxu0 0.0
    %6241 = vmatpush1.msra.mxu0 0.0
    %6242 = vmatprep.subr.mxu0 0.0
    %6243 = vmatpush1.msra.mxu0 0.0
    %6244 = vmatprep.subr.mxu0 0.0
    %6245 = vmatpush1.msra.mxu0 0.0
    %6246 = vmatprep.subr.mxu0 0.0
    %6247 = vmatpush1.msra.mxu0 0.0
    %6248 = vmatprep.subr.mxu0 0.0
    %6249 = vmatpush1.msra.mxu0 0.0
    %6250 = vmatprep.subr.mxu0 0.0
    %6251 = vmatpush1.msra.mxu0 0.0
    %6252 = vmatprep.subr.mxu0 0.0
    %6253 = vmatpush1.msra.mxu0 0.0
    %6254 = vmatprep.subr.mxu0 0.0
    %6255 = vmatpush1.msra.mxu0 0.0
    %6256 = vmatprep.subr.mxu0 0.0
    %6257 = vmatpush1.msra.mxu0 0.0
    %6258 = vmatprep.subr.mxu0 0.0
    %6259 = vmatpush1.msra.mxu0 0.0
    %6260 = vmatprep.subr.mxu0 0.0
    %6261 = vmatpush1.msra.mxu0 0.0
    %6262 = vmatprep.subr.mxu0 0.0
    %6263 = vmatpush1.msra.mxu0 0.0
    %6264 = vmatprep.subr.mxu0 0.0
    %6265 = vmatpush1.msra.mxu0 0.0
    %6266 = vmatprep.subr.mxu0 0.0
    %6267 = vmatpush1.msra.mxu0 0.0
    %6268 = vmatprep.subr.mxu0 0.0
    %6269 = vmatpush1.msra.mxu0 0.0
    %6270 = vmatprep.mubr.f32.mxu0 0.0
    %6271 = vmatmul.mubr.f32.gmra.mrb[0].mxu0 %v6204
    %v6272 = vpop.f32.mrb[0].mxu0
    %v6273 = vadd.f32 0.0, %v6272
    %v6274 = vpop.f32.mrb[0].mxu0
    %6275 = vdwg.mxu0
    %6277 = vrot.lane.b32.xlu0 %v6200, 56
    %v6278 = vpop.permute.xlu0 %6277
    %v6279 = vsel %vm530, %v6278, 0
    %6281 = vmatprep.subr.mxu0 0.0
    %6282 = vmatpush1.msra.mxu0 %v4037
    %6283 = vmatprep.subr.mxu0 0.0
    %6284 = vmatpush1.msra.mxu0 %v4038
    %6285 = vmatprep.subr.mxu0 0.0
    %6286 = vmatpush1.msra.mxu0 %v4039
    %6287 = vmatprep.subr.mxu0 0.0
    %6288 = vmatpush1.msra.mxu0 0.0
    %6289 = vmatprep.subr.mxu0 0.0
    %6290 = vmatpush1.msra.mxu0 0.0
    %6291 = vmatprep.subr.mxu0 0.0
    %6292 = vmatpush1.msra.mxu0 0.0
    %6293 = vmatprep.subr.mxu0 0.0
    %6294 = vmatpush1.msra.mxu0 0.0
    %6295 = vmatprep.subr.mxu0 0.0
    %6296 = vmatpush1.msra.mxu0 0.0
    %6297 = vmatprep.subr.mxu0 0.0
    %6298 = vmatpush1.msra.mxu0 0.0
    %6299 = vmatprep.subr.mxu0 0.0
    %6300 = vmatpush1.msra.mxu0 0.0
    %6301 = vmatprep.subr.mxu0 0.0
    %6302 = vmatpush1.msra.mxu0 0.0
    %6303 = vmatprep.subr.mxu0 0.0
    %6304 = vmatpush1.msra.mxu0 0.0
    %6305 = vmatprep.subr.mxu0 0.0
    %6306 = vmatpush1.msra.mxu0 0.0
    %6307 = vmatprep.subr.mxu0 0.0
    %6308 = vmatpush1.msra.mxu0 0.0
    %6309 = vmatprep.subr.mxu0 0.0
    %6310 = vmatpush1.msra.mxu0 0.0
    %6311 = vmatprep.subr.mxu0 0.0
    %6312 = vmatpush1.msra.mxu0 0.0
    %6313 = vmatprep.subr.mxu0 0.0
    %6314 = vmatpush1.msra.mxu0 0.0
    %6315 = vmatprep.subr.mxu0 0.0
    %6316 = vmatpush1.msra.mxu0 0.0
    %6317 = vmatprep.subr.mxu0 0.0
    %6318 = vmatpush1.msra.mxu0 0.0
    %6319 = vmatprep.subr.mxu0 0.0
    %6320 = vmatpush1.msra.mxu0 0.0
    %6321 = vmatprep.subr.mxu0 0.0
    %6322 = vmatpush1.msra.mxu0 0.0
    %6323 = vmatprep.subr.mxu0 0.0
    %6324 = vmatpush1.msra.mxu0 0.0
    %6325 = vmatprep.subr.mxu0 0.0
    %6326 = vmatpush1.msra.mxu0 0.0
    %6327 = vmatprep.subr.mxu0 0.0
    %6328 = vmatpush1.msra.mxu0 0.0
    %6329 = vmatprep.subr.mxu0 0.0
    %6330 = vmatpush1.msra.mxu0 0.0
    %6331 = vmatprep.subr.mxu0 0.0
    %6332 = vmatpush1.msra.mxu0 0.0
    %6333 = vmatprep.subr.mxu0 0.0
    %6334 = vmatpush1.msra.mxu0 0.0
    %6335 = vmatprep.subr.mxu0 0.0
    %6336 = vmatpush1.msra.mxu0 0.0
    %6337 = vmatprep.subr.mxu0 0.0
    %6338 = vmatpush1.msra.mxu0 0.0
    %6339 = vmatprep.subr.mxu0 0.0
    %6340 = vmatpush1.msra.mxu0 0.0
    %6341 = vmatprep.subr.mxu0 0.0
    %6342 = vmatpush1.msra.mxu0 0.0
    %6343 = vmatprep.subr.mxu0 0.0
    %6344 = vmatpush1.msra.mxu0 0.0
    %6345 = vmatprep.mubr.f32.mxu0 0.0
    %6346 = vmatmul.mubr.f32.gmra.mrb[0].mxu0 %v6279
    %v6347 = vpop.f32.mrb[0].mxu0
    %v6348 = vadd.f32 %v6273, %v6347
    %v6349 = vpop.f32.mrb[0].mxu0
    %6350 = vdwg.mxu0
    %v6351 = vadd.f32 %v6348, %v4491
    %v6352 = vxor.u32 %v6351, 2147483648
    %v6353 = vmul.f32 %v6352, 1.442695
    %v6354 = vpow.pop %v6353
    %v6355 = vadd.f32 %v6354, 1.0
    %v6356 = vrcp.pop %v6355
    %v6357 = vmul.f32 1.0, %v6356
    %v6358 = vtanh.pop %v6351
    %v6359 = vmul.f32 %v6357, %v5908
    %6361 = vrot.lane.b32.xlu0 %v6358, 64
    %v6362 = vpop.permute.xlu0 %6361
    %v6364 = vmul.f32 %v6357, %v6362
    %6366 = vrot.lane.b32.xlu0 %v6364, 32
    %v6367 = vpop.permute.xlu0 %6366
    %v6369 = vadd.f32 %v6359, %v6367
    %v6370 = vtanh.pop %v6369
    %6372 = vrot.lane.b32.xlu0 %v6370, 64
    %v6373 = vpop.permute.xlu0 %6372
    %v6375 = vmul.f32 %v6357, %v6373
    %v6376 = vmul.f32 %v6375, %v4524
    %6378 = vrot.lane.b32.xlu0 %v6376, 32
    %v6379 = vpop.permute.xlu0 %6378
    %v6381 = vsel %vm714, %v6379, 0.0
    %6382 = vadd.xlane.f32.xlu0 %v6381
    %v6383 = vpop.xlane.xlu0 %6382
    %v6384 = vadd.f32 %v6383, %v4538
    %vm6385 = vcmp.ge.f32.partialorder %v6384, 0.0
    %v6386 = vmul.f32 %v6384, 0.01
    %v6387 = vsel %vm6385, %v6384, %v6386
    %s6388 = scalar_lea.vmem %s59, 32
    %6389 = vst.msk [vmem:[%s6388] sm:$0xff] %vm4544, %v6387
    // Predicated region
    $region158: #{seq2seq_forward.1} parent=1 // pred_check
      _
    $region159: #{seq2seq_forward.1} parent=1 // pred_check_branch
      %6391 = sbr.rel (0) target = $region161
    $region160: #{seq2seq_forward.1} parent=1 // pred_region
      _
    $region161: #{seq2seq_forward.1} parent=1 // pred_fallthru
      _
    // Predicated region
    $region162: #{seq2seq_forward.1} parent=1 // pred_check
      _
    $region163: #{seq2seq_forward.1} parent=1 // pred_check_branch
      %6393 = sbr.rel (0) target = $region165
    $region164: #{seq2seq_forward.1} parent=1 // pred_region
      _
    $region165: #{seq2seq_forward.1} parent=1 // pred_fallthru
      _
    %6394 = vsyncpa [#allocation6], 1
    %6395 = vsyncpa [#allocation8], 1
    %6396 = vsyncpa [#allocation11], 1
    %6397 = vsyncpa [#allocation14], 1
    %6398 = vsyncpa [#allocation17], 1
    %6399 = vsyncpa [#allocation20], 1

</llo_original>
